<compile_context>
chip_gen: v6e
topology: v6e:2x2x1
jax: 0.10.0
libtpu: 0.0.40
codegen_flags: <defaults>
</compile_context>

<pallas_src>
import functools

import jax
import jax.numpy as jnp
from jax.experimental import pallas as pl
from jax.experimental.pallas import tpu as pltpu

SEED_REGION_INDEX = [
    [3, 0, 1, 2, 4], [7, 8, 9, 10, 11], [5, 6], [13, 12],
    [14, 15, 23, 24, 32, 33], [22, 21, 31, 30, 40, 39],
    [16, 17, 18, 19, 20], [25, 26, 27, 28, 29], [34, 35, 36, 37, 38],
    [41, 42], [49, 48], [43, 44, 45, 46, 47], [50, 51, 57],
    [56, 55, 61], [52, 53, 54], [58, 59, 60],
]


def _round_up(a, m):
    return -(-a // m) * m


def _group_regions(region_index, max_group=4):
    """Group regions with equal electrode count into groups of <= max_group."""
    by_len = {}
    for r, idx in enumerate(region_index):
        by_len.setdefault(len(idx), []).append(r)
    groups = []
    for length in sorted(by_len):
        rs = by_len[length]
        for i in range(0, len(rs), max_group):
            groups.append((tuple(rs[i:i + max_group]), length))
    return tuple(groups)


def _region_bilstm_kernel(*refs, hidden, feat, groups, regions):
    """All regions' BiLSTMs (last-timestep output) for one batch tile.

    refs = (x_ref, wb_ref, wx_g0, wh_g0, ..., wx_gG, wh_gG, out_ref)
      x_ref : (TN, 62*F + R*F) group/time/region-interleaved electrode feats,
              plus a trailing slab with each region's LAST electrode.
      wb_ref: (R*F+1, 3*R*H)   backward-direction weights, gates [i|o|g].
      wx_g  : (k*F+1, 4*k*H)   group input projection + bias, gates [i|f|o|g].
      wh_g  : (k*H,   4*k*H)   group block-diagonal recurrent weights.
      out   : (TN, R*2H)       [h_fwd_r | h_bwd_r] per region, region order.
    """
    x_ref, wb_ref = refs[0], refs[1]
    out_ref = refs[-1]
    gw_refs = refs[2:-1]

    H, F, R = hidden, feat, regions
    TN = x_ref.shape[0]
    f32 = jnp.float32
    ones = jnp.ones((TN, 1), f32)                       # bias column (hoisted)

    # ---- backward direction: each region consumes only its LAST electrode
    #      from a zero state, so all 16 regions collapse into ONE wide
    #      block-structured matmul (fully parallel, off the critical path).
    e_lanes = sum(length * len(ridx) for ridx, length in groups) * F
    xb = x_ref[:, e_lanes:]                             # (TN, R*F)
    gb = jnp.dot(jnp.concatenate([xb, ones], axis=-1), wb_ref[...],
                 preferred_element_type=f32)            # (TN, 3*R*H) [i|o|g]
    sb = jax.nn.sigmoid(gb[:, :2 * R * H])              # one wide sigmoid slab
    h_bwd = sb[:, R * H:] * jnp.tanh(sb[:, :R * H] *
                                     jnp.tanh(gb[:, 2 * R * H:]))  # (TN, R*H)

    # ---- forward recurrences: equal-length regions run block-diagonally.
    h_fwd = [None] * R
    off = 0
    for gi, (ridx, length) in enumerate(groups):
        k = len(ridx)
        wx = gw_refs[2 * gi][...]                       # (k*F+1, 4*k*H)
        wh = gw_refs[2 * gi + 1][...]                   # (k*H,   4*k*H)

        # input projections for every timestep: no serial dependence, these
        # pipeline freely under the recurrent chains of other groups.
        u = [jnp.dot(jnp.concatenate(
                 [x_ref[:, off + t * k * F: off + (t + 1) * k * F], ones],
                 axis=-1), wx, preferred_element_type=f32)
             for t in range(length)]

        h = jnp.zeros((TN, k * H), f32)
        c = jnp.zeros((TN, k * H), f32)
        for t in range(length):            # serial chain: one K=k*H push/step
            g = u[t] + jnp.dot(h, wh, preferred_element_type=f32)
            s = jax.nn.sigmoid(g[:, :3 * k * H])        # [i|f|o] one slab
            c = (s[:, k * H:2 * k * H] * c +
                 s[:, :k * H] * jnp.tanh(g[:, 3 * k * H:]))
            h = s[:, 2 * k * H:] * jnp.tanh(c)
        for j, r in enumerate(ridx):
            h_fwd[r] = h[:, j * H:(j + 1) * H]
        off += length * k * F

    # ---- assemble [h_fwd_r | h_bwd_r] in region order and store the whole
    #      (TN, R*2H) slab once -> lane-dense, unmasked.
    pieces = []
    for r in range(R):
        pieces.append(h_fwd[r])
        pieces.append(h_bwd[:, r * H:(r + 1) * H])
    out_ref[...] = jnp.concatenate(pieces, axis=-1)


def init_params(key, regions, input_size, hidden):
    """Synthetic BiLSTM parameters in PyTorch nn.LSTM layout.

    Returns (w_ih, w_hh, b_ih, b_hh) with shapes
      w_ih: (R, 2, 4H, F)   w_hh: (R, 2, 4H, H)   b_*: (R, 2, 4H)
    gate row order [i, f, g, o]; biases zero except forget gate = 1 per bias
    (matching the module's init).
    """
    # TODO(synk): the module's orthogonal/xavier init is not reproduced; synthetic
    # normal weights are used (forward math is identical for any weights).
    H, F = hidden, input_size
    k1, k2 = jax.random.split(key)
    w_ih = jax.random.normal(k1, (regions, 2, 4 * H, F), jnp.float32) * 0.2
    w_hh = jax.random.normal(k2, (regions, 2, 4 * H, H), jnp.float32) * 0.2
    b = jnp.zeros((regions, 2, 4 * H), jnp.float32)
    b = b.at[:, :, H:2 * H].set(1.0)
    return w_ih, w_hh, b, b


def _pack_group_weights(params, group, hidden, feat):
    """Block-diagonal forward weights for one equal-length region group.

    Gate columns are [i | f | o | g], region-major inside each gate block, so
    one sigmoid covers the 3*k*H [i|f|o] slab.  Rows of wx are x (region-major)
    then a bias row; rows of wh are h (region-major, block-diagonal).
    """
    w_ih, w_hh, b_ih, b_hh = params
    H, F = hidden, feat
    k = len(group)
    wx = jnp.zeros((k * F + 1, 4 * k * H), jnp.float32)
    wh = jnp.zeros((k * H, 4 * k * H), jnp.float32)
    src = (0, H, 3 * H, 2 * H)          # PyTorch rows for gates i, f, o, g
    for j, r in enumerate(group):
        bias = b_ih[r, 0] + b_hh[r, 0]
        for slot, s0 in enumerate(src):
            c0 = slot * k * H + j * H
            wx = wx.at[j * F:(j + 1) * F, c0:c0 + H].set(
                w_ih[r, 0][s0:s0 + H, :].T)
            wx = wx.at[k * F, c0:c0 + H].set(bias[s0:s0 + H])
            wh = wh.at[j * H:(j + 1) * H, c0:c0 + H].set(
                w_hh[r, 0][s0:s0 + H, :].T)
    return wx, wh


def _pack_backward_weight(params, regions, hidden, feat):
    """One block-structured weight for ALL regions' single backward step.

    Gate columns [i | o | g] (f is unused when c0 == 0); rows are each
    region's last-electrode x (region-major) plus a bias row.  h rows are
    omitted entirely because h0_bwd == 0.
    """
    w_ih, _w_hh, b_ih, b_hh = params
    H, F, R = hidden, feat, regions
    wb = jnp.zeros((R * F + 1, 3 * R * H), jnp.float32)
    src = (0, 3 * H, 2 * H)             # PyTorch rows for gates i, o, g
    for r in range(R):
        bias = b_ih[r, 1] + b_hh[r, 1]
        for slot, s0 in enumerate(src):
            c0 = slot * R * H + r * H
            wb = wb.at[r * F:(r + 1) * F, c0:c0 + H].set(
                w_ih[r, 1][s0:s0 + H, :].T)
            wb = wb.at[R * F, c0:c0 + H].set(bias[s0:s0 + H])
    return wb


def region_feature_learner(features, params, region_index, hidden):
    """features: (B, S, C, F) -> regional features (B*S, R, 2*hidden)."""
    B, S, C, F = features.shape
    N = B * S
    H = hidden
    R = len(region_index)
    groups = _group_regions(region_index)

    # One gather: group-major / timestep-major / region-in-group electrode
    # order, plus a trailing slab with each region's LAST electrode (backward).
    order = [region_index[r][t]
             for ridx, length in groups for t in range(length) for r in ridx]
    order += [region_index[r][-1] for r in range(R)]
    flat_idx = jnp.asarray(order, jnp.int32)

    x = features.reshape(N, C, F).astype(jnp.float32)
    x_flat = jnp.take(x, flat_idx, axis=1).reshape(N, len(order) * F)

    # Adaptive batch tiling: aim for <=256-row tiles, keep >=2 programs when
    # there is enough work (v7x has 2 TensorCores), never pad a tiny N to 128.
    n8 = _round_up(N, 8)
    num_tiles = max(1, -(-n8 // 256))
    if n8 > 8 and num_tiles < 2:
        num_tiles = 2
    tn = _round_up(-(-n8 // num_tiles), 8)
    n_pad = tn * num_tiles
    if n_pad != N:
        x_flat = jnp.pad(x_flat, ((0, n_pad - N), (0, 0)))

    wb = _pack_backward_weight(params, R, H, F)
    gw = []
    for ridx, _length in groups:
        gw.extend(_pack_group_weights(params, ridx, H, F))

    kernel = functools.partial(_region_bilstm_kernel, hidden=H, feat=F,
                               groups=groups, regions=R)

    # weights: constant block index -> fetched once, VMEM-resident
    in_specs = [pl.BlockSpec((tn, x_flat.shape[1]), lambda n: (n, 0)),
                pl.BlockSpec(wb.shape, lambda n: (0, 0))]
    in_specs += [pl.BlockSpec(w.shape, lambda n: (0, 0)) for w in gw]

    out = pl.pallas_call(
        kernel,
        out_shape=jax.ShapeDtypeStruct((n_pad, R * 2 * H), jnp.float32),
        grid=(n_pad // tn,),
        in_specs=in_specs,
        out_specs=pl.BlockSpec((tn, R * 2 * H), lambda n: (n, 0)),
        compiler_params=pltpu.CompilerParams(
            dimension_semantics=("parallel",)),
    )(x_flat, wb, *gw)

    # rows past N are padding; reshape is contiguous (no transpose pass)
    return out[:N].reshape(N, R, 2 * H)


def _region_feature_learner_ref(features, params, region_index, hidden):
    """Pure-JAX reference mirroring the PyTorch module (for validation)."""
    w_ih, w_hh, b_ih, b_hh = params
    H = hidden
    B, S, C, F = features.shape
    N = B * S
    x = features.reshape(N, C, F).astype(jnp.float32)

    def cell(xt, h, c, wi, wh, b):
        g = xt @ wi.T + h @ wh.T + b
        i = jax.nn.sigmoid(g[:, :H])
        f = jax.nn.sigmoid(g[:, H:2 * H])
        gg = jnp.tanh(g[:, 2 * H:3 * H])
        o = jax.nn.sigmoid(g[:, 3 * H:])
        c = f * c + i * gg
        return o * jnp.tanh(c), c

    outs = []
    for r, idx in enumerate(region_index):
        xr = x[:, jnp.asarray(idx, jnp.int32), :]
        L = len(idx)
        h = jnp.zeros((N, H), jnp.float32)
        c = jnp.zeros((N, H), jnp.float32)
        for t in range(L):
            h, c = cell(xr[:, t], h, c, w_ih[r, 0], w_hh[r, 0],
                        b_ih[r, 0] + b_hh[r, 0])
        hb, _ = cell(xr[:, L - 1], jnp.zeros((N, H), jnp.float32),
                     jnp.zeros((N, H), jnp.float32),
                     w_ih[r, 1], w_hh[r, 1], b_ih[r, 1] + b_hh[r, 1])
        outs.append(jnp.concatenate([h, hb], axis=-1)[:, None, :])
    return jnp.concatenate(outs, axis=1)


if __name__ == "__main__":
    # 62 electrodes (required by the SEED region index), input F=5,
    # reduced hidden size H=32 for the demo.
    C, F, HIDDEN = 62, 5, 32
    R = len(SEED_REGION_INDEX)

    key = jax.random.PRNGKey(0)
    kx, kp, kx2 = jax.random.split(key, 3)
    params = init_params(kp, R, F, HIDDEN)

    # small shape: N=6 rows -> one 8-row tile (no padding to 128)
    B, S = 2, 3
    features = jax.random.normal(kx, (B, S, C, F), jnp.float32)
    out = region_feature_learner(features, params, SEED_REGION_INDEX, HIDDEN)
    out = jax.block_until_ready(out)
    assert out.shape == (B * S, R, 2 * HIDDEN), out.shape
    assert bool(jnp.all(jnp.isfinite(out)))
    ref = _region_feature_learner_ref(features, params, SEED_REGION_INDEX,
                                      HIDDEN)
    assert bool(jnp.allclose(out, ref, atol=2e-3, rtol=2e-3)), (
        float(jnp.max(jnp.abs(out - ref))))

    # second shape: exercises the multi-tile (>=2 grid programs) + padding path
    B2, S2 = 7, 11
    features2 = jax.random.normal(kx2, (B2, S2, C, F), jnp.float32)
    out2 = jax.block_until_ready(
        region_feature_learner(features2, params, SEED_REGION_INDEX, HIDDEN))
    ref2 = _region_feature_learner_ref(features2, params, SEED_REGION_INDEX,
                                       HIDDEN)
    assert out2.shape == (B2 * S2, R, 2 * HIDDEN), out2.shape
    assert bool(jnp.allclose(out2, ref2, atol=2e-3, rtol=2e-3)), (
        float(jnp.max(jnp.abs(out2 - ref2))))

    print("KERNEL_OK")
</pallas_src>

<mosaic_0001>
module attributes {stable_mosaic.version = 11 : i64} {
  func.func @_region_bilstm_kernel(%arg0: i32, %arg1: memref<8x390xf32, #tpu.memory_space<vmem>>, %arg2: memref<81x1536xf32, #tpu.memory_space<vmem>>, %arg3: memref<21x512xf32, #tpu.memory_space<vmem>>, %arg4: memref<128x512xf32, #tpu.memory_space<vmem>>, %arg5: memref<21x512xf32, #tpu.memory_space<vmem>>, %arg6: memref<128x512xf32, #tpu.memory_space<vmem>>, %arg7: memref<21x512xf32, #tpu.memory_space<vmem>>, %arg8: memref<128x512xf32, #tpu.memory_space<vmem>>, %arg9: memref<11x256xf32, #tpu.memory_space<vmem>>, %arg10: memref<64x256xf32, #tpu.memory_space<vmem>>, %arg11: memref<11x256xf32, #tpu.memory_space<vmem>>, %arg12: memref<64x256xf32, #tpu.memory_space<vmem>>, %arg13: memref<8x1024xf32, #tpu.memory_space<vmem>>) attributes {dimension_semantics = [#tpu.dimension_semantics<parallel>], iteration_bounds = array<i64: 1>, scalar_prefetch = 0 : i64, scratch_operands = 0 : i64, tpu.core_type = #tpu.core_type<tc>, window_params = [{transform_indices = @transform_0, window_bounds = array<i64: 8, 390>}, {pipeline_mode = #tpu.pipeline_mode<synchronous>, transform_indices = @transform_1, window_bounds = array<i64: 81, 1536>}, {pipeline_mode = #tpu.pipeline_mode<synchronous>, transform_indices = @transform_2, window_bounds = array<i64: 21, 512>}, {pipeline_mode = #tpu.pipeline_mode<synchronous>, transform_indices = @transform_3, window_bounds = array<i64: 128, 512>}, {pipeline_mode = #tpu.pipeline_mode<synchronous>, transform_indices = @transform_4, window_bounds = array<i64: 21, 512>}, {pipeline_mode = #tpu.pipeline_mode<synchronous>, transform_indices = @transform_5, window_bounds = array<i64: 128, 512>}, {pipeline_mode = #tpu.pipeline_mode<synchronous>, transform_indices = @transform_6, window_bounds = array<i64: 21, 512>}, {pipeline_mode = #tpu.pipeline_mode<synchronous>, transform_indices = @transform_7, window_bounds = array<i64: 128, 512>}, {pipeline_mode = #tpu.pipeline_mode<synchronous>, transform_indices = @transform_8, window_bounds = array<i64: 11, 256>}, {pipeline_mode = #tpu.pipeline_mode<synchronous>, transform_indices = @transform_9, window_bounds = array<i64: 64, 256>}, {pipeline_mode = #tpu.pipeline_mode<synchronous>, transform_indices = @transform_10, window_bounds = array<i64: 11, 256>}, {pipeline_mode = #tpu.pipeline_mode<synchronous>, transform_indices = @transform_11, window_bounds = array<i64: 64, 256>}, {transform_indices = @transform_12, window_bounds = array<i64: 8, 1024>}]} {
    %cst = arith.constant 1.000000e+00 : f32
    %0 = vector.broadcast %cst : f32 to vector<8x1xf32>
    %c0 = arith.constant 0 : index
    %c310 = arith.constant 310 : index
    %1 = vector.load %arg1[%c0, %c310] : memref<8x390xf32, #tpu.memory_space<vmem>>, vector<8x80xf32>
    %2 = tpu.concatenate %1, %0 in 1 : vector<8x80xf32>, vector<8x1xf32> -> vector<8x81xf32>
    %c0_0 = arith.constant 0 : index
    %c0_1 = arith.constant 0 : index
    %3 = vector.load %arg2[%c0_0, %c0_1] : memref<81x1536xf32, #tpu.memory_space<vmem>>, vector<81x1536xf32>
    %cst_2 = arith.constant dense<0.000000e+00> : vector<8x1536xf32>
    %4 = tpu.matmul %2, %3, %cst_2 {dimension_numbers = #tpu.dot_dimension_numbers<[1], [0], [0], [1], [0, 0, 1, 1], [], []>} : vector<8x81xf32>, vector<81x1536xf32>, vector<8x1536xf32> -> vector<8x1536xf32>
    %5 = vector.extract_strided_slice %4 {offsets = [0, 0], sizes = [8, 1024], strides = [1, 1]} : vector<8x1536xf32> to vector<8x1024xf32>
    %6 = arith.negf %5 : vector<8x1024xf32>
    %7 = math.exp %6 : vector<8x1024xf32>
    %cst_3 = arith.constant 1.000000e+00 : f32
    %8 = vector.broadcast %cst_3 : f32 to vector<8x1024xf32>
    %9 = arith.addf %8, %7 : vector<8x1024xf32>
    %10 = arith.divf %8, %9 : vector<8x1024xf32>
    %11 = vector.extract_strided_slice %10 {offsets = [0, 512], sizes = [8, 512], strides = [1, 1]} : vector<8x1024xf32> to vector<8x512xf32>
    %12 = vector.extract_strided_slice %10 {offsets = [0, 0], sizes = [8, 512], strides = [1, 1]} : vector<8x1024xf32> to vector<8x512xf32>
    %13 = vector.extract_strided_slice %4 {offsets = [0, 1024], sizes = [8, 512], strides = [1, 1]} : vector<8x1536xf32> to vector<8x512xf32>
    %14 = math.tanh %13 : vector<8x512xf32>
    %15 = arith.mulf %12, %14 : vector<8x512xf32>
    %16 = math.tanh %15 : vector<8x512xf32>
    %17 = arith.mulf %11, %16 : vector<8x512xf32>
    %c0_4 = arith.constant 0 : index
    %c0_5 = arith.constant 0 : index
    %18 = vector.load %arg3[%c0_4, %c0_5] : memref<21x512xf32, #tpu.memory_space<vmem>>, vector<21x512xf32>
    %c0_6 = arith.constant 0 : index
    %c0_7 = arith.constant 0 : index
    %19 = vector.load %arg4[%c0_6, %c0_7] : memref<128x512xf32, #tpu.memory_space<vmem>>, vector<128x512xf32>
    %c0_8 = arith.constant 0 : index
    %c0_9 = arith.constant 0 : index
    %20 = vector.load %arg1[%c0_8, %c0_9] : memref<8x390xf32, #tpu.memory_space<vmem>>, vector<8x20xf32>
    %21 = tpu.concatenate %20, %0 in 1 : vector<8x20xf32>, vector<8x1xf32> -> vector<8x21xf32>
    %cst_10 = arith.constant dense<0.000000e+00> : vector<8x512xf32>
    %22 = tpu.matmul %21, %18, %cst_10 {dimension_numbers = #tpu.dot_dimension_numbers<[1], [0], [0], [1], [0, 0, 1, 1], [], []>} : vector<8x21xf32>, vector<21x512xf32>, vector<8x512xf32> -> vector<8x512xf32>
    %c0_11 = arith.constant 0 : index
    %c20 = arith.constant 20 : index
    %23 = vector.load %arg1[%c0_11, %c20] : memref<8x390xf32, #tpu.memory_space<vmem>>, vector<8x20xf32>
    %24 = tpu.concatenate %23, %0 in 1 : vector<8x20xf32>, vector<8x1xf32> -> vector<8x21xf32>
    %cst_12 = arith.constant dense<0.000000e+00> : vector<8x512xf32>
    %25 = tpu.matmul %24, %18, %cst_12 {dimension_numbers = #tpu.dot_dimension_numbers<[1], [0], [0], [1], [0, 0, 1, 1], [], []>} : vector<8x21xf32>, vector<21x512xf32>, vector<8x512xf32> -> vector<8x512xf32>
    %cst_13 = arith.constant 0.000000e+00 : f32
    %26 = vector.broadcast %cst_13 : f32 to vector<8x128xf32>
    %cst_14 = arith.constant 0.000000e+00 : f32
    %27 = vector.broadcast %cst_14 : f32 to vector<8x128xf32>
    %cst_15 = arith.constant dense<0.000000e+00> : vector<8x512xf32>
    %28 = tpu.matmul %26, %19, %cst_15 {dimension_numbers = #tpu.dot_dimension_numbers<[1], [0], [0], [1], [0, 0, 1, 1], [], []>} : vector<8x128xf32>, vector<128x512xf32>, vector<8x512xf32> -> vector<8x512xf32>
    %29 = arith.addf %22, %28 : vector<8x512xf32>
    %30 = vector.extract_strided_slice %29 {offsets = [0, 0], sizes = [8, 384], strides = [1, 1]} : vector<8x512xf32> to vector<8x384xf32>
    %31 = arith.negf %30 : vector<8x384xf32>
    %32 = math.exp %31 : vector<8x384xf32>
    %cst_16 = arith.constant 1.000000e+00 : f32
    %33 = vector.broadcast %cst_16 : f32 to vector<8x384xf32>
    %34 = arith.addf %33, %32 : vector<8x384xf32>
    %35 = arith.divf %33, %34 : vector<8x384xf32>
    %36 = vector.extract_strided_slice %35 {offsets = [0, 128], sizes = [8, 128], strides = [1, 1]} : vector<8x384xf32> to vector<8x128xf32>
    %37 = arith.mulf %36, %27 : vector<8x128xf32>
    %38 = vector.extract_strided_slice %35 {offsets = [0, 0], sizes = [8, 128], strides = [1, 1]} : vector<8x384xf32> to vector<8x128xf32>
    %39 = vector.extract_strided_slice %29 {offsets = [0, 384], sizes = [8, 128], strides = [1, 1]} : vector<8x512xf32> to vector<8x128xf32>
    %40 = math.tanh %39 : vector<8x128xf32>
    %41 = arith.mulf %38, %40 : vector<8x128xf32>
    %42 = arith.addf %37, %41 : vector<8x128xf32>
    %43 = vector.extract_strided_slice %35 {offsets = [0, 256], sizes = [8, 128], strides = [1, 1]} : vector<8x384xf32> to vector<8x128xf32>
    %44 = math.tanh %42 : vector<8x128xf32>
    %45 = arith.mulf %43, %44 : vector<8x128xf32>
    %cst_17 = arith.constant dense<0.000000e+00> : vector<8x512xf32>
    %46 = tpu.matmul %45, %19, %cst_17 {dimension_numbers = #tpu.dot_dimension_numbers<[1], [0], [0], [1], [0, 0, 1, 1], [], []>} : vector<8x128xf32>, vector<128x512xf32>, vector<8x512xf32> -> vector<8x512xf32>
    %47 = arith.addf %25, %46 : vector<8x512xf32>
    %48 = vector.extract_strided_slice %47 {offsets = [0, 0], sizes = [8, 384], strides = [1, 1]} : vector<8x512xf32> to vector<8x384xf32>
    %49 = arith.negf %48 : vector<8x384xf32>
    %50 = math.exp %49 : vector<8x384xf32>
    %cst_18 = arith.constant 1.000000e+00 : f32
    %51 = vector.broadcast %cst_18 : f32 to vector<8x384xf32>
    %52 = arith.addf %51, %50 : vector<8x384xf32>
    %53 = arith.divf %51, %52 : vector<8x384xf32>
    %54 = vector.extract_strided_slice %53 {offsets = [0, 128], sizes = [8, 128], strides = [1, 1]} : vector<8x384xf32> to vector<8x128xf32>
    %55 = arith.mulf %54, %42 : vector<8x128xf32>
    %56 = vector.extract_strided_slice %53 {offsets = [0, 0], sizes = [8, 128], strides = [1, 1]} : vector<8x384xf32> to vector<8x128xf32>
    %57 = vector.extract_strided_slice %47 {offsets = [0, 384], sizes = [8, 128], strides = [1, 1]} : vector<8x512xf32> to vector<8x128xf32>
    %58 = math.tanh %57 : vector<8x128xf32>
    %59 = arith.mulf %56, %58 : vector<8x128xf32>
    %60 = arith.addf %55, %59 : vector<8x128xf32>
    %61 = vector.extract_strided_slice %53 {offsets = [0, 256], sizes = [8, 128], strides = [1, 1]} : vector<8x384xf32> to vector<8x128xf32>
    %62 = math.tanh %60 : vector<8x128xf32>
    %63 = arith.mulf %61, %62 : vector<8x128xf32>
    %64 = vector.extract_strided_slice %63 {offsets = [0, 0], sizes = [8, 32], strides = [1, 1]} : vector<8x128xf32> to vector<8x32xf32>
    %65 = vector.extract_strided_slice %63 {offsets = [0, 32], sizes = [8, 32], strides = [1, 1]} : vector<8x128xf32> to vector<8x32xf32>
    %66 = vector.extract_strided_slice %63 {offsets = [0, 64], sizes = [8, 32], strides = [1, 1]} : vector<8x128xf32> to vector<8x32xf32>
    %67 = vector.extract_strided_slice %63 {offsets = [0, 96], sizes = [8, 32], strides = [1, 1]} : vector<8x128xf32> to vector<8x32xf32>
    %c0_19 = arith.constant 0 : index
    %c0_20 = arith.constant 0 : index
    %68 = vector.load %arg5[%c0_19, %c0_20] : memref<21x512xf32, #tpu.memory_space<vmem>>, vector<21x512xf32>
    %c0_21 = arith.constant 0 : index
    %c0_22 = arith.constant 0 : index
    %69 = vector.load %arg6[%c0_21, %c0_22] : memref<128x512xf32, #tpu.memory_space<vmem>>, vector<128x512xf32>
    %c0_23 = arith.constant 0 : index
    %c40 = arith.constant 40 : index
    %70 = vector.load %arg1[%c0_23, %c40] : memref<8x390xf32, #tpu.memory_space<vmem>>, vector<8x20xf32>
    %71 = tpu.concatenate %70, %0 in 1 : vector<8x20xf32>, vector<8x1xf32> -> vector<8x21xf32>
    %cst_24 = arith.constant dense<0.000000e+00> : vector<8x512xf32>
    %72 = tpu.matmul %71, %68, %cst_24 {dimension_numbers = #tpu.dot_dimension_numbers<[1], [0], [0], [1], [0, 0, 1, 1], [], []>} : vector<8x21xf32>, vector<21x512xf32>, vector<8x512xf32> -> vector<8x512xf32>
    %c0_25 = arith.constant 0 : index
    %c60 = arith.constant 60 : index
    %73 = vector.load %arg1[%c0_25, %c60] : memref<8x390xf32, #tpu.memory_space<vmem>>, vector<8x20xf32>
    %74 = tpu.concatenate %73, %0 in 1 : vector<8x20xf32>, vector<8x1xf32> -> vector<8x21xf32>
    %cst_26 = arith.constant dense<0.000000e+00> : vector<8x512xf32>
    %75 = tpu.matmul %74, %68, %cst_26 {dimension_numbers = #tpu.dot_dimension_numbers<[1], [0], [0], [1], [0, 0, 1, 1], [], []>} : vector<8x21xf32>, vector<21x512xf32>, vector<8x512xf32> -> vector<8x512xf32>
    %c0_27 = arith.constant 0 : index
    %c80 = arith.constant 80 : index
    %76 = vector.load %arg1[%c0_27, %c80] : memref<8x390xf32, #tpu.memory_space<vmem>>, vector<8x20xf32>
    %77 = tpu.concatenate %76, %0 in 1 : vector<8x20xf32>, vector<8x1xf32> -> vector<8x21xf32>
    %cst_28 = arith.constant dense<0.000000e+00> : vector<8x512xf32>
    %78 = tpu.matmul %77, %68, %cst_28 {dimension_numbers = #tpu.dot_dimension_numbers<[1], [0], [0], [1], [0, 0, 1, 1], [], []>} : vector<8x21xf32>, vector<21x512xf32>, vector<8x512xf32> -> vector<8x512xf32>
    %cst_29 = arith.constant 0.000000e+00 : f32
    %79 = vector.broadcast %cst_29 : f32 to vector<8x128xf32>
    %cst_30 = arith.constant 0.000000e+00 : f32
    %80 = vector.broadcast %cst_30 : f32 to vector<8x128xf32>
    %cst_31 = arith.constant dense<0.000000e+00> : vector<8x512xf32>
    %81 = tpu.matmul %79, %69, %cst_31 {dimension_numbers = #tpu.dot_dimension_numbers<[1], [0], [0], [1], [0, 0, 1, 1], [], []>} : vector<8x128xf32>, vector<128x512xf32>, vector<8x512xf32> -> vector<8x512xf32>
    %82 = arith.addf %72, %81 : vector<8x512xf32>
    %83 = vector.extract_strided_slice %82 {offsets = [0, 0], sizes = [8, 384], strides = [1, 1]} : vector<8x512xf32> to vector<8x384xf32>
    %84 = arith.negf %83 : vector<8x384xf32>
    %85 = math.exp %84 : vector<8x384xf32>
    %cst_32 = arith.constant 1.000000e+00 : f32
    %86 = vector.broadcast %cst_32 : f32 to vector<8x384xf32>
    %87 = arith.addf %86, %85 : vector<8x384xf32>
    %88 = arith.divf %86, %87 : vector<8x384xf32>
    %89 = vector.extract_strided_slice %88 {offsets = [0, 128], sizes = [8, 128], strides = [1, 1]} : vector<8x384xf32> to vector<8x128xf32>
    %90 = arith.mulf %89, %80 : vector<8x128xf32>
    %91 = vector.extract_strided_slice %88 {offsets = [0, 0], sizes = [8, 128], strides = [1, 1]} : vector<8x384xf32> to vector<8x128xf32>
    %92 = vector.extract_strided_slice %82 {offsets = [0, 384], sizes = [8, 128], strides = [1, 1]} : vector<8x512xf32> to vector<8x128xf32>
    %93 = math.tanh %92 : vector<8x128xf32>
    %94 = arith.mulf %91, %93 : vector<8x128xf32>
    %95 = arith.addf %90, %94 : vector<8x128xf32>
    %96 = vector.extract_strided_slice %88 {offsets = [0, 256], sizes = [8, 128], strides = [1, 1]} : vector<8x384xf32> to vector<8x128xf32>
    %97 = math.tanh %95 : vector<8x128xf32>
    %98 = arith.mulf %96, %97 : vector<8x128xf32>
    %cst_33 = arith.constant dense<0.000000e+00> : vector<8x512xf32>
    %99 = tpu.matmul %98, %69, %cst_33 {dimension_numbers = #tpu.dot_dimension_numbers<[1], [0], [0], [1], [0, 0, 1, 1], [], []>} : vector<8x128xf32>, vector<128x512xf32>, vector<8x512xf32> -> vector<8x512xf32>
    %100 = arith.addf %75, %99 : vector<8x512xf32>
    %101 = vector.extract_strided_slice %100 {offsets = [0, 0], sizes = [8, 384], strides = [1, 1]} : vector<8x512xf32> to vector<8x384xf32>
    %102 = arith.negf %101 : vector<8x384xf32>
    %103 = math.exp %102 : vector<8x384xf32>
    %cst_34 = arith.constant 1.000000e+00 : f32
    %104 = vector.broadcast %cst_34 : f32 to vector<8x384xf32>
    %105 = arith.addf %104, %103 : vector<8x384xf32>
    %106 = arith.divf %104, %105 : vector<8x384xf32>
    %107 = vector.extract_strided_slice %106 {offsets = [0, 128], sizes = [8, 128], strides = [1, 1]} : vector<8x384xf32> to vector<8x128xf32>
    %108 = arith.mulf %107, %95 : vector<8x128xf32>
    %109 = vector.extract_strided_slice %106 {offsets = [0, 0], sizes = [8, 128], strides = [1, 1]} : vector<8x384xf32> to vector<8x128xf32>
    %110 = vector.extract_strided_slice %100 {offsets = [0, 384], sizes = [8, 128], strides = [1, 1]} : vector<8x512xf32> to vector<8x128xf32>
    %111 = math.tanh %110 : vector<8x128xf32>
    %112 = arith.mulf %109, %111 : vector<8x128xf32>
    %113 = arith.addf %108, %112 : vector<8x128xf32>
    %114 = vector.extract_strided_slice %106 {offsets = [0, 256], sizes = [8, 128], strides = [1, 1]} : vector<8x384xf32> to vector<8x128xf32>
    %115 = math.tanh %113 : vector<8x128xf32>
    %116 = arith.mulf %114, %115 : vector<8x128xf32>
    %cst_35 = arith.constant dense<0.000000e+00> : vector<8x512xf32>
    %117 = tpu.matmul %116, %69, %cst_35 {dimension_numbers = #tpu.dot_dimension_numbers<[1], [0], [0], [1], [0, 0, 1, 1], [], []>} : vector<8x128xf32>, vector<128x512xf32>, vector<8x512xf32> -> vector<8x512xf32>
    %118 = arith.addf %78, %117 : vector<8x512xf32>
    %119 = vector.extract_strided_slice %118 {offsets = [0, 0], sizes = [8, 384], strides = [1, 1]} : vector<8x512xf32> to vector<8x384xf32>
    %120 = arith.negf %119 : vector<8x384xf32>
    %121 = math.exp %120 : vector<8x384xf32>
    %cst_36 = arith.constant 1.000000e+00 : f32
    %122 = vector.broadcast %cst_36 : f32 to vector<8x384xf32>
    %123 = arith.addf %122, %121 : vector<8x384xf32>
    %124 = arith.divf %122, %123 : vector<8x384xf32>
    %125 = vector.extract_strided_slice %124 {offsets = [0, 128], sizes = [8, 128], strides = [1, 1]} : vector<8x384xf32> to vector<8x128xf32>
    %126 = arith.mulf %125, %113 : vector<8x128xf32>
    %127 = vector.extract_strided_slice %124 {offsets = [0, 0], sizes = [8, 128], strides = [1, 1]} : vector<8x384xf32> to vector<8x128xf32>
    %128 = vector.extract_strided_slice %118 {offsets = [0, 384], sizes = [8, 128], strides = [1, 1]} : vector<8x512xf32> to vector<8x128xf32>
    %129 = math.tanh %128 : vector<8x128xf32>
    %130 = arith.mulf %127, %129 : vector<8x128xf32>
    %131 = arith.addf %126, %130 : vector<8x128xf32>
    %132 = vector.extract_strided_slice %124 {offsets = [0, 256], sizes = [8, 128], strides = [1, 1]} : vector<8x384xf32> to vector<8x128xf32>
    %133 = math.tanh %131 : vector<8x128xf32>
    %134 = arith.mulf %132, %133 : vector<8x128xf32>
    %135 = vector.extract_strided_slice %134 {offsets = [0, 0], sizes = [8, 32], strides = [1, 1]} : vector<8x128xf32> to vector<8x32xf32>
    %136 = vector.extract_strided_slice %134 {offsets = [0, 32], sizes = [8, 32], strides = [1, 1]} : vector<8x128xf32> to vector<8x32xf32>
    %137 = vector.extract_strided_slice %134 {offsets = [0, 64], sizes = [8, 32], strides = [1, 1]} : vector<8x128xf32> to vector<8x32xf32>
    %138 = vector.extract_strided_slice %134 {offsets = [0, 96], sizes = [8, 32], strides = [1, 1]} : vector<8x128xf32> to vector<8x32xf32>
    %c0_37 = arith.constant 0 : index
    %c0_38 = arith.constant 0 : index
    %139 = vector.load %arg7[%c0_37, %c0_38] : memref<21x512xf32, #tpu.memory_space<vmem>>, vector<21x512xf32>
    %c0_39 = arith.constant 0 : index
    %c0_40 = arith.constant 0 : index
    %140 = vector.load %arg8[%c0_39, %c0_40] : memref<128x512xf32, #tpu.memory_space<vmem>>, vector<128x512xf32>
    %c0_41 = arith.constant 0 : index
    %c100 = arith.constant 100 : index
    %141 = vector.load %arg1[%c0_41, %c100] : memref<8x390xf32, #tpu.memory_space<vmem>>, vector<8x20xf32>
    %142 = tpu.concatenate %141, %0 in 1 : vector<8x20xf32>, vector<8x1xf32> -> vector<8x21xf32>
    %cst_42 = arith.constant dense<0.000000e+00> : vector<8x512xf32>
    %143 = tpu.matmul %142, %139, %cst_42 {dimension_numbers = #tpu.dot_dimension_numbers<[1], [0], [0], [1], [0, 0, 1, 1], [], []>} : vector<8x21xf32>, vector<21x512xf32>, vector<8x512xf32> -> vector<8x512xf32>
    %c0_43 = arith.constant 0 : index
    %c120 = arith.constant 120 : index
    %144 = vector.load %arg1[%c0_43, %c120] : memref<8x390xf32, #tpu.memory_space<vmem>>, vector<8x20xf32>
    %145 = tpu.concatenate %144, %0 in 1 : vector<8x20xf32>, vector<8x1xf32> -> vector<8x21xf32>
    %cst_44 = arith.constant dense<0.000000e+00> : vector<8x512xf32>
    %146 = tpu.matmul %145, %139, %cst_44 {dimension_numbers = #tpu.dot_dimension_numbers<[1], [0], [0], [1], [0, 0, 1, 1], [], []>} : vector<8x21xf32>, vector<21x512xf32>, vector<8x512xf32> -> vector<8x512xf32>
    %c0_45 = arith.constant 0 : index
    %c140 = arith.constant 140 : index
    %147 = vector.load %arg1[%c0_45, %c140] : memref<8x390xf32, #tpu.memory_space<vmem>>, vector<8x20xf32>
    %148 = tpu.concatenate %147, %0 in 1 : vector<8x20xf32>, vector<8x1xf32> -> vector<8x21xf32>
    %cst_46 = arith.constant dense<0.000000e+00> : vector<8x512xf32>
    %149 = tpu.matmul %148, %139, %cst_46 {dimension_numbers = #tpu.dot_dimension_numbers<[1], [0], [0], [1], [0, 0, 1, 1], [], []>} : vector<8x21xf32>, vector<21x512xf32>, vector<8x512xf32> -> vector<8x512xf32>
    %c0_47 = arith.constant 0 : index
    %c160 = arith.constant 160 : index
    %150 = vector.load %arg1[%c0_47, %c160] : memref<8x390xf32, #tpu.memory_space<vmem>>, vector<8x20xf32>
    %151 = tpu.concatenate %150, %0 in 1 : vector<8x20xf32>, vector<8x1xf32> -> vector<8x21xf32>
    %cst_48 = arith.constant dense<0.000000e+00> : vector<8x512xf32>
    %152 = tpu.matmul %151, %139, %cst_48 {dimension_numbers = #tpu.dot_dimension_numbers<[1], [0], [0], [1], [0, 0, 1, 1], [], []>} : vector<8x21xf32>, vector<21x512xf32>, vector<8x512xf32> -> vector<8x512xf32>
    %c0_49 = arith.constant 0 : index
    %c180 = arith.constant 180 : index
    %153 = vector.load %arg1[%c0_49, %c180] : memref<8x390xf32, #tpu.memory_space<vmem>>, vector<8x20xf32>
    %154 = tpu.concatenate %153, %0 in 1 : vector<8x20xf32>, vector<8x1xf32> -> vector<8x21xf32>
    %cst_50 = arith.constant dense<0.000000e+00> : vector<8x512xf32>
    %155 = tpu.matmul %154, %139, %cst_50 {dimension_numbers = #tpu.dot_dimension_numbers<[1], [0], [0], [1], [0, 0, 1, 1], [], []>} : vector<8x21xf32>, vector<21x512xf32>, vector<8x512xf32> -> vector<8x512xf32>
    %cst_51 = arith.constant 0.000000e+00 : f32
    %156 = vector.broadcast %cst_51 : f32 to vector<8x128xf32>
    %cst_52 = arith.constant 0.000000e+00 : f32
    %157 = vector.broadcast %cst_52 : f32 to vector<8x128xf32>
    %cst_53 = arith.constant dense<0.000000e+00> : vector<8x512xf32>
    %158 = tpu.matmul %156, %140, %cst_53 {dimension_numbers = #tpu.dot_dimension_numbers<[1], [0], [0], [1], [0, 0, 1, 1], [], []>} : vector<8x128xf32>, vector<128x512xf32>, vector<8x512xf32> -> vector<8x512xf32>
    %159 = arith.addf %143, %158 : vector<8x512xf32>
    %160 = vector.extract_strided_slice %159 {offsets = [0, 0], sizes = [8, 384], strides = [1, 1]} : vector<8x512xf32> to vector<8x384xf32>
    %161 = arith.negf %160 : vector<8x384xf32>
    %162 = math.exp %161 : vector<8x384xf32>
    %cst_54 = arith.constant 1.000000e+00 : f32
    %163 = vector.broadcast %cst_54 : f32 to vector<8x384xf32>
    %164 = arith.addf %163, %162 : vector<8x384xf32>
    %165 = arith.divf %163, %164 : vector<8x384xf32>
    %166 = vector.extract_strided_slice %165 {offsets = [0, 128], sizes = [8, 128], strides = [1, 1]} : vector<8x384xf32> to vector<8x128xf32>
    %167 = arith.mulf %166, %157 : vector<8x128xf32>
    %168 = vector.extract_strided_slice %165 {offsets = [0, 0], sizes = [8, 128], strides = [1, 1]} : vector<8x384xf32> to vector<8x128xf32>
    %169 = vector.extract_strided_slice %159 {offsets = [0, 384], sizes = [8, 128], strides = [1, 1]} : vector<8x512xf32> to vector<8x128xf32>
    %170 = math.tanh %169 : vector<8x128xf32>
    %171 = arith.mulf %168, %170 : vector<8x128xf32>
    %172 = arith.addf %167, %171 : vector<8x128xf32>
    %173 = vector.extract_strided_slice %165 {offsets = [0, 256], sizes = [8, 128], strides = [1, 1]} : vector<8x384xf32> to vector<8x128xf32>
    %174 = math.tanh %172 : vector<8x128xf32>
    %175 = arith.mulf %173, %174 : vector<8x128xf32>
    %cst_55 = arith.constant dense<0.000000e+00> : vector<8x512xf32>
    %176 = tpu.matmul %175, %140, %cst_55 {dimension_numbers = #tpu.dot_dimension_numbers<[1], [0], [0], [1], [0, 0, 1, 1], [], []>} : vector<8x128xf32>, vector<128x512xf32>, vector<8x512xf32> -> vector<8x512xf32>
    %177 = arith.addf %146, %176 : vector<8x512xf32>
    %178 = vector.extract_strided_slice %177 {offsets = [0, 0], sizes = [8, 384], strides = [1, 1]} : vector<8x512xf32> to vector<8x384xf32>
    %179 = arith.negf %178 : vector<8x384xf32>
    %180 = math.exp %179 : vector<8x384xf32>
    %cst_56 = arith.constant 1.000000e+00 : f32
    %181 = vector.broadcast %cst_56 : f32 to vector<8x384xf32>
    %182 = arith.addf %181, %180 : vector<8x384xf32>
    %183 = arith.divf %181, %182 : vector<8x384xf32>
    %184 = vector.extract_strided_slice %183 {offsets = [0, 128], sizes = [8, 128], strides = [1, 1]} : vector<8x384xf32> to vector<8x128xf32>
    %185 = arith.mulf %184, %172 : vector<8x128xf32>
    %186 = vector.extract_strided_slice %183 {offsets = [0, 0], sizes = [8, 128], strides = [1, 1]} : vector<8x384xf32> to vector<8x128xf32>
    %187 = vector.extract_strided_slice %177 {offsets = [0, 384], sizes = [8, 128], strides = [1, 1]} : vector<8x512xf32> to vector<8x128xf32>
    %188 = math.tanh %187 : vector<8x128xf32>
    %189 = arith.mulf %186, %188 : vector<8x128xf32>
    %190 = arith.addf %185, %189 : vector<8x128xf32>
    %191 = vector.extract_strided_slice %183 {offsets = [0, 256], sizes = [8, 128], strides = [1, 1]} : vector<8x384xf32> to vector<8x128xf32>
    %192 = math.tanh %190 : vector<8x128xf32>
    %193 = arith.mulf %191, %192 : vector<8x128xf32>
    %cst_57 = arith.constant dense<0.000000e+00> : vector<8x512xf32>
    %194 = tpu.matmul %193, %140, %cst_57 {dimension_numbers = #tpu.dot_dimension_numbers<[1], [0], [0], [1], [0, 0, 1, 1], [], []>} : vector<8x128xf32>, vector<128x512xf32>, vector<8x512xf32> -> vector<8x512xf32>
    %195 = arith.addf %149, %194 : vector<8x512xf32>
    %196 = vector.extract_strided_slice %195 {offsets = [0, 0], sizes = [8, 384], strides = [1, 1]} : vector<8x512xf32> to vector<8x384xf32>
    %197 = arith.negf %196 : vector<8x384xf32>
    %198 = math.exp %197 : vector<8x384xf32>
    %cst_58 = arith.constant 1.000000e+00 : f32
    %199 = vector.broadcast %cst_58 : f32 to vector<8x384xf32>
    %200 = arith.addf %199, %198 : vector<8x384xf32>
    %201 = arith.divf %199, %200 : vector<8x384xf32>
    %202 = vector.extract_strided_slice %201 {offsets = [0, 128], sizes = [8, 128], strides = [1, 1]} : vector<8x384xf32> to vector<8x128xf32>
    %203 = arith.mulf %202, %190 : vector<8x128xf32>
    %204 = vector.extract_strided_slice %201 {offsets = [0, 0], sizes = [8, 128], strides = [1, 1]} : vector<8x384xf32> to vector<8x128xf32>
    %205 = vector.extract_strided_slice %195 {offsets = [0, 384], sizes = [8, 128], strides = [1, 1]} : vector<8x512xf32> to vector<8x128xf32>
    %206 = math.tanh %205 : vector<8x128xf32>
    %207 = arith.mulf %204, %206 : vector<8x128xf32>
    %208 = arith.addf %203, %207 : vector<8x128xf32>
    %209 = vector.extract_strided_slice %201 {offsets = [0, 256], sizes = [8, 128], strides = [1, 1]} : vector<8x384xf32> to vector<8x128xf32>
    %210 = math.tanh %208 : vector<8x128xf32>
    %211 = arith.mulf %209, %210 : vector<8x128xf32>
    %cst_59 = arith.constant dense<0.000000e+00> : vector<8x512xf32>
    %212 = tpu.matmul %211, %140, %cst_59 {dimension_numbers = #tpu.dot_dimension_numbers<[1], [0], [0], [1], [0, 0, 1, 1], [], []>} : vector<8x128xf32>, vector<128x512xf32>, vector<8x512xf32> -> vector<8x512xf32>
    %213 = arith.addf %152, %212 : vector<8x512xf32>
    %214 = vector.extract_strided_slice %213 {offsets = [0, 0], sizes = [8, 384], strides = [1, 1]} : vector<8x512xf32> to vector<8x384xf32>
    %215 = arith.negf %214 : vector<8x384xf32>
    %216 = math.exp %215 : vector<8x384xf32>
    %cst_60 = arith.constant 1.000000e+00 : f32
    %217 = vector.broadcast %cst_60 : f32 to vector<8x384xf32>
    %218 = arith.addf %217, %216 : vector<8x384xf32>
    %219 = arith.divf %217, %218 : vector<8x384xf32>
    %220 = vector.extract_strided_slice %219 {offsets = [0, 128], sizes = [8, 128], strides = [1, 1]} : vector<8x384xf32> to vector<8x128xf32>
    %221 = arith.mulf %220, %208 : vector<8x128xf32>
    %222 = vector.extract_strided_slice %219 {offsets = [0, 0], sizes = [8, 128], strides = [1, 1]} : vector<8x384xf32> to vector<8x128xf32>
    %223 = vector.extract_strided_slice %213 {offsets = [0, 384], sizes = [8, 128], strides = [1, 1]} : vector<8x512xf32> to vector<8x128xf32>
    %224 = math.tanh %223 : vector<8x128xf32>
    %225 = arith.mulf %222, %224 : vector<8x128xf32>
    %226 = arith.addf %221, %225 : vector<8x128xf32>
    %227 = vector.extract_strided_slice %219 {offsets = [0, 256], sizes = [8, 128], strides = [1, 1]} : vector<8x384xf32> to vector<8x128xf32>
    %228 = math.tanh %226 : vector<8x128xf32>
    %229 = arith.mulf %227, %228 : vector<8x128xf32>
    %cst_61 = arith.constant dense<0.000000e+00> : vector<8x512xf32>
    %230 = tpu.matmul %229, %140, %cst_61 {dimension_numbers = #tpu.dot_dimension_numbers<[1], [0], [0], [1], [0, 0, 1, 1], [], []>} : vector<8x128xf32>, vector<128x512xf32>, vector<8x512xf32> -> vector<8x512xf32>
    %231 = arith.addf %155, %230 : vector<8x512xf32>
    %232 = vector.extract_strided_slice %231 {offsets = [0, 0], sizes = [8, 384], strides = [1, 1]} : vector<8x512xf32> to vector<8x384xf32>
    %233 = arith.negf %232 : vector<8x384xf32>
    %234 = math.exp %233 : vector<8x384xf32>
    %cst_62 = arith.constant 1.000000e+00 : f32
    %235 = vector.broadcast %cst_62 : f32 to vector<8x384xf32>
    %236 = arith.addf %235, %234 : vector<8x384xf32>
    %237 = arith.divf %235, %236 : vector<8x384xf32>
    %238 = vector.extract_strided_slice %237 {offsets = [0, 128], sizes = [8, 128], strides = [1, 1]} : vector<8x384xf32> to vector<8x128xf32>
    %239 = arith.mulf %238, %226 : vector<8x128xf32>
    %240 = vector.extract_strided_slice %237 {offsets = [0, 0], sizes = [8, 128], strides = [1, 1]} : vector<8x384xf32> to vector<8x128xf32>
    %241 = vector.extract_strided_slice %231 {offsets = [0, 384], sizes = [8, 128], strides = [1, 1]} : vector<8x512xf32> to vector<8x128xf32>
    %242 = math.tanh %241 : vector<8x128xf32>
    %243 = arith.mulf %240, %242 : vector<8x128xf32>
    %244 = arith.addf %239, %243 : vector<8x128xf32>
    %245 = vector.extract_strided_slice %237 {offsets = [0, 256], sizes = [8, 128], strides = [1, 1]} : vector<8x384xf32> to vector<8x128xf32>
    %246 = math.tanh %244 : vector<8x128xf32>
    %247 = arith.mulf %245, %246 : vector<8x128xf32>
    %248 = vector.extract_strided_slice %247 {offsets = [0, 0], sizes = [8, 32], strides = [1, 1]} : vector<8x128xf32> to vector<8x32xf32>
    %249 = vector.extract_strided_slice %247 {offsets = [0, 32], sizes = [8, 32], strides = [1, 1]} : vector<8x128xf32> to vector<8x32xf32>
    %250 = vector.extract_strided_slice %247 {offsets = [0, 64], sizes = [8, 32], strides = [1, 1]} : vector<8x128xf32> to vector<8x32xf32>
    %251 = vector.extract_strided_slice %247 {offsets = [0, 96], sizes = [8, 32], strides = [1, 1]} : vector<8x128xf32> to vector<8x32xf32>
    %c0_63 = arith.constant 0 : index
    %c0_64 = arith.constant 0 : index
    %252 = vector.load %arg9[%c0_63, %c0_64] : memref<11x256xf32, #tpu.memory_space<vmem>>, vector<11x256xf32>
    %c0_65 = arith.constant 0 : index
    %c0_66 = arith.constant 0 : index
    %253 = vector.load %arg10[%c0_65, %c0_66] : memref<64x256xf32, #tpu.memory_space<vmem>>, vector<64x256xf32>
    %c0_67 = arith.constant 0 : index
    %c200 = arith.constant 200 : index
    %254 = vector.load %arg1[%c0_67, %c200] : memref<8x390xf32, #tpu.memory_space<vmem>>, vector<8x10xf32>
    %255 = tpu.concatenate %254, %0 in 1 : vector<8x10xf32>, vector<8x1xf32> -> vector<8x11xf32>
    %cst_68 = arith.constant dense<0.000000e+00> : vector<8x256xf32>
    %256 = tpu.matmul %255, %252, %cst_68 {dimension_numbers = #tpu.dot_dimension_numbers<[1], [0], [0], [1], [0, 0, 1, 1], [], []>} : vector<8x11xf32>, vector<11x256xf32>, vector<8x256xf32> -> vector<8x256xf32>
    %c0_69 = arith.constant 0 : index
    %c210 = arith.constant 210 : index
    %257 = vector.load %arg1[%c0_69, %c210] : memref<8x390xf32, #tpu.memory_space<vmem>>, vector<8x10xf32>
    %258 = tpu.concatenate %257, %0 in 1 : vector<8x10xf32>, vector<8x1xf32> -> vector<8x11xf32>
    %cst_70 = arith.constant dense<0.000000e+00> : vector<8x256xf32>
    %259 = tpu.matmul %258, %252, %cst_70 {dimension_numbers = #tpu.dot_dimension_numbers<[1], [0], [0], [1], [0, 0, 1, 1], [], []>} : vector<8x11xf32>, vector<11x256xf32>, vector<8x256xf32> -> vector<8x256xf32>
    %c0_71 = arith.constant 0 : index
    %c220 = arith.constant 220 : index
    %260 = vector.load %arg1[%c0_71, %c220] : memref<8x390xf32, #tpu.memory_space<vmem>>, vector<8x10xf32>
    %261 = tpu.concatenate %260, %0 in 1 : vector<8x10xf32>, vector<8x1xf32> -> vector<8x11xf32>
    %cst_72 = arith.constant dense<0.000000e+00> : vector<8x256xf32>
    %262 = tpu.matmul %261, %252, %cst_72 {dimension_numbers = #tpu.dot_dimension_numbers<[1], [0], [0], [1], [0, 0, 1, 1], [], []>} : vector<8x11xf32>, vector<11x256xf32>, vector<8x256xf32> -> vector<8x256xf32>
    %c0_73 = arith.constant 0 : index
    %c230 = arith.constant 230 : index
    %263 = vector.load %arg1[%c0_73, %c230] : memref<8x390xf32, #tpu.memory_space<vmem>>, vector<8x10xf32>
    %264 = tpu.concatenate %263, %0 in 1 : vector<8x10xf32>, vector<8x1xf32> -> vector<8x11xf32>
    %cst_74 = arith.constant dense<0.000000e+00> : vector<8x256xf32>
    %265 = tpu.matmul %264, %252, %cst_74 {dimension_numbers = #tpu.dot_dimension_numbers<[1], [0], [0], [1], [0, 0, 1, 1], [], []>} : vector<8x11xf32>, vector<11x256xf32>, vector<8x256xf32> -> vector<8x256xf32>
    %c0_75 = arith.constant 0 : index
    %c240 = arith.constant 240 : index
    %266 = vector.load %arg1[%c0_75, %c240] : memref<8x390xf32, #tpu.memory_space<vmem>>, vector<8x10xf32>
    %267 = tpu.concatenate %266, %0 in 1 : vector<8x10xf32>, vector<8x1xf32> -> vector<8x11xf32>
    %cst_76 = arith.constant dense<0.000000e+00> : vector<8x256xf32>
    %268 = tpu.matmul %267, %252, %cst_76 {dimension_numbers = #tpu.dot_dimension_numbers<[1], [0], [0], [1], [0, 0, 1, 1], [], []>} : vector<8x11xf32>, vector<11x256xf32>, vector<8x256xf32> -> vector<8x256xf32>
    %cst_77 = arith.constant 0.000000e+00 : f32
    %269 = vector.broadcast %cst_77 : f32 to vector<8x64xf32>
    %cst_78 = arith.constant 0.000000e+00 : f32
    %270 = vector.broadcast %cst_78 : f32 to vector<8x64xf32>
    %cst_79 = arith.constant dense<0.000000e+00> : vector<8x256xf32>
    %271 = tpu.matmul %269, %253, %cst_79 {dimension_numbers = #tpu.dot_dimension_numbers<[1], [0], [0], [1], [0, 0, 1, 1], [], []>} : vector<8x64xf32>, vector<64x256xf32>, vector<8x256xf32> -> vector<8x256xf32>
    %272 = arith.addf %256, %271 : vector<8x256xf32>
    %273 = vector.extract_strided_slice %272 {offsets = [0, 0], sizes = [8, 192], strides = [1, 1]} : vector<8x256xf32> to vector<8x192xf32>
    %274 = arith.negf %273 : vector<8x192xf32>
    %275 = math.exp %274 : vector<8x192xf32>
    %cst_80 = arith.constant 1.000000e+00 : f32
    %276 = vector.broadcast %cst_80 : f32 to vector<8x192xf32>
    %277 = arith.addf %276, %275 : vector<8x192xf32>
    %278 = arith.divf %276, %277 : vector<8x192xf32>
    %279 = vector.extract_strided_slice %278 {offsets = [0, 64], sizes = [8, 64], strides = [1, 1]} : vector<8x192xf32> to vector<8x64xf32>
    %280 = arith.mulf %279, %270 : vector<8x64xf32>
    %281 = vector.extract_strided_slice %278 {offsets = [0, 0], sizes = [8, 64], strides = [1, 1]} : vector<8x192xf32> to vector<8x64xf32>
    %282 = vector.extract_strided_slice %272 {offsets = [0, 192], sizes = [8, 64], strides = [1, 1]} : vector<8x256xf32> to vector<8x64xf32>
    %283 = math.tanh %282 : vector<8x64xf32>
    %284 = arith.mulf %281, %283 : vector<8x64xf32>
    %285 = arith.addf %280, %284 : vector<8x64xf32>
    %286 = vector.extract_strided_slice %278 {offsets = [0, 128], sizes = [8, 64], strides = [1, 1]} : vector<8x192xf32> to vector<8x64xf32>
    %287 = math.tanh %285 : vector<8x64xf32>
    %288 = arith.mulf %286, %287 : vector<8x64xf32>
    %cst_81 = arith.constant dense<0.000000e+00> : vector<8x256xf32>
    %289 = tpu.matmul %288, %253, %cst_81 {dimension_numbers = #tpu.dot_dimension_numbers<[1], [0], [0], [1], [0, 0, 1, 1], [], []>} : vector<8x64xf32>, vector<64x256xf32>, vector<8x256xf32> -> vector<8x256xf32>
    %290 = arith.addf %259, %289 : vector<8x256xf32>
    %291 = vector.extract_strided_slice %290 {offsets = [0, 0], sizes = [8, 192], strides = [1, 1]} : vector<8x256xf32> to vector<8x192xf32>
    %292 = arith.negf %291 : vector<8x192xf32>
    %293 = math.exp %292 : vector<8x192xf32>
    %cst_82 = arith.constant 1.000000e+00 : f32
    %294 = vector.broadcast %cst_82 : f32 to vector<8x192xf32>
    %295 = arith.addf %294, %293 : vector<8x192xf32>
    %296 = arith.divf %294, %295 : vector<8x192xf32>
    %297 = vector.extract_strided_slice %296 {offsets = [0, 64], sizes = [8, 64], strides = [1, 1]} : vector<8x192xf32> to vector<8x64xf32>
    %298 = arith.mulf %297, %285 : vector<8x64xf32>
    %299 = vector.extract_strided_slice %296 {offsets = [0, 0], sizes = [8, 64], strides = [1, 1]} : vector<8x192xf32> to vector<8x64xf32>
    %300 = vector.extract_strided_slice %290 {offsets = [0, 192], sizes = [8, 64], strides = [1, 1]} : vector<8x256xf32> to vector<8x64xf32>
    %301 = math.tanh %300 : vector<8x64xf32>
    %302 = arith.mulf %299, %301 : vector<8x64xf32>
    %303 = arith.addf %298, %302 : vector<8x64xf32>
    %304 = vector.extract_strided_slice %296 {offsets = [0, 128], sizes = [8, 64], strides = [1, 1]} : vector<8x192xf32> to vector<8x64xf32>
    %305 = math.tanh %303 : vector<8x64xf32>
    %306 = arith.mulf %304, %305 : vector<8x64xf32>
    %cst_83 = arith.constant dense<0.000000e+00> : vector<8x256xf32>
    %307 = tpu.matmul %306, %253, %cst_83 {dimension_numbers = #tpu.dot_dimension_numbers<[1], [0], [0], [1], [0, 0, 1, 1], [], []>} : vector<8x64xf32>, vector<64x256xf32>, vector<8x256xf32> -> vector<8x256xf32>
    %308 = arith.addf %262, %307 : vector<8x256xf32>
    %309 = vector.extract_strided_slice %308 {offsets = [0, 0], sizes = [8, 192], strides = [1, 1]} : vector<8x256xf32> to vector<8x192xf32>
    %310 = arith.negf %309 : vector<8x192xf32>
    %311 = math.exp %310 : vector<8x192xf32>
    %cst_84 = arith.constant 1.000000e+00 : f32
    %312 = vector.broadcast %cst_84 : f32 to vector<8x192xf32>
    %313 = arith.addf %312, %311 : vector<8x192xf32>
    %314 = arith.divf %312, %313 : vector<8x192xf32>
    %315 = vector.extract_strided_slice %314 {offsets = [0, 64], sizes = [8, 64], strides = [1, 1]} : vector<8x192xf32> to vector<8x64xf32>
    %316 = arith.mulf %315, %303 : vector<8x64xf32>
    %317 = vector.extract_strided_slice %314 {offsets = [0, 0], sizes = [8, 64], strides = [1, 1]} : vector<8x192xf32> to vector<8x64xf32>
    %318 = vector.extract_strided_slice %308 {offsets = [0, 192], sizes = [8, 64], strides = [1, 1]} : vector<8x256xf32> to vector<8x64xf32>
    %319 = math.tanh %318 : vector<8x64xf32>
    %320 = arith.mulf %317, %319 : vector<8x64xf32>
    %321 = arith.addf %316, %320 : vector<8x64xf32>
    %322 = vector.extract_strided_slice %314 {offsets = [0, 128], sizes = [8, 64], strides = [1, 1]} : vector<8x192xf32> to vector<8x64xf32>
    %323 = math.tanh %321 : vector<8x64xf32>
    %324 = arith.mulf %322, %323 : vector<8x64xf32>
    %cst_85 = arith.constant dense<0.000000e+00> : vector<8x256xf32>
    %325 = tpu.matmul %324, %253, %cst_85 {dimension_numbers = #tpu.dot_dimension_numbers<[1], [0], [0], [1], [0, 0, 1, 1], [], []>} : vector<8x64xf32>, vector<64x256xf32>, vector<8x256xf32> -> vector<8x256xf32>
    %326 = arith.addf %265, %325 : vector<8x256xf32>
    %327 = vector.extract_strided_slice %326 {offsets = [0, 0], sizes = [8, 192], strides = [1, 1]} : vector<8x256xf32> to vector<8x192xf32>
    %328 = arith.negf %327 : vector<8x192xf32>
    %329 = math.exp %328 : vector<8x192xf32>
    %cst_86 = arith.constant 1.000000e+00 : f32
    %330 = vector.broadcast %cst_86 : f32 to vector<8x192xf32>
    %331 = arith.addf %330, %329 : vector<8x192xf32>
    %332 = arith.divf %330, %331 : vector<8x192xf32>
    %333 = vector.extract_strided_slice %332 {offsets = [0, 64], sizes = [8, 64], strides = [1, 1]} : vector<8x192xf32> to vector<8x64xf32>
    %334 = arith.mulf %333, %321 : vector<8x64xf32>
    %335 = vector.extract_strided_slice %332 {offsets = [0, 0], sizes = [8, 64], strides = [1, 1]} : vector<8x192xf32> to vector<8x64xf32>
    %336 = vector.extract_strided_slice %326 {offsets = [0, 192], sizes = [8, 64], strides = [1, 1]} : vector<8x256xf32> to vector<8x64xf32>
    %337 = math.tanh %336 : vector<8x64xf32>
    %338 = arith.mulf %335, %337 : vector<8x64xf32>
    %339 = arith.addf %334, %338 : vector<8x64xf32>
    %340 = vector.extract_strided_slice %332 {offsets = [0, 128], sizes = [8, 64], strides = [1, 1]} : vector<8x192xf32> to vector<8x64xf32>
    %341 = math.tanh %339 : vector<8x64xf32>
    %342 = arith.mulf %340, %341 : vector<8x64xf32>
    %cst_87 = arith.constant dense<0.000000e+00> : vector<8x256xf32>
    %343 = tpu.matmul %342, %253, %cst_87 {dimension_numbers = #tpu.dot_dimension_numbers<[1], [0], [0], [1], [0, 0, 1, 1], [], []>} : vector<8x64xf32>, vector<64x256xf32>, vector<8x256xf32> -> vector<8x256xf32>
    %344 = arith.addf %268, %343 : vector<8x256xf32>
    %345 = vector.extract_strided_slice %344 {offsets = [0, 0], sizes = [8, 192], strides = [1, 1]} : vector<8x256xf32> to vector<8x192xf32>
    %346 = arith.negf %345 : vector<8x192xf32>
    %347 = math.exp %346 : vector<8x192xf32>
    %cst_88 = arith.constant 1.000000e+00 : f32
    %348 = vector.broadcast %cst_88 : f32 to vector<8x192xf32>
    %349 = arith.addf %348, %347 : vector<8x192xf32>
    %350 = arith.divf %348, %349 : vector<8x192xf32>
    %351 = vector.extract_strided_slice %350 {offsets = [0, 64], sizes = [8, 64], strides = [1, 1]} : vector<8x192xf32> to vector<8x64xf32>
    %352 = arith.mulf %351, %339 : vector<8x64xf32>
    %353 = vector.extract_strided_slice %350 {offsets = [0, 0], sizes = [8, 64], strides = [1, 1]} : vector<8x192xf32> to vector<8x64xf32>
    %354 = vector.extract_strided_slice %344 {offsets = [0, 192], sizes = [8, 64], strides = [1, 1]} : vector<8x256xf32> to vector<8x64xf32>
    %355 = math.tanh %354 : vector<8x64xf32>
    %356 = arith.mulf %353, %355 : vector<8x64xf32>
    %357 = arith.addf %352, %356 : vector<8x64xf32>
    %358 = vector.extract_strided_slice %350 {offsets = [0, 128], sizes = [8, 64], strides = [1, 1]} : vector<8x192xf32> to vector<8x64xf32>
    %359 = math.tanh %357 : vector<8x64xf32>
    %360 = arith.mulf %358, %359 : vector<8x64xf32>
    %361 = vector.extract_strided_slice %360 {offsets = [0, 0], sizes = [8, 32], strides = [1, 1]} : vector<8x64xf32> to vector<8x32xf32>
    %362 = vector.extract_strided_slice %360 {offsets = [0, 32], sizes = [8, 32], strides = [1, 1]} : vector<8x64xf32> to vector<8x32xf32>
    %c0_89 = arith.constant 0 : index
    %c0_90 = arith.constant 0 : index
    %363 = vector.load %arg11[%c0_89, %c0_90] : memref<11x256xf32, #tpu.memory_space<vmem>>, vector<11x256xf32>
    %c0_91 = arith.constant 0 : index
    %c0_92 = arith.constant 0 : index
    %364 = vector.load %arg12[%c0_91, %c0_92] : memref<64x256xf32, #tpu.memory_space<vmem>>, vector<64x256xf32>
    %c0_93 = arith.constant 0 : index
    %c250 = arith.constant 250 : index
    %365 = vector.load %arg1[%c0_93, %c250] : memref<8x390xf32, #tpu.memory_space<vmem>>, vector<8x10xf32>
    %366 = tpu.concatenate %365, %0 in 1 : vector<8x10xf32>, vector<8x1xf32> -> vector<8x11xf32>
    %cst_94 = arith.constant dense<0.000000e+00> : vector<8x256xf32>
    %367 = tpu.matmul %366, %363, %cst_94 {dimension_numbers = #tpu.dot_dimension_numbers<[1], [0], [0], [1], [0, 0, 1, 1], [], []>} : vector<8x11xf32>, vector<11x256xf32>, vector<8x256xf32> -> vector<8x256xf32>
    %c0_95 = arith.constant 0 : index
    %c260 = arith.constant 260 : index
    %368 = vector.load %arg1[%c0_95, %c260] : memref<8x390xf32, #tpu.memory_space<vmem>>, vector<8x10xf32>
    %369 = tpu.concatenate %368, %0 in 1 : vector<8x10xf32>, vector<8x1xf32> -> vector<8x11xf32>
    %cst_96 = arith.constant dense<0.000000e+00> : vector<8x256xf32>
    %370 = tpu.matmul %369, %363, %cst_96 {dimension_numbers = #tpu.dot_dimension_numbers<[1], [0], [0], [1], [0, 0, 1, 1], [], []>} : vector<8x11xf32>, vector<11x256xf32>, vector<8x256xf32> -> vector<8x256xf32>
    %c0_97 = arith.constant 0 : index
    %c270 = arith.constant 270 : index
    %371 = vector.load %arg1[%c0_97, %c270] : memref<8x390xf32, #tpu.memory_space<vmem>>, vector<8x10xf32>
    %372 = tpu.concatenate %371, %0 in 1 : vector<8x10xf32>, vector<8x1xf32> -> vector<8x11xf32>
    %cst_98 = arith.constant dense<0.000000e+00> : vector<8x256xf32>
    %373 = tpu.matmul %372, %363, %cst_98 {dimension_numbers = #tpu.dot_dimension_numbers<[1], [0], [0], [1], [0, 0, 1, 1], [], []>} : vector<8x11xf32>, vector<11x256xf32>, vector<8x256xf32> -> vector<8x256xf32>
    %c0_99 = arith.constant 0 : index
    %c280 = arith.constant 280 : index
    %374 = vector.load %arg1[%c0_99, %c280] : memref<8x390xf32, #tpu.memory_space<vmem>>, vector<8x10xf32>
    %375 = tpu.concatenate %374, %0 in 1 : vector<8x10xf32>, vector<8x1xf32> -> vector<8x11xf32>
    %cst_100 = arith.constant dense<0.000000e+00> : vector<8x256xf32>
    %376 = tpu.matmul %375, %363, %cst_100 {dimension_numbers = #tpu.dot_dimension_numbers<[1], [0], [0], [1], [0, 0, 1, 1], [], []>} : vector<8x11xf32>, vector<11x256xf32>, vector<8x256xf32> -> vector<8x256xf32>
    %c0_101 = arith.constant 0 : index
    %c290 = arith.constant 290 : index
    %377 = vector.load %arg1[%c0_101, %c290] : memref<8x390xf32, #tpu.memory_space<vmem>>, vector<8x10xf32>
    %378 = tpu.concatenate %377, %0 in 1 : vector<8x10xf32>, vector<8x1xf32> -> vector<8x11xf32>
    %cst_102 = arith.constant dense<0.000000e+00> : vector<8x256xf32>
    %379 = tpu.matmul %378, %363, %cst_102 {dimension_numbers = #tpu.dot_dimension_numbers<[1], [0], [0], [1], [0, 0, 1, 1], [], []>} : vector<8x11xf32>, vector<11x256xf32>, vector<8x256xf32> -> vector<8x256xf32>
    %c0_103 = arith.constant 0 : index
    %c300 = arith.constant 300 : index
    %380 = vector.load %arg1[%c0_103, %c300] : memref<8x390xf32, #tpu.memory_space<vmem>>, vector<8x10xf32>
    %381 = tpu.concatenate %380, %0 in 1 : vector<8x10xf32>, vector<8x1xf32> -> vector<8x11xf32>
    %cst_104 = arith.constant dense<0.000000e+00> : vector<8x256xf32>
    %382 = tpu.matmul %381, %363, %cst_104 {dimension_numbers = #tpu.dot_dimension_numbers<[1], [0], [0], [1], [0, 0, 1, 1], [], []>} : vector<8x11xf32>, vector<11x256xf32>, vector<8x256xf32> -> vector<8x256xf32>
    %cst_105 = arith.constant 0.000000e+00 : f32
    %383 = vector.broadcast %cst_105 : f32 to vector<8x64xf32>
    %cst_106 = arith.constant 0.000000e+00 : f32
    %384 = vector.broadcast %cst_106 : f32 to vector<8x64xf32>
    %cst_107 = arith.constant dense<0.000000e+00> : vector<8x256xf32>
    %385 = tpu.matmul %383, %364, %cst_107 {dimension_numbers = #tpu.dot_dimension_numbers<[1], [0], [0], [1], [0, 0, 1, 1], [], []>} : vector<8x64xf32>, vector<64x256xf32>, vector<8x256xf32> -> vector<8x256xf32>
    %386 = arith.addf %367, %385 : vector<8x256xf32>
    %387 = vector.extract_strided_slice %386 {offsets = [0, 0], sizes = [8, 192], strides = [1, 1]} : vector<8x256xf32> to vector<8x192xf32>
    %388 = arith.negf %387 : vector<8x192xf32>
    %389 = math.exp %388 : vector<8x192xf32>
    %cst_108 = arith.constant 1.000000e+00 : f32
    %390 = vector.broadcast %cst_108 : f32 to vector<8x192xf32>
    %391 = arith.addf %390, %389 : vector<8x192xf32>
    %392 = arith.divf %390, %391 : vector<8x192xf32>
    %393 = vector.extract_strided_slice %392 {offsets = [0, 64], sizes = [8, 64], strides = [1, 1]} : vector<8x192xf32> to vector<8x64xf32>
    %394 = arith.mulf %393, %384 : vector<8x64xf32>
    %395 = vector.extract_strided_slice %392 {offsets = [0, 0], sizes = [8, 64], strides = [1, 1]} : vector<8x192xf32> to vector<8x64xf32>
    %396 = vector.extract_strided_slice %386 {offsets = [0, 192], sizes = [8, 64], strides = [1, 1]} : vector<8x256xf32> to vector<8x64xf32>
    %397 = math.tanh %396 : vector<8x64xf32>
    %398 = arith.mulf %395, %397 : vector<8x64xf32>
    %399 = arith.addf %394, %398 : vector<8x64xf32>
    %400 = vector.extract_strided_slice %392 {offsets = [0, 128], sizes = [8, 64], strides = [1, 1]} : vector<8x192xf32> to vector<8x64xf32>
    %401 = math.tanh %399 : vector<8x64xf32>
    %402 = arith.mulf %400, %401 : vector<8x64xf32>
    %cst_109 = arith.constant dense<0.000000e+00> : vector<8x256xf32>
    %403 = tpu.matmul %402, %364, %cst_109 {dimension_numbers = #tpu.dot_dimension_numbers<[1], [0], [0], [1], [0, 0, 1, 1], [], []>} : vector<8x64xf32>, vector<64x256xf32>, vector<8x256xf32> -> vector<8x256xf32>
    %404 = arith.addf %370, %403 : vector<8x256xf32>
    %405 = vector.extract_strided_slice %404 {offsets = [0, 0], sizes = [8, 192], strides = [1, 1]} : vector<8x256xf32> to vector<8x192xf32>
    %406 = arith.negf %405 : vector<8x192xf32>
    %407 = math.exp %406 : vector<8x192xf32>
    %cst_110 = arith.constant 1.000000e+00 : f32
    %408 = vector.broadcast %cst_110 : f32 to vector<8x192xf32>
    %409 = arith.addf %408, %407 : vector<8x192xf32>
    %410 = arith.divf %408, %409 : vector<8x192xf32>
    %411 = vector.extract_strided_slice %410 {offsets = [0, 64], sizes = [8, 64], strides = [1, 1]} : vector<8x192xf32> to vector<8x64xf32>
    %412 = arith.mulf %411, %399 : vector<8x64xf32>
    %413 = vector.extract_strided_slice %410 {offsets = [0, 0], sizes = [8, 64], strides = [1, 1]} : vector<8x192xf32> to vector<8x64xf32>
    %414 = vector.extract_strided_slice %404 {offsets = [0, 192], sizes = [8, 64], strides = [1, 1]} : vector<8x256xf32> to vector<8x64xf32>
    %415 = math.tanh %414 : vector<8x64xf32>
    %416 = arith.mulf %413, %415 : vector<8x64xf32>
    %417 = arith.addf %412, %416 : vector<8x64xf32>
    %418 = vector.extract_strided_slice %410 {offsets = [0, 128], sizes = [8, 64], strides = [1, 1]} : vector<8x192xf32> to vector<8x64xf32>
    %419 = math.tanh %417 : vector<8x64xf32>
    %420 = arith.mulf %418, %419 : vector<8x64xf32>
    %cst_111 = arith.constant dense<0.000000e+00> : vector<8x256xf32>
    %421 = tpu.matmul %420, %364, %cst_111 {dimension_numbers = #tpu.dot_dimension_numbers<[1], [0], [0], [1], [0, 0, 1, 1], [], []>} : vector<8x64xf32>, vector<64x256xf32>, vector<8x256xf32> -> vector<8x256xf32>
    %422 = arith.addf %373, %421 : vector<8x256xf32>
    %423 = vector.extract_strided_slice %422 {offsets = [0, 0], sizes = [8, 192], strides = [1, 1]} : vector<8x256xf32> to vector<8x192xf32>
    %424 = arith.negf %423 : vector<8x192xf32>
    %425 = math.exp %424 : vector<8x192xf32>
    %cst_112 = arith.constant 1.000000e+00 : f32
    %426 = vector.broadcast %cst_112 : f32 to vector<8x192xf32>
    %427 = arith.addf %426, %425 : vector<8x192xf32>
    %428 = arith.divf %426, %427 : vector<8x192xf32>
    %429 = vector.extract_strided_slice %428 {offsets = [0, 64], sizes = [8, 64], strides = [1, 1]} : vector<8x192xf32> to vector<8x64xf32>
    %430 = arith.mulf %429, %417 : vector<8x64xf32>
    %431 = vector.extract_strided_slice %428 {offsets = [0, 0], sizes = [8, 64], strides = [1, 1]} : vector<8x192xf32> to vector<8x64xf32>
    %432 = vector.extract_strided_slice %422 {offsets = [0, 192], sizes = [8, 64], strides = [1, 1]} : vector<8x256xf32> to vector<8x64xf32>
    %433 = math.tanh %432 : vector<8x64xf32>
    %434 = arith.mulf %431, %433 : vector<8x64xf32>
    %435 = arith.addf %430, %434 : vector<8x64xf32>
    %436 = vector.extract_strided_slice %428 {offsets = [0, 128], sizes = [8, 64], strides = [1, 1]} : vector<8x192xf32> to vector<8x64xf32>
    %437 = math.tanh %435 : vector<8x64xf32>
    %438 = arith.mulf %436, %437 : vector<8x64xf32>
    %cst_113 = arith.constant dense<0.000000e+00> : vector<8x256xf32>
    %439 = tpu.matmul %438, %364, %cst_113 {dimension_numbers = #tpu.dot_dimension_numbers<[1], [0], [0], [1], [0, 0, 1, 1], [], []>} : vector<8x64xf32>, vector<64x256xf32>, vector<8x256xf32> -> vector<8x256xf32>
    %440 = arith.addf %376, %439 : vector<8x256xf32>
    %441 = vector.extract_strided_slice %440 {offsets = [0, 0], sizes = [8, 192], strides = [1, 1]} : vector<8x256xf32> to vector<8x192xf32>
    %442 = arith.negf %441 : vector<8x192xf32>
    %443 = math.exp %442 : vector<8x192xf32>
    %cst_114 = arith.constant 1.000000e+00 : f32
    %444 = vector.broadcast %cst_114 : f32 to vector<8x192xf32>
    %445 = arith.addf %444, %443 : vector<8x192xf32>
    %446 = arith.divf %444, %445 : vector<8x192xf32>
    %447 = vector.extract_strided_slice %446 {offsets = [0, 64], sizes = [8, 64], strides = [1, 1]} : vector<8x192xf32> to vector<8x64xf32>
    %448 = arith.mulf %447, %435 : vector<8x64xf32>
    %449 = vector.extract_strided_slice %446 {offsets = [0, 0], sizes = [8, 64], strides = [1, 1]} : vector<8x192xf32> to vector<8x64xf32>
    %450 = vector.extract_strided_slice %440 {offsets = [0, 192], sizes = [8, 64], strides = [1, 1]} : vector<8x256xf32> to vector<8x64xf32>
    %451 = math.tanh %450 : vector<8x64xf32>
    %452 = arith.mulf %449, %451 : vector<8x64xf32>
    %453 = arith.addf %448, %452 : vector<8x64xf32>
    %454 = vector.extract_strided_slice %446 {offsets = [0, 128], sizes = [8, 64], strides = [1, 1]} : vector<8x192xf32> to vector<8x64xf32>
    %455 = math.tanh %453 : vector<8x64xf32>
    %456 = arith.mulf %454, %455 : vector<8x64xf32>
    %cst_115 = arith.constant dense<0.000000e+00> : vector<8x256xf32>
    %457 = tpu.matmul %456, %364, %cst_115 {dimension_numbers = #tpu.dot_dimension_numbers<[1], [0], [0], [1], [0, 0, 1, 1], [], []>} : vector<8x64xf32>, vector<64x256xf32>, vector<8x256xf32> -> vector<8x256xf32>
    %458 = arith.addf %379, %457 : vector<8x256xf32>
    %459 = vector.extract_strided_slice %458 {offsets = [0, 0], sizes = [8, 192], strides = [1, 1]} : vector<8x256xf32> to vector<8x192xf32>
    %460 = arith.negf %459 : vector<8x192xf32>
    %461 = math.exp %460 : vector<8x192xf32>
    %cst_116 = arith.constant 1.000000e+00 : f32
    %462 = vector.broadcast %cst_116 : f32 to vector<8x192xf32>
    %463 = arith.addf %462, %461 : vector<8x192xf32>
    %464 = arith.divf %462, %463 : vector<8x192xf32>
    %465 = vector.extract_strided_slice %464 {offsets = [0, 64], sizes = [8, 64], strides = [1, 1]} : vector<8x192xf32> to vector<8x64xf32>
    %466 = arith.mulf %465, %453 : vector<8x64xf32>
    %467 = vector.extract_strided_slice %464 {offsets = [0, 0], sizes = [8, 64], strides = [1, 1]} : vector<8x192xf32> to vector<8x64xf32>
    %468 = vector.extract_strided_slice %458 {offsets = [0, 192], sizes = [8, 64], strides = [1, 1]} : vector<8x256xf32> to vector<8x64xf32>
    %469 = math.tanh %468 : vector<8x64xf32>
    %470 = arith.mulf %467, %469 : vector<8x64xf32>
    %471 = arith.addf %466, %470 : vector<8x64xf32>
    %472 = vector.extract_strided_slice %464 {offsets = [0, 128], sizes = [8, 64], strides = [1, 1]} : vector<8x192xf32> to vector<8x64xf32>
    %473 = math.tanh %471 : vector<8x64xf32>
    %474 = arith.mulf %472, %473 : vector<8x64xf32>
    %cst_117 = arith.constant dense<0.000000e+00> : vector<8x256xf32>
    %475 = tpu.matmul %474, %364, %cst_117 {dimension_numbers = #tpu.dot_dimension_numbers<[1], [0], [0], [1], [0, 0, 1, 1], [], []>} : vector<8x64xf32>, vector<64x256xf32>, vector<8x256xf32> -> vector<8x256xf32>
    %476 = arith.addf %382, %475 : vector<8x256xf32>
    %477 = vector.extract_strided_slice %476 {offsets = [0, 0], sizes = [8, 192], strides = [1, 1]} : vector<8x256xf32> to vector<8x192xf32>
    %478 = arith.negf %477 : vector<8x192xf32>
    %479 = math.exp %478 : vector<8x192xf32>
    %cst_118 = arith.constant 1.000000e+00 : f32
    %480 = vector.broadcast %cst_118 : f32 to vector<8x192xf32>
    %481 = arith.addf %480, %479 : vector<8x192xf32>
    %482 = arith.divf %480, %481 : vector<8x192xf32>
    %483 = vector.extract_strided_slice %482 {offsets = [0, 64], sizes = [8, 64], strides = [1, 1]} : vector<8x192xf32> to vector<8x64xf32>
    %484 = arith.mulf %483, %471 : vector<8x64xf32>
    %485 = vector.extract_strided_slice %482 {offsets = [0, 0], sizes = [8, 64], strides = [1, 1]} : vector<8x192xf32> to vector<8x64xf32>
    %486 = vector.extract_strided_slice %476 {offsets = [0, 192], sizes = [8, 64], strides = [1, 1]} : vector<8x256xf32> to vector<8x64xf32>
    %487 = math.tanh %486 : vector<8x64xf32>
    %488 = arith.mulf %485, %487 : vector<8x64xf32>
    %489 = arith.addf %484, %488 : vector<8x64xf32>
    %490 = vector.extract_strided_slice %482 {offsets = [0, 128], sizes = [8, 64], strides = [1, 1]} : vector<8x192xf32> to vector<8x64xf32>
    %491 = math.tanh %489 : vector<8x64xf32>
    %492 = arith.mulf %490, %491 : vector<8x64xf32>
    %493 = vector.extract_strided_slice %492 {offsets = [0, 0], sizes = [8, 32], strides = [1, 1]} : vector<8x64xf32> to vector<8x32xf32>
    %494 = vector.extract_strided_slice %492 {offsets = [0, 32], sizes = [8, 32], strides = [1, 1]} : vector<8x64xf32> to vector<8x32xf32>
    %495 = vector.extract_strided_slice %17 {offsets = [0, 0], sizes = [8, 32], strides = [1, 1]} : vector<8x512xf32> to vector<8x32xf32>
    %496 = vector.extract_strided_slice %17 {offsets = [0, 32], sizes = [8, 32], strides = [1, 1]} : vector<8x512xf32> to vector<8x32xf32>
    %497 = vector.extract_strided_slice %17 {offsets = [0, 64], sizes = [8, 32], strides = [1, 1]} : vector<8x512xf32> to vector<8x32xf32>
    %498 = vector.extract_strided_slice %17 {offsets = [0, 96], sizes = [8, 32], strides = [1, 1]} : vector<8x512xf32> to vector<8x32xf32>
    %499 = vector.extract_strided_slice %17 {offsets = [0, 128], sizes = [8, 32], strides = [1, 1]} : vector<8x512xf32> to vector<8x32xf32>
    %500 = vector.extract_strided_slice %17 {offsets = [0, 160], sizes = [8, 32], strides = [1, 1]} : vector<8x512xf32> to vector<8x32xf32>
    %501 = vector.extract_strided_slice %17 {offsets = [0, 192], sizes = [8, 32], strides = [1, 1]} : vector<8x512xf32> to vector<8x32xf32>
    %502 = vector.extract_strided_slice %17 {offsets = [0, 224], sizes = [8, 32], strides = [1, 1]} : vector<8x512xf32> to vector<8x32xf32>
    %503 = vector.extract_strided_slice %17 {offsets = [0, 256], sizes = [8, 32], strides = [1, 1]} : vector<8x512xf32> to vector<8x32xf32>
    %504 = vector.extract_strided_slice %17 {offsets = [0, 288], sizes = [8, 32], strides = [1, 1]} : vector<8x512xf32> to vector<8x32xf32>
    %505 = vector.extract_strided_slice %17 {offsets = [0, 320], sizes = [8, 32], strides = [1, 1]} : vector<8x512xf32> to vector<8x32xf32>
    %506 = vector.extract_strided_slice %17 {offsets = [0, 352], sizes = [8, 32], strides = [1, 1]} : vector<8x512xf32> to vector<8x32xf32>
    %507 = vector.extract_strided_slice %17 {offsets = [0, 384], sizes = [8, 32], strides = [1, 1]} : vector<8x512xf32> to vector<8x32xf32>
    %508 = vector.extract_strided_slice %17 {offsets = [0, 416], sizes = [8, 32], strides = [1, 1]} : vector<8x512xf32> to vector<8x32xf32>
    %509 = vector.extract_strided_slice %17 {offsets = [0, 448], sizes = [8, 32], strides = [1, 1]} : vector<8x512xf32> to vector<8x32xf32>
    %510 = vector.extract_strided_slice %17 {offsets = [0, 480], sizes = [8, 32], strides = [1, 1]} : vector<8x512xf32> to vector<8x32xf32>
    %511 = tpu.concatenate %248, %495, %249, %496, %64, %497, %65, %498, %493, %499, %494, %500, %250, %501, %251, %502 in 1 : vector<8x32xf32>, vector<8x32xf32>, vector<8x32xf32>, vector<8x32xf32>, vector<8x32xf32>, vector<8x32xf32>, vector<8x32xf32>, vector<8x32xf32>, vector<8x32xf32>, vector<8x32xf32>, vector<8x32xf32>, vector<8x32xf32>, vector<8x32xf32>, vector<8x32xf32>, vector<8x32xf32>, vector<8x32xf32> -> vector<8x512xf32>
    %512 = tpu.concatenate %361, %503, %66, %504, %67, %505, %362, %506, %135, %507, %136, %508, %137, %509, %138, %510 in 1 : vector<8x32xf32>, vector<8x32xf32>, vector<8x32xf32>, vector<8x32xf32>, vector<8x32xf32>, vector<8x32xf32>, vector<8x32xf32>, vector<8x32xf32>, vector<8x32xf32>, vector<8x32xf32>, vector<8x32xf32>, vector<8x32xf32>, vector<8x32xf32>, vector<8x32xf32>, vector<8x32xf32>, vector<8x32xf32> -> vector<8x512xf32>
    %513 = tpu.concatenate %511, %512 in 1 : vector<8x512xf32>, vector<8x512xf32> -> vector<8x1024xf32>
    %c0_119 = arith.constant 0 : index
    %c0_120 = arith.constant 0 : index
    %514 = vector.load %arg13[%c0_119, %c0_120] : memref<8x1024xf32, #tpu.memory_space<vmem>>, vector<8x1024xf32>
    tpu.vector_store %arg13[%c0_119, %c0_120], %513 {strides = array<i32>} : memref<8x1024xf32, #tpu.memory_space<vmem>>, vector<8x1024xf32>,
    return
  }
  func.func @transform_0(%arg0: i32) -> (i32, i32) {
    %c0_i32 = arith.constant 0 : i32
    %c0_i32_0 = arith.constant 0 : i32
    return %arg0, %c0_i32 : i32, i32
  }
  func.func @transform_1(%arg0: i32) -> (i32, i32) {
    %c0_i32 = arith.constant 0 : i32
    %c0_i32_0 = arith.constant 0 : i32
    %c0_i32_1 = arith.constant 0 : i32
    return %c0_i32, %c0_i32_0 : i32, i32
  }
  func.func @transform_2(%arg0: i32) -> (i32, i32) {
    %c0_i32 = arith.constant 0 : i32
    %c0_i32_0 = arith.constant 0 : i32
    %c0_i32_1 = arith.constant 0 : i32
    return %c0_i32, %c0_i32_0 : i32, i32
  }
  func.func @transform_3(%arg0: i32) -> (i32, i32) {
    %c0_i32 = arith.constant 0 : i32
    %c0_i32_0 = arith.constant 0 : i32
    %c0_i32_1 = arith.constant 0 : i32
    return %c0_i32, %c0_i32_0 : i32, i32
  }
  func.func @transform_4(%arg0: i32) -> (i32, i32) {
    %c0_i32 = arith.constant 0 : i32
    %c0_i32_0 = arith.constant 0 : i32
    %c0_i32_1 = arith.constant 0 : i32
    return %c0_i32, %c0_i32_0 : i32, i32
  }
  func.func @transform_5(%arg0: i32) -> (i32, i32) {
    %c0_i32 = arith.constant 0 : i32
    %c0_i32_0 = arith.constant 0 : i32
    %c0_i32_1 = arith.constant 0 : i32
    return %c0_i32, %c0_i32_0 : i32, i32
  }
  func.func @transform_6(%arg0: i32) -> (i32, i32) {
    %c0_i32 = arith.constant 0 : i32
    %c0_i32_0 = arith.constant 0 : i32
    %c0_i32_1 = arith.constant 0 : i32
    return %c0_i32, %c0_i32_0 : i32, i32
  }
  func.func @transform_7(%arg0: i32) -> (i32, i32) {
    %c0_i32 = arith.constant 0 : i32
    %c0_i32_0 = arith.constant 0 : i32
    %c0_i32_1 = arith.constant 0 : i32
    return %c0_i32, %c0_i32_0 : i32, i32
  }
  func.func @transform_8(%arg0: i32) -> (i32, i32) {
    %c0_i32 = arith.constant 0 : i32
    %c0_i32_0 = arith.constant 0 : i32
    %c0_i32_1 = arith.constant 0 : i32
    return %c0_i32, %c0_i32_0 : i32, i32
  }
  func.func @transform_9(%arg0: i32) -> (i32, i32) {
    %c0_i32 = arith.constant 0 : i32
    %c0_i32_0 = arith.constant 0 : i32
    %c0_i32_1 = arith.constant 0 : i32
    return %c0_i32, %c0_i32_0 : i32, i32
  }
  func.func @transform_10(%arg0: i32) -> (i32, i32) {
    %c0_i32 = arith.constant 0 : i32
    %c0_i32_0 = arith.constant 0 : i32
    %c0_i32_1 = arith.constant 0 : i32
    return %c0_i32, %c0_i32_0 : i32, i32
  }
  func.func @transform_11(%arg0: i32) -> (i32, i32) {
    %c0_i32 = arith.constant 0 : i32
    %c0_i32_0 = arith.constant 0 : i32
    %c0_i32_1 = arith.constant 0 : i32
    return %c0_i32, %c0_i32_0 : i32, i32
  }
  func.func @transform_12(%arg0: i32) -> (i32, i32) {
    %c0_i32 = arith.constant 0 : i32
    %c0_i32_0 = arith.constant 0 : i32
    return %arg0, %c0_i32 : i32, i32
  }
}

</mosaic_0001>

<llo_original>
// kernel: tpu_custom_call.1
$region0: #{tpu_custom_call.1}
  #allocation0 [shape = 'u32[]', space=smem, size = 0x4, offset = 0x4, fixed_abs, tag = 'smem constant byte address 0x4 - core index']
  #allocation1 [shape = 'u32[144,128]{1,0:T(1,128)}', space=vmem, size = 0x12000, scoped, tag = 'internal scratch']
  %s0 = inlined_call_operand.hbm [shape: f32[8,390], index: 0, kind: input, shape index: {}]
  %s1 = inlined_call_operand.hbm [shape: f32[81,1536], index: 1, kind: input, shape index: {}]
  %s2 = inlined_call_operand.hbm [shape: f32[21,512], index: 2, kind: input, shape index: {}]
  %s3 = inlined_call_operand.hbm [shape: f32[128,512], index: 3, kind: input, shape index: {}]
  %s4 = inlined_call_operand.hbm [shape: f32[21,512], index: 4, kind: input, shape index: {}]
  %s5 = inlined_call_operand.hbm [shape: f32[128,512], index: 5, kind: input, shape index: {}]
  %s6 = inlined_call_operand.hbm [shape: f32[21,512], index: 6, kind: input, shape index: {}]
  %s7 = inlined_call_operand.hbm [shape: f32[128,512], index: 7, kind: input, shape index: {}]
  %s8 = inlined_call_operand.hbm [shape: f32[11,256], index: 8, kind: input, shape index: {}]
  %s9 = inlined_call_operand.hbm [shape: f32[64,256], index: 9, kind: input, shape index: {}]
  %s10 = inlined_call_operand.hbm [shape: f32[11,256], index: 10, kind: input, shape index: {}]
  %s11 = inlined_call_operand.hbm [shape: f32[64,256], index: 11, kind: input, shape index: {}]
  %s12 = inlined_call_operand.hbm [shape: f32[8,1024], index: 12, kind: output, shape index: {}]
  %s13 = sld [smem:[#allocation0]]
  $region106: #{tpu_custom_call.1} parent=0
    _
  %s15 = ssub.s32 1, %s13
  %s16 = scalar_select 0, %s15, %s13
  $region1: #{tpu_custom_call.1} parent=0
    #allocation2 [shape = 'u8[16384]{0}', space=vmem, size = 0x4000, scoped, tag = 'input window, operand 0, single buffered']
    #allocation3 [shape = 's32[1]{0}', space=sflag, size = 0x4, scoped, tag = 'scoped memory for tpu_custom_call.1']
    #allocation4 [shape = 's32[1]{0}', space=sflag, size = 0x4, scoped, tag = 'scoped memory for tpu_custom_call.1']
    #allocation5 [shape = 'u8[540672]{0}', space=vmem, size = 0x84000, scoped, tag = 'input window, operand 1, single buffered']
    #allocation6 [shape = 's32[1]{0}', space=sflag, size = 0x4, scoped, tag = 'scoped memory for tpu_custom_call.1']
    #allocation7 [shape = 'u8[49152]{0}', space=vmem, size = 0xc000, scoped, tag = 'input window, operand 2, single buffered']
    #allocation8 [shape = 'u8[262144]{0}', space=vmem, size = 0x40000, scoped, tag = 'input window, operand 3, single buffered']
    #allocation9 [shape = 's32[1]{0}', space=sflag, size = 0x4, scoped, tag = 'scoped memory for tpu_custom_call.1']
    #allocation10 [shape = 'u8[49152]{0}', space=vmem, size = 0xc000, scoped, tag = 'input window, operand 4, single buffered']
    #allocation11 [shape = 'u8[262144]{0}', space=vmem, size = 0x40000, scoped, tag = 'input window, operand 5, single buffered']
    #allocation12 [shape = 's32[1]{0}', space=sflag, size = 0x4, scoped, tag = 'scoped memory for tpu_custom_call.1']
    #allocation13 [shape = 'u8[49152]{0}', space=vmem, size = 0xc000, scoped, tag = 'input window, operand 6, single buffered']
    #allocation14 [shape = 'u8[262144]{0}', space=vmem, size = 0x40000, scoped, tag = 'input window, operand 7, single buffered']
    #allocation15 [shape = 's32[1]{0}', space=sflag, size = 0x4, scoped, tag = 'scoped memory for tpu_custom_call.1']
    #allocation16 [shape = 'u8[16384]{0}', space=vmem, size = 0x4000, scoped, tag = 'input window, operand 8, single buffered']
    #allocation17 [shape = 'u8[65536]{0}', space=vmem, size = 0x10000, scoped, tag = 'input window, operand 9, single buffered']
    #allocation18 [shape = 's32[1]{0}', space=sflag, size = 0x4, scoped, tag = 'scoped memory for tpu_custom_call.1']
    #allocation19 [shape = 'u8[16384]{0}', space=vmem, size = 0x4000, scoped, tag = 'input window, operand 10, single buffered']
    #allocation20 [shape = 'u8[65536]{0}', space=vmem, size = 0x10000, scoped, tag = 'input window, operand 11, single buffered']
    #allocation21 [shape = 's32[1]{0}', space=sflag, size = 0x4, scoped, tag = 'scoped memory for tpu_custom_call.1']
    #allocation22 [shape = 'u8[32768]{0}', space=vmem, size = 0x8000, scoped, tag = 'output window, operand 0, single buffered']
    %17 = vsyncpa [#allocation3], 0
    %18 = vsyncpa [#allocation6], 0
    %19 = vsyncpa [#allocation9], 0
    %20 = vsyncpa [#allocation12], 0
    %21 = vsyncpa [#allocation15], 0
    %22 = vsyncpa [#allocation18], 0
    %23 = vsyncpa [#allocation21], 0
    %24 = vsyncpa [#allocation4], 0
    // Predicated region
    $region2: #{tpu_custom_call.1} parent=1 // pred_check
      _
    $region3: #{tpu_custom_call.1} parent=1 // pred_check_branch
      %26 = sbr.rel (0) target = $region5
    $region4: #{tpu_custom_call.1} parent=1 // pred_region
      %s28 = ssub.s32 512, 512
      %29 = vsyncadd [#allocation3], %s28
      %s31 = sshll.u32 [#allocation2], 4
      %s32 = int_to_ptr.vmem [resolvable:$true] %s31
      %34 = dma.hbm_to_vmem [thread:$0]  %s0, 512, %s32, [#allocation3]
    $region5: #{tpu_custom_call.1} parent=1 // pred_fallthru
      _
    // Predicated region
    $region6: #{tpu_custom_call.1} parent=1 // pred_check
      _
    $region7: #{tpu_custom_call.1} parent=1 // pred_check_branch
      %36 = sbr.rel (0) target = $region9
    $region8: #{tpu_custom_call.1} parent=1 // pred_region
      %s38 = ssub.s32 16896, 16896
      %39 = vsyncadd [#allocation6], %s38
      %s40 = sshll.u32 [#allocation5], 4
      %s41 = int_to_ptr.vmem [resolvable:$true] %s40
      %46 = dma.hbm_to_vmem [thread:$0]  %s1, 16896, %s41, [#allocation6], 1536, 1536, 96
    $region9: #{tpu_custom_call.1} parent=1 // pred_fallthru
      _
    // Predicated region
    $region10: #{tpu_custom_call.1} parent=1 // pred_check
      _
    $region11: #{tpu_custom_call.1} parent=1 // pred_check_branch
      %48 = sbr.rel (0) target = $region13
    $region12: #{tpu_custom_call.1} parent=1 // pred_region
      %s50 = ssub.s32 1536, 1536
      %51 = vsyncadd [#allocation6], %s50
      %s52 = sshll.u32 [#allocation7], 4
      %s53 = int_to_ptr.vmem [resolvable:$true] %s52
      %58 = dma.hbm_to_vmem [thread:$0]  %s2, 1536, %s53, [#allocation6], 512, 512, 32
    $region13: #{tpu_custom_call.1} parent=1 // pred_fallthru
      _
    // Predicated region
    $region14: #{tpu_custom_call.1} parent=1 // pred_check
      _
    $region15: #{tpu_custom_call.1} parent=1 // pred_check_branch
      %60 = sbr.rel (0) target = $region17
    $region16: #{tpu_custom_call.1} parent=1 // pred_region
      %s62 = ssub.s32 8192, 8192
      %63 = vsyncadd [#allocation9], %s62
      %s64 = sshll.u32 [#allocation8], 4
      %s65 = int_to_ptr.vmem [resolvable:$true] %s64
      %70 = dma.hbm_to_vmem [thread:$0]  %s3, 8192, %s65, [#allocation9], 512, 512, 32
    $region17: #{tpu_custom_call.1} parent=1 // pred_fallthru
      _
    // Predicated region
    $region18: #{tpu_custom_call.1} parent=1 // pred_check
      _
    $region19: #{tpu_custom_call.1} parent=1 // pred_check_branch
      %72 = sbr.rel (0) target = $region21
    $region20: #{tpu_custom_call.1} parent=1 // pred_region
      %s74 = ssub.s32 1536, 1536
      %75 = vsyncadd [#allocation9], %s74
      %s76 = sshll.u32 [#allocation10], 4
      %s77 = int_to_ptr.vmem [resolvable:$true] %s76
      %82 = dma.hbm_to_vmem [thread:$0]  %s4, 1536, %s77, [#allocation9], 512, 512, 32
    $region21: #{tpu_custom_call.1} parent=1 // pred_fallthru
      _
    // Predicated region
    $region22: #{tpu_custom_call.1} parent=1 // pred_check
      _
    $region23: #{tpu_custom_call.1} parent=1 // pred_check_branch
      %84 = sbr.rel (0) target = $region25
    $region24: #{tpu_custom_call.1} parent=1 // pred_region
      %s86 = ssub.s32 8192, 8192
      %87 = vsyncadd [#allocation12], %s86
      %s88 = sshll.u32 [#allocation11], 4
      %s89 = int_to_ptr.vmem [resolvable:$true] %s88
      %94 = dma.hbm_to_vmem [thread:$0]  %s5, 8192, %s89, [#allocation12], 512, 512, 32
    $region25: #{tpu_custom_call.1} parent=1 // pred_fallthru
      _
    // Predicated region
    $region26: #{tpu_custom_call.1} parent=1 // pred_check
      _
    $region27: #{tpu_custom_call.1} parent=1 // pred_check_branch
      %96 = sbr.rel (0) target = $region29
    $region28: #{tpu_custom_call.1} parent=1 // pred_region
      %s98 = ssub.s32 1536, 1536
      %99 = vsyncadd [#allocation12], %s98
      %s100 = sshll.u32 [#allocation13], 4
      %s101 = int_to_ptr.vmem [resolvable:$true] %s100
      %106 = dma.hbm_to_vmem [thread:$0]  %s6, 1536, %s101, [#allocation12], 512, 512, 32
    $region29: #{tpu_custom_call.1} parent=1 // pred_fallthru
      _
    // Predicated region
    $region30: #{tpu_custom_call.1} parent=1 // pred_check
      _
    $region31: #{tpu_custom_call.1} parent=1 // pred_check_branch
      %108 = sbr.rel (0) target = $region33
    $region32: #{tpu_custom_call.1} parent=1 // pred_region
      %s110 = ssub.s32 8192, 8192
      %111 = vsyncadd [#allocation15], %s110
      %s112 = sshll.u32 [#allocation14], 4
      %s113 = int_to_ptr.vmem [resolvable:$true] %s112
      %118 = dma.hbm_to_vmem [thread:$0]  %s7, 8192, %s113, [#allocation15], 512, 512, 32
    $region33: #{tpu_custom_call.1} parent=1 // pred_fallthru
      _
    // Predicated region
    $region34: #{tpu_custom_call.1} parent=1 // pred_check
      _
    $region35: #{tpu_custom_call.1} parent=1 // pred_check_branch
      %120 = sbr.rel (0) target = $region37
    $region36: #{tpu_custom_call.1} parent=1 // pred_region
      %s122 = ssub.s32 512, 512
      %123 = vsyncadd [#allocation15], %s122
      %s124 = sshll.u32 [#allocation16], 4
      %s125 = int_to_ptr.vmem [resolvable:$true] %s124
      %130 = dma.hbm_to_vmem [thread:$0]  %s8, 512, %s125, [#allocation15], 256, 256, 16
    $region37: #{tpu_custom_call.1} parent=1 // pred_fallthru
      _
    // Predicated region
    $region38: #{tpu_custom_call.1} parent=1 // pred_check
      _
    $region39: #{tpu_custom_call.1} parent=1 // pred_check_branch
      %132 = sbr.rel (0) target = $region41
    $region40: #{tpu_custom_call.1} parent=1 // pred_region
      %s134 = ssub.s32 2048, 2048
      %135 = vsyncadd [#allocation18], %s134
      %s136 = sshll.u32 [#allocation17], 4
      %s137 = int_to_ptr.vmem [resolvable:$true] %s136
      %142 = dma.hbm_to_vmem [thread:$0]  %s9, 2048, %s137, [#allocation18], 256, 256, 16
    $region41: #{tpu_custom_call.1} parent=1 // pred_fallthru
      _
    // Predicated region
    $region42: #{tpu_custom_call.1} parent=1 // pred_check
      _
    $region43: #{tpu_custom_call.1} parent=1 // pred_check_branch
      %144 = sbr.rel (0) target = $region45
    $region44: #{tpu_custom_call.1} parent=1 // pred_region
      %s146 = ssub.s32 512, 512
      %147 = vsyncadd [#allocation18], %s146
      %s148 = sshll.u32 [#allocation19], 4
      %s149 = int_to_ptr.vmem [resolvable:$true] %s148
      %154 = dma.hbm_to_vmem [thread:$0]  %s10, 512, %s149, [#allocation18], 256, 256, 16
    $region45: #{tpu_custom_call.1} parent=1 // pred_fallthru
      _
    // Predicated region
    $region46: #{tpu_custom_call.1} parent=1 // pred_check
      _
    $region47: #{tpu_custom_call.1} parent=1 // pred_check_branch
      %156 = sbr.rel (0) target = $region49
    $region48: #{tpu_custom_call.1} parent=1 // pred_region
      %s158 = ssub.s32 2048, 2048
      %159 = vsyncadd [#allocation21], %s158
      %s160 = sshll.u32 [#allocation20], 4
      %s161 = int_to_ptr.vmem [resolvable:$true] %s160
      %166 = dma.hbm_to_vmem [thread:$0]  %s11, 2048, %s161, [#allocation21], 256, 256, 16
    $region49: #{tpu_custom_call.1} parent=1 // pred_fallthru
      _
    // Predicated region
    $region50: #{tpu_custom_call.1} parent=1 // pred_check
      _
    $region51: #{tpu_custom_call.1} parent=1 // pred_check_branch
      %168 = sbr.rel (0) target = $region53
    $region52: #{tpu_custom_call.1} parent=1 // pred_region
      %169 = dma.done [#allocation3], 512
    $region53: #{tpu_custom_call.1} parent=1 // pred_fallthru
      _
    // Predicated region
    $region54: #{tpu_custom_call.1} parent=1 // pred_check
      _
    $region55: #{tpu_custom_call.1} parent=1 // pred_check_branch
      %171 = sbr.rel (0) target = $region57
    $region56: #{tpu_custom_call.1} parent=1 // pred_region
      %172 = dma.done [#allocation6], 16896
    $region57: #{tpu_custom_call.1} parent=1 // pred_fallthru
      _
    // Predicated region
    $region58: #{tpu_custom_call.1} parent=1 // pred_check
      _
    $region59: #{tpu_custom_call.1} parent=1 // pred_check_branch
      %174 = sbr.rel (0) target = $region61
    $region60: #{tpu_custom_call.1} parent=1 // pred_region
      %175 = dma.done [#allocation6], 1536
    $region61: #{tpu_custom_call.1} parent=1 // pred_fallthru
      _
    // Predicated region
    $region62: #{tpu_custom_call.1} parent=1 // pred_check
      _
    $region63: #{tpu_custom_call.1} parent=1 // pred_check_branch
      %177 = sbr.rel (0) target = $region65
    $region64: #{tpu_custom_call.1} parent=1 // pred_region
      %178 = dma.done [#allocation9], 8192
    $region65: #{tpu_custom_call.1} parent=1 // pred_fallthru
      _
    // Predicated region
    $region66: #{tpu_custom_call.1} parent=1 // pred_check
      _
    $region67: #{tpu_custom_call.1} parent=1 // pred_check_branch
      %180 = sbr.rel (0) target = $region69
    $region68: #{tpu_custom_call.1} parent=1 // pred_region
      %181 = dma.done [#allocation9], 1536
    $region69: #{tpu_custom_call.1} parent=1 // pred_fallthru
      _
    // Predicated region
    $region70: #{tpu_custom_call.1} parent=1 // pred_check
      _
    $region71: #{tpu_custom_call.1} parent=1 // pred_check_branch
      %183 = sbr.rel (0) target = $region73
    $region72: #{tpu_custom_call.1} parent=1 // pred_region
      %184 = dma.done [#allocation12], 8192
    $region73: #{tpu_custom_call.1} parent=1 // pred_fallthru
      _
    // Predicated region
    $region74: #{tpu_custom_call.1} parent=1 // pred_check
      _
    $region75: #{tpu_custom_call.1} parent=1 // pred_check_branch
      %186 = sbr.rel (0) target = $region77
    $region76: #{tpu_custom_call.1} parent=1 // pred_region
      %187 = dma.done [#allocation12], 1536
    $region77: #{tpu_custom_call.1} parent=1 // pred_fallthru
      _
    // Predicated region
    $region78: #{tpu_custom_call.1} parent=1 // pred_check
      _
    $region79: #{tpu_custom_call.1} parent=1 // pred_check_branch
      %189 = sbr.rel (0) target = $region81
    $region80: #{tpu_custom_call.1} parent=1 // pred_region
      %190 = dma.done [#allocation15], 8192
    $region81: #{tpu_custom_call.1} parent=1 // pred_fallthru
      _
    // Predicated region
    $region82: #{tpu_custom_call.1} parent=1 // pred_check
      _
    $region83: #{tpu_custom_call.1} parent=1 // pred_check_branch
      %192 = sbr.rel (0) target = $region85
    $region84: #{tpu_custom_call.1} parent=1 // pred_region
      %193 = dma.done [#allocation15], 512
    $region85: #{tpu_custom_call.1} parent=1 // pred_fallthru
      _
    // Predicated region
    $region86: #{tpu_custom_call.1} parent=1 // pred_check
      _
    $region87: #{tpu_custom_call.1} parent=1 // pred_check_branch
      %195 = sbr.rel (0) target = $region89
    $region88: #{tpu_custom_call.1} parent=1 // pred_region
      %196 = dma.done [#allocation18], 2048
    $region89: #{tpu_custom_call.1} parent=1 // pred_fallthru
      _
    // Predicated region
    $region90: #{tpu_custom_call.1} parent=1 // pred_check
      _
    $region91: #{tpu_custom_call.1} parent=1 // pred_check_branch
      %198 = sbr.rel (0) target = $region93
    $region92: #{tpu_custom_call.1} parent=1 // pred_region
      %199 = dma.done [#allocation18], 512
    $region93: #{tpu_custom_call.1} parent=1 // pred_fallthru
      _
    // Predicated region
    $region94: #{tpu_custom_call.1} parent=1 // pred_check
      _
    $region95: #{tpu_custom_call.1} parent=1 // pred_check_branch
      %201 = sbr.rel (0) target = $region97
    $region96: #{tpu_custom_call.1} parent=1 // pred_region
      %202 = dma.done [#allocation21], 2048
    $region97: #{tpu_custom_call.1} parent=1 // pred_fallthru
      _
    %v203 = vld [vmem:[#allocation2 + $0x10] sm:$0xff]
    %v204 = vld [vmem:[#allocation2 + $0x18] sm:$0xff]
    %207 = vrot.lane.b32.xlu0 %v203, 74
    %v208 = vpop.permute.xlu0 %207
    %209 = vrot.lane.b32.xlu0 %v204, 74
    %v210 = vpop.permute.xlu0 %209
    %vm211 = vcmask 605184
    %v212 = vsel %vm211, %v208, %v210
    %vm214 = vcmask 654336
    %v215 = vsel %vm214, %v212, 1.0
    %v216 = vld [vmem:[#allocation5] sm:$0xff]
    %v217 = vld [vmem:[#allocation5 + $0x8] sm:$0xff]
    %v218 = vld [vmem:[#allocation5 + $0x10] sm:$0xff]
    %v219 = vld [vmem:[#allocation5 + $0x18] sm:$0xff]
    %v220 = vld [vmem:[#allocation5 + $0x20] sm:$0xff]
    %v221 = vld [vmem:[#allocation5 + $0x28] sm:$0xff]
    %v222 = vld [vmem:[#allocation5 + $0x30] sm:$0xff]
    %v223 = vld [vmem:[#allocation5 + $0x38] sm:$0xff]
    %v224 = vld [vmem:[#allocation5 + $0x40] sm:$0xff]
    %v225 = vld [vmem:[#allocation5 + $0x48] sm:$0xff]
    %v226 = vld [vmem:[#allocation5 + $0x50] sm:$0xff]
    %v227 = vld [vmem:[#allocation5 + $0x58] sm:$0xff]
    %v228 = vld [vmem:[#allocation5 + $0x60] sm:$0xff]
    %v229 = vld [vmem:[#allocation5 + $0x68] sm:$0xff]
    %v230 = vld [vmem:[#allocation5 + $0x70] sm:$0xff]
    %v231 = vld [vmem:[#allocation5 + $0x78] sm:$0xff]
    %v232 = vld [vmem:[#allocation5 + $0x80] sm:$0xff]
    %v233 = vld [vmem:[#allocation5 + $0x88] sm:$0xff]
    %v234 = vld [vmem:[#allocation5 + $0x90] sm:$0xff]
    %v235 = vld [vmem:[#allocation5 + $0x98] sm:$0xff]
    %v236 = vld [vmem:[#allocation5 + $0xa0] sm:$0xff]
    %v237 = vld [vmem:[#allocation5 + $0xa8] sm:$0xff]
    %v238 = vld [vmem:[#allocation5 + $0xb0] sm:$0xff]
    %v239 = vld [vmem:[#allocation5 + $0xb8] sm:$0xff]
    %v240 = vld [vmem:[#allocation5 + $0xc0] sm:$0xff]
    %v241 = vld [vmem:[#allocation5 + $0xc8] sm:$0xff]
    %v242 = vld [vmem:[#allocation5 + $0xd0] sm:$0xff]
    %v243 = vld [vmem:[#allocation5 + $0xd8] sm:$0xff]
    %v244 = vld [vmem:[#allocation5 + $0xe0] sm:$0xff]
    %v245 = vld [vmem:[#allocation5 + $0xe8] sm:$0xff]
    %v246 = vld [vmem:[#allocation5 + $0xf0] sm:$0xff]
    %v247 = vld [vmem:[#allocation5 + $0xf8] sm:$0xff]
    %v248 = vld [vmem:[#allocation5 + $0x100] sm:$0xff]
    %v249 = vld [vmem:[#allocation5 + $0x108] sm:$0xff]
    %v250 = vld [vmem:[#allocation5 + $0x110] sm:$0xff]
    %v251 = vld [vmem:[#allocation5 + $0x118] sm:$0xff]
    %v252 = vld [vmem:[#allocation5 + $0x120] sm:$0xff]
    %v253 = vld [vmem:[#allocation5 + $0x128] sm:$0xff]
    %v254 = vld [vmem:[#allocation5 + $0x130] sm:$0xff]
    %v255 = vld [vmem:[#allocation5 + $0x138] sm:$0xff]
    %v256 = vld [vmem:[#allocation5 + $0x140] sm:$0xff]
    %v257 = vld [vmem:[#allocation5 + $0x148] sm:$0xff]
    %v258 = vld [vmem:[#allocation5 + $0x150] sm:$0xff]
    %v259 = vld [vmem:[#allocation5 + $0x158] sm:$0xff]
    %v260 = vld [vmem:[#allocation5 + $0x160] sm:$0xff]
    %v261 = vld [vmem:[#allocation5 + $0x168] sm:$0xff]
    %v262 = vld [vmem:[#allocation5 + $0x170] sm:$0xff]
    %v263 = vld [vmem:[#allocation5 + $0x178] sm:$0xff]
    %v264 = vld [vmem:[#allocation5 + $0x180] sm:$0xff]
    %v265 = vld [vmem:[#allocation5 + $0x188] sm:$0xff]
    %v266 = vld [vmem:[#allocation5 + $0x190] sm:$0xff]
    %v267 = vld [vmem:[#allocation5 + $0x198] sm:$0xff]
    %v268 = vld [vmem:[#allocation5 + $0x1a0] sm:$0xff]
    %v269 = vld [vmem:[#allocation5 + $0x1a8] sm:$0xff]
    %v270 = vld [vmem:[#allocation5 + $0x1b0] sm:$0xff]
    %v271 = vld [vmem:[#allocation5 + $0x1b8] sm:$0xff]
    %v272 = vld [vmem:[#allocation5 + $0x1c0] sm:$0xff]
    %v273 = vld [vmem:[#allocation5 + $0x1c8] sm:$0xff]
    %v274 = vld [vmem:[#allocation5 + $0x1d0] sm:$0xff]
    %v275 = vld [vmem:[#allocation5 + $0x1d8] sm:$0xff]
    %v276 = vld [vmem:[#allocation5 + $0x1e0] sm:$0xff]
    %v277 = vld [vmem:[#allocation5 + $0x1e8] sm:$0xff]
    %v278 = vld [vmem:[#allocation5 + $0x1f0] sm:$0xff]
    %v279 = vld [vmem:[#allocation5 + $0x1f8] sm:$0xff]
    %v280 = vld [vmem:[#allocation5 + $0x200] sm:$0xff]
    %v281 = vld [vmem:[#allocation5 + $0x208] sm:$0xff]
    %v282 = vld [vmem:[#allocation5 + $0x210] sm:$0xff]
    %v283 = vld [vmem:[#allocation5 + $0x218] sm:$0xff]
    %v284 = vld [vmem:[#allocation5 + $0x220] sm:$0xff]
    %v285 = vld [vmem:[#allocation5 + $0x228] sm:$0xff]
    %v286 = vld [vmem:[#allocation5 + $0x230] sm:$0xff]
    %v287 = vld [vmem:[#allocation5 + $0x238] sm:$0xff]
    %v288 = vld [vmem:[#allocation5 + $0x240] sm:$0xff]
    %v289 = vld [vmem:[#allocation5 + $0x248] sm:$0xff]
    %v290 = vld [vmem:[#allocation5 + $0x250] sm:$0xff]
    %v291 = vld [vmem:[#allocation5 + $0x258] sm:$0xff]
    %v292 = vld [vmem:[#allocation5 + $0x260] sm:$0xff]
    %v293 = vld [vmem:[#allocation5 + $0x268] sm:$0xff]
    %v294 = vld [vmem:[#allocation5 + $0x270] sm:$0xff]
    %v295 = vld [vmem:[#allocation5 + $0x278] sm:$0xff]
    %v296 = vld [vmem:[#allocation5 + $0x280] sm:$0xff]
    %v297 = vld [vmem:[#allocation5 + $0x288] sm:$0xff]
    %v298 = vld [vmem:[#allocation5 + $0x290] sm:$0xff]
    %v299 = vld [vmem:[#allocation5 + $0x298] sm:$0xff]
    %v300 = vld [vmem:[#allocation5 + $0x2a0] sm:$0xff]
    %v301 = vld [vmem:[#allocation5 + $0x2a8] sm:$0xff]
    %v302 = vld [vmem:[#allocation5 + $0x2b0] sm:$0xff]
    %v303 = vld [vmem:[#allocation5 + $0x2b8] sm:$0xff]
    %v304 = vld [vmem:[#allocation5 + $0x2c0] sm:$0xff]
    %v305 = vld [vmem:[#allocation5 + $0x2c8] sm:$0xff]
    %v306 = vld [vmem:[#allocation5 + $0x2d0] sm:$0xff]
    %v307 = vld [vmem:[#allocation5 + $0x2d8] sm:$0xff]
    %v308 = vld [vmem:[#allocation5 + $0x2e0] sm:$0xff]
    %v309 = vld [vmem:[#allocation5 + $0x2e8] sm:$0xff]
    %v310 = vld [vmem:[#allocation5 + $0x2f0] sm:$0xff]
    %v311 = vld [vmem:[#allocation5 + $0x2f8] sm:$0xff]
    %v312 = vld [vmem:[#allocation5 + $0x300] sm:$0xff]
    %v313 = vld [vmem:[#allocation5 + $0x308] sm:$0xff]
    %v314 = vld [vmem:[#allocation5 + $0x310] sm:$0xff]
    %v315 = vld [vmem:[#allocation5 + $0x318] sm:$0xff]
    %v316 = vld [vmem:[#allocation5 + $0x320] sm:$0xff]
    %v317 = vld [vmem:[#allocation5 + $0x328] sm:$0xff]
    %v318 = vld [vmem:[#allocation5 + $0x330] sm:$0xff]
    %v319 = vld [vmem:[#allocation5 + $0x338] sm:$0xff]
    %v320 = vld [vmem:[#allocation5 + $0x340] sm:$0xff]
    %v321 = vld [vmem:[#allocation5 + $0x348] sm:$0xff]
    %v322 = vld [vmem:[#allocation5 + $0x350] sm:$0xff]
    %v323 = vld [vmem:[#allocation5 + $0x358] sm:$0xff]
    %v324 = vld [vmem:[#allocation5 + $0x360] sm:$0xff]
    %v325 = vld [vmem:[#allocation5 + $0x368] sm:$0xff]
    %v326 = vld [vmem:[#allocation5 + $0x370] sm:$0xff]
    %v327 = vld [vmem:[#allocation5 + $0x378] sm:$0xff]
    %v328 = vld [vmem:[#allocation5 + $0x380] sm:$0xff]
    %v329 = vld [vmem:[#allocation5 + $0x388] sm:$0xff]
    %v330 = vld [vmem:[#allocation5 + $0x390] sm:$0xff]
    %v331 = vld [vmem:[#allocation5 + $0x398] sm:$0xff]
    %v332 = vld [vmem:[#allocation5 + $0x3a0] sm:$0xff]
    %v333 = vld [vmem:[#allocation5 + $0x3a8] sm:$0xff]
    %v334 = vld [vmem:[#allocation5 + $0x3b0] sm:$0xff]
    %v335 = vld [vmem:[#allocation5 + $0x3b8] sm:$0xff]
    %v336 = vld [vmem:[#allocation5 + $0x3c0] sm:$0x1]
    %v337 = vld [vmem:[#allocation5 + $0x3c8] sm:$0x1]
    %v338 = vld [vmem:[#allocation5 + $0x3d0] sm:$0x1]
    %v339 = vld [vmem:[#allocation5 + $0x3d8] sm:$0x1]
    %v340 = vld [vmem:[#allocation5 + $0x3e0] sm:$0x1]
    %v341 = vld [vmem:[#allocation5 + $0x3e8] sm:$0x1]
    %v342 = vld [vmem:[#allocation5 + $0x3f0] sm:$0x1]
    %v343 = vld [vmem:[#allocation5 + $0x3f8] sm:$0x1]
    %v344 = vld [vmem:[#allocation5 + $0x400] sm:$0x1]
    %v345 = vld [vmem:[#allocation5 + $0x408] sm:$0x1]
    %v346 = vld [vmem:[#allocation5 + $0x410] sm:$0x1]
    %v347 = vld [vmem:[#allocation5 + $0x418] sm:$0x1]
    %vm348 = vcmask 662528
    %v350 = vsel %vm348, %v215, 0
    %vm352 = vcmask 1040384
    %v354 = vsel %vm352, %v336, 0
    %v357 = vsel %vm352, %v337, 0
    %v360 = vsel %vm352, %v338, 0
    %v363 = vsel %vm352, %v339, 0
    %v366 = vsel %vm352, %v340, 0
    %v369 = vsel %vm352, %v341, 0
    %v372 = vsel %vm352, %v342, 0
    %v375 = vsel %vm352, %v343, 0
    %v378 = vsel %vm352, %v344, 0
    %v381 = vsel %vm352, %v345, 0
    %v384 = vsel %vm352, %v346, 0
    %v387 = vsel %vm352, %v347, 0
    %389 = vmatprep.subr.mxu0 0.0
    %390 = vmatpush1.msra.mxu0 0.0
    %391 = vmatprep.subr.mxu0 0.0
    %392 = vmatpush1.msra.mxu0 0.0
    %393 = vmatprep.subr.mxu0 0.0
    %394 = vmatpush1.msra.mxu0 0.0
    %395 = vmatprep.subr.mxu0 0.0
    %396 = vmatpush1.msra.mxu0 0.0
    %397 = vmatprep.subr.mxu0 0.0
    %398 = vmatpush1.msra.mxu0 0.0
    %399 = vmatprep.subr.mxu0 %v357
    %400 = vmatpush1.msra.mxu0 %v354
    %401 = vmatprep.subr.mxu0 %v325
    %402 = vmatpush1.msra.mxu0 %v324
    %403 = vmatprep.subr.mxu0 %v313
    %404 = vmatpush1.msra.mxu0 %v312
    %405 = vmatprep.subr.mxu0 %v301
    %406 = vmatpush1.msra.mxu0 %v300
    %407 = vmatprep.subr.mxu0 %v289
    %408 = vmatpush1.msra.mxu0 %v288
    %409 = vmatprep.subr.mxu0 %v277
    %410 = vmatpush1.msra.mxu0 %v276
    %411 = vmatprep.subr.mxu0 %v265
    %412 = vmatpush1.msra.mxu0 %v264
    %413 = vmatprep.subr.mxu0 %v253
    %414 = vmatpush1.msra.mxu0 %v252
    %415 = vmatprep.subr.mxu0 %v241
    %416 = vmatpush1.msra.mxu0 %v240
    %417 = vmatprep.subr.mxu0 %v229
    %418 = vmatpush1.msra.mxu0 %v228
    %419 = vmatprep.subr.mxu0 %v217
    %420 = vmatpush1.msra.mxu0 %v216
    %421 = vmatprep.subr.mxu0 0.0
    %422 = vmatpush2.msra.mxu0 0.0
    %423 = vmatprep.subr.mxu0 0.0
    %424 = vmatpush2.msra.mxu0 0.0
    %425 = vmatprep.subr.mxu0 0.0
    %426 = vmatpush2.msra.mxu0 0.0
    %427 = vmatprep.subr.mxu0 0.0
    %428 = vmatpush2.msra.mxu0 0.0
    %429 = vmatprep.subr.mxu0 0.0
    %430 = vmatpush2.msra.mxu0 0.0
    %431 = vmatprep.subr.mxu0 0.0
    %432 = vmatpush2.msra.mxu0 0.0
    %433 = vmatprep.subr.mxu0 0.0
    %434 = vmatpush2.msra.mxu0 0.0
    %435 = vmatprep.subr.mxu0 0.0
    %436 = vmatpush2.msra.mxu0 0.0
    %437 = vmatprep.subr.mxu0 0.0
    %438 = vmatpush2.msra.mxu0 0.0
    %439 = vmatprep.subr.mxu0 0.0
    %440 = vmatpush2.msra.mxu0 0.0
    %441 = vmatprep.subr.mxu0 0.0
    %442 = vmatpush2.msra.mxu0 0.0
    %443 = vmatprep.subr.mxu0 0.0
    %444 = vmatpush2.msra.mxu0 0.0
    %445 = vmatprep.subr.mxu0 0.0
    %446 = vmatpush2.msra.mxu0 0.0
    %447 = vmatprep.subr.mxu0 0.0
    %448 = vmatpush2.msra.mxu0 0.0
    %449 = vmatprep.subr.mxu0 0.0
    %450 = vmatpush2.msra.mxu0 0.0
    %451 = vmatprep.subr.mxu0 0.0
    %452 = vmatpush2.msra.mxu0 0.0
    %453 = vmatprep.mubr.f32.mxu0 0.0
    %454 = vmatmul.mubr.f32.gmra.mxu0 %v350
    %v455 = vpop.f32.mrf.mxu0
    %v456 = vadd.f32 0.0, %v455
    %v457 = vpop.f32.mrf.mxu0
    %v458 = vadd.f32 0.0, %v457
    %459 = vdwg.mxu0
    %460 = vmatprep.subr.mxu0 0.0
    %461 = vmatpush1.msra.mxu0 0.0
    %462 = vmatprep.subr.mxu0 0.0
    %463 = vmatpush1.msra.mxu0 0.0
    %464 = vmatprep.subr.mxu0 0.0
    %465 = vmatpush1.msra.mxu0 0.0
    %466 = vmatprep.subr.mxu0 0.0
    %467 = vmatpush1.msra.mxu0 0.0
    %468 = vmatprep.subr.mxu0 0.0
    %469 = vmatpush1.msra.mxu0 0.0
    %470 = vmatprep.subr.mxu0 %v363
    %471 = vmatpush1.msra.mxu0 %v360
    %472 = vmatprep.subr.mxu0 %v327
    %473 = vmatpush1.msra.mxu0 %v326
    %474 = vmatprep.subr.mxu0 %v315
    %475 = vmatpush1.msra.mxu0 %v314
    %476 = vmatprep.subr.mxu0 %v303
    %477 = vmatpush1.msra.mxu0 %v302
    %478 = vmatprep.subr.mxu0 %v291
    %479 = vmatpush1.msra.mxu0 %v290
    %480 = vmatprep.subr.mxu0 %v279
    %481 = vmatpush1.msra.mxu0 %v278
    %482 = vmatprep.subr.mxu0 %v267
    %483 = vmatpush1.msra.mxu0 %v266
    %484 = vmatprep.subr.mxu0 %v255
    %485 = vmatpush1.msra.mxu0 %v254
    %486 = vmatprep.subr.mxu0 %v243
    %487 = vmatpush1.msra.mxu0 %v242
    %488 = vmatprep.subr.mxu0 %v231
    %489 = vmatpush1.msra.mxu0 %v230
    %490 = vmatprep.subr.mxu0 %v219
    %491 = vmatpush1.msra.mxu0 %v218
    %492 = vmatprep.subr.mxu0 0.0
    %493 = vmatpush2.msra.mxu0 0.0
    %494 = vmatprep.subr.mxu0 0.0
    %495 = vmatpush2.msra.mxu0 0.0
    %496 = vmatprep.subr.mxu0 0.0
    %497 = vmatpush2.msra.mxu0 0.0
    %498 = vmatprep.subr.mxu0 0.0
    %499 = vmatpush2.msra.mxu0 0.0
    %500 = vmatprep.subr.mxu0 0.0
    %501 = vmatpush2.msra.mxu0 0.0
    %502 = vmatprep.subr.mxu0 0.0
    %503 = vmatpush2.msra.mxu0 0.0
    %504 = vmatprep.subr.mxu0 0.0
    %505 = vmatpush2.msra.mxu0 0.0
    %506 = vmatprep.subr.mxu0 0.0
    %507 = vmatpush2.msra.mxu0 0.0
    %508 = vmatprep.subr.mxu0 0.0
    %509 = vmatpush2.msra.mxu0 0.0
    %510 = vmatprep.subr.mxu0 0.0
    %511 = vmatpush2.msra.mxu0 0.0
    %512 = vmatprep.subr.mxu0 0.0
    %513 = vmatpush2.msra.mxu0 0.0
    %514 = vmatprep.subr.mxu0 0.0
    %515 = vmatpush2.msra.mxu0 0.0
    %516 = vmatprep.subr.mxu0 0.0
    %517 = vmatpush2.msra.mxu0 0.0
    %518 = vmatprep.subr.mxu0 0.0
    %519 = vmatpush2.msra.mxu0 0.0
    %520 = vmatprep.subr.mxu0 0.0
    %521 = vmatpush2.msra.mxu0 0.0
    %522 = vmatprep.subr.mxu0 0.0
    %523 = vmatpush2.msra.mxu0 0.0
    %524 = vmatprep.mubr.f32.mxu0 0.0
    %525 = vmatmul.mubr.f32.gmra.mxu0 %v350
    %v526 = vpop.f32.mrf.mxu0
    %v527 = vadd.f32 0.0, %v526
    %v528 = vpop.f32.mrf.mxu0
    %v529 = vadd.f32 0.0, %v528
    %530 = vdwg.mxu0
    %531 = vmatprep.subr.mxu0 0.0
    %532 = vmatpush1.msra.mxu0 0.0
    %533 = vmatprep.subr.mxu0 0.0
    %534 = vmatpush1.msra.mxu0 0.0
    %535 = vmatprep.subr.mxu0 0.0
    %536 = vmatpush1.msra.mxu0 0.0
    %537 = vmatprep.subr.mxu0 0.0
    %538 = vmatpush1.msra.mxu0 0.0
    %539 = vmatprep.subr.mxu0 0.0
    %540 = vmatpush1.msra.mxu0 0.0
    %541 = vmatprep.subr.mxu0 %v369
    %542 = vmatpush1.msra.mxu0 %v366
    %543 = vmatprep.subr.mxu0 %v329
    %544 = vmatpush1.msra.mxu0 %v328
    %545 = vmatprep.subr.mxu0 %v317
    %546 = vmatpush1.msra.mxu0 %v316
    %547 = vmatprep.subr.mxu0 %v305
    %548 = vmatpush1.msra.mxu0 %v304
    %549 = vmatprep.subr.mxu0 %v293
    %550 = vmatpush1.msra.mxu0 %v292
    %551 = vmatprep.subr.mxu0 %v281
    %552 = vmatpush1.msra.mxu0 %v280
    %553 = vmatprep.subr.mxu0 %v269
    %554 = vmatpush1.msra.mxu0 %v268
    %555 = vmatprep.subr.mxu0 %v257
    %556 = vmatpush1.msra.mxu0 %v256
    %557 = vmatprep.subr.mxu0 %v245
    %558 = vmatpush1.msra.mxu0 %v244
    %559 = vmatprep.subr.mxu0 %v233
    %560 = vmatpush1.msra.mxu0 %v232
    %561 = vmatprep.subr.mxu0 %v221
    %562 = vmatpush1.msra.mxu0 %v220
    %563 = vmatprep.subr.mxu0 0.0
    %564 = vmatpush2.msra.mxu0 0.0
    %565 = vmatprep.subr.mxu0 0.0
    %566 = vmatpush2.msra.mxu0 0.0
    %567 = vmatprep.subr.mxu0 0.0
    %568 = vmatpush2.msra.mxu0 0.0
    %569 = vmatprep.subr.mxu0 0.0
    %570 = vmatpush2.msra.mxu0 0.0
    %571 = vmatprep.subr.mxu0 0.0
    %572 = vmatpush2.msra.mxu0 0.0
    %573 = vmatprep.subr.mxu0 0.0
    %574 = vmatpush2.msra.mxu0 0.0
    %575 = vmatprep.subr.mxu0 0.0
    %576 = vmatpush2.msra.mxu0 0.0
    %577 = vmatprep.subr.mxu0 0.0
    %578 = vmatpush2.msra.mxu0 0.0
    %579 = vmatprep.subr.mxu0 0.0
    %580 = vmatpush2.msra.mxu0 0.0
    %581 = vmatprep.subr.mxu0 0.0
    %582 = vmatpush2.msra.mxu0 0.0
    %583 = vmatprep.subr.mxu0 0.0
    %584 = vmatpush2.msra.mxu0 0.0
    %585 = vmatprep.subr.mxu0 0.0
    %586 = vmatpush2.msra.mxu0 0.0
    %587 = vmatprep.subr.mxu0 0.0
    %588 = vmatpush2.msra.mxu0 0.0
    %589 = vmatprep.subr.mxu0 0.0
    %590 = vmatpush2.msra.mxu0 0.0
    %591 = vmatprep.subr.mxu0 0.0
    %592 = vmatpush2.msra.mxu0 0.0
    %593 = vmatprep.subr.mxu0 0.0
    %594 = vmatpush2.msra.mxu0 0.0
    %595 = vmatprep.mubr.f32.mxu0 0.0
    %596 = vmatmul.mubr.f32.gmra.mxu0 %v350
    %v597 = vpop.f32.mrf.mxu0
    %v598 = vadd.f32 0.0, %v597
    %v599 = vpop.f32.mrf.mxu0
    %v600 = vadd.f32 0.0, %v599
    %601 = vdwg.mxu0
    %602 = vmatprep.subr.mxu0 0.0
    %603 = vmatpush1.msra.mxu0 0.0
    %604 = vmatprep.subr.mxu0 0.0
    %605 = vmatpush1.msra.mxu0 0.0
    %606 = vmatprep.subr.mxu0 0.0
    %607 = vmatpush1.msra.mxu0 0.0
    %608 = vmatprep.subr.mxu0 0.0
    %609 = vmatpush1.msra.mxu0 0.0
    %610 = vmatprep.subr.mxu0 0.0
    %611 = vmatpush1.msra.mxu0 0.0
    %612 = vmatprep.subr.mxu0 %v375
    %613 = vmatpush1.msra.mxu0 %v372
    %614 = vmatprep.subr.mxu0 %v331
    %615 = vmatpush1.msra.mxu0 %v330
    %616 = vmatprep.subr.mxu0 %v319
    %617 = vmatpush1.msra.mxu0 %v318
    %618 = vmatprep.subr.mxu0 %v307
    %619 = vmatpush1.msra.mxu0 %v306
    %620 = vmatprep.subr.mxu0 %v295
    %621 = vmatpush1.msra.mxu0 %v294
    %622 = vmatprep.subr.mxu0 %v283
    %623 = vmatpush1.msra.mxu0 %v282
    %624 = vmatprep.subr.mxu0 %v271
    %625 = vmatpush1.msra.mxu0 %v270
    %626 = vmatprep.subr.mxu0 %v259
    %627 = vmatpush1.msra.mxu0 %v258
    %628 = vmatprep.subr.mxu0 %v247
    %629 = vmatpush1.msra.mxu0 %v246
    %630 = vmatprep.subr.mxu0 %v235
    %631 = vmatpush1.msra.mxu0 %v234
    %632 = vmatprep.subr.mxu0 %v223
    %633 = vmatpush1.msra.mxu0 %v222
    %634 = vmatprep.subr.mxu0 0.0
    %635 = vmatpush2.msra.mxu0 0.0
    %636 = vmatprep.subr.mxu0 0.0
    %637 = vmatpush2.msra.mxu0 0.0
    %638 = vmatprep.subr.mxu0 0.0
    %639 = vmatpush2.msra.mxu0 0.0
    %640 = vmatprep.subr.mxu0 0.0
    %641 = vmatpush2.msra.mxu0 0.0
    %642 = vmatprep.subr.mxu0 0.0
    %643 = vmatpush2.msra.mxu0 0.0
    %644 = vmatprep.subr.mxu0 0.0
    %645 = vmatpush2.msra.mxu0 0.0
    %646 = vmatprep.subr.mxu0 0.0
    %647 = vmatpush2.msra.mxu0 0.0
    %648 = vmatprep.subr.mxu0 0.0
    %649 = vmatpush2.msra.mxu0 0.0
    %650 = vmatprep.subr.mxu0 0.0
    %651 = vmatpush2.msra.mxu0 0.0
    %652 = vmatprep.subr.mxu0 0.0
    %653 = vmatpush2.msra.mxu0 0.0
    %654 = vmatprep.subr.mxu0 0.0
    %655 = vmatpush2.msra.mxu0 0.0
    %656 = vmatprep.subr.mxu0 0.0
    %657 = vmatpush2.msra.mxu0 0.0
    %658 = vmatprep.subr.mxu0 0.0
    %659 = vmatpush2.msra.mxu0 0.0
    %660 = vmatprep.subr.mxu0 0.0
    %661 = vmatpush2.msra.mxu0 0.0
    %662 = vmatprep.subr.mxu0 0.0
    %663 = vmatpush2.msra.mxu0 0.0
    %664 = vmatprep.subr.mxu0 0.0
    %665 = vmatpush2.msra.mxu0 0.0
    %666 = vmatprep.mubr.f32.mxu0 0.0
    %667 = vmatmul.mubr.f32.gmra.mxu0 %v350
    %v668 = vpop.f32.mrf.mxu0
    %v669 = vadd.f32 0.0, %v668
    %v670 = vpop.f32.mrf.mxu0
    %v671 = vadd.f32 0.0, %v670
    %672 = vdwg.mxu0
    %673 = vmatprep.subr.mxu0 0.0
    %674 = vmatpush1.msra.mxu0 0.0
    %675 = vmatprep.subr.mxu0 0.0
    %676 = vmatpush1.msra.mxu0 0.0
    %677 = vmatprep.subr.mxu0 0.0
    %678 = vmatpush1.msra.mxu0 0.0
    %679 = vmatprep.subr.mxu0 0.0
    %680 = vmatpush1.msra.mxu0 0.0
    %681 = vmatprep.subr.mxu0 0.0
    %682 = vmatpush1.msra.mxu0 0.0
    %683 = vmatprep.subr.mxu0 %v381
    %684 = vmatpush1.msra.mxu0 %v378
    %685 = vmatprep.subr.mxu0 %v333
    %686 = vmatpush1.msra.mxu0 %v332
    %687 = vmatprep.subr.mxu0 %v321
    %688 = vmatpush1.msra.mxu0 %v320
    %689 = vmatprep.subr.mxu0 %v309
    %690 = vmatpush1.msra.mxu0 %v308
    %691 = vmatprep.subr.mxu0 %v297
    %692 = vmatpush1.msra.mxu0 %v296
    %693 = vmatprep.subr.mxu0 %v285
    %694 = vmatpush1.msra.mxu0 %v284
    %695 = vmatprep.subr.mxu0 %v273
    %696 = vmatpush1.msra.mxu0 %v272
    %697 = vmatprep.subr.mxu0 %v261
    %698 = vmatpush1.msra.mxu0 %v260
    %699 = vmatprep.subr.mxu0 %v249
    %700 = vmatpush1.msra.mxu0 %v248
    %701 = vmatprep.subr.mxu0 %v237
    %702 = vmatpush1.msra.mxu0 %v236
    %703 = vmatprep.subr.mxu0 %v225
    %704 = vmatpush1.msra.mxu0 %v224
    %705 = vmatprep.subr.mxu0 0.0
    %706 = vmatpush2.msra.mxu0 0.0
    %707 = vmatprep.subr.mxu0 0.0
    %708 = vmatpush2.msra.mxu0 0.0
    %709 = vmatprep.subr.mxu0 0.0
    %710 = vmatpush2.msra.mxu0 0.0
    %711 = vmatprep.subr.mxu0 0.0
    %712 = vmatpush2.msra.mxu0 0.0
    %713 = vmatprep.subr.mxu0 0.0
    %714 = vmatpush2.msra.mxu0 0.0
    %715 = vmatprep.subr.mxu0 0.0
    %716 = vmatpush2.msra.mxu0 0.0
    %717 = vmatprep.subr.mxu0 0.0
    %718 = vmatpush2.msra.mxu0 0.0
    %719 = vmatprep.subr.mxu0 0.0
    %720 = vmatpush2.msra.mxu0 0.0
    %721 = vmatprep.subr.mxu0 0.0
    %722 = vmatpush2.msra.mxu0 0.0
    %723 = vmatprep.subr.mxu0 0.0
    %724 = vmatpush2.msra.mxu0 0.0
    %725 = vmatprep.subr.mxu0 0.0
    %726 = vmatpush2.msra.mxu0 0.0
    %727 = vmatprep.subr.mxu0 0.0
    %728 = vmatpush2.msra.mxu0 0.0
    %729 = vmatprep.subr.mxu0 0.0
    %730 = vmatpush2.msra.mxu0 0.0
    %731 = vmatprep.subr.mxu0 0.0
    %732 = vmatpush2.msra.mxu0 0.0
    %733 = vmatprep.subr.mxu0 0.0
    %734 = vmatpush2.msra.mxu0 0.0
    %735 = vmatprep.subr.mxu0 0.0
    %736 = vmatpush2.msra.mxu0 0.0
    %737 = vmatprep.mubr.f32.mxu0 0.0
    %738 = vmatmul.mubr.f32.gmra.mxu0 %v350
    %v739 = vpop.f32.mrf.mxu0
    %v740 = vadd.f32 0.0, %v739
    %v741 = vpop.f32.mrf.mxu0
    %v742 = vadd.f32 0.0, %v741
    %743 = vdwg.mxu0
    %744 = vmatprep.subr.mxu0 0.0
    %745 = vmatpush1.msra.mxu0 0.0
    %746 = vmatprep.subr.mxu0 0.0
    %747 = vmatpush1.msra.mxu0 0.0
    %748 = vmatprep.subr.mxu0 0.0
    %749 = vmatpush1.msra.mxu0 0.0
    %750 = vmatprep.subr.mxu0 0.0
    %751 = vmatpush1.msra.mxu0 0.0
    %752 = vmatprep.subr.mxu0 0.0
    %753 = vmatpush1.msra.mxu0 0.0
    %754 = vmatprep.subr.mxu0 %v387
    %755 = vmatpush1.msra.mxu0 %v384
    %756 = vmatprep.subr.mxu0 %v335
    %757 = vmatpush1.msra.mxu0 %v334
    %758 = vmatprep.subr.mxu0 %v323
    %759 = vmatpush1.msra.mxu0 %v322
    %760 = vmatprep.subr.mxu0 %v311
    %761 = vmatpush1.msra.mxu0 %v310
    %762 = vmatprep.subr.mxu0 %v299
    %763 = vmatpush1.msra.mxu0 %v298
    %764 = vmatprep.subr.mxu0 %v287
    %765 = vmatpush1.msra.mxu0 %v286
    %766 = vmatprep.subr.mxu0 %v275
    %767 = vmatpush1.msra.mxu0 %v274
    %768 = vmatprep.subr.mxu0 %v263
    %769 = vmatpush1.msra.mxu0 %v262
    %770 = vmatprep.subr.mxu0 %v251
    %771 = vmatpush1.msra.mxu0 %v250
    %772 = vmatprep.subr.mxu0 %v239
    %773 = vmatpush1.msra.mxu0 %v238
    %774 = vmatprep.subr.mxu0 %v227
    %775 = vmatpush1.msra.mxu0 %v226
    %776 = vmatprep.subr.mxu0 0.0
    %777 = vmatpush2.msra.mxu0 0.0
    %778 = vmatprep.subr.mxu0 0.0
    %779 = vmatpush2.msra.mxu0 0.0
    %780 = vmatprep.subr.mxu0 0.0
    %781 = vmatpush2.msra.mxu0 0.0
    %782 = vmatprep.subr.mxu0 0.0
    %783 = vmatpush2.msra.mxu0 0.0
    %784 = vmatprep.subr.mxu0 0.0
    %785 = vmatpush2.msra.mxu0 0.0
    %786 = vmatprep.subr.mxu0 0.0
    %787 = vmatpush2.msra.mxu0 0.0
    %788 = vmatprep.subr.mxu0 0.0
    %789 = vmatpush2.msra.mxu0 0.0
    %790 = vmatprep.subr.mxu0 0.0
    %791 = vmatpush2.msra.mxu0 0.0
    %792 = vmatprep.subr.mxu0 0.0
    %793 = vmatpush2.msra.mxu0 0.0
    %794 = vmatprep.subr.mxu0 0.0
    %795 = vmatpush2.msra.mxu0 0.0
    %796 = vmatprep.subr.mxu0 0.0
    %797 = vmatpush2.msra.mxu0 0.0
    %798 = vmatprep.subr.mxu0 0.0
    %799 = vmatpush2.msra.mxu0 0.0
    %800 = vmatprep.subr.mxu0 0.0
    %801 = vmatpush2.msra.mxu0 0.0
    %802 = vmatprep.subr.mxu0 0.0
    %803 = vmatpush2.msra.mxu0 0.0
    %804 = vmatprep.subr.mxu0 0.0
    %805 = vmatpush2.msra.mxu0 0.0
    %806 = vmatprep.subr.mxu0 0.0
    %807 = vmatpush2.msra.mxu0 0.0
    %808 = vmatprep.mubr.f32.mxu0 0.0
    %809 = vmatmul.mubr.f32.gmra.mxu0 %v350
    %v810 = vpop.f32.mrf.mxu0
    %v811 = vadd.f32 0.0, %v810
    %v812 = vpop.f32.mrf.mxu0
    %v813 = vadd.f32 0.0, %v812
    %814 = vdwg.mxu0
    %v815 = vxor.u32 %v456, 2147483648
    %v816 = vxor.u32 %v458, 2147483648
    %v817 = vxor.u32 %v527, 2147483648
    %v818 = vxor.u32 %v529, 2147483648
    %v819 = vxor.u32 %v598, 2147483648
    %v820 = vxor.u32 %v600, 2147483648
    %v821 = vxor.u32 %v669, 2147483648
    %v822 = vxor.u32 %v671, 2147483648
    %v823 = vmul.f32 %v815, 1.442695
    %v824 = vpow.pop %v823
    %v825 = vmul.f32 %v816, 1.442695
    %v826 = vpow.pop %v825
    %v827 = vmul.f32 %v817, 1.442695
    %v828 = vpow.pop %v827
    %v829 = vmul.f32 %v818, 1.442695
    %v830 = vpow.pop %v829
    %v831 = vmul.f32 %v819, 1.442695
    %v832 = vpow.pop %v831
    %v833 = vmul.f32 %v820, 1.442695
    %v834 = vpow.pop %v833
    %v835 = vmul.f32 %v821, 1.442695
    %v836 = vpow.pop %v835
    %v837 = vmul.f32 %v822, 1.442695
    %v838 = vpow.pop %v837
    %v839 = vadd.f32 %v824, 1.0
    %v840 = vadd.f32 %v826, 1.0
    %v841 = vadd.f32 %v828, 1.0
    %v842 = vadd.f32 %v830, 1.0
    %v843 = vadd.f32 %v832, 1.0
    %v844 = vadd.f32 %v834, 1.0
    %v845 = vadd.f32 %v836, 1.0
    %v846 = vadd.f32 %v838, 1.0
    %v847 = vrcp.pop %v839
    %v848 = vmul.f32 1.0, %v847
    %v849 = vrcp.pop %v840
    %v850 = vmul.f32 1.0, %v849
    %v851 = vrcp.pop %v841
    %v852 = vmul.f32 1.0, %v851
    %v853 = vrcp.pop %v842
    %v854 = vmul.f32 1.0, %v853
    %v855 = vrcp.pop %v843
    %v856 = vmul.f32 1.0, %v855
    %v857 = vrcp.pop %v844
    %v858 = vmul.f32 1.0, %v857
    %v859 = vrcp.pop %v845
    %v860 = vmul.f32 1.0, %v859
    %v861 = vrcp.pop %v846
    %v862 = vmul.f32 1.0, %v861
    %v863 = vtanh.pop %v740
    %v864 = vtanh.pop %v742
    %v865 = vtanh.pop %v811
    %v866 = vtanh.pop %v813
    %v867 = vmul.f32 %v848, %v863
    %v868 = vmul.f32 %v850, %v864
    %v869 = vmul.f32 %v852, %v865
    %v870 = vmul.f32 %v854, %v866
    %v871 = vtanh.pop %v867
    %v872 = vtanh.pop %v868
    %v873 = vtanh.pop %v869
    %v874 = vtanh.pop %v870
    %v875 = vmul.f32 %v856, %v871
    %v876 = vmul.f32 %v858, %v872
    %v877 = vmul.f32 %v860, %v873
    %v878 = vmul.f32 %v862, %v874
    %v879 = vld [vmem:[#allocation7] sm:$0xff]
    %v880 = vld [vmem:[#allocation7 + $0x8] sm:$0xff]
    %v881 = vld [vmem:[#allocation7 + $0x10] sm:$0xff]
    %v882 = vld [vmem:[#allocation7 + $0x18] sm:$0xff]
    %v883 = vld [vmem:[#allocation7 + $0x20] sm:$0xff]
    %v884 = vld [vmem:[#allocation7 + $0x28] sm:$0xff]
    %v885 = vld [vmem:[#allocation7 + $0x30] sm:$0xff]
    %v886 = vld [vmem:[#allocation7 + $0x38] sm:$0xff]
    %v887 = vld [vmem:[#allocation7 + $0x40] sm:$0x1f]
    %v888 = vld [vmem:[#allocation7 + $0x48] sm:$0x1f]
    %v889 = vld [vmem:[#allocation7 + $0x50] sm:$0x1f]
    %v890 = vld [vmem:[#allocation7 + $0x58] sm:$0x1f]
    %v891 = vld [vmem:[#allocation8] sm:$0xff]
    %v892 = vld [vmem:[#allocation8 + $0x8] sm:$0xff]
    %v893 = vld [vmem:[#allocation8 + $0x10] sm:$0xff]
    %v894 = vld [vmem:[#allocation8 + $0x18] sm:$0xff]
    %v895 = vld [vmem:[#allocation8 + $0x20] sm:$0xff]
    %v896 = vld [vmem:[#allocation8 + $0x28] sm:$0xff]
    %v897 = vld [vmem:[#allocation8 + $0x30] sm:$0xff]
    %v898 = vld [vmem:[#allocation8 + $0x38] sm:$0xff]
    %v899 = vld [vmem:[#allocation8 + $0x40] sm:$0xff]
    %v900 = vld [vmem:[#allocation8 + $0x48] sm:$0xff]
    %v901 = vld [vmem:[#allocation8 + $0x50] sm:$0xff]
    %v902 = vld [vmem:[#allocation8 + $0x58] sm:$0xff]
    %v903 = vld [vmem:[#allocation8 + $0x60] sm:$0xff]
    %v904 = vld [vmem:[#allocation8 + $0x68] sm:$0xff]
    %v905 = vld [vmem:[#allocation8 + $0x70] sm:$0xff]
    %v906 = vld [vmem:[#allocation8 + $0x78] sm:$0xff]
    %v907 = vld [vmem:[#allocation8 + $0x80] sm:$0xff]
    %v908 = vld [vmem:[#allocation8 + $0x88] sm:$0xff]
    %v909 = vld [vmem:[#allocation8 + $0x90] sm:$0xff]
    %v910 = vld [vmem:[#allocation8 + $0x98] sm:$0xff]
    %v911 = vld [vmem:[#allocation8 + $0xa0] sm:$0xff]
    %v912 = vld [vmem:[#allocation8 + $0xa8] sm:$0xff]
    %v913 = vld [vmem:[#allocation8 + $0xb0] sm:$0xff]
    %v914 = vld [vmem:[#allocation8 + $0xb8] sm:$0xff]
    %v915 = vld [vmem:[#allocation8 + $0xc0] sm:$0xff]
    %v916 = vld [vmem:[#allocation8 + $0xc8] sm:$0xff]
    %v917 = vld [vmem:[#allocation8 + $0xd0] sm:$0xff]
    %v918 = vld [vmem:[#allocation8 + $0xd8] sm:$0xff]
    %v919 = vld [vmem:[#allocation8 + $0xe0] sm:$0xff]
    %v920 = vld [vmem:[#allocation8 + $0xe8] sm:$0xff]
    %v921 = vld [vmem:[#allocation8 + $0xf0] sm:$0xff]
    %v922 = vld [vmem:[#allocation8 + $0xf8] sm:$0xff]
    %v923 = vld [vmem:[#allocation8 + $0x100] sm:$0xff]
    %v924 = vld [vmem:[#allocation8 + $0x108] sm:$0xff]
    %v925 = vld [vmem:[#allocation8 + $0x110] sm:$0xff]
    %v926 = vld [vmem:[#allocation8 + $0x118] sm:$0xff]
    %v927 = vld [vmem:[#allocation8 + $0x120] sm:$0xff]
    %v928 = vld [vmem:[#allocation8 + $0x128] sm:$0xff]
    %v929 = vld [vmem:[#allocation8 + $0x130] sm:$0xff]
    %v930 = vld [vmem:[#allocation8 + $0x138] sm:$0xff]
    %v931 = vld [vmem:[#allocation8 + $0x140] sm:$0xff]
    %v932 = vld [vmem:[#allocation8 + $0x148] sm:$0xff]
    %v933 = vld [vmem:[#allocation8 + $0x150] sm:$0xff]
    %v934 = vld [vmem:[#allocation8 + $0x158] sm:$0xff]
    %v935 = vld [vmem:[#allocation8 + $0x160] sm:$0xff]
    %v936 = vld [vmem:[#allocation8 + $0x168] sm:$0xff]
    %v937 = vld [vmem:[#allocation8 + $0x170] sm:$0xff]
    %v938 = vld [vmem:[#allocation8 + $0x178] sm:$0xff]
    %v939 = vld [vmem:[#allocation8 + $0x180] sm:$0xff]
    %v940 = vld [vmem:[#allocation8 + $0x188] sm:$0xff]
    %v941 = vld [vmem:[#allocation8 + $0x190] sm:$0xff]
    %v942 = vld [vmem:[#allocation8 + $0x198] sm:$0xff]
    %v943 = vld [vmem:[#allocation8 + $0x1a0] sm:$0xff]
    %v944 = vld [vmem:[#allocation8 + $0x1a8] sm:$0xff]
    %v945 = vld [vmem:[#allocation8 + $0x1b0] sm:$0xff]
    %v946 = vld [vmem:[#allocation8 + $0x1b8] sm:$0xff]
    %v947 = vld [vmem:[#allocation8 + $0x1c0] sm:$0xff]
    %v948 = vld [vmem:[#allocation8 + $0x1c8] sm:$0xff]
    %v949 = vld [vmem:[#allocation8 + $0x1d0] sm:$0xff]
    %v950 = vld [vmem:[#allocation8 + $0x1d8] sm:$0xff]
    %v951 = vld [vmem:[#allocation8 + $0x1e0] sm:$0xff]
    %v952 = vld [vmem:[#allocation8 + $0x1e8] sm:$0xff]
    %v953 = vld [vmem:[#allocation8 + $0x1f0] sm:$0xff]
    %v954 = vld [vmem:[#allocation8 + $0x1f8] sm:$0xff]
    %v955 = vld [vmem:[#allocation2] sm:$0xff]
    %vm956 = vcmask 162816
    %v957 = vsel %vm956, %v955, 1.0
    %959 = vrot.lane.b32.xlu0 %v955, 108
    %v960 = vpop.permute.xlu0 %959
    %v962 = vsel %vm956, %v960, 1.0
    %963 = vmatprep.subr.mxu0 %v952
    %964 = vmatpush1.msra.mxu0 %v951
    %965 = vmatprep.subr.mxu0 %v948
    %966 = vmatpush1.msra.mxu0 %v947
    %967 = vmatprep.subr.mxu0 %v944
    %968 = vmatpush1.msra.mxu0 %v943
    %969 = vmatprep.subr.mxu0 %v940
    %970 = vmatpush1.msra.mxu0 %v939
    %971 = vmatprep.subr.mxu0 %v936
    %972 = vmatpush1.msra.mxu0 %v935
    %973 = vmatprep.subr.mxu0 %v932
    %974 = vmatpush1.msra.mxu0 %v931
    %975 = vmatprep.subr.mxu0 %v928
    %976 = vmatpush1.msra.mxu0 %v927
    %977 = vmatprep.subr.mxu0 %v924
    %978 = vmatpush1.msra.mxu0 %v923
    %979 = vmatprep.subr.mxu0 %v920
    %980 = vmatpush1.msra.mxu0 %v919
    %981 = vmatprep.subr.mxu0 %v916
    %982 = vmatpush1.msra.mxu0 %v915
    %983 = vmatprep.subr.mxu0 %v912
    %984 = vmatpush1.msra.mxu0 %v911
    %985 = vmatprep.subr.mxu0 %v908
    %986 = vmatpush1.msra.mxu0 %v907
    %987 = vmatprep.subr.mxu0 %v904
    %988 = vmatpush1.msra.mxu0 %v903
    %989 = vmatprep.subr.mxu0 %v900
    %990 = vmatpush1.msra.mxu0 %v899
    %991 = vmatprep.subr.mxu0 %v896
    %992 = vmatpush1.msra.mxu0 %v895
    %993 = vmatprep.subr.mxu0 %v892
    %994 = vmatpush1.msra.mxu0 %v891
    %995 = vmatprep.subr.mxu0 0.0
    %996 = vmatpush2.msra.mxu0 0.0
    %997 = vmatprep.subr.mxu0 0.0
    %998 = vmatpush2.msra.mxu0 0.0
    %999 = vmatprep.subr.mxu0 0.0
    %1000 = vmatpush2.msra.mxu0 0.0
    %1001 = vmatprep.subr.mxu0 0.0
    %1002 = vmatpush2.msra.mxu0 0.0
    %1003 = vmatprep.subr.mxu0 0.0
    %1004 = vmatpush2.msra.mxu0 0.0
    %1005 = vmatprep.subr.mxu0 0.0
    %1006 = vmatpush2.msra.mxu0 0.0
    %1007 = vmatprep.subr.mxu0 0.0
    %1008 = vmatpush2.msra.mxu0 0.0
    %1009 = vmatprep.subr.mxu0 0.0
    %1010 = vmatpush2.msra.mxu0 0.0
    %1011 = vmatprep.subr.mxu0 0.0
    %1012 = vmatpush2.msra.mxu0 0.0
    %1013 = vmatprep.subr.mxu0 0.0
    %1014 = vmatpush2.msra.mxu0 0.0
    %1015 = vmatprep.subr.mxu0 0.0
    %1016 = vmatpush2.msra.mxu0 0.0
    %1017 = vmatprep.subr.mxu0 0.0
    %1018 = vmatpush2.msra.mxu0 0.0
    %1019 = vmatprep.subr.mxu0 0.0
    %1020 = vmatpush2.msra.mxu0 0.0
    %1021 = vmatprep.subr.mxu0 0.0
    %1022 = vmatpush2.msra.mxu0 0.0
    %1023 = vmatprep.subr.mxu0 0.0
    %1024 = vmatpush2.msra.mxu0 0.0
    %1025 = vmatprep.subr.mxu0 0.0
    %1026 = vmatpush2.msra.mxu0 0.0
    %1027 = vmatprep.mubr.f32.mxu0 0.0
    %1028 = vmatmul.mubr.f32.gmra.mxu0 0.0
    %v1029 = vpop.f32.mrf.mxu0
    %v1030 = vadd.f32 0.0, %v1029
    %v1031 = vpop.f32.mrf.mxu0
    %v1032 = vadd.f32 0.0, %v1031
    %1033 = vdwg.mxu0
    %1034 = vmatprep.subr.mxu0 %v954
    %1035 = vmatpush1.msra.mxu0 %v953
    %1036 = vmatprep.subr.mxu0 %v950
    %1037 = vmatpush1.msra.mxu0 %v949
    %1038 = vmatprep.subr.mxu0 %v946
    %1039 = vmatpush1.msra.mxu0 %v945
    %1040 = vmatprep.subr.mxu0 %v942
    %1041 = vmatpush1.msra.mxu0 %v941
    %1042 = vmatprep.subr.mxu0 %v938
    %1043 = vmatpush1.msra.mxu0 %v937
    %1044 = vmatprep.subr.mxu0 %v934
    %1045 = vmatpush1.msra.mxu0 %v933
    %1046 = vmatprep.subr.mxu0 %v930
    %1047 = vmatpush1.msra.mxu0 %v929
    %1048 = vmatprep.subr.mxu0 %v926
    %1049 = vmatpush1.msra.mxu0 %v925
    %1050 = vmatprep.subr.mxu0 %v922
    %1051 = vmatpush1.msra.mxu0 %v921
    %1052 = vmatprep.subr.mxu0 %v918
    %1053 = vmatpush1.msra.mxu0 %v917
    %1054 = vmatprep.subr.mxu0 %v914
    %1055 = vmatpush1.msra.mxu0 %v913
    %1056 = vmatprep.subr.mxu0 %v910
    %1057 = vmatpush1.msra.mxu0 %v909
    %1058 = vmatprep.subr.mxu0 %v906
    %1059 = vmatpush1.msra.mxu0 %v905
    %1060 = vmatprep.subr.mxu0 %v902
    %1061 = vmatpush1.msra.mxu0 %v901
    %1062 = vmatprep.subr.mxu0 %v898
    %1063 = vmatpush1.msra.mxu0 %v897
    %1064 = vmatprep.subr.mxu0 %v894
    %1065 = vmatpush1.msra.mxu0 %v893
    %1066 = vmatprep.subr.mxu0 0.0
    %1067 = vmatpush2.msra.mxu0 0.0
    %1068 = vmatprep.subr.mxu0 0.0
    %1069 = vmatpush2.msra.mxu0 0.0
    %1070 = vmatprep.subr.mxu0 0.0
    %1071 = vmatpush2.msra.mxu0 0.0
    %1072 = vmatprep.subr.mxu0 0.0
    %1073 = vmatpush2.msra.mxu0 0.0
    %1074 = vmatprep.subr.mxu0 0.0
    %1075 = vmatpush2.msra.mxu0 0.0
    %1076 = vmatprep.subr.mxu0 0.0
    %1077 = vmatpush2.msra.mxu0 0.0
    %1078 = vmatprep.subr.mxu0 0.0
    %1079 = vmatpush2.msra.mxu0 0.0
    %1080 = vmatprep.subr.mxu0 0.0
    %1081 = vmatpush2.msra.mxu0 0.0
    %1082 = vmatprep.subr.mxu0 0.0
    %1083 = vmatpush2.msra.mxu0 0.0
    %1084 = vmatprep.subr.mxu0 0.0
    %1085 = vmatpush2.msra.mxu0 0.0
    %1086 = vmatprep.subr.mxu0 0.0
    %1087 = vmatpush2.msra.mxu0 0.0
    %1088 = vmatprep.subr.mxu0 0.0
    %1089 = vmatpush2.msra.mxu0 0.0
    %1090 = vmatprep.subr.mxu0 0.0
    %1091 = vmatpush2.msra.mxu0 0.0
    %1092 = vmatprep.subr.mxu0 0.0
    %1093 = vmatpush2.msra.mxu0 0.0
    %1094 = vmatprep.subr.mxu0 0.0
    %1095 = vmatpush2.msra.mxu0 0.0
    %1096 = vmatprep.subr.mxu0 0.0
    %1097 = vmatpush2.msra.mxu0 0.0
    %1098 = vmatprep.mubr.f32.mxu0 0.0
    %1099 = vmatmul.mubr.f32.gmra.mxu0 0.0
    %v1100 = vpop.f32.mrf.mxu0
    %v1101 = vadd.f32 0.0, %v1100
    %v1102 = vpop.f32.mrf.mxu0
    %v1103 = vadd.f32 0.0, %v1102
    %1104 = vdwg.mxu0
    %vm1105 = vcmask 171008
    %v1107 = vsel %vm1105, %v957, 0
    %vm1109 = vcmask 1044480
    %v1111 = vsel %vm1109, %v887, 0
    %v1114 = vsel %vm1109, %v888, 0
    %v1117 = vsel %vm1109, %v889, 0
    %v1120 = vsel %vm1109, %v890, 0
    %1122 = vmatprep.subr.mxu0 0.0
    %1123 = vmatpush1.msra.mxu0 0.0
    %1124 = vmatprep.subr.mxu0 0.0
    %1125 = vmatpush1.msra.mxu0 0.0
    %1126 = vmatprep.subr.mxu0 0.0
    %1127 = vmatpush1.msra.mxu0 0.0
    %1128 = vmatprep.subr.mxu0 0.0
    %1129 = vmatpush1.msra.mxu0 0.0
    %1130 = vmatprep.subr.mxu0 0.0
    %1131 = vmatpush1.msra.mxu0 0.0
    %1132 = vmatprep.subr.mxu0 0.0
    %1133 = vmatpush1.msra.mxu0 0.0
    %1134 = vmatprep.subr.mxu0 0.0
    %1135 = vmatpush1.msra.mxu0 0.0
    %1136 = vmatprep.subr.mxu0 0.0
    %1137 = vmatpush1.msra.mxu0 0.0
    %1138 = vmatprep.subr.mxu0 0.0
    %1139 = vmatpush1.msra.mxu0 0.0
    %1140 = vmatprep.subr.mxu0 0.0
    %1141 = vmatpush1.msra.mxu0 0.0
    %1142 = vmatprep.subr.mxu0 0.0
    %1143 = vmatpush1.msra.mxu0 0.0
    %1144 = vmatprep.subr.mxu0 0.0
    %1145 = vmatpush1.msra.mxu0 0.0
    %1146 = vmatprep.subr.mxu0 0.0
    %1147 = vmatpush1.msra.mxu0 0.0
    %1148 = vmatprep.subr.mxu0 %v1114
    %1149 = vmatpush1.msra.mxu0 %v1111
    %1150 = vmatprep.subr.mxu0 %v884
    %1151 = vmatpush1.msra.mxu0 %v883
    %1152 = vmatprep.subr.mxu0 %v880
    %1153 = vmatpush1.msra.mxu0 %v879
    %1154 = vmatprep.subr.mxu0 0.0
    %1155 = vmatpush2.msra.mxu0 0.0
    %1156 = vmatprep.subr.mxu0 0.0
    %1157 = vmatpush2.msra.mxu0 0.0
    %1158 = vmatprep.subr.mxu0 0.0
    %1159 = vmatpush2.msra.mxu0 0.0
    %1160 = vmatprep.subr.mxu0 0.0
    %1161 = vmatpush2.msra.mxu0 0.0
    %1162 = vmatprep.subr.mxu0 0.0
    %1163 = vmatpush2.msra.mxu0 0.0
    %1164 = vmatprep.subr.mxu0 0.0
    %1165 = vmatpush2.msra.mxu0 0.0
    %1166 = vmatprep.subr.mxu0 0.0
    %1167 = vmatpush2.msra.mxu0 0.0
    %1168 = vmatprep.subr.mxu0 0.0
    %1169 = vmatpush2.msra.mxu0 0.0
    %1170 = vmatprep.subr.mxu0 0.0
    %1171 = vmatpush2.msra.mxu0 0.0
    %1172 = vmatprep.subr.mxu0 0.0
    %1173 = vmatpush2.msra.mxu0 0.0
    %1174 = vmatprep.subr.mxu0 0.0
    %1175 = vmatpush2.msra.mxu0 0.0
    %1176 = vmatprep.subr.mxu0 0.0
    %1177 = vmatpush2.msra.mxu0 0.0
    %1178 = vmatprep.subr.mxu0 0.0
    %1179 = vmatpush2.msra.mxu0 0.0
    %1180 = vmatprep.subr.mxu0 0.0
    %1181 = vmatpush2.msra.mxu0 0.0
    %1182 = vmatprep.subr.mxu0 0.0
    %1183 = vmatpush2.msra.mxu0 0.0
    %1184 = vmatprep.subr.mxu0 0.0
    %1185 = vmatpush2.msra.mxu0 0.0
    %1186 = vmatprep.mubr.f32.mxu0 0.0
    %1187 = vmatmul.mubr.f32.gmra.mxu0 %v1107
    %v1188 = vpop.f32.mrf.mxu0
    %v1189 = vadd.f32 %v1030, %v1188
    %v1190 = vpop.f32.mrf.mxu0
    %v1191 = vadd.f32 %v1032, %v1190
    %1192 = vdwg.mxu0
    %1193 = vmatprep.subr.mxu0 0.0
    %1194 = vmatpush1.msra.mxu0 0.0
    %1195 = vmatprep.subr.mxu0 0.0
    %1196 = vmatpush1.msra.mxu0 0.0
    %1197 = vmatprep.subr.mxu0 0.0
    %1198 = vmatpush1.msra.mxu0 0.0
    %1199 = vmatprep.subr.mxu0 0.0
    %1200 = vmatpush1.msra.mxu0 0.0
    %1201 = vmatprep.subr.mxu0 0.0
    %1202 = vmatpush1.msra.mxu0 0.0
    %1203 = vmatprep.subr.mxu0 0.0
    %1204 = vmatpush1.msra.mxu0 0.0
    %1205 = vmatprep.subr.mxu0 0.0
    %1206 = vmatpush1.msra.mxu0 0.0
    %1207 = vmatprep.subr.mxu0 0.0
    %1208 = vmatpush1.msra.mxu0 0.0
    %1209 = vmatprep.subr.mxu0 0.0
    %1210 = vmatpush1.msra.mxu0 0.0
    %1211 = vmatprep.subr.mxu0 0.0
    %1212 = vmatpush1.msra.mxu0 0.0
    %1213 = vmatprep.subr.mxu0 0.0
    %1214 = vmatpush1.msra.mxu0 0.0
    %1215 = vmatprep.subr.mxu0 0.0
    %1216 = vmatpush1.msra.mxu0 0.0
    %1217 = vmatprep.subr.mxu0 0.0
    %1218 = vmatpush1.msra.mxu0 0.0
    %1219 = vmatprep.subr.mxu0 %v1120
    %1220 = vmatpush1.msra.mxu0 %v1117
    %1221 = vmatprep.subr.mxu0 %v886
    %1222 = vmatpush1.msra.mxu0 %v885
    %1223 = vmatprep.subr.mxu0 %v882
    %1224 = vmatpush1.msra.mxu0 %v881
    %1225 = vmatprep.subr.mxu0 0.0
    %1226 = vmatpush2.msra.mxu0 0.0
    %1227 = vmatprep.subr.mxu0 0.0
    %1228 = vmatpush2.msra.mxu0 0.0
    %1229 = vmatprep.subr.mxu0 0.0
    %1230 = vmatpush2.msra.mxu0 0.0
    %1231 = vmatprep.subr.mxu0 0.0
    %1232 = vmatpush2.msra.mxu0 0.0
    %1233 = vmatprep.subr.mxu0 0.0
    %1234 = vmatpush2.msra.mxu0 0.0
    %1235 = vmatprep.subr.mxu0 0.0
    %1236 = vmatpush2.msra.mxu0 0.0
    %1237 = vmatprep.subr.mxu0 0.0
    %1238 = vmatpush2.msra.mxu0 0.0
    %1239 = vmatprep.subr.mxu0 0.0
    %1240 = vmatpush2.msra.mxu0 0.0
    %1241 = vmatprep.subr.mxu0 0.0
    %1242 = vmatpush2.msra.mxu0 0.0
    %1243 = vmatprep.subr.mxu0 0.0
    %1244 = vmatpush2.msra.mxu0 0.0
    %1245 = vmatprep.subr.mxu0 0.0
    %1246 = vmatpush2.msra.mxu0 0.0
    %1247 = vmatprep.subr.mxu0 0.0
    %1248 = vmatpush2.msra.mxu0 0.0
    %1249 = vmatprep.subr.mxu0 0.0
    %1250 = vmatpush2.msra.mxu0 0.0
    %1251 = vmatprep.subr.mxu0 0.0
    %1252 = vmatpush2.msra.mxu0 0.0
    %1253 = vmatprep.subr.mxu0 0.0
    %1254 = vmatpush2.msra.mxu0 0.0
    %1255 = vmatprep.subr.mxu0 0.0
    %1256 = vmatpush2.msra.mxu0 0.0
    %1257 = vmatprep.mubr.f32.mxu0 0.0
    %1258 = vmatmul.mubr.f32.gmra.mxu0 %v1107
    %v1259 = vpop.f32.mrf.mxu0
    %v1260 = vadd.f32 %v1101, %v1259
    %v1261 = vpop.f32.mrf.mxu0
    %v1262 = vadd.f32 %v1103, %v1261
    %1263 = vdwg.mxu0
    %v1264 = vxor.u32 %v1189, 2147483648
    %v1265 = vxor.u32 %v1191, 2147483648
    %v1266 = vxor.u32 %v1260, 2147483648
    %v1267 = vmul.f32 %v1264, 1.442695
    %v1268 = vpow.pop %v1267
    %v1269 = vmul.f32 %v1265, 1.442695
    %v1270 = vpow.pop %v1269
    %v1271 = vmul.f32 %v1266, 1.442695
    %v1272 = vpow.pop %v1271
    %v1273 = vadd.f32 %v1268, 1.0
    %v1274 = vadd.f32 %v1270, 1.0
    %v1275 = vadd.f32 %v1272, 1.0
    %v1276 = vrcp.pop %v1273
    %v1277 = vmul.f32 1.0, %v1276
    %v1278 = vrcp.pop %v1274
    %v1279 = vmul.f32 1.0, %v1278
    %v1280 = vrcp.pop %v1275
    %v1281 = vmul.f32 1.0, %v1280
    %v1282 = vmul.f32 %v1279, 0.0
    %v1283 = vtanh.pop %v1262
    %v1284 = vmul.f32 %v1277, %v1283
    %v1285 = vadd.f32 %v1282, %v1284
    %v1286 = vtanh.pop %v1285
    %v1287 = vmul.f32 %v1281, %v1286
    %1288 = vmatprep.subr.mxu0 %v952
    %1289 = vmatpush1.msra.mxu0 %v951
    %1290 = vmatprep.subr.mxu0 %v948
    %1291 = vmatpush1.msra.mxu0 %v947
    %1292 = vmatprep.subr.mxu0 %v944
    %1293 = vmatpush1.msra.mxu0 %v943
    %1294 = vmatprep.subr.mxu0 %v940
    %1295 = vmatpush1.msra.mxu0 %v939
    %1296 = vmatprep.subr.mxu0 %v936
    %1297 = vmatpush1.msra.mxu0 %v935
    %1298 = vmatprep.subr.mxu0 %v932
    %1299 = vmatpush1.msra.mxu0 %v931
    %1300 = vmatprep.subr.mxu0 %v928
    %1301 = vmatpush1.msra.mxu0 %v927
    %1302 = vmatprep.subr.mxu0 %v924
    %1303 = vmatpush1.msra.mxu0 %v923
    %1304 = vmatprep.subr.mxu0 %v920
    %1305 = vmatpush1.msra.mxu0 %v919
    %1306 = vmatprep.subr.mxu0 %v916
    %1307 = vmatpush1.msra.mxu0 %v915
    %1308 = vmatprep.subr.mxu0 %v912
    %1309 = vmatpush1.msra.mxu0 %v911
    %1310 = vmatprep.subr.mxu0 %v908
    %1311 = vmatpush1.msra.mxu0 %v907
    %1312 = vmatprep.subr.mxu0 %v904
    %1313 = vmatpush1.msra.mxu0 %v903
    %1314 = vmatprep.subr.mxu0 %v900
    %1315 = vmatpush1.msra.mxu0 %v899
    %1316 = vmatprep.subr.mxu0 %v896
    %1317 = vmatpush1.msra.mxu0 %v895
    %1318 = vmatprep.subr.mxu0 %v892
    %1319 = vmatpush1.msra.mxu0 %v891
    %1320 = vmatprep.subr.mxu0 0.0
    %1321 = vmatpush2.msra.mxu0 0.0
    %1322 = vmatprep.subr.mxu0 0.0
    %1323 = vmatpush2.msra.mxu0 0.0
    %1324 = vmatprep.subr.mxu0 0.0
    %1325 = vmatpush2.msra.mxu0 0.0
    %1326 = vmatprep.subr.mxu0 0.0
    %1327 = vmatpush2.msra.mxu0 0.0
    %1328 = vmatprep.subr.mxu0 0.0
    %1329 = vmatpush2.msra.mxu0 0.0
    %1330 = vmatprep.subr.mxu0 0.0
    %1331 = vmatpush2.msra.mxu0 0.0
    %1332 = vmatprep.subr.mxu0 0.0
    %1333 = vmatpush2.msra.mxu0 0.0
    %1334 = vmatprep.subr.mxu0 0.0
    %1335 = vmatpush2.msra.mxu0 0.0
    %1336 = vmatprep.subr.mxu0 0.0
    %1337 = vmatpush2.msra.mxu0 0.0
    %1338 = vmatprep.subr.mxu0 0.0
    %1339 = vmatpush2.msra.mxu0 0.0
    %1340 = vmatprep.subr.mxu0 0.0
    %1341 = vmatpush2.msra.mxu0 0.0
    %1342 = vmatprep.subr.mxu0 0.0
    %1343 = vmatpush2.msra.mxu0 0.0
    %1344 = vmatprep.subr.mxu0 0.0
    %1345 = vmatpush2.msra.mxu0 0.0
    %1346 = vmatprep.subr.mxu0 0.0
    %1347 = vmatpush2.msra.mxu0 0.0
    %1348 = vmatprep.subr.mxu0 0.0
    %1349 = vmatpush2.msra.mxu0 0.0
    %1350 = vmatprep.subr.mxu0 0.0
    %1351 = vmatpush2.msra.mxu0 0.0
    %1352 = vmatprep.mubr.f32.mxu0 0.0
    %1353 = vmatmul.mubr.f32.gmra.mxu0 %v1287
    %v1354 = vpop.f32.mrf.mxu0
    %v1355 = vadd.f32 0.0, %v1354
    %v1356 = vpop.f32.mrf.mxu0
    %v1357 = vadd.f32 0.0, %v1356
    %1358 = vdwg.mxu0
    %1359 = vmatprep.subr.mxu0 %v954
    %1360 = vmatpush1.msra.mxu0 %v953
    %1361 = vmatprep.subr.mxu0 %v950
    %1362 = vmatpush1.msra.mxu0 %v949
    %1363 = vmatprep.subr.mxu0 %v946
    %1364 = vmatpush1.msra.mxu0 %v945
    %1365 = vmatprep.subr.mxu0 %v942
    %1366 = vmatpush1.msra.mxu0 %v941
    %1367 = vmatprep.subr.mxu0 %v938
    %1368 = vmatpush1.msra.mxu0 %v937
    %1369 = vmatprep.subr.mxu0 %v934
    %1370 = vmatpush1.msra.mxu0 %v933
    %1371 = vmatprep.subr.mxu0 %v930
    %1372 = vmatpush1.msra.mxu0 %v929
    %1373 = vmatprep.subr.mxu0 %v926
    %1374 = vmatpush1.msra.mxu0 %v925
    %1375 = vmatprep.subr.mxu0 %v922
    %1376 = vmatpush1.msra.mxu0 %v921
    %1377 = vmatprep.subr.mxu0 %v918
    %1378 = vmatpush1.msra.mxu0 %v917
    %1379 = vmatprep.subr.mxu0 %v914
    %1380 = vmatpush1.msra.mxu0 %v913
    %1381 = vmatprep.subr.mxu0 %v910
    %1382 = vmatpush1.msra.mxu0 %v909
    %1383 = vmatprep.subr.mxu0 %v906
    %1384 = vmatpush1.msra.mxu0 %v905
    %1385 = vmatprep.subr.mxu0 %v902
    %1386 = vmatpush1.msra.mxu0 %v901
    %1387 = vmatprep.subr.mxu0 %v898
    %1388 = vmatpush1.msra.mxu0 %v897
    %1389 = vmatprep.subr.mxu0 %v894
    %1390 = vmatpush1.msra.mxu0 %v893
    %1391 = vmatprep.subr.mxu0 0.0
    %1392 = vmatpush2.msra.mxu0 0.0
    %1393 = vmatprep.subr.mxu0 0.0
    %1394 = vmatpush2.msra.mxu0 0.0
    %1395 = vmatprep.subr.mxu0 0.0
    %1396 = vmatpush2.msra.mxu0 0.0
    %1397 = vmatprep.subr.mxu0 0.0
    %1398 = vmatpush2.msra.mxu0 0.0
    %1399 = vmatprep.subr.mxu0 0.0
    %1400 = vmatpush2.msra.mxu0 0.0
    %1401 = vmatprep.subr.mxu0 0.0
    %1402 = vmatpush2.msra.mxu0 0.0
    %1403 = vmatprep.subr.mxu0 0.0
    %1404 = vmatpush2.msra.mxu0 0.0
    %1405 = vmatprep.subr.mxu0 0.0
    %1406 = vmatpush2.msra.mxu0 0.0
    %1407 = vmatprep.subr.mxu0 0.0
    %1408 = vmatpush2.msra.mxu0 0.0
    %1409 = vmatprep.subr.mxu0 0.0
    %1410 = vmatpush2.msra.mxu0 0.0
    %1411 = vmatprep.subr.mxu0 0.0
    %1412 = vmatpush2.msra.mxu0 0.0
    %1413 = vmatprep.subr.mxu0 0.0
    %1414 = vmatpush2.msra.mxu0 0.0
    %1415 = vmatprep.subr.mxu0 0.0
    %1416 = vmatpush2.msra.mxu0 0.0
    %1417 = vmatprep.subr.mxu0 0.0
    %1418 = vmatpush2.msra.mxu0 0.0
    %1419 = vmatprep.subr.mxu0 0.0
    %1420 = vmatpush2.msra.mxu0 0.0
    %1421 = vmatprep.subr.mxu0 0.0
    %1422 = vmatpush2.msra.mxu0 0.0
    %1423 = vmatprep.mubr.f32.mxu0 0.0
    %1424 = vmatmul.mubr.f32.gmra.mxu0 %v1287
    %v1425 = vpop.f32.mrf.mxu0
    %v1426 = vadd.f32 0.0, %v1425
    %v1427 = vpop.f32.mrf.mxu0
    %v1428 = vadd.f32 0.0, %v1427
    %1429 = vdwg.mxu0
    %v1431 = vsel %vm1105, %v962, 0
    %1433 = vmatprep.subr.mxu0 0.0
    %1434 = vmatpush1.msra.mxu0 0.0
    %1435 = vmatprep.subr.mxu0 0.0
    %1436 = vmatpush1.msra.mxu0 0.0
    %1437 = vmatprep.subr.mxu0 0.0
    %1438 = vmatpush1.msra.mxu0 0.0
    %1439 = vmatprep.subr.mxu0 0.0
    %1440 = vmatpush1.msra.mxu0 0.0
    %1441 = vmatprep.subr.mxu0 0.0
    %1442 = vmatpush1.msra.mxu0 0.0
    %1443 = vmatprep.subr.mxu0 0.0
    %1444 = vmatpush1.msra.mxu0 0.0
    %1445 = vmatprep.subr.mxu0 0.0
    %1446 = vmatpush1.msra.mxu0 0.0
    %1447 = vmatprep.subr.mxu0 0.0
    %1448 = vmatpush1.msra.mxu0 0.0
    %1449 = vmatprep.subr.mxu0 0.0
    %1450 = vmatpush1.msra.mxu0 0.0
    %1451 = vmatprep.subr.mxu0 0.0
    %1452 = vmatpush1.msra.mxu0 0.0
    %1453 = vmatprep.subr.mxu0 0.0
    %1454 = vmatpush1.msra.mxu0 0.0
    %1455 = vmatprep.subr.mxu0 0.0
    %1456 = vmatpush1.msra.mxu0 0.0
    %1457 = vmatprep.subr.mxu0 0.0
    %1458 = vmatpush1.msra.mxu0 0.0
    %1459 = vmatprep.subr.mxu0 %v1114
    %1460 = vmatpush1.msra.mxu0 %v1111
    %1461 = vmatprep.subr.mxu0 %v884
    %1462 = vmatpush1.msra.mxu0 %v883
    %1463 = vmatprep.subr.mxu0 %v880
    %1464 = vmatpush1.msra.mxu0 %v879
    %1465 = vmatprep.subr.mxu0 0.0
    %1466 = vmatpush2.msra.mxu0 0.0
    %1467 = vmatprep.subr.mxu0 0.0
    %1468 = vmatpush2.msra.mxu0 0.0
    %1469 = vmatprep.subr.mxu0 0.0
    %1470 = vmatpush2.msra.mxu0 0.0
    %1471 = vmatprep.subr.mxu0 0.0
    %1472 = vmatpush2.msra.mxu0 0.0
    %1473 = vmatprep.subr.mxu0 0.0
    %1474 = vmatpush2.msra.mxu0 0.0
    %1475 = vmatprep.subr.mxu0 0.0
    %1476 = vmatpush2.msra.mxu0 0.0
    %1477 = vmatprep.subr.mxu0 0.0
    %1478 = vmatpush2.msra.mxu0 0.0
    %1479 = vmatprep.subr.mxu0 0.0
    %1480 = vmatpush2.msra.mxu0 0.0
    %1481 = vmatprep.subr.mxu0 0.0
    %1482 = vmatpush2.msra.mxu0 0.0
    %1483 = vmatprep.subr.mxu0 0.0
    %1484 = vmatpush2.msra.mxu0 0.0
    %1485 = vmatprep.subr.mxu0 0.0
    %1486 = vmatpush2.msra.mxu0 0.0
    %1487 = vmatprep.subr.mxu0 0.0
    %1488 = vmatpush2.msra.mxu0 0.0
    %1489 = vmatprep.subr.mxu0 0.0
    %1490 = vmatpush2.msra.mxu0 0.0
    %1491 = vmatprep.subr.mxu0 0.0
    %1492 = vmatpush2.msra.mxu0 0.0
    %1493 = vmatprep.subr.mxu0 0.0
    %1494 = vmatpush2.msra.mxu0 0.0
    %1495 = vmatprep.subr.mxu0 0.0
    %1496 = vmatpush2.msra.mxu0 0.0
    %1497 = vmatprep.mubr.f32.mxu0 0.0
    %1498 = vmatmul.mubr.f32.gmra.mxu0 %v1431
    %v1499 = vpop.f32.mrf.mxu0
    %v1500 = vadd.f32 %v1355, %v1499
    %v1501 = vpop.f32.mrf.mxu0
    %v1502 = vadd.f32 %v1357, %v1501
    %1503 = vdwg.mxu0
    %1504 = vmatprep.subr.mxu0 0.0
    %1505 = vmatpush1.msra.mxu0 0.0
    %1506 = vmatprep.subr.mxu0 0.0
    %1507 = vmatpush1.msra.mxu0 0.0
    %1508 = vmatprep.subr.mxu0 0.0
    %1509 = vmatpush1.msra.mxu0 0.0
    %1510 = vmatprep.subr.mxu0 0.0
    %1511 = vmatpush1.msra.mxu0 0.0
    %1512 = vmatprep.subr.mxu0 0.0
    %1513 = vmatpush1.msra.mxu0 0.0
    %1514 = vmatprep.subr.mxu0 0.0
    %1515 = vmatpush1.msra.mxu0 0.0
    %1516 = vmatprep.subr.mxu0 0.0
    %1517 = vmatpush1.msra.mxu0 0.0
    %1518 = vmatprep.subr.mxu0 0.0
    %1519 = vmatpush1.msra.mxu0 0.0
    %1520 = vmatprep.subr.mxu0 0.0
    %1521 = vmatpush1.msra.mxu0 0.0
    %1522 = vmatprep.subr.mxu0 0.0
    %1523 = vmatpush1.msra.mxu0 0.0
    %1524 = vmatprep.subr.mxu0 0.0
    %1525 = vmatpush1.msra.mxu0 0.0
    %1526 = vmatprep.subr.mxu0 0.0
    %1527 = vmatpush1.msra.mxu0 0.0
    %1528 = vmatprep.subr.mxu0 0.0
    %1529 = vmatpush1.msra.mxu0 0.0
    %1530 = vmatprep.subr.mxu0 %v1120
    %1531 = vmatpush1.msra.mxu0 %v1117
    %1532 = vmatprep.subr.mxu0 %v886
    %1533 = vmatpush1.msra.mxu0 %v885
    %1534 = vmatprep.subr.mxu0 %v882
    %1535 = vmatpush1.msra.mxu0 %v881
    %1536 = vmatprep.subr.mxu0 0.0
    %1537 = vmatpush2.msra.mxu0 0.0
    %1538 = vmatprep.subr.mxu0 0.0
    %1539 = vmatpush2.msra.mxu0 0.0
    %1540 = vmatprep.subr.mxu0 0.0
    %1541 = vmatpush2.msra.mxu0 0.0
    %1542 = vmatprep.subr.mxu0 0.0
    %1543 = vmatpush2.msra.mxu0 0.0
    %1544 = vmatprep.subr.mxu0 0.0
    %1545 = vmatpush2.msra.mxu0 0.0
    %1546 = vmatprep.subr.mxu0 0.0
    %1547 = vmatpush2.msra.mxu0 0.0
    %1548 = vmatprep.subr.mxu0 0.0
    %1549 = vmatpush2.msra.mxu0 0.0
    %1550 = vmatprep.subr.mxu0 0.0
    %1551 = vmatpush2.msra.mxu0 0.0
    %1552 = vmatprep.subr.mxu0 0.0
    %1553 = vmatpush2.msra.mxu0 0.0
    %1554 = vmatprep.subr.mxu0 0.0
    %1555 = vmatpush2.msra.mxu0 0.0
    %1556 = vmatprep.subr.mxu0 0.0
    %1557 = vmatpush2.msra.mxu0 0.0
    %1558 = vmatprep.subr.mxu0 0.0
    %1559 = vmatpush2.msra.mxu0 0.0
    %1560 = vmatprep.subr.mxu0 0.0
    %1561 = vmatpush2.msra.mxu0 0.0
    %1562 = vmatprep.subr.mxu0 0.0
    %1563 = vmatpush2.msra.mxu0 0.0
    %1564 = vmatprep.subr.mxu0 0.0
    %1565 = vmatpush2.msra.mxu0 0.0
    %1566 = vmatprep.subr.mxu0 0.0
    %1567 = vmatpush2.msra.mxu0 0.0
    %1568 = vmatprep.mubr.f32.mxu0 0.0
    %1569 = vmatmul.mubr.f32.gmra.mxu0 %v1431
    %v1570 = vpop.f32.mrf.mxu0
    %v1571 = vadd.f32 %v1426, %v1570
    %v1572 = vpop.f32.mrf.mxu0
    %v1573 = vadd.f32 %v1428, %v1572
    %1574 = vdwg.mxu0
    %v1575 = vxor.u32 %v1500, 2147483648
    %v1576 = vxor.u32 %v1502, 2147483648
    %v1577 = vxor.u32 %v1571, 2147483648
    %v1578 = vmul.f32 %v1575, 1.442695
    %v1579 = vpow.pop %v1578
    %v1580 = vmul.f32 %v1576, 1.442695
    %v1581 = vpow.pop %v1580
    %v1582 = vmul.f32 %v1577, 1.442695
    %v1583 = vpow.pop %v1582
    %v1584 = vadd.f32 %v1579, 1.0
    %v1585 = vadd.f32 %v1581, 1.0
    %v1586 = vadd.f32 %v1583, 1.0
    %v1587 = vrcp.pop %v1584
    %v1588 = vmul.f32 1.0, %v1587
    %v1589 = vrcp.pop %v1585
    %v1590 = vmul.f32 1.0, %v1589
    %v1591 = vrcp.pop %v1586
    %v1592 = vmul.f32 1.0, %v1591
    %v1593 = vmul.f32 %v1590, %v1285
    %v1594 = vtanh.pop %v1573
    %v1595 = vmul.f32 %v1588, %v1594
    %v1596 = vadd.f32 %v1593, %v1595
    %v1597 = vtanh.pop %v1596
    %v1598 = vmul.f32 %v1592, %v1597
    %v1599 = vld [vmem:[#allocation10] sm:$0xff]
    %v1600 = vld [vmem:[#allocation10 + $0x8] sm:$0xff]
    %v1601 = vld [vmem:[#allocation10 + $0x10] sm:$0xff]
    %v1602 = vld [vmem:[#allocation10 + $0x18] sm:$0xff]
    %v1603 = vld [vmem:[#allocation10 + $0x20] sm:$0xff]
    %v1604 = vld [vmem:[#allocation10 + $0x28] sm:$0xff]
    %v1605 = vld [vmem:[#allocation10 + $0x30] sm:$0xff]
    %v1606 = vld [vmem:[#allocation10 + $0x38] sm:$0xff]
    %v1607 = vld [vmem:[#allocation10 + $0x40] sm:$0x1f]
    %v1608 = vld [vmem:[#allocation10 + $0x48] sm:$0x1f]
    %v1609 = vld [vmem:[#allocation10 + $0x50] sm:$0x1f]
    %v1610 = vld [vmem:[#allocation10 + $0x58] sm:$0x1f]
    %v1611 = vld [vmem:[#allocation11] sm:$0xff]
    %v1612 = vld [vmem:[#allocation11 + $0x8] sm:$0xff]
    %v1613 = vld [vmem:[#allocation11 + $0x10] sm:$0xff]
    %v1614 = vld [vmem:[#allocation11 + $0x18] sm:$0xff]
    %v1615 = vld [vmem:[#allocation11 + $0x20] sm:$0xff]
    %v1616 = vld [vmem:[#allocation11 + $0x28] sm:$0xff]
    %v1617 = vld [vmem:[#allocation11 + $0x30] sm:$0xff]
    %v1618 = vld [vmem:[#allocation11 + $0x38] sm:$0xff]
    %v1619 = vld [vmem:[#allocation11 + $0x40] sm:$0xff]
    %v1620 = vld [vmem:[#allocation11 + $0x48] sm:$0xff]
    %v1621 = vld [vmem:[#allocation11 + $0x50] sm:$0xff]
    %v1622 = vld [vmem:[#allocation11 + $0x58] sm:$0xff]
    %v1623 = vld [vmem:[#allocation11 + $0x60] sm:$0xff]
    %v1624 = vld [vmem:[#allocation11 + $0x68] sm:$0xff]
    %v1625 = vld [vmem:[#allocation11 + $0x70] sm:$0xff]
    %v1626 = vld [vmem:[#allocation11 + $0x78] sm:$0xff]
    %v1627 = vld [vmem:[#allocation11 + $0x80] sm:$0xff]
    %v1628 = vld [vmem:[#allocation11 + $0x88] sm:$0xff]
    %v1629 = vld [vmem:[#allocation11 + $0x90] sm:$0xff]
    %v1630 = vld [vmem:[#allocation11 + $0x98] sm:$0xff]
    %v1631 = vld [vmem:[#allocation11 + $0xa0] sm:$0xff]
    %v1632 = vld [vmem:[#allocation11 + $0xa8] sm:$0xff]
    %v1633 = vld [vmem:[#allocation11 + $0xb0] sm:$0xff]
    %v1634 = vld [vmem:[#allocation11 + $0xb8] sm:$0xff]
    %v1635 = vld [vmem:[#allocation11 + $0xc0] sm:$0xff]
    %v1636 = vld [vmem:[#allocation11 + $0xc8] sm:$0xff]
    %v1637 = vld [vmem:[#allocation11 + $0xd0] sm:$0xff]
    %v1638 = vld [vmem:[#allocation11 + $0xd8] sm:$0xff]
    %v1639 = vld [vmem:[#allocation11 + $0xe0] sm:$0xff]
    %v1640 = vld [vmem:[#allocation11 + $0xe8] sm:$0xff]
    %v1641 = vld [vmem:[#allocation11 + $0xf0] sm:$0xff]
    %v1642 = vld [vmem:[#allocation11 + $0xf8] sm:$0xff]
    %v1643 = vld [vmem:[#allocation11 + $0x100] sm:$0xff]
    %v1644 = vld [vmem:[#allocation11 + $0x108] sm:$0xff]
    %v1645 = vld [vmem:[#allocation11 + $0x110] sm:$0xff]
    %v1646 = vld [vmem:[#allocation11 + $0x118] sm:$0xff]
    %v1647 = vld [vmem:[#allocation11 + $0x120] sm:$0xff]
    %v1648 = vld [vmem:[#allocation11 + $0x128] sm:$0xff]
    %v1649 = vld [vmem:[#allocation11 + $0x130] sm:$0xff]
    %v1650 = vld [vmem:[#allocation11 + $0x138] sm:$0xff]
    %v1651 = vld [vmem:[#allocation11 + $0x140] sm:$0xff]
    %v1652 = vld [vmem:[#allocation11 + $0x148] sm:$0xff]
    %v1653 = vld [vmem:[#allocation11 + $0x150] sm:$0xff]
    %v1654 = vld [vmem:[#allocation11 + $0x158] sm:$0xff]
    %v1655 = vld [vmem:[#allocation11 + $0x160] sm:$0xff]
    %v1656 = vld [vmem:[#allocation11 + $0x168] sm:$0xff]
    %v1657 = vld [vmem:[#allocation11 + $0x170] sm:$0xff]
    %v1658 = vld [vmem:[#allocation11 + $0x178] sm:$0xff]
    %v1659 = vld [vmem:[#allocation11 + $0x180] sm:$0xff]
    %v1660 = vld [vmem:[#allocation11 + $0x188] sm:$0xff]
    %v1661 = vld [vmem:[#allocation11 + $0x190] sm:$0xff]
    %v1662 = vld [vmem:[#allocation11 + $0x198] sm:$0xff]
    %v1663 = vld [vmem:[#allocation11 + $0x1a0] sm:$0xff]
    %v1664 = vld [vmem:[#allocation11 + $0x1a8] sm:$0xff]
    %v1665 = vld [vmem:[#allocation11 + $0x1b0] sm:$0xff]
    %v1666 = vld [vmem:[#allocation11 + $0x1b8] sm:$0xff]
    %v1667 = vld [vmem:[#allocation11 + $0x1c0] sm:$0xff]
    %v1668 = vld [vmem:[#allocation11 + $0x1c8] sm:$0xff]
    %v1669 = vld [vmem:[#allocation11 + $0x1d0] sm:$0xff]
    %v1670 = vld [vmem:[#allocation11 + $0x1d8] sm:$0xff]
    %v1671 = vld [vmem:[#allocation11 + $0x1e0] sm:$0xff]
    %v1672 = vld [vmem:[#allocation11 + $0x1e8] sm:$0xff]
    %v1673 = vld [vmem:[#allocation11 + $0x1f0] sm:$0xff]
    %v1674 = vld [vmem:[#allocation11 + $0x1f8] sm:$0xff]
    %1675 = vrot.lane.b32.xlu0 %v955, 88
    %v1676 = vpop.permute.xlu0 %1675
    %v1678 = vsel %vm956, %v1676, 1.0
    %1679 = vrot.lane.b32.xlu0 %v955, 68
    %v1680 = vpop.permute.xlu0 %1679
    %v1682 = vsel %vm956, %v1680, 1.0
    %1683 = vrot.lane.b32.xlu0 %v955, 48
    %v1684 = vpop.permute.xlu0 %1683
    %v1686 = vsel %vm956, %v1684, 1.0
    %1687 = vmatprep.subr.mxu0 %v1672
    %1688 = vmatpush1.msra.mxu0 %v1671
    %1689 = vmatprep.subr.mxu0 %v1668
    %1690 = vmatpush1.msra.mxu0 %v1667
    %1691 = vmatprep.subr.mxu0 %v1664
    %1692 = vmatpush1.msra.mxu0 %v1663
    %1693 = vmatprep.subr.mxu0 %v1660
    %1694 = vmatpush1.msra.mxu0 %v1659
    %1695 = vmatprep.subr.mxu0 %v1656
    %1696 = vmatpush1.msra.mxu0 %v1655
    %1697 = vmatprep.subr.mxu0 %v1652
    %1698 = vmatpush1.msra.mxu0 %v1651
    %1699 = vmatprep.subr.mxu0 %v1648
    %1700 = vmatpush1.msra.mxu0 %v1647
    %1701 = vmatprep.subr.mxu0 %v1644
    %1702 = vmatpush1.msra.mxu0 %v1643
    %1703 = vmatprep.subr.mxu0 %v1640
    %1704 = vmatpush1.msra.mxu0 %v1639
    %1705 = vmatprep.subr.mxu0 %v1636
    %1706 = vmatpush1.msra.mxu0 %v1635
    %1707 = vmatprep.subr.mxu0 %v1632
    %1708 = vmatpush1.msra.mxu0 %v1631
    %1709 = vmatprep.subr.mxu0 %v1628
    %1710 = vmatpush1.msra.mxu0 %v1627
    %1711 = vmatprep.subr.mxu0 %v1624
    %1712 = vmatpush1.msra.mxu0 %v1623
    %1713 = vmatprep.subr.mxu0 %v1620
    %1714 = vmatpush1.msra.mxu0 %v1619
    %1715 = vmatprep.subr.mxu0 %v1616
    %1716 = vmatpush1.msra.mxu0 %v1615
    %1717 = vmatprep.subr.mxu0 %v1612
    %1718 = vmatpush1.msra.mxu0 %v1611
    %1719 = vmatprep.subr.mxu0 0.0
    %1720 = vmatpush2.msra.mxu0 0.0
    %1721 = vmatprep.subr.mxu0 0.0
    %1722 = vmatpush2.msra.mxu0 0.0
    %1723 = vmatprep.subr.mxu0 0.0
    %1724 = vmatpush2.msra.mxu0 0.0
    %1725 = vmatprep.subr.mxu0 0.0
    %1726 = vmatpush2.msra.mxu0 0.0
    %1727 = vmatprep.subr.mxu0 0.0
    %1728 = vmatpush2.msra.mxu0 0.0
    %1729 = vmatprep.subr.mxu0 0.0
    %1730 = vmatpush2.msra.mxu0 0.0
    %1731 = vmatprep.subr.mxu0 0.0
    %1732 = vmatpush2.msra.mxu0 0.0
    %1733 = vmatprep.subr.mxu0 0.0
    %1734 = vmatpush2.msra.mxu0 0.0
    %1735 = vmatprep.subr.mxu0 0.0
    %1736 = vmatpush2.msra.mxu0 0.0
    %1737 = vmatprep.subr.mxu0 0.0
    %1738 = vmatpush2.msra.mxu0 0.0
    %1739 = vmatprep.subr.mxu0 0.0
    %1740 = vmatpush2.msra.mxu0 0.0
    %1741 = vmatprep.subr.mxu0 0.0
    %1742 = vmatpush2.msra.mxu0 0.0
    %1743 = vmatprep.subr.mxu0 0.0
    %1744 = vmatpush2.msra.mxu0 0.0
    %1745 = vmatprep.subr.mxu0 0.0
    %1746 = vmatpush2.msra.mxu0 0.0
    %1747 = vmatprep.subr.mxu0 0.0
    %1748 = vmatpush2.msra.mxu0 0.0
    %1749 = vmatprep.subr.mxu0 0.0
    %1750 = vmatpush2.msra.mxu0 0.0
    %1751 = vmatprep.mubr.f32.mxu0 0.0
    %1752 = vmatmul.mubr.f32.gmra.mxu0 0.0
    %v1753 = vpop.f32.mrf.mxu0
    %v1754 = vadd.f32 0.0, %v1753
    %v1755 = vpop.f32.mrf.mxu0
    %v1756 = vadd.f32 0.0, %v1755
    %1757 = vdwg.mxu0
    %1758 = vmatprep.subr.mxu0 %v1674
    %1759 = vmatpush1.msra.mxu0 %v1673
    %1760 = vmatprep.subr.mxu0 %v1670
    %1761 = vmatpush1.msra.mxu0 %v1669
    %1762 = vmatprep.subr.mxu0 %v1666
    %1763 = vmatpush1.msra.mxu0 %v1665
    %1764 = vmatprep.subr.mxu0 %v1662
    %1765 = vmatpush1.msra.mxu0 %v1661
    %1766 = vmatprep.subr.mxu0 %v1658
    %1767 = vmatpush1.msra.mxu0 %v1657
    %1768 = vmatprep.subr.mxu0 %v1654
    %1769 = vmatpush1.msra.mxu0 %v1653
    %1770 = vmatprep.subr.mxu0 %v1650
    %1771 = vmatpush1.msra.mxu0 %v1649
    %1772 = vmatprep.subr.mxu0 %v1646
    %1773 = vmatpush1.msra.mxu0 %v1645
    %1774 = vmatprep.subr.mxu0 %v1642
    %1775 = vmatpush1.msra.mxu0 %v1641
    %1776 = vmatprep.subr.mxu0 %v1638
    %1777 = vmatpush1.msra.mxu0 %v1637
    %1778 = vmatprep.subr.mxu0 %v1634
    %1779 = vmatpush1.msra.mxu0 %v1633
    %1780 = vmatprep.subr.mxu0 %v1630
    %1781 = vmatpush1.msra.mxu0 %v1629
    %1782 = vmatprep.subr.mxu0 %v1626
    %1783 = vmatpush1.msra.mxu0 %v1625
    %1784 = vmatprep.subr.mxu0 %v1622
    %1785 = vmatpush1.msra.mxu0 %v1621
    %1786 = vmatprep.subr.mxu0 %v1618
    %1787 = vmatpush1.msra.mxu0 %v1617
    %1788 = vmatprep.subr.mxu0 %v1614
    %1789 = vmatpush1.msra.mxu0 %v1613
    %1790 = vmatprep.subr.mxu0 0.0
    %1791 = vmatpush2.msra.mxu0 0.0
    %1792 = vmatprep.subr.mxu0 0.0
    %1793 = vmatpush2.msra.mxu0 0.0
    %1794 = vmatprep.subr.mxu0 0.0
    %1795 = vmatpush2.msra.mxu0 0.0
    %1796 = vmatprep.subr.mxu0 0.0
    %1797 = vmatpush2.msra.mxu0 0.0
    %1798 = vmatprep.subr.mxu0 0.0
    %1799 = vmatpush2.msra.mxu0 0.0
    %1800 = vmatprep.subr.mxu0 0.0
    %1801 = vmatpush2.msra.mxu0 0.0
    %1802 = vmatprep.subr.mxu0 0.0
    %1803 = vmatpush2.msra.mxu0 0.0
    %1804 = vmatprep.subr.mxu0 0.0
    %1805 = vmatpush2.msra.mxu0 0.0
    %1806 = vmatprep.subr.mxu0 0.0
    %1807 = vmatpush2.msra.mxu0 0.0
    %1808 = vmatprep.subr.mxu0 0.0
    %1809 = vmatpush2.msra.mxu0 0.0
    %1810 = vmatprep.subr.mxu0 0.0
    %1811 = vmatpush2.msra.mxu0 0.0
    %1812 = vmatprep.subr.mxu0 0.0
    %1813 = vmatpush2.msra.mxu0 0.0
    %1814 = vmatprep.subr.mxu0 0.0
    %1815 = vmatpush2.msra.mxu0 0.0
    %1816 = vmatprep.subr.mxu0 0.0
    %1817 = vmatpush2.msra.mxu0 0.0
    %1818 = vmatprep.subr.mxu0 0.0
    %1819 = vmatpush2.msra.mxu0 0.0
    %1820 = vmatprep.subr.mxu0 0.0
    %1821 = vmatpush2.msra.mxu0 0.0
    %1822 = vmatprep.mubr.f32.mxu0 0.0
    %1823 = vmatmul.mubr.f32.gmra.mxu0 0.0
    %v1824 = vpop.f32.mrf.mxu0
    %v1825 = vadd.f32 0.0, %v1824
    %v1826 = vpop.f32.mrf.mxu0
    %v1827 = vadd.f32 0.0, %v1826
    %1828 = vdwg.mxu0
    %v1830 = vsel %vm1105, %v1678, 0
    %v1833 = vsel %vm1109, %v1607, 0
    %v1836 = vsel %vm1109, %v1608, 0
    %v1839 = vsel %vm1109, %v1609, 0
    %v1842 = vsel %vm1109, %v1610, 0
    %1844 = vmatprep.subr.mxu0 0.0
    %1845 = vmatpush1.msra.mxu0 0.0
    %1846 = vmatprep.subr.mxu0 0.0
    %1847 = vmatpush1.msra.mxu0 0.0
    %1848 = vmatprep.subr.mxu0 0.0
    %1849 = vmatpush1.msra.mxu0 0.0
    %1850 = vmatprep.subr.mxu0 0.0
    %1851 = vmatpush1.msra.mxu0 0.0
    %1852 = vmatprep.subr.mxu0 0.0
    %1853 = vmatpush1.msra.mxu0 0.0
    %1854 = vmatprep.subr.mxu0 0.0
    %1855 = vmatpush1.msra.mxu0 0.0
    %1856 = vmatprep.subr.mxu0 0.0
    %1857 = vmatpush1.msra.mxu0 0.0
    %1858 = vmatprep.subr.mxu0 0.0
    %1859 = vmatpush1.msra.mxu0 0.0
    %1860 = vmatprep.subr.mxu0 0.0
    %1861 = vmatpush1.msra.mxu0 0.0
    %1862 = vmatprep.subr.mxu0 0.0
    %1863 = vmatpush1.msra.mxu0 0.0
    %1864 = vmatprep.subr.mxu0 0.0
    %1865 = vmatpush1.msra.mxu0 0.0
    %1866 = vmatprep.subr.mxu0 0.0
    %1867 = vmatpush1.msra.mxu0 0.0
    %1868 = vmatprep.subr.mxu0 0.0
    %1869 = vmatpush1.msra.mxu0 0.0
    %1870 = vmatprep.subr.mxu0 %v1836
    %1871 = vmatpush1.msra.mxu0 %v1833
    %1872 = vmatprep.subr.mxu0 %v1604
    %1873 = vmatpush1.msra.mxu0 %v1603
    %1874 = vmatprep.subr.mxu0 %v1600
    %1875 = vmatpush1.msra.mxu0 %v1599
    %1876 = vmatprep.subr.mxu0 0.0
    %1877 = vmatpush2.msra.mxu0 0.0
    %1878 = vmatprep.subr.mxu0 0.0
    %1879 = vmatpush2.msra.mxu0 0.0
    %1880 = vmatprep.subr.mxu0 0.0
    %1881 = vmatpush2.msra.mxu0 0.0
    %1882 = vmatprep.subr.mxu0 0.0
    %1883 = vmatpush2.msra.mxu0 0.0
    %1884 = vmatprep.subr.mxu0 0.0
    %1885 = vmatpush2.msra.mxu0 0.0
    %1886 = vmatprep.subr.mxu0 0.0
    %1887 = vmatpush2.msra.mxu0 0.0
    %1888 = vmatprep.subr.mxu0 0.0
    %1889 = vmatpush2.msra.mxu0 0.0
    %1890 = vmatprep.subr.mxu0 0.0
    %1891 = vmatpush2.msra.mxu0 0.0
    %1892 = vmatprep.subr.mxu0 0.0
    %1893 = vmatpush2.msra.mxu0 0.0
    %1894 = vmatprep.subr.mxu0 0.0
    %1895 = vmatpush2.msra.mxu0 0.0
    %1896 = vmatprep.subr.mxu0 0.0
    %1897 = vmatpush2.msra.mxu0 0.0
    %1898 = vmatprep.subr.mxu0 0.0
    %1899 = vmatpush2.msra.mxu0 0.0
    %1900 = vmatprep.subr.mxu0 0.0
    %1901 = vmatpush2.msra.mxu0 0.0
    %1902 = vmatprep.subr.mxu0 0.0
    %1903 = vmatpush2.msra.mxu0 0.0
    %1904 = vmatprep.subr.mxu0 0.0
    %1905 = vmatpush2.msra.mxu0 0.0
    %1906 = vmatprep.subr.mxu0 0.0
    %1907 = vmatpush2.msra.mxu0 0.0
    %1908 = vmatprep.mubr.f32.mxu0 0.0
    %1909 = vmatmul.mubr.f32.gmra.mxu0 %v1830
    %v1910 = vpop.f32.mrf.mxu0
    %v1911 = vadd.f32 %v1754, %v1910
    %v1912 = vpop.f32.mrf.mxu0
    %v1913 = vadd.f32 %v1756, %v1912
    %1914 = vdwg.mxu0
    %1915 = vmatprep.subr.mxu0 0.0
    %1916 = vmatpush1.msra.mxu0 0.0
    %1917 = vmatprep.subr.mxu0 0.0
    %1918 = vmatpush1.msra.mxu0 0.0
    %1919 = vmatprep.subr.mxu0 0.0
    %1920 = vmatpush1.msra.mxu0 0.0
    %1921 = vmatprep.subr.mxu0 0.0
    %1922 = vmatpush1.msra.mxu0 0.0
    %1923 = vmatprep.subr.mxu0 0.0
    %1924 = vmatpush1.msra.mxu0 0.0
    %1925 = vmatprep.subr.mxu0 0.0
    %1926 = vmatpush1.msra.mxu0 0.0
    %1927 = vmatprep.subr.mxu0 0.0
    %1928 = vmatpush1.msra.mxu0 0.0
    %1929 = vmatprep.subr.mxu0 0.0
    %1930 = vmatpush1.msra.mxu0 0.0
    %1931 = vmatprep.subr.mxu0 0.0
    %1932 = vmatpush1.msra.mxu0 0.0
    %1933 = vmatprep.subr.mxu0 0.0
    %1934 = vmatpush1.msra.mxu0 0.0
    %1935 = vmatprep.subr.mxu0 0.0
    %1936 = vmatpush1.msra.mxu0 0.0
    %1937 = vmatprep.subr.mxu0 0.0
    %1938 = vmatpush1.msra.mxu0 0.0
    %1939 = vmatprep.subr.mxu0 0.0
    %1940 = vmatpush1.msra.mxu0 0.0
    %1941 = vmatprep.subr.mxu0 %v1842
    %1942 = vmatpush1.msra.mxu0 %v1839
    %1943 = vmatprep.subr.mxu0 %v1606
    %1944 = vmatpush1.msra.mxu0 %v1605
    %1945 = vmatprep.subr.mxu0 %v1602
    %1946 = vmatpush1.msra.mxu0 %v1601
    %1947 = vmatprep.subr.mxu0 0.0
    %1948 = vmatpush2.msra.mxu0 0.0
    %1949 = vmatprep.subr.mxu0 0.0
    %1950 = vmatpush2.msra.mxu0 0.0
    %1951 = vmatprep.subr.mxu0 0.0
    %1952 = vmatpush2.msra.mxu0 0.0
    %1953 = vmatprep.subr.mxu0 0.0
    %1954 = vmatpush2.msra.mxu0 0.0
    %1955 = vmatprep.subr.mxu0 0.0
    %1956 = vmatpush2.msra.mxu0 0.0
    %1957 = vmatprep.subr.mxu0 0.0
    %1958 = vmatpush2.msra.mxu0 0.0
    %1959 = vmatprep.subr.mxu0 0.0
    %1960 = vmatpush2.msra.mxu0 0.0
    %1961 = vmatprep.subr.mxu0 0.0
    %1962 = vmatpush2.msra.mxu0 0.0
    %1963 = vmatprep.subr.mxu0 0.0
    %1964 = vmatpush2.msra.mxu0 0.0
    %1965 = vmatprep.subr.mxu0 0.0
    %1966 = vmatpush2.msra.mxu0 0.0
    %1967 = vmatprep.subr.mxu0 0.0
    %1968 = vmatpush2.msra.mxu0 0.0
    %1969 = vmatprep.subr.mxu0 0.0
    %1970 = vmatpush2.msra.mxu0 0.0
    %1971 = vmatprep.subr.mxu0 0.0
    %1972 = vmatpush2.msra.mxu0 0.0
    %1973 = vmatprep.subr.mxu0 0.0
    %1974 = vmatpush2.msra.mxu0 0.0
    %1975 = vmatprep.subr.mxu0 0.0
    %1976 = vmatpush2.msra.mxu0 0.0
    %1977 = vmatprep.subr.mxu0 0.0
    %1978 = vmatpush2.msra.mxu0 0.0
    %1979 = vmatprep.mubr.f32.mxu0 0.0
    %1980 = vmatmul.mubr.f32.gmra.mxu0 %v1830
    %v1981 = vpop.f32.mrf.mxu0
    %v1982 = vadd.f32 %v1825, %v1981
    %v1983 = vpop.f32.mrf.mxu0
    %v1984 = vadd.f32 %v1827, %v1983
    %1985 = vdwg.mxu0
    %v1986 = vxor.u32 %v1911, 2147483648
    %v1987 = vxor.u32 %v1913, 2147483648
    %v1988 = vxor.u32 %v1982, 2147483648
    %v1989 = vmul.f32 %v1986, 1.442695
    %v1990 = vpow.pop %v1989
    %v1991 = vmul.f32 %v1987, 1.442695
    %v1992 = vpow.pop %v1991
    %v1993 = vmul.f32 %v1988, 1.442695
    %v1994 = vpow.pop %v1993
    %v1995 = vadd.f32 %v1990, 1.0
    %v1996 = vadd.f32 %v1992, 1.0
    %v1997 = vadd.f32 %v1994, 1.0
    %v1998 = vrcp.pop %v1995
    %v1999 = vmul.f32 1.0, %v1998
    %v2000 = vrcp.pop %v1996
    %v2001 = vmul.f32 1.0, %v2000
    %v2002 = vrcp.pop %v1997
    %v2003 = vmul.f32 1.0, %v2002
    %v2004 = vmul.f32 %v2001, 0.0
    %v2005 = vtanh.pop %v1984
    %v2006 = vmul.f32 %v1999, %v2005
    %v2007 = vadd.f32 %v2004, %v2006
    %v2008 = vtanh.pop %v2007
    %v2009 = vmul.f32 %v2003, %v2008
    %2010 = vmatprep.subr.mxu0 %v1672
    %2011 = vmatpush1.msra.mxu0 %v1671
    %2012 = vmatprep.subr.mxu0 %v1668
    %2013 = vmatpush1.msra.mxu0 %v1667
    %2014 = vmatprep.subr.mxu0 %v1664
    %2015 = vmatpush1.msra.mxu0 %v1663
    %2016 = vmatprep.subr.mxu0 %v1660
    %2017 = vmatpush1.msra.mxu0 %v1659
    %2018 = vmatprep.subr.mxu0 %v1656
    %2019 = vmatpush1.msra.mxu0 %v1655
    %2020 = vmatprep.subr.mxu0 %v1652
    %2021 = vmatpush1.msra.mxu0 %v1651
    %2022 = vmatprep.subr.mxu0 %v1648
    %2023 = vmatpush1.msra.mxu0 %v1647
    %2024 = vmatprep.subr.mxu0 %v1644
    %2025 = vmatpush1.msra.mxu0 %v1643
    %2026 = vmatprep.subr.mxu0 %v1640
    %2027 = vmatpush1.msra.mxu0 %v1639
    %2028 = vmatprep.subr.mxu0 %v1636
    %2029 = vmatpush1.msra.mxu0 %v1635
    %2030 = vmatprep.subr.mxu0 %v1632
    %2031 = vmatpush1.msra.mxu0 %v1631
    %2032 = vmatprep.subr.mxu0 %v1628
    %2033 = vmatpush1.msra.mxu0 %v1627
    %2034 = vmatprep.subr.mxu0 %v1624
    %2035 = vmatpush1.msra.mxu0 %v1623
    %2036 = vmatprep.subr.mxu0 %v1620
    %2037 = vmatpush1.msra.mxu0 %v1619
    %2038 = vmatprep.subr.mxu0 %v1616
    %2039 = vmatpush1.msra.mxu0 %v1615
    %2040 = vmatprep.subr.mxu0 %v1612
    %2041 = vmatpush1.msra.mxu0 %v1611
    %2042 = vmatprep.subr.mxu0 0.0
    %2043 = vmatpush2.msra.mxu0 0.0
    %2044 = vmatprep.subr.mxu0 0.0
    %2045 = vmatpush2.msra.mxu0 0.0
    %2046 = vmatprep.subr.mxu0 0.0
    %2047 = vmatpush2.msra.mxu0 0.0
    %2048 = vmatprep.subr.mxu0 0.0
    %2049 = vmatpush2.msra.mxu0 0.0
    %2050 = vmatprep.subr.mxu0 0.0
    %2051 = vmatpush2.msra.mxu0 0.0
    %2052 = vmatprep.subr.mxu0 0.0
    %2053 = vmatpush2.msra.mxu0 0.0
    %2054 = vmatprep.subr.mxu0 0.0
    %2055 = vmatpush2.msra.mxu0 0.0
    %2056 = vmatprep.subr.mxu0 0.0
    %2057 = vmatpush2.msra.mxu0 0.0
    %2058 = vmatprep.subr.mxu0 0.0
    %2059 = vmatpush2.msra.mxu0 0.0
    %2060 = vmatprep.subr.mxu0 0.0
    %2061 = vmatpush2.msra.mxu0 0.0
    %2062 = vmatprep.subr.mxu0 0.0
    %2063 = vmatpush2.msra.mxu0 0.0
    %2064 = vmatprep.subr.mxu0 0.0
    %2065 = vmatpush2.msra.mxu0 0.0
    %2066 = vmatprep.subr.mxu0 0.0
    %2067 = vmatpush2.msra.mxu0 0.0
    %2068 = vmatprep.subr.mxu0 0.0
    %2069 = vmatpush2.msra.mxu0 0.0
    %2070 = vmatprep.subr.mxu0 0.0
    %2071 = vmatpush2.msra.mxu0 0.0
    %2072 = vmatprep.subr.mxu0 0.0
    %2073 = vmatpush2.msra.mxu0 0.0
    %2074 = vmatprep.mubr.f32.mxu0 0.0
    %2075 = vmatmul.mubr.f32.gmra.mxu0 %v2009
    %v2076 = vpop.f32.mrf.mxu0
    %v2077 = vadd.f32 0.0, %v2076
    %v2078 = vpop.f32.mrf.mxu0
    %v2079 = vadd.f32 0.0, %v2078
    %2080 = vdwg.mxu0
    %2081 = vmatprep.subr.mxu0 %v1674
    %2082 = vmatpush1.msra.mxu0 %v1673
    %2083 = vmatprep.subr.mxu0 %v1670
    %2084 = vmatpush1.msra.mxu0 %v1669
    %2085 = vmatprep.subr.mxu0 %v1666
    %2086 = vmatpush1.msra.mxu0 %v1665
    %2087 = vmatprep.subr.mxu0 %v1662
    %2088 = vmatpush1.msra.mxu0 %v1661
    %2089 = vmatprep.subr.mxu0 %v1658
    %2090 = vmatpush1.msra.mxu0 %v1657
    %2091 = vmatprep.subr.mxu0 %v1654
    %2092 = vmatpush1.msra.mxu0 %v1653
    %2093 = vmatprep.subr.mxu0 %v1650
    %2094 = vmatpush1.msra.mxu0 %v1649
    %2095 = vmatprep.subr.mxu0 %v1646
    %2096 = vmatpush1.msra.mxu0 %v1645
    %2097 = vmatprep.subr.mxu0 %v1642
    %2098 = vmatpush1.msra.mxu0 %v1641
    %2099 = vmatprep.subr.mxu0 %v1638
    %2100 = vmatpush1.msra.mxu0 %v1637
    %2101 = vmatprep.subr.mxu0 %v1634
    %2102 = vmatpush1.msra.mxu0 %v1633
    %2103 = vmatprep.subr.mxu0 %v1630
    %2104 = vmatpush1.msra.mxu0 %v1629
    %2105 = vmatprep.subr.mxu0 %v1626
    %2106 = vmatpush1.msra.mxu0 %v1625
    %2107 = vmatprep.subr.mxu0 %v1622
    %2108 = vmatpush1.msra.mxu0 %v1621
    %2109 = vmatprep.subr.mxu0 %v1618
    %2110 = vmatpush1.msra.mxu0 %v1617
    %2111 = vmatprep.subr.mxu0 %v1614
    %2112 = vmatpush1.msra.mxu0 %v1613
    %2113 = vmatprep.subr.mxu0 0.0
    %2114 = vmatpush2.msra.mxu0 0.0
    %2115 = vmatprep.subr.mxu0 0.0
    %2116 = vmatpush2.msra.mxu0 0.0
    %2117 = vmatprep.subr.mxu0 0.0
    %2118 = vmatpush2.msra.mxu0 0.0
    %2119 = vmatprep.subr.mxu0 0.0
    %2120 = vmatpush2.msra.mxu0 0.0
    %2121 = vmatprep.subr.mxu0 0.0
    %2122 = vmatpush2.msra.mxu0 0.0
    %2123 = vmatprep.subr.mxu0 0.0
    %2124 = vmatpush2.msra.mxu0 0.0
    %2125 = vmatprep.subr.mxu0 0.0
    %2126 = vmatpush2.msra.mxu0 0.0
    %2127 = vmatprep.subr.mxu0 0.0
    %2128 = vmatpush2.msra.mxu0 0.0
    %2129 = vmatprep.subr.mxu0 0.0
    %2130 = vmatpush2.msra.mxu0 0.0
    %2131 = vmatprep.subr.mxu0 0.0
    %2132 = vmatpush2.msra.mxu0 0.0
    %2133 = vmatprep.subr.mxu0 0.0
    %2134 = vmatpush2.msra.mxu0 0.0
    %2135 = vmatprep.subr.mxu0 0.0
    %2136 = vmatpush2.msra.mxu0 0.0
    %2137 = vmatprep.subr.mxu0 0.0
    %2138 = vmatpush2.msra.mxu0 0.0
    %2139 = vmatprep.subr.mxu0 0.0
    %2140 = vmatpush2.msra.mxu0 0.0
    %2141 = vmatprep.subr.mxu0 0.0
    %2142 = vmatpush2.msra.mxu0 0.0
    %2143 = vmatprep.subr.mxu0 0.0
    %2144 = vmatpush2.msra.mxu0 0.0
    %2145 = vmatprep.mubr.f32.mxu0 0.0
    %2146 = vmatmul.mubr.f32.gmra.mxu0 %v2009
    %v2147 = vpop.f32.mrf.mxu0
    %v2148 = vadd.f32 0.0, %v2147
    %v2149 = vpop.f32.mrf.mxu0
    %v2150 = vadd.f32 0.0, %v2149
    %2151 = vdwg.mxu0
    %v2153 = vsel %vm1105, %v1682, 0
    %2155 = vmatprep.subr.mxu0 0.0
    %2156 = vmatpush1.msra.mxu0 0.0
    %2157 = vmatprep.subr.mxu0 0.0
    %2158 = vmatpush1.msra.mxu0 0.0
    %2159 = vmatprep.subr.mxu0 0.0
    %2160 = vmatpush1.msra.mxu0 0.0
    %2161 = vmatprep.subr.mxu0 0.0
    %2162 = vmatpush1.msra.mxu0 0.0
    %2163 = vmatprep.subr.mxu0 0.0
    %2164 = vmatpush1.msra.mxu0 0.0
    %2165 = vmatprep.subr.mxu0 0.0
    %2166 = vmatpush1.msra.mxu0 0.0
    %2167 = vmatprep.subr.mxu0 0.0
    %2168 = vmatpush1.msra.mxu0 0.0
    %2169 = vmatprep.subr.mxu0 0.0
    %2170 = vmatpush1.msra.mxu0 0.0
    %2171 = vmatprep.subr.mxu0 0.0
    %2172 = vmatpush1.msra.mxu0 0.0
    %2173 = vmatprep.subr.mxu0 0.0
    %2174 = vmatpush1.msra.mxu0 0.0
    %2175 = vmatprep.subr.mxu0 0.0
    %2176 = vmatpush1.msra.mxu0 0.0
    %2177 = vmatprep.subr.mxu0 0.0
    %2178 = vmatpush1.msra.mxu0 0.0
    %2179 = vmatprep.subr.mxu0 0.0
    %2180 = vmatpush1.msra.mxu0 0.0
    %2181 = vmatprep.subr.mxu0 %v1836
    %2182 = vmatpush1.msra.mxu0 %v1833
    %2183 = vmatprep.subr.mxu0 %v1604
    %2184 = vmatpush1.msra.mxu0 %v1603
    %2185 = vmatprep.subr.mxu0 %v1600
    %2186 = vmatpush1.msra.mxu0 %v1599
    %2187 = vmatprep.subr.mxu0 0.0
    %2188 = vmatpush2.msra.mxu0 0.0
    %2189 = vmatprep.subr.mxu0 0.0
    %2190 = vmatpush2.msra.mxu0 0.0
    %2191 = vmatprep.subr.mxu0 0.0
    %2192 = vmatpush2.msra.mxu0 0.0
    %2193 = vmatprep.subr.mxu0 0.0
    %2194 = vmatpush2.msra.mxu0 0.0
    %2195 = vmatprep.subr.mxu0 0.0
    %2196 = vmatpush2.msra.mxu0 0.0
    %2197 = vmatprep.subr.mxu0 0.0
    %2198 = vmatpush2.msra.mxu0 0.0
    %2199 = vmatprep.subr.mxu0 0.0
    %2200 = vmatpush2.msra.mxu0 0.0
    %2201 = vmatprep.subr.mxu0 0.0
    %2202 = vmatpush2.msra.mxu0 0.0
    %2203 = vmatprep.subr.mxu0 0.0
    %2204 = vmatpush2.msra.mxu0 0.0
    %2205 = vmatprep.subr.mxu0 0.0
    %2206 = vmatpush2.msra.mxu0 0.0
    %2207 = vmatprep.subr.mxu0 0.0
    %2208 = vmatpush2.msra.mxu0 0.0
    %2209 = vmatprep.subr.mxu0 0.0
    %2210 = vmatpush2.msra.mxu0 0.0
    %2211 = vmatprep.subr.mxu0 0.0
    %2212 = vmatpush2.msra.mxu0 0.0
    %2213 = vmatprep.subr.mxu0 0.0
    %2214 = vmatpush2.msra.mxu0 0.0
    %2215 = vmatprep.subr.mxu0 0.0
    %2216 = vmatpush2.msra.mxu0 0.0
    %2217 = vmatprep.subr.mxu0 0.0
    %2218 = vmatpush2.msra.mxu0 0.0
    %2219 = vmatprep.mubr.f32.mxu0 0.0
    %2220 = vmatmul.mubr.f32.gmra.mxu0 %v2153
    %v2221 = vpop.f32.mrf.mxu0
    %v2222 = vadd.f32 %v2077, %v2221
    %v2223 = vpop.f32.mrf.mxu0
    %v2224 = vadd.f32 %v2079, %v2223
    %2225 = vdwg.mxu0
    %2226 = vmatprep.subr.mxu0 0.0
    %2227 = vmatpush1.msra.mxu0 0.0
    %2228 = vmatprep.subr.mxu0 0.0
    %2229 = vmatpush1.msra.mxu0 0.0
    %2230 = vmatprep.subr.mxu0 0.0
    %2231 = vmatpush1.msra.mxu0 0.0
    %2232 = vmatprep.subr.mxu0 0.0
    %2233 = vmatpush1.msra.mxu0 0.0
    %2234 = vmatprep.subr.mxu0 0.0
    %2235 = vmatpush1.msra.mxu0 0.0
    %2236 = vmatprep.subr.mxu0 0.0
    %2237 = vmatpush1.msra.mxu0 0.0
    %2238 = vmatprep.subr.mxu0 0.0
    %2239 = vmatpush1.msra.mxu0 0.0
    %2240 = vmatprep.subr.mxu0 0.0
    %2241 = vmatpush1.msra.mxu0 0.0
    %2242 = vmatprep.subr.mxu0 0.0
    %2243 = vmatpush1.msra.mxu0 0.0
    %2244 = vmatprep.subr.mxu0 0.0
    %2245 = vmatpush1.msra.mxu0 0.0
    %2246 = vmatprep.subr.mxu0 0.0
    %2247 = vmatpush1.msra.mxu0 0.0
    %2248 = vmatprep.subr.mxu0 0.0
    %2249 = vmatpush1.msra.mxu0 0.0
    %2250 = vmatprep.subr.mxu0 0.0
    %2251 = vmatpush1.msra.mxu0 0.0
    %2252 = vmatprep.subr.mxu0 %v1842
    %2253 = vmatpush1.msra.mxu0 %v1839
    %2254 = vmatprep.subr.mxu0 %v1606
    %2255 = vmatpush1.msra.mxu0 %v1605
    %2256 = vmatprep.subr.mxu0 %v1602
    %2257 = vmatpush1.msra.mxu0 %v1601
    %2258 = vmatprep.subr.mxu0 0.0
    %2259 = vmatpush2.msra.mxu0 0.0
    %2260 = vmatprep.subr.mxu0 0.0
    %2261 = vmatpush2.msra.mxu0 0.0
    %2262 = vmatprep.subr.mxu0 0.0
    %2263 = vmatpush2.msra.mxu0 0.0
    %2264 = vmatprep.subr.mxu0 0.0
    %2265 = vmatpush2.msra.mxu0 0.0
    %2266 = vmatprep.subr.mxu0 0.0
    %2267 = vmatpush2.msra.mxu0 0.0
    %2268 = vmatprep.subr.mxu0 0.0
    %2269 = vmatpush2.msra.mxu0 0.0
    %2270 = vmatprep.subr.mxu0 0.0
    %2271 = vmatpush2.msra.mxu0 0.0
    %2272 = vmatprep.subr.mxu0 0.0
    %2273 = vmatpush2.msra.mxu0 0.0
    %2274 = vmatprep.subr.mxu0 0.0
    %2275 = vmatpush2.msra.mxu0 0.0
    %2276 = vmatprep.subr.mxu0 0.0
    %2277 = vmatpush2.msra.mxu0 0.0
    %2278 = vmatprep.subr.mxu0 0.0
    %2279 = vmatpush2.msra.mxu0 0.0
    %2280 = vmatprep.subr.mxu0 0.0
    %2281 = vmatpush2.msra.mxu0 0.0
    %2282 = vmatprep.subr.mxu0 0.0
    %2283 = vmatpush2.msra.mxu0 0.0
    %2284 = vmatprep.subr.mxu0 0.0
    %2285 = vmatpush2.msra.mxu0 0.0
    %2286 = vmatprep.subr.mxu0 0.0
    %2287 = vmatpush2.msra.mxu0 0.0
    %2288 = vmatprep.subr.mxu0 0.0
    %2289 = vmatpush2.msra.mxu0 0.0
    %2290 = vmatprep.mubr.f32.mxu0 0.0
    %2291 = vmatmul.mubr.f32.gmra.mxu0 %v2153
    %v2292 = vpop.f32.mrf.mxu0
    %v2293 = vadd.f32 %v2148, %v2292
    %v2294 = vpop.f32.mrf.mxu0
    %v2295 = vadd.f32 %v2150, %v2294
    %2296 = vdwg.mxu0
    %v2297 = vxor.u32 %v2222, 2147483648
    %v2298 = vxor.u32 %v2224, 2147483648
    %v2299 = vxor.u32 %v2293, 2147483648
    %v2300 = vmul.f32 %v2297, 1.442695
    %v2301 = vpow.pop %v2300
    %v2302 = vmul.f32 %v2298, 1.442695
    %v2303 = vpow.pop %v2302
    %v2304 = vmul.f32 %v2299, 1.442695
    %v2305 = vpow.pop %v2304
    %v2306 = vadd.f32 %v2301, 1.0
    %v2307 = vadd.f32 %v2303, 1.0
    %v2308 = vadd.f32 %v2305, 1.0
    %v2309 = vrcp.pop %v2306
    %v2310 = vmul.f32 1.0, %v2309
    %v2311 = vrcp.pop %v2307
    %v2312 = vmul.f32 1.0, %v2311
    %v2313 = vrcp.pop %v2308
    %v2314 = vmul.f32 1.0, %v2313
    %v2315 = vmul.f32 %v2312, %v2007
    %v2316 = vtanh.pop %v2295
    %v2317 = vmul.f32 %v2310, %v2316
    %v2318 = vadd.f32 %v2315, %v2317
    %v2319 = vtanh.pop %v2318
    %v2320 = vmul.f32 %v2314, %v2319
    %2321 = vmatprep.subr.mxu0 %v1672
    %2322 = vmatpush1.msra.mxu0 %v1671
    %2323 = vmatprep.subr.mxu0 %v1668
    %2324 = vmatpush1.msra.mxu0 %v1667
    %2325 = vmatprep.subr.mxu0 %v1664
    %2326 = vmatpush1.msra.mxu0 %v1663
    %2327 = vmatprep.subr.mxu0 %v1660
    %2328 = vmatpush1.msra.mxu0 %v1659
    %2329 = vmatprep.subr.mxu0 %v1656
    %2330 = vmatpush1.msra.mxu0 %v1655
    %2331 = vmatprep.subr.mxu0 %v1652
    %2332 = vmatpush1.msra.mxu0 %v1651
    %2333 = vmatprep.subr.mxu0 %v1648
    %2334 = vmatpush1.msra.mxu0 %v1647
    %2335 = vmatprep.subr.mxu0 %v1644
    %2336 = vmatpush1.msra.mxu0 %v1643
    %2337 = vmatprep.subr.mxu0 %v1640
    %2338 = vmatpush1.msra.mxu0 %v1639
    %2339 = vmatprep.subr.mxu0 %v1636
    %2340 = vmatpush1.msra.mxu0 %v1635
    %2341 = vmatprep.subr.mxu0 %v1632
    %2342 = vmatpush1.msra.mxu0 %v1631
    %2343 = vmatprep.subr.mxu0 %v1628
    %2344 = vmatpush1.msra.mxu0 %v1627
    %2345 = vmatprep.subr.mxu0 %v1624
    %2346 = vmatpush1.msra.mxu0 %v1623
    %2347 = vmatprep.subr.mxu0 %v1620
    %2348 = vmatpush1.msra.mxu0 %v1619
    %2349 = vmatprep.subr.mxu0 %v1616
    %2350 = vmatpush1.msra.mxu0 %v1615
    %2351 = vmatprep.subr.mxu0 %v1612
    %2352 = vmatpush1.msra.mxu0 %v1611
    %2353 = vmatprep.subr.mxu0 0.0
    %2354 = vmatpush2.msra.mxu0 0.0
    %2355 = vmatprep.subr.mxu0 0.0
    %2356 = vmatpush2.msra.mxu0 0.0
    %2357 = vmatprep.subr.mxu0 0.0
    %2358 = vmatpush2.msra.mxu0 0.0
    %2359 = vmatprep.subr.mxu0 0.0
    %2360 = vmatpush2.msra.mxu0 0.0
    %2361 = vmatprep.subr.mxu0 0.0
    %2362 = vmatpush2.msra.mxu0 0.0
    %2363 = vmatprep.subr.mxu0 0.0
    %2364 = vmatpush2.msra.mxu0 0.0
    %2365 = vmatprep.subr.mxu0 0.0
    %2366 = vmatpush2.msra.mxu0 0.0
    %2367 = vmatprep.subr.mxu0 0.0
    %2368 = vmatpush2.msra.mxu0 0.0
    %2369 = vmatprep.subr.mxu0 0.0
    %2370 = vmatpush2.msra.mxu0 0.0
    %2371 = vmatprep.subr.mxu0 0.0
    %2372 = vmatpush2.msra.mxu0 0.0
    %2373 = vmatprep.subr.mxu0 0.0
    %2374 = vmatpush2.msra.mxu0 0.0
    %2375 = vmatprep.subr.mxu0 0.0
    %2376 = vmatpush2.msra.mxu0 0.0
    %2377 = vmatprep.subr.mxu0 0.0
    %2378 = vmatpush2.msra.mxu0 0.0
    %2379 = vmatprep.subr.mxu0 0.0
    %2380 = vmatpush2.msra.mxu0 0.0
    %2381 = vmatprep.subr.mxu0 0.0
    %2382 = vmatpush2.msra.mxu0 0.0
    %2383 = vmatprep.subr.mxu0 0.0
    %2384 = vmatpush2.msra.mxu0 0.0
    %2385 = vmatprep.mubr.f32.mxu0 0.0
    %2386 = vmatmul.mubr.f32.gmra.mxu0 %v2320
    %v2387 = vpop.f32.mrf.mxu0
    %v2388 = vadd.f32 0.0, %v2387
    %v2389 = vpop.f32.mrf.mxu0
    %v2390 = vadd.f32 0.0, %v2389
    %2391 = vdwg.mxu0
    %2392 = vmatprep.subr.mxu0 %v1674
    %2393 = vmatpush1.msra.mxu0 %v1673
    %2394 = vmatprep.subr.mxu0 %v1670
    %2395 = vmatpush1.msra.mxu0 %v1669
    %2396 = vmatprep.subr.mxu0 %v1666
    %2397 = vmatpush1.msra.mxu0 %v1665
    %2398 = vmatprep.subr.mxu0 %v1662
    %2399 = vmatpush1.msra.mxu0 %v1661
    %2400 = vmatprep.subr.mxu0 %v1658
    %2401 = vmatpush1.msra.mxu0 %v1657
    %2402 = vmatprep.subr.mxu0 %v1654
    %2403 = vmatpush1.msra.mxu0 %v1653
    %2404 = vmatprep.subr.mxu0 %v1650
    %2405 = vmatpush1.msra.mxu0 %v1649
    %2406 = vmatprep.subr.mxu0 %v1646
    %2407 = vmatpush1.msra.mxu0 %v1645
    %2408 = vmatprep.subr.mxu0 %v1642
    %2409 = vmatpush1.msra.mxu0 %v1641
    %2410 = vmatprep.subr.mxu0 %v1638
    %2411 = vmatpush1.msra.mxu0 %v1637
    %2412 = vmatprep.subr.mxu0 %v1634
    %2413 = vmatpush1.msra.mxu0 %v1633
    %2414 = vmatprep.subr.mxu0 %v1630
    %2415 = vmatpush1.msra.mxu0 %v1629
    %2416 = vmatprep.subr.mxu0 %v1626
    %2417 = vmatpush1.msra.mxu0 %v1625
    %2418 = vmatprep.subr.mxu0 %v1622
    %2419 = vmatpush1.msra.mxu0 %v1621
    %2420 = vmatprep.subr.mxu0 %v1618
    %2421 = vmatpush1.msra.mxu0 %v1617
    %2422 = vmatprep.subr.mxu0 %v1614
    %2423 = vmatpush1.msra.mxu0 %v1613
    %2424 = vmatprep.subr.mxu0 0.0
    %2425 = vmatpush2.msra.mxu0 0.0
    %2426 = vmatprep.subr.mxu0 0.0
    %2427 = vmatpush2.msra.mxu0 0.0
    %2428 = vmatprep.subr.mxu0 0.0
    %2429 = vmatpush2.msra.mxu0 0.0
    %2430 = vmatprep.subr.mxu0 0.0
    %2431 = vmatpush2.msra.mxu0 0.0
    %2432 = vmatprep.subr.mxu0 0.0
    %2433 = vmatpush2.msra.mxu0 0.0
    %2434 = vmatprep.subr.mxu0 0.0
    %2435 = vmatpush2.msra.mxu0 0.0
    %2436 = vmatprep.subr.mxu0 0.0
    %2437 = vmatpush2.msra.mxu0 0.0
    %2438 = vmatprep.subr.mxu0 0.0
    %2439 = vmatpush2.msra.mxu0 0.0
    %2440 = vmatprep.subr.mxu0 0.0
    %2441 = vmatpush2.msra.mxu0 0.0
    %2442 = vmatprep.subr.mxu0 0.0
    %2443 = vmatpush2.msra.mxu0 0.0
    %2444 = vmatprep.subr.mxu0 0.0
    %2445 = vmatpush2.msra.mxu0 0.0
    %2446 = vmatprep.subr.mxu0 0.0
    %2447 = vmatpush2.msra.mxu0 0.0
    %2448 = vmatprep.subr.mxu0 0.0
    %2449 = vmatpush2.msra.mxu0 0.0
    %2450 = vmatprep.subr.mxu0 0.0
    %2451 = vmatpush2.msra.mxu0 0.0
    %2452 = vmatprep.subr.mxu0 0.0
    %2453 = vmatpush2.msra.mxu0 0.0
    %2454 = vmatprep.subr.mxu0 0.0
    %2455 = vmatpush2.msra.mxu0 0.0
    %2456 = vmatprep.mubr.f32.mxu0 0.0
    %2457 = vmatmul.mubr.f32.gmra.mxu0 %v2320
    %v2458 = vpop.f32.mrf.mxu0
    %v2459 = vadd.f32 0.0, %v2458
    %v2460 = vpop.f32.mrf.mxu0
    %v2461 = vadd.f32 0.0, %v2460
    %2462 = vdwg.mxu0
    %v2464 = vsel %vm1105, %v1686, 0
    %2466 = vmatprep.subr.mxu0 0.0
    %2467 = vmatpush1.msra.mxu0 0.0
    %2468 = vmatprep.subr.mxu0 0.0
    %2469 = vmatpush1.msra.mxu0 0.0
    %2470 = vmatprep.subr.mxu0 0.0
    %2471 = vmatpush1.msra.mxu0 0.0
    %2472 = vmatprep.subr.mxu0 0.0
    %2473 = vmatpush1.msra.mxu0 0.0
    %2474 = vmatprep.subr.mxu0 0.0
    %2475 = vmatpush1.msra.mxu0 0.0
    %2476 = vmatprep.subr.mxu0 0.0
    %2477 = vmatpush1.msra.mxu0 0.0
    %2478 = vmatprep.subr.mxu0 0.0
    %2479 = vmatpush1.msra.mxu0 0.0
    %2480 = vmatprep.subr.mxu0 0.0
    %2481 = vmatpush1.msra.mxu0 0.0
    %2482 = vmatprep.subr.mxu0 0.0
    %2483 = vmatpush1.msra.mxu0 0.0
    %2484 = vmatprep.subr.mxu0 0.0
    %2485 = vmatpush1.msra.mxu0 0.0
    %2486 = vmatprep.subr.mxu0 0.0
    %2487 = vmatpush1.msra.mxu0 0.0
    %2488 = vmatprep.subr.mxu0 0.0
    %2489 = vmatpush1.msra.mxu0 0.0
    %2490 = vmatprep.subr.mxu0 0.0
    %2491 = vmatpush1.msra.mxu0 0.0
    %2492 = vmatprep.subr.mxu0 %v1836
    %2493 = vmatpush1.msra.mxu0 %v1833
    %2494 = vmatprep.subr.mxu0 %v1604
    %2495 = vmatpush1.msra.mxu0 %v1603
    %2496 = vmatprep.subr.mxu0 %v1600
    %2497 = vmatpush1.msra.mxu0 %v1599
    %2498 = vmatprep.subr.mxu0 0.0
    %2499 = vmatpush2.msra.mxu0 0.0
    %2500 = vmatprep.subr.mxu0 0.0
    %2501 = vmatpush2.msra.mxu0 0.0
    %2502 = vmatprep.subr.mxu0 0.0
    %2503 = vmatpush2.msra.mxu0 0.0
    %2504 = vmatprep.subr.mxu0 0.0
    %2505 = vmatpush2.msra.mxu0 0.0
    %2506 = vmatprep.subr.mxu0 0.0
    %2507 = vmatpush2.msra.mxu0 0.0
    %2508 = vmatprep.subr.mxu0 0.0
    %2509 = vmatpush2.msra.mxu0 0.0
    %2510 = vmatprep.subr.mxu0 0.0
    %2511 = vmatpush2.msra.mxu0 0.0
    %2512 = vmatprep.subr.mxu0 0.0
    %2513 = vmatpush2.msra.mxu0 0.0
    %2514 = vmatprep.subr.mxu0 0.0
    %2515 = vmatpush2.msra.mxu0 0.0
    %2516 = vmatprep.subr.mxu0 0.0
    %2517 = vmatpush2.msra.mxu0 0.0
    %2518 = vmatprep.subr.mxu0 0.0
    %2519 = vmatpush2.msra.mxu0 0.0
    %2520 = vmatprep.subr.mxu0 0.0
    %2521 = vmatpush2.msra.mxu0 0.0
    %2522 = vmatprep.subr.mxu0 0.0
    %2523 = vmatpush2.msra.mxu0 0.0
    %2524 = vmatprep.subr.mxu0 0.0
    %2525 = vmatpush2.msra.mxu0 0.0
    %2526 = vmatprep.subr.mxu0 0.0
    %2527 = vmatpush2.msra.mxu0 0.0
    %2528 = vmatprep.subr.mxu0 0.0
    %2529 = vmatpush2.msra.mxu0 0.0
    %2530 = vmatprep.mubr.f32.mxu0 0.0
    %2531 = vmatmul.mubr.f32.gmra.mxu0 %v2464
    %v2532 = vpop.f32.mrf.mxu0
    %v2533 = vadd.f32 %v2388, %v2532
    %v2534 = vpop.f32.mrf.mxu0
    %v2535 = vadd.f32 %v2390, %v2534
    %2536 = vdwg.mxu0
    %2537 = vmatprep.subr.mxu0 0.0
    %2538 = vmatpush1.msra.mxu0 0.0
    %2539 = vmatprep.subr.mxu0 0.0
    %2540 = vmatpush1.msra.mxu0 0.0
    %2541 = vmatprep.subr.mxu0 0.0
    %2542 = vmatpush1.msra.mxu0 0.0
    %2543 = vmatprep.subr.mxu0 0.0
    %2544 = vmatpush1.msra.mxu0 0.0
    %2545 = vmatprep.subr.mxu0 0.0
    %2546 = vmatpush1.msra.mxu0 0.0
    %2547 = vmatprep.subr.mxu0 0.0
    %2548 = vmatpush1.msra.mxu0 0.0
    %2549 = vmatprep.subr.mxu0 0.0
    %2550 = vmatpush1.msra.mxu0 0.0
    %2551 = vmatprep.subr.mxu0 0.0
    %2552 = vmatpush1.msra.mxu0 0.0
    %2553 = vmatprep.subr.mxu0 0.0
    %2554 = vmatpush1.msra.mxu0 0.0
    %2555 = vmatprep.subr.mxu0 0.0
    %2556 = vmatpush1.msra.mxu0 0.0
    %2557 = vmatprep.subr.mxu0 0.0
    %2558 = vmatpush1.msra.mxu0 0.0
    %2559 = vmatprep.subr.mxu0 0.0
    %2560 = vmatpush1.msra.mxu0 0.0
    %2561 = vmatprep.subr.mxu0 0.0
    %2562 = vmatpush1.msra.mxu0 0.0
    %2563 = vmatprep.subr.mxu0 %v1842
    %2564 = vmatpush1.msra.mxu0 %v1839
    %2565 = vmatprep.subr.mxu0 %v1606
    %2566 = vmatpush1.msra.mxu0 %v1605
    %2567 = vmatprep.subr.mxu0 %v1602
    %2568 = vmatpush1.msra.mxu0 %v1601
    %2569 = vmatprep.subr.mxu0 0.0
    %2570 = vmatpush2.msra.mxu0 0.0
    %2571 = vmatprep.subr.mxu0 0.0
    %2572 = vmatpush2.msra.mxu0 0.0
    %2573 = vmatprep.subr.mxu0 0.0
    %2574 = vmatpush2.msra.mxu0 0.0
    %2575 = vmatprep.subr.mxu0 0.0
    %2576 = vmatpush2.msra.mxu0 0.0
    %2577 = vmatprep.subr.mxu0 0.0
    %2578 = vmatpush2.msra.mxu0 0.0
    %2579 = vmatprep.subr.mxu0 0.0
    %2580 = vmatpush2.msra.mxu0 0.0
    %2581 = vmatprep.subr.mxu0 0.0
    %2582 = vmatpush2.msra.mxu0 0.0
    %2583 = vmatprep.subr.mxu0 0.0
    %2584 = vmatpush2.msra.mxu0 0.0
    %2585 = vmatprep.subr.mxu0 0.0
    %2586 = vmatpush2.msra.mxu0 0.0
    %2587 = vmatprep.subr.mxu0 0.0
    %2588 = vmatpush2.msra.mxu0 0.0
    %2589 = vmatprep.subr.mxu0 0.0
    %2590 = vmatpush2.msra.mxu0 0.0
    %2591 = vmatprep.subr.mxu0 0.0
    %2592 = vmatpush2.msra.mxu0 0.0
    %2593 = vmatprep.subr.mxu0 0.0
    %2594 = vmatpush2.msra.mxu0 0.0
    %2595 = vmatprep.subr.mxu0 0.0
    %2596 = vmatpush2.msra.mxu0 0.0
    %2597 = vmatprep.subr.mxu0 0.0
    %2598 = vmatpush2.msra.mxu0 0.0
    %2599 = vmatprep.subr.mxu0 0.0
    %2600 = vmatpush2.msra.mxu0 0.0
    %2601 = vmatprep.mubr.f32.mxu0 0.0
    %2602 = vmatmul.mubr.f32.gmra.mxu0 %v2464
    %v2603 = vpop.f32.mrf.mxu0
    %v2604 = vadd.f32 %v2459, %v2603
    %v2605 = vpop.f32.mrf.mxu0
    %v2606 = vadd.f32 %v2461, %v2605
    %2607 = vdwg.mxu0
    %v2608 = vxor.u32 %v2533, 2147483648
    %v2609 = vxor.u32 %v2535, 2147483648
    %v2610 = vxor.u32 %v2604, 2147483648
    %v2611 = vmul.f32 %v2608, 1.442695
    %v2612 = vpow.pop %v2611
    %v2613 = vmul.f32 %v2609, 1.442695
    %v2614 = vpow.pop %v2613
    %v2615 = vmul.f32 %v2610, 1.442695
    %v2616 = vpow.pop %v2615
    %v2617 = vadd.f32 %v2612, 1.0
    %v2618 = vadd.f32 %v2614, 1.0
    %v2619 = vadd.f32 %v2616, 1.0
    %v2620 = vrcp.pop %v2617
    %v2621 = vmul.f32 1.0, %v2620
    %v2622 = vrcp.pop %v2618
    %v2623 = vmul.f32 1.0, %v2622
    %v2624 = vrcp.pop %v2619
    %v2625 = vmul.f32 1.0, %v2624
    %v2626 = vmul.f32 %v2623, %v2318
    %v2627 = vtanh.pop %v2606
    %v2628 = vmul.f32 %v2621, %v2627
    %v2629 = vadd.f32 %v2626, %v2628
    %v2630 = vtanh.pop %v2629
    %v2631 = vmul.f32 %v2625, %v2630
    %v2632 = vld [vmem:[#allocation13] sm:$0xff]
    %v2633 = vld [vmem:[#allocation13 + $0x8] sm:$0xff]
    %v2634 = vld [vmem:[#allocation13 + $0x10] sm:$0xff]
    %v2635 = vld [vmem:[#allocation13 + $0x18] sm:$0xff]
    %v2636 = vld [vmem:[#allocation13 + $0x20] sm:$0xff]
    %v2637 = vld [vmem:[#allocation13 + $0x28] sm:$0xff]
    %v2638 = vld [vmem:[#allocation13 + $0x30] sm:$0xff]
    %v2639 = vld [vmem:[#allocation13 + $0x38] sm:$0xff]
    %v2640 = vld [vmem:[#allocation13 + $0x40] sm:$0x1f]
    %v2641 = vld [vmem:[#allocation13 + $0x48] sm:$0x1f]
    %v2642 = vld [vmem:[#allocation13 + $0x50] sm:$0x1f]
    %v2643 = vld [vmem:[#allocation13 + $0x58] sm:$0x1f]
    %v2644 = vld [vmem:[#allocation14] sm:$0xff]
    %v2645 = vld [vmem:[#allocation14 + $0x8] sm:$0xff]
    %v2646 = vld [vmem:[#allocation14 + $0x10] sm:$0xff]
    %v2647 = vld [vmem:[#allocation14 + $0x18] sm:$0xff]
    %v2648 = vld [vmem:[#allocation14 + $0x20] sm:$0xff]
    %v2649 = vld [vmem:[#allocation14 + $0x28] sm:$0xff]
    %v2650 = vld [vmem:[#allocation14 + $0x30] sm:$0xff]
    %v2651 = vld [vmem:[#allocation14 + $0x38] sm:$0xff]
    %v2652 = vld [vmem:[#allocation14 + $0x40] sm:$0xff]
    %v2653 = vld [vmem:[#allocation14 + $0x48] sm:$0xff]
    %v2654 = vld [vmem:[#allocation14 + $0x50] sm:$0xff]
    %v2655 = vld [vmem:[#allocation14 + $0x58] sm:$0xff]
    %v2656 = vld [vmem:[#allocation14 + $0x60] sm:$0xff]
    %v2657 = vld [vmem:[#allocation14 + $0x68] sm:$0xff]
    %v2658 = vld [vmem:[#allocation14 + $0x70] sm:$0xff]
    %v2659 = vld [vmem:[#allocation14 + $0x78] sm:$0xff]
    %v2660 = vld [vmem:[#allocation14 + $0x80] sm:$0xff]
    %v2661 = vld [vmem:[#allocation14 + $0x88] sm:$0xff]
    %v2662 = vld [vmem:[#allocation14 + $0x90] sm:$0xff]
    %v2663 = vld [vmem:[#allocation14 + $0x98] sm:$0xff]
    %v2664 = vld [vmem:[#allocation14 + $0xa0] sm:$0xff]
    %v2665 = vld [vmem:[#allocation14 + $0xa8] sm:$0xff]
    %v2666 = vld [vmem:[#allocation14 + $0xb0] sm:$0xff]
    %v2667 = vld [vmem:[#allocation14 + $0xb8] sm:$0xff]
    %v2668 = vld [vmem:[#allocation14 + $0xc0] sm:$0xff]
    %v2669 = vld [vmem:[#allocation14 + $0xc8] sm:$0xff]
    %v2670 = vld [vmem:[#allocation14 + $0xd0] sm:$0xff]
    %v2671 = vld [vmem:[#allocation14 + $0xd8] sm:$0xff]
    %v2672 = vld [vmem:[#allocation14 + $0xe0] sm:$0xff]
    %v2673 = vld [vmem:[#allocation14 + $0xe8] sm:$0xff]
    %v2674 = vld [vmem:[#allocation14 + $0xf0] sm:$0xff]
    %v2675 = vld [vmem:[#allocation14 + $0xf8] sm:$0xff]
    %v2676 = vld [vmem:[#allocation14 + $0x100] sm:$0xff]
    %v2677 = vld [vmem:[#allocation14 + $0x108] sm:$0xff]
    %v2678 = vld [vmem:[#allocation14 + $0x110] sm:$0xff]
    %v2679 = vld [vmem:[#allocation14 + $0x118] sm:$0xff]
    %v2680 = vld [vmem:[#allocation14 + $0x120] sm:$0xff]
    %v2681 = vld [vmem:[#allocation14 + $0x128] sm:$0xff]
    %v2682 = vld [vmem:[#allocation14 + $0x130] sm:$0xff]
    %v2683 = vld [vmem:[#allocation14 + $0x138] sm:$0xff]
    %v2684 = vld [vmem:[#allocation14 + $0x140] sm:$0xff]
    %v2685 = vld [vmem:[#allocation14 + $0x148] sm:$0xff]
    %v2686 = vld [vmem:[#allocation14 + $0x150] sm:$0xff]
    %v2687 = vld [vmem:[#allocation14 + $0x158] sm:$0xff]
    %v2688 = vld [vmem:[#allocation14 + $0x160] sm:$0xff]
    %v2689 = vld [vmem:[#allocation14 + $0x168] sm:$0xff]
    %v2690 = vld [vmem:[#allocation14 + $0x170] sm:$0xff]
    %v2691 = vld [vmem:[#allocation14 + $0x178] sm:$0xff]
    %v2692 = vld [vmem:[#allocation14 + $0x180] sm:$0xff]
    %v2693 = vld [vmem:[#allocation14 + $0x188] sm:$0xff]
    %v2694 = vld [vmem:[#allocation14 + $0x190] sm:$0xff]
    %v2695 = vld [vmem:[#allocation14 + $0x198] sm:$0xff]
    %v2696 = vld [vmem:[#allocation14 + $0x1a0] sm:$0xff]
    %v2697 = vld [vmem:[#allocation14 + $0x1a8] sm:$0xff]
    %v2698 = vld [vmem:[#allocation14 + $0x1b0] sm:$0xff]
    %v2699 = vld [vmem:[#allocation14 + $0x1b8] sm:$0xff]
    %v2700 = vld [vmem:[#allocation14 + $0x1c0] sm:$0xff]
    %v2701 = vld [vmem:[#allocation14 + $0x1c8] sm:$0xff]
    %v2702 = vld [vmem:[#allocation14 + $0x1d0] sm:$0xff]
    %v2703 = vld [vmem:[#allocation14 + $0x1d8] sm:$0xff]
    %v2704 = vld [vmem:[#allocation14 + $0x1e0] sm:$0xff]
    %v2705 = vld [vmem:[#allocation14 + $0x1e8] sm:$0xff]
    %v2706 = vld [vmem:[#allocation14 + $0x1f0] sm:$0xff]
    %v2707 = vld [vmem:[#allocation14 + $0x1f8] sm:$0xff]
    %2708 = vrot.lane.b32.xlu0 %v955, 28
    %v2709 = vpop.permute.xlu0 %2708
    %v2711 = vsel %vm956, %v2709, 1.0
    %v2712 = vld [vmem:[#allocation2] sm:$0xff]
    %v2713 = vld [vmem:[#allocation2 + $0x8] sm:$0xff]
    %2716 = vrot.lane.b32.xlu0 %v2712, 8
    %v2717 = vpop.permute.xlu0 %2716
    %2718 = vrot.lane.b32.xlu0 %v2713, 8
    %v2719 = vpop.permute.xlu0 %2718
    %vm2720 = vcmask 64512
    %v2721 = vsel %vm2720, %v2717, %v2719
    %v2723 = vsel %vm956, %v2721, 1.0
    %2724 = vrot.lane.b32.xlu0 %v2713, 116
    %v2725 = vpop.permute.xlu0 %2724
    %v2727 = vsel %vm956, %v2725, 1.0
    %2728 = vrot.lane.b32.xlu0 %v2713, 96
    %v2729 = vpop.permute.xlu0 %2728
    %v2731 = vsel %vm956, %v2729, 1.0
    %2732 = vrot.lane.b32.xlu0 %v2713, 76
    %v2733 = vpop.permute.xlu0 %2732
    %v2735 = vsel %vm956, %v2733, 1.0
    %2736 = vmatprep.subr.mxu0 %v2705
    %2737 = vmatpush1.msra.mxu0 %v2704
    %2738 = vmatprep.subr.mxu0 %v2701
    %2739 = vmatpush1.msra.mxu0 %v2700
    %2740 = vmatprep.subr.mxu0 %v2697
    %2741 = vmatpush1.msra.mxu0 %v2696
    %2742 = vmatprep.subr.mxu0 %v2693
    %2743 = vmatpush1.msra.mxu0 %v2692
    %2744 = vmatprep.subr.mxu0 %v2689
    %2745 = vmatpush1.msra.mxu0 %v2688
    %2746 = vmatprep.subr.mxu0 %v2685
    %2747 = vmatpush1.msra.mxu0 %v2684
    %2748 = vmatprep.subr.mxu0 %v2681
    %2749 = vmatpush1.msra.mxu0 %v2680
    %2750 = vmatprep.subr.mxu0 %v2677
    %2751 = vmatpush1.msra.mxu0 %v2676
    %2752 = vmatprep.subr.mxu0 %v2673
    %2753 = vmatpush1.msra.mxu0 %v2672
    %2754 = vmatprep.subr.mxu0 %v2669
    %2755 = vmatpush1.msra.mxu0 %v2668
    %2756 = vmatprep.subr.mxu0 %v2665
    %2757 = vmatpush1.msra.mxu0 %v2664
    %2758 = vmatprep.subr.mxu0 %v2661
    %2759 = vmatpush1.msra.mxu0 %v2660
    %2760 = vmatprep.subr.mxu0 %v2657
    %2761 = vmatpush1.msra.mxu0 %v2656
    %2762 = vmatprep.subr.mxu0 %v2653
    %2763 = vmatpush1.msra.mxu0 %v2652
    %2764 = vmatprep.subr.mxu0 %v2649
    %2765 = vmatpush1.msra.mxu0 %v2648
    %2766 = vmatprep.subr.mxu0 %v2645
    %2767 = vmatpush1.msra.mxu0 %v2644
    %2768 = vmatprep.subr.mxu0 0.0
    %2769 = vmatpush2.msra.mxu0 0.0
    %2770 = vmatprep.subr.mxu0 0.0
    %2771 = vmatpush2.msra.mxu0 0.0
    %2772 = vmatprep.subr.mxu0 0.0
    %2773 = vmatpush2.msra.mxu0 0.0
    %2774 = vmatprep.subr.mxu0 0.0
    %2775 = vmatpush2.msra.mxu0 0.0
    %2776 = vmatprep.subr.mxu0 0.0
    %2777 = vmatpush2.msra.mxu0 0.0
    %2778 = vmatprep.subr.mxu0 0.0
    %2779 = vmatpush2.msra.mxu0 0.0
    %2780 = vmatprep.subr.mxu0 0.0
    %2781 = vmatpush2.msra.mxu0 0.0
    %2782 = vmatprep.subr.mxu0 0.0
    %2783 = vmatpush2.msra.mxu0 0.0
    %2784 = vmatprep.subr.mxu0 0.0
    %2785 = vmatpush2.msra.mxu0 0.0
    %2786 = vmatprep.subr.mxu0 0.0
    %2787 = vmatpush2.msra.mxu0 0.0
    %2788 = vmatprep.subr.mxu0 0.0
    %2789 = vmatpush2.msra.mxu0 0.0
    %2790 = vmatprep.subr.mxu0 0.0
    %2791 = vmatpush2.msra.mxu0 0.0
    %2792 = vmatprep.subr.mxu0 0.0
    %2793 = vmatpush2.msra.mxu0 0.0
    %2794 = vmatprep.subr.mxu0 0.0
    %2795 = vmatpush2.msra.mxu0 0.0
    %2796 = vmatprep.subr.mxu0 0.0
    %2797 = vmatpush2.msra.mxu0 0.0
    %2798 = vmatprep.subr.mxu0 0.0
    %2799 = vmatpush2.msra.mxu0 0.0
    %2800 = vmatprep.mubr.f32.mxu0 0.0
    %2801 = vmatmul.mubr.f32.gmra.mxu0 0.0
    %v2802 = vpop.f32.mrf.mxu0
    %v2803 = vadd.f32 0.0, %v2802
    %v2804 = vpop.f32.mrf.mxu0
    %v2805 = vadd.f32 0.0, %v2804
    %2806 = vdwg.mxu0
    %2807 = vmatprep.subr.mxu0 %v2707
    %2808 = vmatpush1.msra.mxu0 %v2706
    %2809 = vmatprep.subr.mxu0 %v2703
    %2810 = vmatpush1.msra.mxu0 %v2702
    %2811 = vmatprep.subr.mxu0 %v2699
    %2812 = vmatpush1.msra.mxu0 %v2698
    %2813 = vmatprep.subr.mxu0 %v2695
    %2814 = vmatpush1.msra.mxu0 %v2694
    %2815 = vmatprep.subr.mxu0 %v2691
    %2816 = vmatpush1.msra.mxu0 %v2690
    %2817 = vmatprep.subr.mxu0 %v2687
    %2818 = vmatpush1.msra.mxu0 %v2686
    %2819 = vmatprep.subr.mxu0 %v2683
    %2820 = vmatpush1.msra.mxu0 %v2682
    %2821 = vmatprep.subr.mxu0 %v2679
    %2822 = vmatpush1.msra.mxu0 %v2678
    %2823 = vmatprep.subr.mxu0 %v2675
    %2824 = vmatpush1.msra.mxu0 %v2674
    %2825 = vmatprep.subr.mxu0 %v2671
    %2826 = vmatpush1.msra.mxu0 %v2670
    %2827 = vmatprep.subr.mxu0 %v2667
    %2828 = vmatpush1.msra.mxu0 %v2666
    %2829 = vmatprep.subr.mxu0 %v2663
    %2830 = vmatpush1.msra.mxu0 %v2662
    %2831 = vmatprep.subr.mxu0 %v2659
    %2832 = vmatpush1.msra.mxu0 %v2658
    %2833 = vmatprep.subr.mxu0 %v2655
    %2834 = vmatpush1.msra.mxu0 %v2654
    %2835 = vmatprep.subr.mxu0 %v2651
    %2836 = vmatpush1.msra.mxu0 %v2650
    %2837 = vmatprep.subr.mxu0 %v2647
    %2838 = vmatpush1.msra.mxu0 %v2646
    %2839 = vmatprep.subr.mxu0 0.0
    %2840 = vmatpush2.msra.mxu0 0.0
    %2841 = vmatprep.subr.mxu0 0.0
    %2842 = vmatpush2.msra.mxu0 0.0
    %2843 = vmatprep.subr.mxu0 0.0
    %2844 = vmatpush2.msra.mxu0 0.0
    %2845 = vmatprep.subr.mxu0 0.0
    %2846 = vmatpush2.msra.mxu0 0.0
    %2847 = vmatprep.subr.mxu0 0.0
    %2848 = vmatpush2.msra.mxu0 0.0
    %2849 = vmatprep.subr.mxu0 0.0
    %2850 = vmatpush2.msra.mxu0 0.0
    %2851 = vmatprep.subr.mxu0 0.0
    %2852 = vmatpush2.msra.mxu0 0.0
    %2853 = vmatprep.subr.mxu0 0.0
    %2854 = vmatpush2.msra.mxu0 0.0
    %2855 = vmatprep.subr.mxu0 0.0
    %2856 = vmatpush2.msra.mxu0 0.0
    %2857 = vmatprep.subr.mxu0 0.0
    %2858 = vmatpush2.msra.mxu0 0.0
    %2859 = vmatprep.subr.mxu0 0.0
    %2860 = vmatpush2.msra.mxu0 0.0
    %2861 = vmatprep.subr.mxu0 0.0
    %2862 = vmatpush2.msra.mxu0 0.0
    %2863 = vmatprep.subr.mxu0 0.0
    %2864 = vmatpush2.msra.mxu0 0.0
    %2865 = vmatprep.subr.mxu0 0.0
    %2866 = vmatpush2.msra.mxu0 0.0
    %2867 = vmatprep.subr.mxu0 0.0
    %2868 = vmatpush2.msra.mxu0 0.0
    %2869 = vmatprep.subr.mxu0 0.0
    %2870 = vmatpush2.msra.mxu0 0.0
    %2871 = vmatprep.mubr.f32.mxu0 0.0
    %2872 = vmatmul.mubr.f32.gmra.mxu0 0.0
    %v2873 = vpop.f32.mrf.mxu0
    %v2874 = vadd.f32 0.0, %v2873
    %v2875 = vpop.f32.mrf.mxu0
    %v2876 = vadd.f32 0.0, %v2875
    %2877 = vdwg.mxu0
    %v2879 = vsel %vm1105, %v2711, 0
    %v2882 = vsel %vm1109, %v2640, 0
    %v2885 = vsel %vm1109, %v2641, 0
    %v2888 = vsel %vm1109, %v2642, 0
    %v2891 = vsel %vm1109, %v2643, 0
    %2893 = vmatprep.subr.mxu0 0.0
    %2894 = vmatpush1.msra.mxu0 0.0
    %2895 = vmatprep.subr.mxu0 0.0
    %2896 = vmatpush1.msra.mxu0 0.0
    %2897 = vmatprep.subr.mxu0 0.0
    %2898 = vmatpush1.msra.mxu0 0.0
    %2899 = vmatprep.subr.mxu0 0.0
    %2900 = vmatpush1.msra.mxu0 0.0
    %2901 = vmatprep.subr.mxu0 0.0
    %2902 = vmatpush1.msra.mxu0 0.0
    %2903 = vmatprep.subr.mxu0 0.0
    %2904 = vmatpush1.msra.mxu0 0.0
    %2905 = vmatprep.subr.mxu0 0.0
    %2906 = vmatpush1.msra.mxu0 0.0
    %2907 = vmatprep.subr.mxu0 0.0
    %2908 = vmatpush1.msra.mxu0 0.0
    %2909 = vmatprep.subr.mxu0 0.0
    %2910 = vmatpush1.msra.mxu0 0.0
    %2911 = vmatprep.subr.mxu0 0.0
    %2912 = vmatpush1.msra.mxu0 0.0
    %2913 = vmatprep.subr.mxu0 0.0
    %2914 = vmatpush1.msra.mxu0 0.0
    %2915 = vmatprep.subr.mxu0 0.0
    %2916 = vmatpush1.msra.mxu0 0.0
    %2917 = vmatprep.subr.mxu0 0.0
    %2918 = vmatpush1.msra.mxu0 0.0
    %2919 = vmatprep.subr.mxu0 %v2885
    %2920 = vmatpush1.msra.mxu0 %v2882
    %2921 = vmatprep.subr.mxu0 %v2637
    %2922 = vmatpush1.msra.mxu0 %v2636
    %2923 = vmatprep.subr.mxu0 %v2633
    %2924 = vmatpush1.msra.mxu0 %v2632
    %2925 = vmatprep.subr.mxu0 0.0
    %2926 = vmatpush2.msra.mxu0 0.0
    %2927 = vmatprep.subr.mxu0 0.0
    %2928 = vmatpush2.msra.mxu0 0.0
    %2929 = vmatprep.subr.mxu0 0.0
    %2930 = vmatpush2.msra.mxu0 0.0
    %2931 = vmatprep.subr.mxu0 0.0
    %2932 = vmatpush2.msra.mxu0 0.0
    %2933 = vmatprep.subr.mxu0 0.0
    %2934 = vmatpush2.msra.mxu0 0.0
    %2935 = vmatprep.subr.mxu0 0.0
    %2936 = vmatpush2.msra.mxu0 0.0
    %2937 = vmatprep.subr.mxu0 0.0
    %2938 = vmatpush2.msra.mxu0 0.0
    %2939 = vmatprep.subr.mxu0 0.0
    %2940 = vmatpush2.msra.mxu0 0.0
    %2941 = vmatprep.subr.mxu0 0.0
    %2942 = vmatpush2.msra.mxu0 0.0
    %2943 = vmatprep.subr.mxu0 0.0
    %2944 = vmatpush2.msra.mxu0 0.0
    %2945 = vmatprep.subr.mxu0 0.0
    %2946 = vmatpush2.msra.mxu0 0.0
    %2947 = vmatprep.subr.mxu0 0.0
    %2948 = vmatpush2.msra.mxu0 0.0
    %2949 = vmatprep.subr.mxu0 0.0
    %2950 = vmatpush2.msra.mxu0 0.0
    %2951 = vmatprep.subr.mxu0 0.0
    %2952 = vmatpush2.msra.mxu0 0.0
    %2953 = vmatprep.subr.mxu0 0.0
    %2954 = vmatpush2.msra.mxu0 0.0
    %2955 = vmatprep.subr.mxu0 0.0
    %2956 = vmatpush2.msra.mxu0 0.0
    %2957 = vmatprep.mubr.f32.mxu0 0.0
    %2958 = vmatmul.mubr.f32.gmra.mxu0 %v2879
    %v2959 = vpop.f32.mrf.mxu0
    %v2960 = vadd.f32 %v2803, %v2959
    %v2961 = vpop.f32.mrf.mxu0
    %v2962 = vadd.f32 %v2805, %v2961
    %2963 = vdwg.mxu0
    %2964 = vmatprep.subr.mxu0 0.0
    %2965 = vmatpush1.msra.mxu0 0.0
    %2966 = vmatprep.subr.mxu0 0.0
    %2967 = vmatpush1.msra.mxu0 0.0
    %2968 = vmatprep.subr.mxu0 0.0
    %2969 = vmatpush1.msra.mxu0 0.0
    %2970 = vmatprep.subr.mxu0 0.0
    %2971 = vmatpush1.msra.mxu0 0.0
    %2972 = vmatprep.subr.mxu0 0.0
    %2973 = vmatpush1.msra.mxu0 0.0
    %2974 = vmatprep.subr.mxu0 0.0
    %2975 = vmatpush1.msra.mxu0 0.0
    %2976 = vmatprep.subr.mxu0 0.0
    %2977 = vmatpush1.msra.mxu0 0.0
    %2978 = vmatprep.subr.mxu0 0.0
    %2979 = vmatpush1.msra.mxu0 0.0
    %2980 = vmatprep.subr.mxu0 0.0
    %2981 = vmatpush1.msra.mxu0 0.0
    %2982 = vmatprep.subr.mxu0 0.0
    %2983 = vmatpush1.msra.mxu0 0.0
    %2984 = vmatprep.subr.mxu0 0.0
    %2985 = vmatpush1.msra.mxu0 0.0
    %2986 = vmatprep.subr.mxu0 0.0
    %2987 = vmatpush1.msra.mxu0 0.0
    %2988 = vmatprep.subr.mxu0 0.0
    %2989 = vmatpush1.msra.mxu0 0.0
    %2990 = vmatprep.subr.mxu0 %v2891
    %2991 = vmatpush1.msra.mxu0 %v2888
    %2992 = vmatprep.subr.mxu0 %v2639
    %2993 = vmatpush1.msra.mxu0 %v2638
    %2994 = vmatprep.subr.mxu0 %v2635
    %2995 = vmatpush1.msra.mxu0 %v2634
    %2996 = vmatprep.subr.mxu0 0.0
    %2997 = vmatpush2.msra.mxu0 0.0
    %2998 = vmatprep.subr.mxu0 0.0
    %2999 = vmatpush2.msra.mxu0 0.0
    %3000 = vmatprep.subr.mxu0 0.0
    %3001 = vmatpush2.msra.mxu0 0.0
    %3002 = vmatprep.subr.mxu0 0.0
    %3003 = vmatpush2.msra.mxu0 0.0
    %3004 = vmatprep.subr.mxu0 0.0
    %3005 = vmatpush2.msra.mxu0 0.0
    %3006 = vmatprep.subr.mxu0 0.0
    %3007 = vmatpush2.msra.mxu0 0.0
    %3008 = vmatprep.subr.mxu0 0.0
    %3009 = vmatpush2.msra.mxu0 0.0
    %3010 = vmatprep.subr.mxu0 0.0
    %3011 = vmatpush2.msra.mxu0 0.0
    %3012 = vmatprep.subr.mxu0 0.0
    %3013 = vmatpush2.msra.mxu0 0.0
    %3014 = vmatprep.subr.mxu0 0.0
    %3015 = vmatpush2.msra.mxu0 0.0
    %3016 = vmatprep.subr.mxu0 0.0
    %3017 = vmatpush2.msra.mxu0 0.0
    %3018 = vmatprep.subr.mxu0 0.0
    %3019 = vmatpush2.msra.mxu0 0.0
    %3020 = vmatprep.subr.mxu0 0.0
    %3021 = vmatpush2.msra.mxu0 0.0
    %3022 = vmatprep.subr.mxu0 0.0
    %3023 = vmatpush2.msra.mxu0 0.0
    %3024 = vmatprep.subr.mxu0 0.0
    %3025 = vmatpush2.msra.mxu0 0.0
    %3026 = vmatprep.subr.mxu0 0.0
    %3027 = vmatpush2.msra.mxu0 0.0
    %3028 = vmatprep.mubr.f32.mxu0 0.0
    %3029 = vmatmul.mubr.f32.gmra.mxu0 %v2879
    %v3030 = vpop.f32.mrf.mxu0
    %v3031 = vadd.f32 %v2874, %v3030
    %v3032 = vpop.f32.mrf.mxu0
    %v3033 = vadd.f32 %v2876, %v3032
    %3034 = vdwg.mxu0
    %v3035 = vxor.u32 %v2960, 2147483648
    %v3036 = vxor.u32 %v2962, 2147483648
    %v3037 = vxor.u32 %v3031, 2147483648
    %v3038 = vmul.f32 %v3035, 1.442695
    %v3039 = vpow.pop %v3038
    %v3040 = vmul.f32 %v3036, 1.442695
    %v3041 = vpow.pop %v3040
    %v3042 = vmul.f32 %v3037, 1.442695
    %v3043 = vpow.pop %v3042
    %v3044 = vadd.f32 %v3039, 1.0
    %v3045 = vadd.f32 %v3041, 1.0
    %v3046 = vadd.f32 %v3043, 1.0
    %v3047 = vrcp.pop %v3044
    %v3048 = vmul.f32 1.0, %v3047
    %v3049 = vrcp.pop %v3045
    %v3050 = vmul.f32 1.0, %v3049
    %v3051 = vrcp.pop %v3046
    %v3052 = vmul.f32 1.0, %v3051
    %v3053 = vmul.f32 %v3050, 0.0
    %v3054 = vtanh.pop %v3033
    %v3055 = vmul.f32 %v3048, %v3054
    %v3056 = vadd.f32 %v3053, %v3055
    %v3057 = vtanh.pop %v3056
    %v3058 = vmul.f32 %v3052, %v3057
    %3059 = vmatprep.subr.mxu0 %v2705
    %3060 = vmatpush1.msra.mxu0 %v2704
    %3061 = vmatprep.subr.mxu0 %v2701
    %3062 = vmatpush1.msra.mxu0 %v2700
    %3063 = vmatprep.subr.mxu0 %v2697
    %3064 = vmatpush1.msra.mxu0 %v2696
    %3065 = vmatprep.subr.mxu0 %v2693
    %3066 = vmatpush1.msra.mxu0 %v2692
    %3067 = vmatprep.subr.mxu0 %v2689
    %3068 = vmatpush1.msra.mxu0 %v2688
    %3069 = vmatprep.subr.mxu0 %v2685
    %3070 = vmatpush1.msra.mxu0 %v2684
    %3071 = vmatprep.subr.mxu0 %v2681
    %3072 = vmatpush1.msra.mxu0 %v2680
    %3073 = vmatprep.subr.mxu0 %v2677
    %3074 = vmatpush1.msra.mxu0 %v2676
    %3075 = vmatprep.subr.mxu0 %v2673
    %3076 = vmatpush1.msra.mxu0 %v2672
    %3077 = vmatprep.subr.mxu0 %v2669
    %3078 = vmatpush1.msra.mxu0 %v2668
    %3079 = vmatprep.subr.mxu0 %v2665
    %3080 = vmatpush1.msra.mxu0 %v2664
    %3081 = vmatprep.subr.mxu0 %v2661
    %3082 = vmatpush1.msra.mxu0 %v2660
    %3083 = vmatprep.subr.mxu0 %v2657
    %3084 = vmatpush1.msra.mxu0 %v2656
    %3085 = vmatprep.subr.mxu0 %v2653
    %3086 = vmatpush1.msra.mxu0 %v2652
    %3087 = vmatprep.subr.mxu0 %v2649
    %3088 = vmatpush1.msra.mxu0 %v2648
    %3089 = vmatprep.subr.mxu0 %v2645
    %3090 = vmatpush1.msra.mxu0 %v2644
    %3091 = vmatprep.subr.mxu0 0.0
    %3092 = vmatpush2.msra.mxu0 0.0
    %3093 = vmatprep.subr.mxu0 0.0
    %3094 = vmatpush2.msra.mxu0 0.0
    %3095 = vmatprep.subr.mxu0 0.0
    %3096 = vmatpush2.msra.mxu0 0.0
    %3097 = vmatprep.subr.mxu0 0.0
    %3098 = vmatpush2.msra.mxu0 0.0
    %3099 = vmatprep.subr.mxu0 0.0
    %3100 = vmatpush2.msra.mxu0 0.0
    %3101 = vmatprep.subr.mxu0 0.0
    %3102 = vmatpush2.msra.mxu0 0.0
    %3103 = vmatprep.subr.mxu0 0.0
    %3104 = vmatpush2.msra.mxu0 0.0
    %3105 = vmatprep.subr.mxu0 0.0
    %3106 = vmatpush2.msra.mxu0 0.0
    %3107 = vmatprep.subr.mxu0 0.0
    %3108 = vmatpush2.msra.mxu0 0.0
    %3109 = vmatprep.subr.mxu0 0.0
    %3110 = vmatpush2.msra.mxu0 0.0
    %3111 = vmatprep.subr.mxu0 0.0
    %3112 = vmatpush2.msra.mxu0 0.0
    %3113 = vmatprep.subr.mxu0 0.0
    %3114 = vmatpush2.msra.mxu0 0.0
    %3115 = vmatprep.subr.mxu0 0.0
    %3116 = vmatpush2.msra.mxu0 0.0
    %3117 = vmatprep.subr.mxu0 0.0
    %3118 = vmatpush2.msra.mxu0 0.0
    %3119 = vmatprep.subr.mxu0 0.0
    %3120 = vmatpush2.msra.mxu0 0.0
    %3121 = vmatprep.subr.mxu0 0.0
    %3122 = vmatpush2.msra.mxu0 0.0
    %3123 = vmatprep.mubr.f32.mxu0 0.0
    %3124 = vmatmul.mubr.f32.gmra.mxu0 %v3058
    %v3125 = vpop.f32.mrf.mxu0
    %v3126 = vadd.f32 0.0, %v3125
    %v3127 = vpop.f32.mrf.mxu0
    %v3128 = vadd.f32 0.0, %v3127
    %3129 = vdwg.mxu0
    %3130 = vmatprep.subr.mxu0 %v2707
    %3131 = vmatpush1.msra.mxu0 %v2706
    %3132 = vmatprep.subr.mxu0 %v2703
    %3133 = vmatpush1.msra.mxu0 %v2702
    %3134 = vmatprep.subr.mxu0 %v2699
    %3135 = vmatpush1.msra.mxu0 %v2698
    %3136 = vmatprep.subr.mxu0 %v2695
    %3137 = vmatpush1.msra.mxu0 %v2694
    %3138 = vmatprep.subr.mxu0 %v2691
    %3139 = vmatpush1.msra.mxu0 %v2690
    %3140 = vmatprep.subr.mxu0 %v2687
    %3141 = vmatpush1.msra.mxu0 %v2686
    %3142 = vmatprep.subr.mxu0 %v2683
    %3143 = vmatpush1.msra.mxu0 %v2682
    %3144 = vmatprep.subr.mxu0 %v2679
    %3145 = vmatpush1.msra.mxu0 %v2678
    %3146 = vmatprep.subr.mxu0 %v2675
    %3147 = vmatpush1.msra.mxu0 %v2674
    %3148 = vmatprep.subr.mxu0 %v2671
    %3149 = vmatpush1.msra.mxu0 %v2670
    %3150 = vmatprep.subr.mxu0 %v2667
    %3151 = vmatpush1.msra.mxu0 %v2666
    %3152 = vmatprep.subr.mxu0 %v2663
    %3153 = vmatpush1.msra.mxu0 %v2662
    %3154 = vmatprep.subr.mxu0 %v2659
    %3155 = vmatpush1.msra.mxu0 %v2658
    %3156 = vmatprep.subr.mxu0 %v2655
    %3157 = vmatpush1.msra.mxu0 %v2654
    %3158 = vmatprep.subr.mxu0 %v2651
    %3159 = vmatpush1.msra.mxu0 %v2650
    %3160 = vmatprep.subr.mxu0 %v2647
    %3161 = vmatpush1.msra.mxu0 %v2646
    %3162 = vmatprep.subr.mxu0 0.0
    %3163 = vmatpush2.msra.mxu0 0.0
    %3164 = vmatprep.subr.mxu0 0.0
    %3165 = vmatpush2.msra.mxu0 0.0
    %3166 = vmatprep.subr.mxu0 0.0
    %3167 = vmatpush2.msra.mxu0 0.0
    %3168 = vmatprep.subr.mxu0 0.0
    %3169 = vmatpush2.msra.mxu0 0.0
    %3170 = vmatprep.subr.mxu0 0.0
    %3171 = vmatpush2.msra.mxu0 0.0
    %3172 = vmatprep.subr.mxu0 0.0
    %3173 = vmatpush2.msra.mxu0 0.0
    %3174 = vmatprep.subr.mxu0 0.0
    %3175 = vmatpush2.msra.mxu0 0.0
    %3176 = vmatprep.subr.mxu0 0.0
    %3177 = vmatpush2.msra.mxu0 0.0
    %3178 = vmatprep.subr.mxu0 0.0
    %3179 = vmatpush2.msra.mxu0 0.0
    %3180 = vmatprep.subr.mxu0 0.0
    %3181 = vmatpush2.msra.mxu0 0.0
    %3182 = vmatprep.subr.mxu0 0.0
    %3183 = vmatpush2.msra.mxu0 0.0
    %3184 = vmatprep.subr.mxu0 0.0
    %3185 = vmatpush2.msra.mxu0 0.0
    %3186 = vmatprep.subr.mxu0 0.0
    %3187 = vmatpush2.msra.mxu0 0.0
    %3188 = vmatprep.subr.mxu0 0.0
    %3189 = vmatpush2.msra.mxu0 0.0
    %3190 = vmatprep.subr.mxu0 0.0
    %3191 = vmatpush2.msra.mxu0 0.0
    %3192 = vmatprep.subr.mxu0 0.0
    %3193 = vmatpush2.msra.mxu0 0.0
    %3194 = vmatprep.mubr.f32.mxu0 0.0
    %3195 = vmatmul.mubr.f32.gmra.mxu0 %v3058
    %v3196 = vpop.f32.mrf.mxu0
    %v3197 = vadd.f32 0.0, %v3196
    %v3198 = vpop.f32.mrf.mxu0
    %v3199 = vadd.f32 0.0, %v3198
    %3200 = vdwg.mxu0
    %v3202 = vsel %vm1105, %v2723, 0
    %3204 = vmatprep.subr.mxu0 0.0
    %3205 = vmatpush1.msra.mxu0 0.0
    %3206 = vmatprep.subr.mxu0 0.0
    %3207 = vmatpush1.msra.mxu0 0.0
    %3208 = vmatprep.subr.mxu0 0.0
    %3209 = vmatpush1.msra.mxu0 0.0
    %3210 = vmatprep.subr.mxu0 0.0
    %3211 = vmatpush1.msra.mxu0 0.0
    %3212 = vmatprep.subr.mxu0 0.0
    %3213 = vmatpush1.msra.mxu0 0.0
    %3214 = vmatprep.subr.mxu0 0.0
    %3215 = vmatpush1.msra.mxu0 0.0
    %3216 = vmatprep.subr.mxu0 0.0
    %3217 = vmatpush1.msra.mxu0 0.0
    %3218 = vmatprep.subr.mxu0 0.0
    %3219 = vmatpush1.msra.mxu0 0.0
    %3220 = vmatprep.subr.mxu0 0.0
    %3221 = vmatpush1.msra.mxu0 0.0
    %3222 = vmatprep.subr.mxu0 0.0
    %3223 = vmatpush1.msra.mxu0 0.0
    %3224 = vmatprep.subr.mxu0 0.0
    %3225 = vmatpush1.msra.mxu0 0.0
    %3226 = vmatprep.subr.mxu0 0.0
    %3227 = vmatpush1.msra.mxu0 0.0
    %3228 = vmatprep.subr.mxu0 0.0
    %3229 = vmatpush1.msra.mxu0 0.0
    %3230 = vmatprep.subr.mxu0 %v2885
    %3231 = vmatpush1.msra.mxu0 %v2882
    %3232 = vmatprep.subr.mxu0 %v2637
    %3233 = vmatpush1.msra.mxu0 %v2636
    %3234 = vmatprep.subr.mxu0 %v2633
    %3235 = vmatpush1.msra.mxu0 %v2632
    %3236 = vmatprep.subr.mxu0 0.0
    %3237 = vmatpush2.msra.mxu0 0.0
    %3238 = vmatprep.subr.mxu0 0.0
    %3239 = vmatpush2.msra.mxu0 0.0
    %3240 = vmatprep.subr.mxu0 0.0
    %3241 = vmatpush2.msra.mxu0 0.0
    %3242 = vmatprep.subr.mxu0 0.0
    %3243 = vmatpush2.msra.mxu0 0.0
    %3244 = vmatprep.subr.mxu0 0.0
    %3245 = vmatpush2.msra.mxu0 0.0
    %3246 = vmatprep.subr.mxu0 0.0
    %3247 = vmatpush2.msra.mxu0 0.0
    %3248 = vmatprep.subr.mxu0 0.0
    %3249 = vmatpush2.msra.mxu0 0.0
    %3250 = vmatprep.subr.mxu0 0.0
    %3251 = vmatpush2.msra.mxu0 0.0
    %3252 = vmatprep.subr.mxu0 0.0
    %3253 = vmatpush2.msra.mxu0 0.0
    %3254 = vmatprep.subr.mxu0 0.0
    %3255 = vmatpush2.msra.mxu0 0.0
    %3256 = vmatprep.subr.mxu0 0.0
    %3257 = vmatpush2.msra.mxu0 0.0
    %3258 = vmatprep.subr.mxu0 0.0
    %3259 = vmatpush2.msra.mxu0 0.0
    %3260 = vmatprep.subr.mxu0 0.0
    %3261 = vmatpush2.msra.mxu0 0.0
    %3262 = vmatprep.subr.mxu0 0.0
    %3263 = vmatpush2.msra.mxu0 0.0
    %3264 = vmatprep.subr.mxu0 0.0
    %3265 = vmatpush2.msra.mxu0 0.0
    %3266 = vmatprep.subr.mxu0 0.0
    %3267 = vmatpush2.msra.mxu0 0.0
    %3268 = vmatprep.mubr.f32.mxu0 0.0
    %3269 = vmatmul.mubr.f32.gmra.mxu0 %v3202
    %v3270 = vpop.f32.mrf.mxu0
    %v3271 = vadd.f32 %v3126, %v3270
    %v3272 = vpop.f32.mrf.mxu0
    %v3273 = vadd.f32 %v3128, %v3272
    %3274 = vdwg.mxu0
    %3275 = vmatprep.subr.mxu0 0.0
    %3276 = vmatpush1.msra.mxu0 0.0
    %3277 = vmatprep.subr.mxu0 0.0
    %3278 = vmatpush1.msra.mxu0 0.0
    %3279 = vmatprep.subr.mxu0 0.0
    %3280 = vmatpush1.msra.mxu0 0.0
    %3281 = vmatprep.subr.mxu0 0.0
    %3282 = vmatpush1.msra.mxu0 0.0
    %3283 = vmatprep.subr.mxu0 0.0
    %3284 = vmatpush1.msra.mxu0 0.0
    %3285 = vmatprep.subr.mxu0 0.0
    %3286 = vmatpush1.msra.mxu0 0.0
    %3287 = vmatprep.subr.mxu0 0.0
    %3288 = vmatpush1.msra.mxu0 0.0
    %3289 = vmatprep.subr.mxu0 0.0
    %3290 = vmatpush1.msra.mxu0 0.0
    %3291 = vmatprep.subr.mxu0 0.0
    %3292 = vmatpush1.msra.mxu0 0.0
    %3293 = vmatprep.subr.mxu0 0.0
    %3294 = vmatpush1.msra.mxu0 0.0
    %3295 = vmatprep.subr.mxu0 0.0
    %3296 = vmatpush1.msra.mxu0 0.0
    %3297 = vmatprep.subr.mxu0 0.0
    %3298 = vmatpush1.msra.mxu0 0.0
    %3299 = vmatprep.subr.mxu0 0.0
    %3300 = vmatpush1.msra.mxu0 0.0
    %3301 = vmatprep.subr.mxu0 %v2891
    %3302 = vmatpush1.msra.mxu0 %v2888
    %3303 = vmatprep.subr.mxu0 %v2639
    %3304 = vmatpush1.msra.mxu0 %v2638
    %3305 = vmatprep.subr.mxu0 %v2635
    %3306 = vmatpush1.msra.mxu0 %v2634
    %3307 = vmatprep.subr.mxu0 0.0
    %3308 = vmatpush2.msra.mxu0 0.0
    %3309 = vmatprep.subr.mxu0 0.0
    %3310 = vmatpush2.msra.mxu0 0.0
    %3311 = vmatprep.subr.mxu0 0.0
    %3312 = vmatpush2.msra.mxu0 0.0
    %3313 = vmatprep.subr.mxu0 0.0
    %3314 = vmatpush2.msra.mxu0 0.0
    %3315 = vmatprep.subr.mxu0 0.0
    %3316 = vmatpush2.msra.mxu0 0.0
    %3317 = vmatprep.subr.mxu0 0.0
    %3318 = vmatpush2.msra.mxu0 0.0
    %3319 = vmatprep.subr.mxu0 0.0
    %3320 = vmatpush2.msra.mxu0 0.0
    %3321 = vmatprep.subr.mxu0 0.0
    %3322 = vmatpush2.msra.mxu0 0.0
    %3323 = vmatprep.subr.mxu0 0.0
    %3324 = vmatpush2.msra.mxu0 0.0
    %3325 = vmatprep.subr.mxu0 0.0
    %3326 = vmatpush2.msra.mxu0 0.0
    %3327 = vmatprep.subr.mxu0 0.0
    %3328 = vmatpush2.msra.mxu0 0.0
    %3329 = vmatprep.subr.mxu0 0.0
    %3330 = vmatpush2.msra.mxu0 0.0
    %3331 = vmatprep.subr.mxu0 0.0
    %3332 = vmatpush2.msra.mxu0 0.0
    %3333 = vmatprep.subr.mxu0 0.0
    %3334 = vmatpush2.msra.mxu0 0.0
    %3335 = vmatprep.subr.mxu0 0.0
    %3336 = vmatpush2.msra.mxu0 0.0
    %3337 = vmatprep.subr.mxu0 0.0
    %3338 = vmatpush2.msra.mxu0 0.0
    %3339 = vmatprep.mubr.f32.mxu0 0.0
    %3340 = vmatmul.mubr.f32.gmra.mxu0 %v3202
    %v3341 = vpop.f32.mrf.mxu0
    %v3342 = vadd.f32 %v3197, %v3341
    %v3343 = vpop.f32.mrf.mxu0
    %v3344 = vadd.f32 %v3199, %v3343
    %3345 = vdwg.mxu0
    %v3346 = vxor.u32 %v3271, 2147483648
    %v3347 = vxor.u32 %v3273, 2147483648
    %v3348 = vxor.u32 %v3342, 2147483648
    %v3349 = vmul.f32 %v3346, 1.442695
    %v3350 = vpow.pop %v3349
    %v3351 = vmul.f32 %v3347, 1.442695
    %v3352 = vpow.pop %v3351
    %v3353 = vmul.f32 %v3348, 1.442695
    %v3354 = vpow.pop %v3353
    %v3355 = vadd.f32 %v3350, 1.0
    %v3356 = vadd.f32 %v3352, 1.0
    %v3357 = vadd.f32 %v3354, 1.0
    %v3358 = vrcp.pop %v3355
    %v3359 = vmul.f32 1.0, %v3358
    %v3360 = vrcp.pop %v3356
    %v3361 = vmul.f32 1.0, %v3360
    %v3362 = vrcp.pop %v3357
    %v3363 = vmul.f32 1.0, %v3362
    %v3364 = vmul.f32 %v3361, %v3056
    %v3365 = vtanh.pop %v3344
    %v3366 = vmul.f32 %v3359, %v3365
    %v3367 = vadd.f32 %v3364, %v3366
    %v3368 = vtanh.pop %v3367
    %v3369 = vmul.f32 %v3363, %v3368
    %3370 = vmatprep.subr.mxu0 %v2705
    %3371 = vmatpush1.msra.mxu0 %v2704
    %3372 = vmatprep.subr.mxu0 %v2701
    %3373 = vmatpush1.msra.mxu0 %v2700
    %3374 = vmatprep.subr.mxu0 %v2697
    %3375 = vmatpush1.msra.mxu0 %v2696
    %3376 = vmatprep.subr.mxu0 %v2693
    %3377 = vmatpush1.msra.mxu0 %v2692
    %3378 = vmatprep.subr.mxu0 %v2689
    %3379 = vmatpush1.msra.mxu0 %v2688
    %3380 = vmatprep.subr.mxu0 %v2685
    %3381 = vmatpush1.msra.mxu0 %v2684
    %3382 = vmatprep.subr.mxu0 %v2681
    %3383 = vmatpush1.msra.mxu0 %v2680
    %3384 = vmatprep.subr.mxu0 %v2677
    %3385 = vmatpush1.msra.mxu0 %v2676
    %3386 = vmatprep.subr.mxu0 %v2673
    %3387 = vmatpush1.msra.mxu0 %v2672
    %3388 = vmatprep.subr.mxu0 %v2669
    %3389 = vmatpush1.msra.mxu0 %v2668
    %3390 = vmatprep.subr.mxu0 %v2665
    %3391 = vmatpush1.msra.mxu0 %v2664
    %3392 = vmatprep.subr.mxu0 %v2661
    %3393 = vmatpush1.msra.mxu0 %v2660
    %3394 = vmatprep.subr.mxu0 %v2657
    %3395 = vmatpush1.msra.mxu0 %v2656
    %3396 = vmatprep.subr.mxu0 %v2653
    %3397 = vmatpush1.msra.mxu0 %v2652
    %3398 = vmatprep.subr.mxu0 %v2649
    %3399 = vmatpush1.msra.mxu0 %v2648
    %3400 = vmatprep.subr.mxu0 %v2645
    %3401 = vmatpush1.msra.mxu0 %v2644
    %3402 = vmatprep.subr.mxu0 0.0
    %3403 = vmatpush2.msra.mxu0 0.0
    %3404 = vmatprep.subr.mxu0 0.0
    %3405 = vmatpush2.msra.mxu0 0.0
    %3406 = vmatprep.subr.mxu0 0.0
    %3407 = vmatpush2.msra.mxu0 0.0
    %3408 = vmatprep.subr.mxu0 0.0
    %3409 = vmatpush2.msra.mxu0 0.0
    %3410 = vmatprep.subr.mxu0 0.0
    %3411 = vmatpush2.msra.mxu0 0.0
    %3412 = vmatprep.subr.mxu0 0.0
    %3413 = vmatpush2.msra.mxu0 0.0
    %3414 = vmatprep.subr.mxu0 0.0
    %3415 = vmatpush2.msra.mxu0 0.0
    %3416 = vmatprep.subr.mxu0 0.0
    %3417 = vmatpush2.msra.mxu0 0.0
    %3418 = vmatprep.subr.mxu0 0.0
    %3419 = vmatpush2.msra.mxu0 0.0
    %3420 = vmatprep.subr.mxu0 0.0
    %3421 = vmatpush2.msra.mxu0 0.0
    %3422 = vmatprep.subr.mxu0 0.0
    %3423 = vmatpush2.msra.mxu0 0.0
    %3424 = vmatprep.subr.mxu0 0.0
    %3425 = vmatpush2.msra.mxu0 0.0
    %3426 = vmatprep.subr.mxu0 0.0
    %3427 = vmatpush2.msra.mxu0 0.0
    %3428 = vmatprep.subr.mxu0 0.0
    %3429 = vmatpush2.msra.mxu0 0.0
    %3430 = vmatprep.subr.mxu0 0.0
    %3431 = vmatpush2.msra.mxu0 0.0
    %3432 = vmatprep.subr.mxu0 0.0
    %3433 = vmatpush2.msra.mxu0 0.0
    %3434 = vmatprep.mubr.f32.mxu0 0.0
    %3435 = vmatmul.mubr.f32.gmra.mxu0 %v3369
    %v3436 = vpop.f32.mrf.mxu0
    %v3437 = vadd.f32 0.0, %v3436
    %v3438 = vpop.f32.mrf.mxu0
    %v3439 = vadd.f32 0.0, %v3438
    %3440 = vdwg.mxu0
    %3441 = vmatprep.subr.mxu0 %v2707
    %3442 = vmatpush1.msra.mxu0 %v2706
    %3443 = vmatprep.subr.mxu0 %v2703
    %3444 = vmatpush1.msra.mxu0 %v2702
    %3445 = vmatprep.subr.mxu0 %v2699
    %3446 = vmatpush1.msra.mxu0 %v2698
    %3447 = vmatprep.subr.mxu0 %v2695
    %3448 = vmatpush1.msra.mxu0 %v2694
    %3449 = vmatprep.subr.mxu0 %v2691
    %3450 = vmatpush1.msra.mxu0 %v2690
    %3451 = vmatprep.subr.mxu0 %v2687
    %3452 = vmatpush1.msra.mxu0 %v2686
    %3453 = vmatprep.subr.mxu0 %v2683
    %3454 = vmatpush1.msra.mxu0 %v2682
    %3455 = vmatprep.subr.mxu0 %v2679
    %3456 = vmatpush1.msra.mxu0 %v2678
    %3457 = vmatprep.subr.mxu0 %v2675
    %3458 = vmatpush1.msra.mxu0 %v2674
    %3459 = vmatprep.subr.mxu0 %v2671
    %3460 = vmatpush1.msra.mxu0 %v2670
    %3461 = vmatprep.subr.mxu0 %v2667
    %3462 = vmatpush1.msra.mxu0 %v2666
    %3463 = vmatprep.subr.mxu0 %v2663
    %3464 = vmatpush1.msra.mxu0 %v2662
    %3465 = vmatprep.subr.mxu0 %v2659
    %3466 = vmatpush1.msra.mxu0 %v2658
    %3467 = vmatprep.subr.mxu0 %v2655
    %3468 = vmatpush1.msra.mxu0 %v2654
    %3469 = vmatprep.subr.mxu0 %v2651
    %3470 = vmatpush1.msra.mxu0 %v2650
    %3471 = vmatprep.subr.mxu0 %v2647
    %3472 = vmatpush1.msra.mxu0 %v2646
    %3473 = vmatprep.subr.mxu0 0.0
    %3474 = vmatpush2.msra.mxu0 0.0
    %3475 = vmatprep.subr.mxu0 0.0
    %3476 = vmatpush2.msra.mxu0 0.0
    %3477 = vmatprep.subr.mxu0 0.0
    %3478 = vmatpush2.msra.mxu0 0.0
    %3479 = vmatprep.subr.mxu0 0.0
    %3480 = vmatpush2.msra.mxu0 0.0
    %3481 = vmatprep.subr.mxu0 0.0
    %3482 = vmatpush2.msra.mxu0 0.0
    %3483 = vmatprep.subr.mxu0 0.0
    %3484 = vmatpush2.msra.mxu0 0.0
    %3485 = vmatprep.subr.mxu0 0.0
    %3486 = vmatpush2.msra.mxu0 0.0
    %3487 = vmatprep.subr.mxu0 0.0
    %3488 = vmatpush2.msra.mxu0 0.0
    %3489 = vmatprep.subr.mxu0 0.0
    %3490 = vmatpush2.msra.mxu0 0.0
    %3491 = vmatprep.subr.mxu0 0.0
    %3492 = vmatpush2.msra.mxu0 0.0
    %3493 = vmatprep.subr.mxu0 0.0
    %3494 = vmatpush2.msra.mxu0 0.0
    %3495 = vmatprep.subr.mxu0 0.0
    %3496 = vmatpush2.msra.mxu0 0.0
    %3497 = vmatprep.subr.mxu0 0.0
    %3498 = vmatpush2.msra.mxu0 0.0
    %3499 = vmatprep.subr.mxu0 0.0
    %3500 = vmatpush2.msra.mxu0 0.0
    %3501 = vmatprep.subr.mxu0 0.0
    %3502 = vmatpush2.msra.mxu0 0.0
    %3503 = vmatprep.subr.mxu0 0.0
    %3504 = vmatpush2.msra.mxu0 0.0
    %3505 = vmatprep.mubr.f32.mxu0 0.0
    %3506 = vmatmul.mubr.f32.gmra.mxu0 %v3369
    %v3507 = vpop.f32.mrf.mxu0
    %v3508 = vadd.f32 0.0, %v3507
    %v3509 = vpop.f32.mrf.mxu0
    %v3510 = vadd.f32 0.0, %v3509
    %3511 = vdwg.mxu0
    %v3513 = vsel %vm1105, %v2727, 0
    %3515 = vmatprep.subr.mxu0 0.0
    %3516 = vmatpush1.msra.mxu0 0.0
    %3517 = vmatprep.subr.mxu0 0.0
    %3518 = vmatpush1.msra.mxu0 0.0
    %3519 = vmatprep.subr.mxu0 0.0
    %3520 = vmatpush1.msra.mxu0 0.0
    %3521 = vmatprep.subr.mxu0 0.0
    %3522 = vmatpush1.msra.mxu0 0.0
    %3523 = vmatprep.subr.mxu0 0.0
    %3524 = vmatpush1.msra.mxu0 0.0
    %3525 = vmatprep.subr.mxu0 0.0
    %3526 = vmatpush1.msra.mxu0 0.0
    %3527 = vmatprep.subr.mxu0 0.0
    %3528 = vmatpush1.msra.mxu0 0.0
    %3529 = vmatprep.subr.mxu0 0.0
    %3530 = vmatpush1.msra.mxu0 0.0
    %3531 = vmatprep.subr.mxu0 0.0
    %3532 = vmatpush1.msra.mxu0 0.0
    %3533 = vmatprep.subr.mxu0 0.0
    %3534 = vmatpush1.msra.mxu0 0.0
    %3535 = vmatprep.subr.mxu0 0.0
    %3536 = vmatpush1.msra.mxu0 0.0
    %3537 = vmatprep.subr.mxu0 0.0
    %3538 = vmatpush1.msra.mxu0 0.0
    %3539 = vmatprep.subr.mxu0 0.0
    %3540 = vmatpush1.msra.mxu0 0.0
    %3541 = vmatprep.subr.mxu0 %v2885
    %3542 = vmatpush1.msra.mxu0 %v2882
    %3543 = vmatprep.subr.mxu0 %v2637
    %3544 = vmatpush1.msra.mxu0 %v2636
    %3545 = vmatprep.subr.mxu0 %v2633
    %3546 = vmatpush1.msra.mxu0 %v2632
    %3547 = vmatprep.subr.mxu0 0.0
    %3548 = vmatpush2.msra.mxu0 0.0
    %3549 = vmatprep.subr.mxu0 0.0
    %3550 = vmatpush2.msra.mxu0 0.0
    %3551 = vmatprep.subr.mxu0 0.0
    %3552 = vmatpush2.msra.mxu0 0.0
    %3553 = vmatprep.subr.mxu0 0.0
    %3554 = vmatpush2.msra.mxu0 0.0
    %3555 = vmatprep.subr.mxu0 0.0
    %3556 = vmatpush2.msra.mxu0 0.0
    %3557 = vmatprep.subr.mxu0 0.0
    %3558 = vmatpush2.msra.mxu0 0.0
    %3559 = vmatprep.subr.mxu0 0.0
    %3560 = vmatpush2.msra.mxu0 0.0
    %3561 = vmatprep.subr.mxu0 0.0
    %3562 = vmatpush2.msra.mxu0 0.0
    %3563 = vmatprep.subr.mxu0 0.0
    %3564 = vmatpush2.msra.mxu0 0.0
    %3565 = vmatprep.subr.mxu0 0.0
    %3566 = vmatpush2.msra.mxu0 0.0
    %3567 = vmatprep.subr.mxu0 0.0
    %3568 = vmatpush2.msra.mxu0 0.0
    %3569 = vmatprep.subr.mxu0 0.0
    %3570 = vmatpush2.msra.mxu0 0.0
    %3571 = vmatprep.subr.mxu0 0.0
    %3572 = vmatpush2.msra.mxu0 0.0
    %3573 = vmatprep.subr.mxu0 0.0
    %3574 = vmatpush2.msra.mxu0 0.0
    %3575 = vmatprep.subr.mxu0 0.0
    %3576 = vmatpush2.msra.mxu0 0.0
    %3577 = vmatprep.subr.mxu0 0.0
    %3578 = vmatpush2.msra.mxu0 0.0
    %3579 = vmatprep.mubr.f32.mxu0 0.0
    %3580 = vmatmul.mubr.f32.gmra.mxu0 %v3513
    %v3581 = vpop.f32.mrf.mxu0
    %v3582 = vadd.f32 %v3437, %v3581
    %v3583 = vpop.f32.mrf.mxu0
    %v3584 = vadd.f32 %v3439, %v3583
    %3585 = vdwg.mxu0
    %3586 = vmatprep.subr.mxu0 0.0
    %3587 = vmatpush1.msra.mxu0 0.0
    %3588 = vmatprep.subr.mxu0 0.0
    %3589 = vmatpush1.msra.mxu0 0.0
    %3590 = vmatprep.subr.mxu0 0.0
    %3591 = vmatpush1.msra.mxu0 0.0
    %3592 = vmatprep.subr.mxu0 0.0
    %3593 = vmatpush1.msra.mxu0 0.0
    %3594 = vmatprep.subr.mxu0 0.0
    %3595 = vmatpush1.msra.mxu0 0.0
    %3596 = vmatprep.subr.mxu0 0.0
    %3597 = vmatpush1.msra.mxu0 0.0
    %3598 = vmatprep.subr.mxu0 0.0
    %3599 = vmatpush1.msra.mxu0 0.0
    %3600 = vmatprep.subr.mxu0 0.0
    %3601 = vmatpush1.msra.mxu0 0.0
    %3602 = vmatprep.subr.mxu0 0.0
    %3603 = vmatpush1.msra.mxu0 0.0
    %3604 = vmatprep.subr.mxu0 0.0
    %3605 = vmatpush1.msra.mxu0 0.0
    %3606 = vmatprep.subr.mxu0 0.0
    %3607 = vmatpush1.msra.mxu0 0.0
    %3608 = vmatprep.subr.mxu0 0.0
    %3609 = vmatpush1.msra.mxu0 0.0
    %3610 = vmatprep.subr.mxu0 0.0
    %3611 = vmatpush1.msra.mxu0 0.0
    %3612 = vmatprep.subr.mxu0 %v2891
    %3613 = vmatpush1.msra.mxu0 %v2888
    %3614 = vmatprep.subr.mxu0 %v2639
    %3615 = vmatpush1.msra.mxu0 %v2638
    %3616 = vmatprep.subr.mxu0 %v2635
    %3617 = vmatpush1.msra.mxu0 %v2634
    %3618 = vmatprep.subr.mxu0 0.0
    %3619 = vmatpush2.msra.mxu0 0.0
    %3620 = vmatprep.subr.mxu0 0.0
    %3621 = vmatpush2.msra.mxu0 0.0
    %3622 = vmatprep.subr.mxu0 0.0
    %3623 = vmatpush2.msra.mxu0 0.0
    %3624 = vmatprep.subr.mxu0 0.0
    %3625 = vmatpush2.msra.mxu0 0.0
    %3626 = vmatprep.subr.mxu0 0.0
    %3627 = vmatpush2.msra.mxu0 0.0
    %3628 = vmatprep.subr.mxu0 0.0
    %3629 = vmatpush2.msra.mxu0 0.0
    %3630 = vmatprep.subr.mxu0 0.0
    %3631 = vmatpush2.msra.mxu0 0.0
    %3632 = vmatprep.subr.mxu0 0.0
    %3633 = vmatpush2.msra.mxu0 0.0
    %3634 = vmatprep.subr.mxu0 0.0
    %3635 = vmatpush2.msra.mxu0 0.0
    %3636 = vmatprep.subr.mxu0 0.0
    %3637 = vmatpush2.msra.mxu0 0.0
    %3638 = vmatprep.subr.mxu0 0.0
    %3639 = vmatpush2.msra.mxu0 0.0
    %3640 = vmatprep.subr.mxu0 0.0
    %3641 = vmatpush2.msra.mxu0 0.0
    %3642 = vmatprep.subr.mxu0 0.0
    %3643 = vmatpush2.msra.mxu0 0.0
    %3644 = vmatprep.subr.mxu0 0.0
    %3645 = vmatpush2.msra.mxu0 0.0
    %3646 = vmatprep.subr.mxu0 0.0
    %3647 = vmatpush2.msra.mxu0 0.0
    %3648 = vmatprep.subr.mxu0 0.0
    %3649 = vmatpush2.msra.mxu0 0.0
    %3650 = vmatprep.mubr.f32.mxu0 0.0
    %3651 = vmatmul.mubr.f32.gmra.mxu0 %v3513
    %v3652 = vpop.f32.mrf.mxu0
    %v3653 = vadd.f32 %v3508, %v3652
    %v3654 = vpop.f32.mrf.mxu0
    %v3655 = vadd.f32 %v3510, %v3654
    %3656 = vdwg.mxu0
    %v3657 = vxor.u32 %v3582, 2147483648
    %v3658 = vxor.u32 %v3584, 2147483648
    %v3659 = vxor.u32 %v3653, 2147483648
    %v3660 = vmul.f32 %v3657, 1.442695
    %v3661 = vpow.pop %v3660
    %v3662 = vmul.f32 %v3658, 1.442695
    %v3663 = vpow.pop %v3662
    %v3664 = vmul.f32 %v3659, 1.442695
    %v3665 = vpow.pop %v3664
    %v3666 = vadd.f32 %v3661, 1.0
    %v3667 = vadd.f32 %v3663, 1.0
    %v3668 = vadd.f32 %v3665, 1.0
    %v3669 = vrcp.pop %v3666
    %v3670 = vmul.f32 1.0, %v3669
    %v3671 = vrcp.pop %v3667
    %v3672 = vmul.f32 1.0, %v3671
    %v3673 = vrcp.pop %v3668
    %v3674 = vmul.f32 1.0, %v3673
    %v3675 = vmul.f32 %v3672, %v3367
    %v3676 = vtanh.pop %v3655
    %v3677 = vmul.f32 %v3670, %v3676
    %v3678 = vadd.f32 %v3675, %v3677
    %v3679 = vtanh.pop %v3678
    %v3680 = vmul.f32 %v3674, %v3679
    %3681 = vmatprep.subr.mxu0 %v2705
    %3682 = vmatpush1.msra.mxu0 %v2704
    %3683 = vmatprep.subr.mxu0 %v2701
    %3684 = vmatpush1.msra.mxu0 %v2700
    %3685 = vmatprep.subr.mxu0 %v2697
    %3686 = vmatpush1.msra.mxu0 %v2696
    %3687 = vmatprep.subr.mxu0 %v2693
    %3688 = vmatpush1.msra.mxu0 %v2692
    %3689 = vmatprep.subr.mxu0 %v2689
    %3690 = vmatpush1.msra.mxu0 %v2688
    %3691 = vmatprep.subr.mxu0 %v2685
    %3692 = vmatpush1.msra.mxu0 %v2684
    %3693 = vmatprep.subr.mxu0 %v2681
    %3694 = vmatpush1.msra.mxu0 %v2680
    %3695 = vmatprep.subr.mxu0 %v2677
    %3696 = vmatpush1.msra.mxu0 %v2676
    %3697 = vmatprep.subr.mxu0 %v2673
    %3698 = vmatpush1.msra.mxu0 %v2672
    %3699 = vmatprep.subr.mxu0 %v2669
    %3700 = vmatpush1.msra.mxu0 %v2668
    %3701 = vmatprep.subr.mxu0 %v2665
    %3702 = vmatpush1.msra.mxu0 %v2664
    %3703 = vmatprep.subr.mxu0 %v2661
    %3704 = vmatpush1.msra.mxu0 %v2660
    %3705 = vmatprep.subr.mxu0 %v2657
    %3706 = vmatpush1.msra.mxu0 %v2656
    %3707 = vmatprep.subr.mxu0 %v2653
    %3708 = vmatpush1.msra.mxu0 %v2652
    %3709 = vmatprep.subr.mxu0 %v2649
    %3710 = vmatpush1.msra.mxu0 %v2648
    %3711 = vmatprep.subr.mxu0 %v2645
    %3712 = vmatpush1.msra.mxu0 %v2644
    %3713 = vmatprep.subr.mxu0 0.0
    %3714 = vmatpush2.msra.mxu0 0.0
    %3715 = vmatprep.subr.mxu0 0.0
    %3716 = vmatpush2.msra.mxu0 0.0
    %3717 = vmatprep.subr.mxu0 0.0
    %3718 = vmatpush2.msra.mxu0 0.0
    %3719 = vmatprep.subr.mxu0 0.0
    %3720 = vmatpush2.msra.mxu0 0.0
    %3721 = vmatprep.subr.mxu0 0.0
    %3722 = vmatpush2.msra.mxu0 0.0
    %3723 = vmatprep.subr.mxu0 0.0
    %3724 = vmatpush2.msra.mxu0 0.0
    %3725 = vmatprep.subr.mxu0 0.0
    %3726 = vmatpush2.msra.mxu0 0.0
    %3727 = vmatprep.subr.mxu0 0.0
    %3728 = vmatpush2.msra.mxu0 0.0
    %3729 = vmatprep.subr.mxu0 0.0
    %3730 = vmatpush2.msra.mxu0 0.0
    %3731 = vmatprep.subr.mxu0 0.0
    %3732 = vmatpush2.msra.mxu0 0.0
    %3733 = vmatprep.subr.mxu0 0.0
    %3734 = vmatpush2.msra.mxu0 0.0
    %3735 = vmatprep.subr.mxu0 0.0
    %3736 = vmatpush2.msra.mxu0 0.0
    %3737 = vmatprep.subr.mxu0 0.0
    %3738 = vmatpush2.msra.mxu0 0.0
    %3739 = vmatprep.subr.mxu0 0.0
    %3740 = vmatpush2.msra.mxu0 0.0
    %3741 = vmatprep.subr.mxu0 0.0
    %3742 = vmatpush2.msra.mxu0 0.0
    %3743 = vmatprep.subr.mxu0 0.0
    %3744 = vmatpush2.msra.mxu0 0.0
    %3745 = vmatprep.mubr.f32.mxu0 0.0
    %3746 = vmatmul.mubr.f32.gmra.mxu0 %v3680
    %v3747 = vpop.f32.mrf.mxu0
    %v3748 = vadd.f32 0.0, %v3747
    %v3749 = vpop.f32.mrf.mxu0
    %v3750 = vadd.f32 0.0, %v3749
    %3751 = vdwg.mxu0
    %3752 = vmatprep.subr.mxu0 %v2707
    %3753 = vmatpush1.msra.mxu0 %v2706
    %3754 = vmatprep.subr.mxu0 %v2703
    %3755 = vmatpush1.msra.mxu0 %v2702
    %3756 = vmatprep.subr.mxu0 %v2699
    %3757 = vmatpush1.msra.mxu0 %v2698
    %3758 = vmatprep.subr.mxu0 %v2695
    %3759 = vmatpush1.msra.mxu0 %v2694
    %3760 = vmatprep.subr.mxu0 %v2691
    %3761 = vmatpush1.msra.mxu0 %v2690
    %3762 = vmatprep.subr.mxu0 %v2687
    %3763 = vmatpush1.msra.mxu0 %v2686
    %3764 = vmatprep.subr.mxu0 %v2683
    %3765 = vmatpush1.msra.mxu0 %v2682
    %3766 = vmatprep.subr.mxu0 %v2679
    %3767 = vmatpush1.msra.mxu0 %v2678
    %3768 = vmatprep.subr.mxu0 %v2675
    %3769 = vmatpush1.msra.mxu0 %v2674
    %3770 = vmatprep.subr.mxu0 %v2671
    %3771 = vmatpush1.msra.mxu0 %v2670
    %3772 = vmatprep.subr.mxu0 %v2667
    %3773 = vmatpush1.msra.mxu0 %v2666
    %3774 = vmatprep.subr.mxu0 %v2663
    %3775 = vmatpush1.msra.mxu0 %v2662
    %3776 = vmatprep.subr.mxu0 %v2659
    %3777 = vmatpush1.msra.mxu0 %v2658
    %3778 = vmatprep.subr.mxu0 %v2655
    %3779 = vmatpush1.msra.mxu0 %v2654
    %3780 = vmatprep.subr.mxu0 %v2651
    %3781 = vmatpush1.msra.mxu0 %v2650
    %3782 = vmatprep.subr.mxu0 %v2647
    %3783 = vmatpush1.msra.mxu0 %v2646
    %3784 = vmatprep.subr.mxu0 0.0
    %3785 = vmatpush2.msra.mxu0 0.0
    %3786 = vmatprep.subr.mxu0 0.0
    %3787 = vmatpush2.msra.mxu0 0.0
    %3788 = vmatprep.subr.mxu0 0.0
    %3789 = vmatpush2.msra.mxu0 0.0
    %3790 = vmatprep.subr.mxu0 0.0
    %3791 = vmatpush2.msra.mxu0 0.0
    %3792 = vmatprep.subr.mxu0 0.0
    %3793 = vmatpush2.msra.mxu0 0.0
    %3794 = vmatprep.subr.mxu0 0.0
    %3795 = vmatpush2.msra.mxu0 0.0
    %3796 = vmatprep.subr.mxu0 0.0
    %3797 = vmatpush2.msra.mxu0 0.0
    %3798 = vmatprep.subr.mxu0 0.0
    %3799 = vmatpush2.msra.mxu0 0.0
    %3800 = vmatprep.subr.mxu0 0.0
    %3801 = vmatpush2.msra.mxu0 0.0
    %3802 = vmatprep.subr.mxu0 0.0
    %3803 = vmatpush2.msra.mxu0 0.0
    %3804 = vmatprep.subr.mxu0 0.0
    %3805 = vmatpush2.msra.mxu0 0.0
    %3806 = vmatprep.subr.mxu0 0.0
    %3807 = vmatpush2.msra.mxu0 0.0
    %3808 = vmatprep.subr.mxu0 0.0
    %3809 = vmatpush2.msra.mxu0 0.0
    %3810 = vmatprep.subr.mxu0 0.0
    %3811 = vmatpush2.msra.mxu0 0.0
    %3812 = vmatprep.subr.mxu0 0.0
    %3813 = vmatpush2.msra.mxu0 0.0
    %3814 = vmatprep.subr.mxu0 0.0
    %3815 = vmatpush2.msra.mxu0 0.0
    %3816 = vmatprep.mubr.f32.mxu0 0.0
    %3817 = vmatmul.mubr.f32.gmra.mxu0 %v3680
    %v3818 = vpop.f32.mrf.mxu0
    %v3819 = vadd.f32 0.0, %v3818
    %v3820 = vpop.f32.mrf.mxu0
    %v3821 = vadd.f32 0.0, %v3820
    %3822 = vdwg.mxu0
    %v3824 = vsel %vm1105, %v2731, 0
    %3826 = vmatprep.subr.mxu0 0.0
    %3827 = vmatpush1.msra.mxu0 0.0
    %3828 = vmatprep.subr.mxu0 0.0
    %3829 = vmatpush1.msra.mxu0 0.0
    %3830 = vmatprep.subr.mxu0 0.0
    %3831 = vmatpush1.msra.mxu0 0.0
    %3832 = vmatprep.subr.mxu0 0.0
    %3833 = vmatpush1.msra.mxu0 0.0
    %3834 = vmatprep.subr.mxu0 0.0
    %3835 = vmatpush1.msra.mxu0 0.0
    %3836 = vmatprep.subr.mxu0 0.0
    %3837 = vmatpush1.msra.mxu0 0.0
    %3838 = vmatprep.subr.mxu0 0.0
    %3839 = vmatpush1.msra.mxu0 0.0
    %3840 = vmatprep.subr.mxu0 0.0
    %3841 = vmatpush1.msra.mxu0 0.0
    %3842 = vmatprep.subr.mxu0 0.0
    %3843 = vmatpush1.msra.mxu0 0.0
    %3844 = vmatprep.subr.mxu0 0.0
    %3845 = vmatpush1.msra.mxu0 0.0
    %3846 = vmatprep.subr.mxu0 0.0
    %3847 = vmatpush1.msra.mxu0 0.0
    %3848 = vmatprep.subr.mxu0 0.0
    %3849 = vmatpush1.msra.mxu0 0.0
    %3850 = vmatprep.subr.mxu0 0.0
    %3851 = vmatpush1.msra.mxu0 0.0
    %3852 = vmatprep.subr.mxu0 %v2885
    %3853 = vmatpush1.msra.mxu0 %v2882
    %3854 = vmatprep.subr.mxu0 %v2637
    %3855 = vmatpush1.msra.mxu0 %v2636
    %3856 = vmatprep.subr.mxu0 %v2633
    %3857 = vmatpush1.msra.mxu0 %v2632
    %3858 = vmatprep.subr.mxu0 0.0
    %3859 = vmatpush2.msra.mxu0 0.0
    %3860 = vmatprep.subr.mxu0 0.0
    %3861 = vmatpush2.msra.mxu0 0.0
    %3862 = vmatprep.subr.mxu0 0.0
    %3863 = vmatpush2.msra.mxu0 0.0
    %3864 = vmatprep.subr.mxu0 0.0
    %3865 = vmatpush2.msra.mxu0 0.0
    %3866 = vmatprep.subr.mxu0 0.0
    %3867 = vmatpush2.msra.mxu0 0.0
    %3868 = vmatprep.subr.mxu0 0.0
    %3869 = vmatpush2.msra.mxu0 0.0
    %3870 = vmatprep.subr.mxu0 0.0
    %3871 = vmatpush2.msra.mxu0 0.0
    %3872 = vmatprep.subr.mxu0 0.0
    %3873 = vmatpush2.msra.mxu0 0.0
    %3874 = vmatprep.subr.mxu0 0.0
    %3875 = vmatpush2.msra.mxu0 0.0
    %3876 = vmatprep.subr.mxu0 0.0
    %3877 = vmatpush2.msra.mxu0 0.0
    %3878 = vmatprep.subr.mxu0 0.0
    %3879 = vmatpush2.msra.mxu0 0.0
    %3880 = vmatprep.subr.mxu0 0.0
    %3881 = vmatpush2.msra.mxu0 0.0
    %3882 = vmatprep.subr.mxu0 0.0
    %3883 = vmatpush2.msra.mxu0 0.0
    %3884 = vmatprep.subr.mxu0 0.0
    %3885 = vmatpush2.msra.mxu0 0.0
    %3886 = vmatprep.subr.mxu0 0.0
    %3887 = vmatpush2.msra.mxu0 0.0
    %3888 = vmatprep.subr.mxu0 0.0
    %3889 = vmatpush2.msra.mxu0 0.0
    %3890 = vmatprep.mubr.f32.mxu0 0.0
    %3891 = vmatmul.mubr.f32.gmra.mxu0 %v3824
    %v3892 = vpop.f32.mrf.mxu0
    %v3893 = vadd.f32 %v3748, %v3892
    %v3894 = vpop.f32.mrf.mxu0
    %v3895 = vadd.f32 %v3750, %v3894
    %3896 = vdwg.mxu0
    %3897 = vmatprep.subr.mxu0 0.0
    %3898 = vmatpush1.msra.mxu0 0.0
    %3899 = vmatprep.subr.mxu0 0.0
    %3900 = vmatpush1.msra.mxu0 0.0
    %3901 = vmatprep.subr.mxu0 0.0
    %3902 = vmatpush1.msra.mxu0 0.0
    %3903 = vmatprep.subr.mxu0 0.0
    %3904 = vmatpush1.msra.mxu0 0.0
    %3905 = vmatprep.subr.mxu0 0.0
    %3906 = vmatpush1.msra.mxu0 0.0
    %3907 = vmatprep.subr.mxu0 0.0
    %3908 = vmatpush1.msra.mxu0 0.0
    %3909 = vmatprep.subr.mxu0 0.0
    %3910 = vmatpush1.msra.mxu0 0.0
    %3911 = vmatprep.subr.mxu0 0.0
    %3912 = vmatpush1.msra.mxu0 0.0
    %3913 = vmatprep.subr.mxu0 0.0
    %3914 = vmatpush1.msra.mxu0 0.0
    %3915 = vmatprep.subr.mxu0 0.0
    %3916 = vmatpush1.msra.mxu0 0.0
    %3917 = vmatprep.subr.mxu0 0.0
    %3918 = vmatpush1.msra.mxu0 0.0
    %3919 = vmatprep.subr.mxu0 0.0
    %3920 = vmatpush1.msra.mxu0 0.0
    %3921 = vmatprep.subr.mxu0 0.0
    %3922 = vmatpush1.msra.mxu0 0.0
    %3923 = vmatprep.subr.mxu0 %v2891
    %3924 = vmatpush1.msra.mxu0 %v2888
    %3925 = vmatprep.subr.mxu0 %v2639
    %3926 = vmatpush1.msra.mxu0 %v2638
    %3927 = vmatprep.subr.mxu0 %v2635
    %3928 = vmatpush1.msra.mxu0 %v2634
    %3929 = vmatprep.subr.mxu0 0.0
    %3930 = vmatpush2.msra.mxu0 0.0
    %3931 = vmatprep.subr.mxu0 0.0
    %3932 = vmatpush2.msra.mxu0 0.0
    %3933 = vmatprep.subr.mxu0 0.0
    %3934 = vmatpush2.msra.mxu0 0.0
    %3935 = vmatprep.subr.mxu0 0.0
    %3936 = vmatpush2.msra.mxu0 0.0
    %3937 = vmatprep.subr.mxu0 0.0
    %3938 = vmatpush2.msra.mxu0 0.0
    %3939 = vmatprep.subr.mxu0 0.0
    %3940 = vmatpush2.msra.mxu0 0.0
    %3941 = vmatprep.subr.mxu0 0.0
    %3942 = vmatpush2.msra.mxu0 0.0
    %3943 = vmatprep.subr.mxu0 0.0
    %3944 = vmatpush2.msra.mxu0 0.0
    %3945 = vmatprep.subr.mxu0 0.0
    %3946 = vmatpush2.msra.mxu0 0.0
    %3947 = vmatprep.subr.mxu0 0.0
    %3948 = vmatpush2.msra.mxu0 0.0
    %3949 = vmatprep.subr.mxu0 0.0
    %3950 = vmatpush2.msra.mxu0 0.0
    %3951 = vmatprep.subr.mxu0 0.0
    %3952 = vmatpush2.msra.mxu0 0.0
    %3953 = vmatprep.subr.mxu0 0.0
    %3954 = vmatpush2.msra.mxu0 0.0
    %3955 = vmatprep.subr.mxu0 0.0
    %3956 = vmatpush2.msra.mxu0 0.0
    %3957 = vmatprep.subr.mxu0 0.0
    %3958 = vmatpush2.msra.mxu0 0.0
    %3959 = vmatprep.subr.mxu0 0.0
    %3960 = vmatpush2.msra.mxu0 0.0
    %3961 = vmatprep.mubr.f32.mxu0 0.0
    %3962 = vmatmul.mubr.f32.gmra.mxu0 %v3824
    %v3963 = vpop.f32.mrf.mxu0
    %v3964 = vadd.f32 %v3819, %v3963
    %v3965 = vpop.f32.mrf.mxu0
    %v3966 = vadd.f32 %v3821, %v3965
    %3967 = vdwg.mxu0
    %v3968 = vxor.u32 %v3893, 2147483648
    %v3969 = vxor.u32 %v3895, 2147483648
    %v3970 = vxor.u32 %v3964, 2147483648
    %v3971 = vmul.f32 %v3968, 1.442695
    %v3972 = vpow.pop %v3971
    %v3973 = vmul.f32 %v3969, 1.442695
    %v3974 = vpow.pop %v3973
    %v3975 = vmul.f32 %v3970, 1.442695
    %v3976 = vpow.pop %v3975
    %v3977 = vadd.f32 %v3972, 1.0
    %v3978 = vadd.f32 %v3974, 1.0
    %v3979 = vadd.f32 %v3976, 1.0
    %v3980 = vrcp.pop %v3977
    %v3981 = vmul.f32 1.0, %v3980
    %v3982 = vrcp.pop %v3978
    %v3983 = vmul.f32 1.0, %v3982
    %v3984 = vrcp.pop %v3979
    %v3985 = vmul.f32 1.0, %v3984
    %v3986 = vmul.f32 %v3983, %v3678
    %v3987 = vtanh.pop %v3966
    %v3988 = vmul.f32 %v3981, %v3987
    %v3989 = vadd.f32 %v3986, %v3988
    %v3990 = vtanh.pop %v3989
    %v3991 = vmul.f32 %v3985, %v3990
    %3992 = vmatprep.subr.mxu0 %v2705
    %3993 = vmatpush1.msra.mxu0 %v2704
    %3994 = vmatprep.subr.mxu0 %v2701
    %3995 = vmatpush1.msra.mxu0 %v2700
    %3996 = vmatprep.subr.mxu0 %v2697
    %3997 = vmatpush1.msra.mxu0 %v2696
    %3998 = vmatprep.subr.mxu0 %v2693
    %3999 = vmatpush1.msra.mxu0 %v2692
    %4000 = vmatprep.subr.mxu0 %v2689
    %4001 = vmatpush1.msra.mxu0 %v2688
    %4002 = vmatprep.subr.mxu0 %v2685
    %4003 = vmatpush1.msra.mxu0 %v2684
    %4004 = vmatprep.subr.mxu0 %v2681
    %4005 = vmatpush1.msra.mxu0 %v2680
    %4006 = vmatprep.subr.mxu0 %v2677
    %4007 = vmatpush1.msra.mxu0 %v2676
    %4008 = vmatprep.subr.mxu0 %v2673
    %4009 = vmatpush1.msra.mxu0 %v2672
    %4010 = vmatprep.subr.mxu0 %v2669
    %4011 = vmatpush1.msra.mxu0 %v2668
    %4012 = vmatprep.subr.mxu0 %v2665
    %4013 = vmatpush1.msra.mxu0 %v2664
    %4014 = vmatprep.subr.mxu0 %v2661
    %4015 = vmatpush1.msra.mxu0 %v2660
    %4016 = vmatprep.subr.mxu0 %v2657
    %4017 = vmatpush1.msra.mxu0 %v2656
    %4018 = vmatprep.subr.mxu0 %v2653
    %4019 = vmatpush1.msra.mxu0 %v2652
    %4020 = vmatprep.subr.mxu0 %v2649
    %4021 = vmatpush1.msra.mxu0 %v2648
    %4022 = vmatprep.subr.mxu0 %v2645
    %4023 = vmatpush1.msra.mxu0 %v2644
    %4024 = vmatprep.subr.mxu0 0.0
    %4025 = vmatpush2.msra.mxu0 0.0
    %4026 = vmatprep.subr.mxu0 0.0
    %4027 = vmatpush2.msra.mxu0 0.0
    %4028 = vmatprep.subr.mxu0 0.0
    %4029 = vmatpush2.msra.mxu0 0.0
    %4030 = vmatprep.subr.mxu0 0.0
    %4031 = vmatpush2.msra.mxu0 0.0
    %4032 = vmatprep.subr.mxu0 0.0
    %4033 = vmatpush2.msra.mxu0 0.0
    %4034 = vmatprep.subr.mxu0 0.0
    %4035 = vmatpush2.msra.mxu0 0.0
    %4036 = vmatprep.subr.mxu0 0.0
    %4037 = vmatpush2.msra.mxu0 0.0
    %4038 = vmatprep.subr.mxu0 0.0
    %4039 = vmatpush2.msra.mxu0 0.0
    %4040 = vmatprep.subr.mxu0 0.0
    %4041 = vmatpush2.msra.mxu0 0.0
    %4042 = vmatprep.subr.mxu0 0.0
    %4043 = vmatpush2.msra.mxu0 0.0
    %4044 = vmatprep.subr.mxu0 0.0
    %4045 = vmatpush2.msra.mxu0 0.0
    %4046 = vmatprep.subr.mxu0 0.0
    %4047 = vmatpush2.msra.mxu0 0.0
    %4048 = vmatprep.subr.mxu0 0.0
    %4049 = vmatpush2.msra.mxu0 0.0
    %4050 = vmatprep.subr.mxu0 0.0
    %4051 = vmatpush2.msra.mxu0 0.0
    %4052 = vmatprep.subr.mxu0 0.0
    %4053 = vmatpush2.msra.mxu0 0.0
    %4054 = vmatprep.subr.mxu0 0.0
    %4055 = vmatpush2.msra.mxu0 0.0
    %4056 = vmatprep.mubr.f32.mxu0 0.0
    %4057 = vmatmul.mubr.f32.gmra.mxu0 %v3991
    %v4058 = vpop.f32.mrf.mxu0
    %v4059 = vadd.f32 0.0, %v4058
    %v4060 = vpop.f32.mrf.mxu0
    %v4061 = vadd.f32 0.0, %v4060
    %4062 = vdwg.mxu0
    %4063 = vmatprep.subr.mxu0 %v2707
    %4064 = vmatpush1.msra.mxu0 %v2706
    %4065 = vmatprep.subr.mxu0 %v2703
    %4066 = vmatpush1.msra.mxu0 %v2702
    %4067 = vmatprep.subr.mxu0 %v2699
    %4068 = vmatpush1.msra.mxu0 %v2698
    %4069 = vmatprep.subr.mxu0 %v2695
    %4070 = vmatpush1.msra.mxu0 %v2694
    %4071 = vmatprep.subr.mxu0 %v2691
    %4072 = vmatpush1.msra.mxu0 %v2690
    %4073 = vmatprep.subr.mxu0 %v2687
    %4074 = vmatpush1.msra.mxu0 %v2686
    %4075 = vmatprep.subr.mxu0 %v2683
    %4076 = vmatpush1.msra.mxu0 %v2682
    %4077 = vmatprep.subr.mxu0 %v2679
    %4078 = vmatpush1.msra.mxu0 %v2678
    %4079 = vmatprep.subr.mxu0 %v2675
    %4080 = vmatpush1.msra.mxu0 %v2674
    %4081 = vmatprep.subr.mxu0 %v2671
    %4082 = vmatpush1.msra.mxu0 %v2670
    %4083 = vmatprep.subr.mxu0 %v2667
    %4084 = vmatpush1.msra.mxu0 %v2666
    %4085 = vmatprep.subr.mxu0 %v2663
    %4086 = vmatpush1.msra.mxu0 %v2662
    %4087 = vmatprep.subr.mxu0 %v2659
    %4088 = vmatpush1.msra.mxu0 %v2658
    %4089 = vmatprep.subr.mxu0 %v2655
    %4090 = vmatpush1.msra.mxu0 %v2654
    %4091 = vmatprep.subr.mxu0 %v2651
    %4092 = vmatpush1.msra.mxu0 %v2650
    %4093 = vmatprep.subr.mxu0 %v2647
    %4094 = vmatpush1.msra.mxu0 %v2646
    %4095 = vmatprep.subr.mxu0 0.0
    %4096 = vmatpush2.msra.mxu0 0.0
    %4097 = vmatprep.subr.mxu0 0.0
    %4098 = vmatpush2.msra.mxu0 0.0
    %4099 = vmatprep.subr.mxu0 0.0
    %4100 = vmatpush2.msra.mxu0 0.0
    %4101 = vmatprep.subr.mxu0 0.0
    %4102 = vmatpush2.msra.mxu0 0.0
    %4103 = vmatprep.subr.mxu0 0.0
    %4104 = vmatpush2.msra.mxu0 0.0
    %4105 = vmatprep.subr.mxu0 0.0
    %4106 = vmatpush2.msra.mxu0 0.0
    %4107 = vmatprep.subr.mxu0 0.0
    %4108 = vmatpush2.msra.mxu0 0.0
    %4109 = vmatprep.subr.mxu0 0.0
    %4110 = vmatpush2.msra.mxu0 0.0
    %4111 = vmatprep.subr.mxu0 0.0
    %4112 = vmatpush2.msra.mxu0 0.0
    %4113 = vmatprep.subr.mxu0 0.0
    %4114 = vmatpush2.msra.mxu0 0.0
    %4115 = vmatprep.subr.mxu0 0.0
    %4116 = vmatpush2.msra.mxu0 0.0
    %4117 = vmatprep.subr.mxu0 0.0
    %4118 = vmatpush2.msra.mxu0 0.0
    %4119 = vmatprep.subr.mxu0 0.0
    %4120 = vmatpush2.msra.mxu0 0.0
    %4121 = vmatprep.subr.mxu0 0.0
    %4122 = vmatpush2.msra.mxu0 0.0
    %4123 = vmatprep.subr.mxu0 0.0
    %4124 = vmatpush2.msra.mxu0 0.0
    %4125 = vmatprep.subr.mxu0 0.0
    %4126 = vmatpush2.msra.mxu0 0.0
    %4127 = vmatprep.mubr.f32.mxu0 0.0
    %4128 = vmatmul.mubr.f32.gmra.mxu0 %v3991
    %v4129 = vpop.f32.mrf.mxu0
    %v4130 = vadd.f32 0.0, %v4129
    %v4131 = vpop.f32.mrf.mxu0
    %v4132 = vadd.f32 0.0, %v4131
    %4133 = vdwg.mxu0
    %v4135 = vsel %vm1105, %v2735, 0
    %4137 = vmatprep.subr.mxu0 0.0
    %4138 = vmatpush1.msra.mxu0 0.0
    %4139 = vmatprep.subr.mxu0 0.0
    %4140 = vmatpush1.msra.mxu0 0.0
    %4141 = vmatprep.subr.mxu0 0.0
    %4142 = vmatpush1.msra.mxu0 0.0
    %4143 = vmatprep.subr.mxu0 0.0
    %4144 = vmatpush1.msra.mxu0 0.0
    %4145 = vmatprep.subr.mxu0 0.0
    %4146 = vmatpush1.msra.mxu0 0.0
    %4147 = vmatprep.subr.mxu0 0.0
    %4148 = vmatpush1.msra.mxu0 0.0
    %4149 = vmatprep.subr.mxu0 0.0
    %4150 = vmatpush1.msra.mxu0 0.0
    %4151 = vmatprep.subr.mxu0 0.0
    %4152 = vmatpush1.msra.mxu0 0.0
    %4153 = vmatprep.subr.mxu0 0.0
    %4154 = vmatpush1.msra.mxu0 0.0
    %4155 = vmatprep.subr.mxu0 0.0
    %4156 = vmatpush1.msra.mxu0 0.0
    %4157 = vmatprep.subr.mxu0 0.0
    %4158 = vmatpush1.msra.mxu0 0.0
    %4159 = vmatprep.subr.mxu0 0.0
    %4160 = vmatpush1.msra.mxu0 0.0
    %4161 = vmatprep.subr.mxu0 0.0
    %4162 = vmatpush1.msra.mxu0 0.0
    %4163 = vmatprep.subr.mxu0 %v2885
    %4164 = vmatpush1.msra.mxu0 %v2882
    %4165 = vmatprep.subr.mxu0 %v2637
    %4166 = vmatpush1.msra.mxu0 %v2636
    %4167 = vmatprep.subr.mxu0 %v2633
    %4168 = vmatpush1.msra.mxu0 %v2632
    %4169 = vmatprep.subr.mxu0 0.0
    %4170 = vmatpush2.msra.mxu0 0.0
    %4171 = vmatprep.subr.mxu0 0.0
    %4172 = vmatpush2.msra.mxu0 0.0
    %4173 = vmatprep.subr.mxu0 0.0
    %4174 = vmatpush2.msra.mxu0 0.0
    %4175 = vmatprep.subr.mxu0 0.0
    %4176 = vmatpush2.msra.mxu0 0.0
    %4177 = vmatprep.subr.mxu0 0.0
    %4178 = vmatpush2.msra.mxu0 0.0
    %4179 = vmatprep.subr.mxu0 0.0
    %4180 = vmatpush2.msra.mxu0 0.0
    %4181 = vmatprep.subr.mxu0 0.0
    %4182 = vmatpush2.msra.mxu0 0.0
    %4183 = vmatprep.subr.mxu0 0.0
    %4184 = vmatpush2.msra.mxu0 0.0
    %4185 = vmatprep.subr.mxu0 0.0
    %4186 = vmatpush2.msra.mxu0 0.0
    %4187 = vmatprep.subr.mxu0 0.0
    %4188 = vmatpush2.msra.mxu0 0.0
    %4189 = vmatprep.subr.mxu0 0.0
    %4190 = vmatpush2.msra.mxu0 0.0
    %4191 = vmatprep.subr.mxu0 0.0
    %4192 = vmatpush2.msra.mxu0 0.0
    %4193 = vmatprep.subr.mxu0 0.0
    %4194 = vmatpush2.msra.mxu0 0.0
    %4195 = vmatprep.subr.mxu0 0.0
    %4196 = vmatpush2.msra.mxu0 0.0
    %4197 = vmatprep.subr.mxu0 0.0
    %4198 = vmatpush2.msra.mxu0 0.0
    %4199 = vmatprep.subr.mxu0 0.0
    %4200 = vmatpush2.msra.mxu0 0.0
    %4201 = vmatprep.mubr.f32.mxu0 0.0
    %4202 = vmatmul.mubr.f32.gmra.mxu0 %v4135
    %v4203 = vpop.f32.mrf.mxu0
    %v4204 = vadd.f32 %v4059, %v4203
    %v4205 = vpop.f32.mrf.mxu0
    %v4206 = vadd.f32 %v4061, %v4205
    %4207 = vdwg.mxu0
    %4208 = vmatprep.subr.mxu0 0.0
    %4209 = vmatpush1.msra.mxu0 0.0
    %4210 = vmatprep.subr.mxu0 0.0
    %4211 = vmatpush1.msra.mxu0 0.0
    %4212 = vmatprep.subr.mxu0 0.0
    %4213 = vmatpush1.msra.mxu0 0.0
    %4214 = vmatprep.subr.mxu0 0.0
    %4215 = vmatpush1.msra.mxu0 0.0
    %4216 = vmatprep.subr.mxu0 0.0
    %4217 = vmatpush1.msra.mxu0 0.0
    %4218 = vmatprep.subr.mxu0 0.0
    %4219 = vmatpush1.msra.mxu0 0.0
    %4220 = vmatprep.subr.mxu0 0.0
    %4221 = vmatpush1.msra.mxu0 0.0
    %4222 = vmatprep.subr.mxu0 0.0
    %4223 = vmatpush1.msra.mxu0 0.0
    %4224 = vmatprep.subr.mxu0 0.0
    %4225 = vmatpush1.msra.mxu0 0.0
    %4226 = vmatprep.subr.mxu0 0.0
    %4227 = vmatpush1.msra.mxu0 0.0
    %4228 = vmatprep.subr.mxu0 0.0
    %4229 = vmatpush1.msra.mxu0 0.0
    %4230 = vmatprep.subr.mxu0 0.0
    %4231 = vmatpush1.msra.mxu0 0.0
    %4232 = vmatprep.subr.mxu0 0.0
    %4233 = vmatpush1.msra.mxu0 0.0
    %4234 = vmatprep.subr.mxu0 %v2891
    %4235 = vmatpush1.msra.mxu0 %v2888
    %4236 = vmatprep.subr.mxu0 %v2639
    %4237 = vmatpush1.msra.mxu0 %v2638
    %4238 = vmatprep.subr.mxu0 %v2635
    %4239 = vmatpush1.msra.mxu0 %v2634
    %4240 = vmatprep.subr.mxu0 0.0
    %4241 = vmatpush2.msra.mxu0 0.0
    %4242 = vmatprep.subr.mxu0 0.0
    %4243 = vmatpush2.msra.mxu0 0.0
    %4244 = vmatprep.subr.mxu0 0.0
    %4245 = vmatpush2.msra.mxu0 0.0
    %4246 = vmatprep.subr.mxu0 0.0
    %4247 = vmatpush2.msra.mxu0 0.0
    %4248 = vmatprep.subr.mxu0 0.0
    %4249 = vmatpush2.msra.mxu0 0.0
    %4250 = vmatprep.subr.mxu0 0.0
    %4251 = vmatpush2.msra.mxu0 0.0
    %4252 = vmatprep.subr.mxu0 0.0
    %4253 = vmatpush2.msra.mxu0 0.0
    %4254 = vmatprep.subr.mxu0 0.0
    %4255 = vmatpush2.msra.mxu0 0.0
    %4256 = vmatprep.subr.mxu0 0.0
    %4257 = vmatpush2.msra.mxu0 0.0
    %4258 = vmatprep.subr.mxu0 0.0
    %4259 = vmatpush2.msra.mxu0 0.0
    %4260 = vmatprep.subr.mxu0 0.0
    %4261 = vmatpush2.msra.mxu0 0.0
    %4262 = vmatprep.subr.mxu0 0.0
    %4263 = vmatpush2.msra.mxu0 0.0
    %4264 = vmatprep.subr.mxu0 0.0
    %4265 = vmatpush2.msra.mxu0 0.0
    %4266 = vmatprep.subr.mxu0 0.0
    %4267 = vmatpush2.msra.mxu0 0.0
    %4268 = vmatprep.subr.mxu0 0.0
    %4269 = vmatpush2.msra.mxu0 0.0
    %4270 = vmatprep.subr.mxu0 0.0
    %4271 = vmatpush2.msra.mxu0 0.0
    %4272 = vmatprep.mubr.f32.mxu0 0.0
    %4273 = vmatmul.mubr.f32.gmra.mxu0 %v4135
    %v4274 = vpop.f32.mrf.mxu0
    %v4275 = vadd.f32 %v4130, %v4274
    %v4276 = vpop.f32.mrf.mxu0
    %v4277 = vadd.f32 %v4132, %v4276
    %4278 = vdwg.mxu0
    %v4279 = vxor.u32 %v4204, 2147483648
    %v4280 = vxor.u32 %v4206, 2147483648
    %v4281 = vxor.u32 %v4275, 2147483648
    %v4282 = vmul.f32 %v4279, 1.442695
    %v4283 = vpow.pop %v4282
    %v4284 = vmul.f32 %v4280, 1.442695
    %v4285 = vpow.pop %v4284
    %v4286 = vmul.f32 %v4281, 1.442695
    %v4287 = vpow.pop %v4286
    %v4288 = vadd.f32 %v4283, 1.0
    %v4289 = vadd.f32 %v4285, 1.0
    %v4290 = vadd.f32 %v4287, 1.0
    %v4291 = vrcp.pop %v4288
    %v4292 = vmul.f32 1.0, %v4291
    %v4293 = vrcp.pop %v4289
    %v4294 = vmul.f32 1.0, %v4293
    %v4295 = vrcp.pop %v4290
    %v4296 = vmul.f32 1.0, %v4295
    %v4297 = vmul.f32 %v4294, %v3989
    %v4298 = vtanh.pop %v4277
    %v4299 = vmul.f32 %v4292, %v4298
    %v4300 = vadd.f32 %v4297, %v4299
    %v4301 = vtanh.pop %v4300
    %v4302 = vmul.f32 %v4296, %v4301
    %v4303 = vld [vmem:[#allocation16] sm:$0xff]
    %v4304 = vld [vmem:[#allocation16 + $0x8] sm:$0xff]
    %v4305 = vld [vmem:[#allocation16 + $0x10] sm:$0x7]
    %v4306 = vld [vmem:[#allocation16 + $0x18] sm:$0x7]
    %v4307 = vld [vmem:[#allocation17] sm:$0xff]
    %v4308 = vld [vmem:[#allocation17 + $0x8] sm:$0xff]
    %v4309 = vld [vmem:[#allocation17 + $0x10] sm:$0xff]
    %v4310 = vld [vmem:[#allocation17 + $0x18] sm:$0xff]
    %v4311 = vld [vmem:[#allocation17 + $0x20] sm:$0xff]
    %v4312 = vld [vmem:[#allocation17 + $0x28] sm:$0xff]
    %v4313 = vld [vmem:[#allocation17 + $0x30] sm:$0xff]
    %v4314 = vld [vmem:[#allocation17 + $0x38] sm:$0xff]
    %v4315 = vld [vmem:[#allocation17 + $0x40] sm:$0xff]
    %v4316 = vld [vmem:[#allocation17 + $0x48] sm:$0xff]
    %v4317 = vld [vmem:[#allocation17 + $0x50] sm:$0xff]
    %v4318 = vld [vmem:[#allocation17 + $0x58] sm:$0xff]
    %v4319 = vld [vmem:[#allocation17 + $0x60] sm:$0xff]
    %v4320 = vld [vmem:[#allocation17 + $0x68] sm:$0xff]
    %v4321 = vld [vmem:[#allocation17 + $0x70] sm:$0xff]
    %v4322 = vld [vmem:[#allocation17 + $0x78] sm:$0xff]
    %4323 = vrot.lane.b32.xlu0 %v2713, 56
    %v4324 = vpop.permute.xlu0 %4323
    %vm4326 = vcmask 80896
    %v4327 = vsel %vm4326, %v4324, 1.0
    %4328 = vrot.lane.b32.xlu0 %v2713, 46
    %v4329 = vpop.permute.xlu0 %4328
    %v4331 = vsel %vm4326, %v4329, 1.0
    %4332 = vrot.lane.b32.xlu0 %v2713, 36
    %v4333 = vpop.permute.xlu0 %4332
    %v4335 = vsel %vm4326, %v4333, 1.0
    %4336 = vrot.lane.b32.xlu0 %v2713, 26
    %v4337 = vpop.permute.xlu0 %4336
    %v4339 = vsel %vm4326, %v4337, 1.0
    %4340 = vrot.lane.b32.xlu0 %v2713, 16
    %v4341 = vpop.permute.xlu0 %4340
    %v4343 = vsel %vm4326, %v4341, 1.0
    %vm4344 = vcmask 523264
    %v4346 = vsel %vm4344, 0.0, 0
    %4348 = vmatprep.subr.mxu0 0.0
    %4349 = vmatpush1.msra.mxu0 0.0
    %4350 = vmatprep.subr.mxu0 0.0
    %4351 = vmatpush1.msra.mxu0 0.0
    %4352 = vmatprep.subr.mxu0 0.0
    %4353 = vmatpush1.msra.mxu0 0.0
    %4354 = vmatprep.subr.mxu0 0.0
    %4355 = vmatpush1.msra.mxu0 0.0
    %4356 = vmatprep.subr.mxu0 0.0
    %4357 = vmatpush1.msra.mxu0 0.0
    %4358 = vmatprep.subr.mxu0 0.0
    %4359 = vmatpush1.msra.mxu0 0.0
    %4360 = vmatprep.subr.mxu0 0.0
    %4361 = vmatpush1.msra.mxu0 0.0
    %4362 = vmatprep.subr.mxu0 0.0
    %4363 = vmatpush1.msra.mxu0 0.0
    %4364 = vmatprep.subr.mxu0 %v4322
    %4365 = vmatpush1.msra.mxu0 %v4321
    %4366 = vmatprep.subr.mxu0 %v4320
    %4367 = vmatpush1.msra.mxu0 %v4319
    %4368 = vmatprep.subr.mxu0 %v4318
    %4369 = vmatpush1.msra.mxu0 %v4317
    %4370 = vmatprep.subr.mxu0 %v4316
    %4371 = vmatpush1.msra.mxu0 %v4315
    %4372 = vmatprep.subr.mxu0 %v4314
    %4373 = vmatpush1.msra.mxu0 %v4313
    %4374 = vmatprep.subr.mxu0 %v4312
    %4375 = vmatpush1.msra.mxu0 %v4311
    %4376 = vmatprep.subr.mxu0 %v4310
    %4377 = vmatpush1.msra.mxu0 %v4309
    %4378 = vmatprep.subr.mxu0 %v4308
    %4379 = vmatpush1.msra.mxu0 %v4307
    %4380 = vmatprep.subr.mxu0 0.0
    %4381 = vmatpush2.msra.mxu0 0.0
    %4382 = vmatprep.subr.mxu0 0.0
    %4383 = vmatpush2.msra.mxu0 0.0
    %4384 = vmatprep.subr.mxu0 0.0
    %4385 = vmatpush2.msra.mxu0 0.0
    %4386 = vmatprep.subr.mxu0 0.0
    %4387 = vmatpush2.msra.mxu0 0.0
    %4388 = vmatprep.subr.mxu0 0.0
    %4389 = vmatpush2.msra.mxu0 0.0
    %4390 = vmatprep.subr.mxu0 0.0
    %4391 = vmatpush2.msra.mxu0 0.0
    %4392 = vmatprep.subr.mxu0 0.0
    %4393 = vmatpush2.msra.mxu0 0.0
    %4394 = vmatprep.subr.mxu0 0.0
    %4395 = vmatpush2.msra.mxu0 0.0
    %4396 = vmatprep.subr.mxu0 0.0
    %4397 = vmatpush2.msra.mxu0 0.0
    %4398 = vmatprep.subr.mxu0 0.0
    %4399 = vmatpush2.msra.mxu0 0.0
    %4400 = vmatprep.subr.mxu0 0.0
    %4401 = vmatpush2.msra.mxu0 0.0
    %4402 = vmatprep.subr.mxu0 0.0
    %4403 = vmatpush2.msra.mxu0 0.0
    %4404 = vmatprep.subr.mxu0 0.0
    %4405 = vmatpush2.msra.mxu0 0.0
    %4406 = vmatprep.subr.mxu0 0.0
    %4407 = vmatpush2.msra.mxu0 0.0
    %4408 = vmatprep.subr.mxu0 0.0
    %4409 = vmatpush2.msra.mxu0 0.0
    %4410 = vmatprep.subr.mxu0 0.0
    %4411 = vmatpush2.msra.mxu0 0.0
    %4412 = vmatprep.mubr.f32.mxu0 0.0
    %4413 = vmatmul.mubr.f32.gmra.mxu0 %v4346
    %v4414 = vpop.f32.mrf.mxu0
    %v4415 = vadd.f32 0.0, %v4414
    %v4416 = vpop.f32.mrf.mxu0
    %v4417 = vadd.f32 0.0, %v4416
    %4418 = vdwg.mxu0
    %vm4419 = vcmask 89088
    %v4421 = vsel %vm4419, %v4327, 0
    %vm4423 = vcmask 1042432
    %v4425 = vsel %vm4423, %v4305, 0
    %v4428 = vsel %vm4423, %v4306, 0
    %4430 = vmatprep.subr.mxu0 0.0
    %4431 = vmatpush1.msra.mxu0 0.0
    %4432 = vmatprep.subr.mxu0 0.0
    %4433 = vmatpush1.msra.mxu0 0.0
    %4434 = vmatprep.subr.mxu0 0.0
    %4435 = vmatpush1.msra.mxu0 0.0
    %4436 = vmatprep.subr.mxu0 0.0
    %4437 = vmatpush1.msra.mxu0 0.0
    %4438 = vmatprep.subr.mxu0 0.0
    %4439 = vmatpush1.msra.mxu0 0.0
    %4440 = vmatprep.subr.mxu0 0.0
    %4441 = vmatpush1.msra.mxu0 0.0
    %4442 = vmatprep.subr.mxu0 0.0
    %4443 = vmatpush1.msra.mxu0 0.0
    %4444 = vmatprep.subr.mxu0 0.0
    %4445 = vmatpush1.msra.mxu0 0.0
    %4446 = vmatprep.subr.mxu0 0.0
    %4447 = vmatpush1.msra.mxu0 0.0
    %4448 = vmatprep.subr.mxu0 0.0
    %4449 = vmatpush1.msra.mxu0 0.0
    %4450 = vmatprep.subr.mxu0 0.0
    %4451 = vmatpush1.msra.mxu0 0.0
    %4452 = vmatprep.subr.mxu0 0.0
    %4453 = vmatpush1.msra.mxu0 0.0
    %4454 = vmatprep.subr.mxu0 0.0
    %4455 = vmatpush1.msra.mxu0 0.0
    %4456 = vmatprep.subr.mxu0 0.0
    %4457 = vmatpush1.msra.mxu0 0.0
    %4458 = vmatprep.subr.mxu0 %v4428
    %4459 = vmatpush1.msra.mxu0 %v4425
    %4460 = vmatprep.subr.mxu0 %v4304
    %4461 = vmatpush1.msra.mxu0 %v4303
    %4462 = vmatprep.subr.mxu0 0.0
    %4463 = vmatpush2.msra.mxu0 0.0
    %4464 = vmatprep.subr.mxu0 0.0
    %4465 = vmatpush2.msra.mxu0 0.0
    %4466 = vmatprep.subr.mxu0 0.0
    %4467 = vmatpush2.msra.mxu0 0.0
    %4468 = vmatprep.subr.mxu0 0.0
    %4469 = vmatpush2.msra.mxu0 0.0
    %4470 = vmatprep.subr.mxu0 0.0
    %4471 = vmatpush2.msra.mxu0 0.0
    %4472 = vmatprep.subr.mxu0 0.0
    %4473 = vmatpush2.msra.mxu0 0.0
    %4474 = vmatprep.subr.mxu0 0.0
    %4475 = vmatpush2.msra.mxu0 0.0
    %4476 = vmatprep.subr.mxu0 0.0
    %4477 = vmatpush2.msra.mxu0 0.0
    %4478 = vmatprep.subr.mxu0 0.0
    %4479 = vmatpush2.msra.mxu0 0.0
    %4480 = vmatprep.subr.mxu0 0.0
    %4481 = vmatpush2.msra.mxu0 0.0
    %4482 = vmatprep.subr.mxu0 0.0
    %4483 = vmatpush2.msra.mxu0 0.0
    %4484 = vmatprep.subr.mxu0 0.0
    %4485 = vmatpush2.msra.mxu0 0.0
    %4486 = vmatprep.subr.mxu0 0.0
    %4487 = vmatpush2.msra.mxu0 0.0
    %4488 = vmatprep.subr.mxu0 0.0
    %4489 = vmatpush2.msra.mxu0 0.0
    %4490 = vmatprep.subr.mxu0 0.0
    %4491 = vmatpush2.msra.mxu0 0.0
    %4492 = vmatprep.subr.mxu0 0.0
    %4493 = vmatpush2.msra.mxu0 0.0
    %4494 = vmatprep.mubr.f32.mxu0 0.0
    %4495 = vmatmul.mubr.f32.gmra.mxu0 %v4421
    %v4496 = vpop.f32.mrf.mxu0
    %v4497 = vadd.f32 %v4415, %v4496
    %v4498 = vpop.f32.mrf.mxu0
    %v4499 = vadd.f32 %v4417, %v4498
    %4500 = vdwg.mxu0
    %v4501 = vxor.u32 %v4497, 2147483648
    %v4502 = vxor.u32 %v4499, 2147483648
    %v4503 = vmul.f32 %v4501, 1.442695
    %v4504 = vpow.pop %v4503
    %v4505 = vmul.f32 %v4502, 1.442695
    %v4506 = vpow.pop %v4505
    %v4507 = vadd.f32 %v4504, 1.0
    %v4508 = vadd.f32 %v4506, 1.0
    %v4509 = vrcp.pop %v4507
    %v4510 = vmul.f32 1.0, %v4509
    %v4511 = vrcp.pop %v4508
    %v4512 = vmul.f32 1.0, %v4511
    %v4513 = vmul.f32 %v4510, 0.0
    %v4514 = vtanh.pop %v4499
    %4516 = vrot.lane.b32.xlu0 %v4514, 64
    %v4517 = vpop.permute.xlu0 %4516
    %v4519 = vmul.f32 %v4510, %v4517
    %4521 = vrot.lane.b32.xlu0 %v4519, 64
    %v4522 = vpop.permute.xlu0 %4521
    %v4524 = vadd.f32 %v4513, %v4522
    %v4525 = vtanh.pop %v4524
    %4527 = vrot.lane.b32.xlu0 %v4525, 64
    %v4528 = vpop.permute.xlu0 %4527
    %v4530 = vmul.f32 %v4512, %v4528
    %v4532 = vsel %vm4344, %v4530, 0
    %4534 = vmatprep.subr.mxu0 0.0
    %4535 = vmatpush1.msra.mxu0 0.0
    %4536 = vmatprep.subr.mxu0 0.0
    %4537 = vmatpush1.msra.mxu0 0.0
    %4538 = vmatprep.subr.mxu0 0.0
    %4539 = vmatpush1.msra.mxu0 0.0
    %4540 = vmatprep.subr.mxu0 0.0
    %4541 = vmatpush1.msra.mxu0 0.0
    %4542 = vmatprep.subr.mxu0 0.0
    %4543 = vmatpush1.msra.mxu0 0.0
    %4544 = vmatprep.subr.mxu0 0.0
    %4545 = vmatpush1.msra.mxu0 0.0
    %4546 = vmatprep.subr.mxu0 0.0
    %4547 = vmatpush1.msra.mxu0 0.0
    %4548 = vmatprep.subr.mxu0 0.0
    %4549 = vmatpush1.msra.mxu0 0.0
    %4550 = vmatprep.subr.mxu0 %v4322
    %4551 = vmatpush1.msra.mxu0 %v4321
    %4552 = vmatprep.subr.mxu0 %v4320
    %4553 = vmatpush1.msra.mxu0 %v4319
    %4554 = vmatprep.subr.mxu0 %v4318
    %4555 = vmatpush1.msra.mxu0 %v4317
    %4556 = vmatprep.subr.mxu0 %v4316
    %4557 = vmatpush1.msra.mxu0 %v4315
    %4558 = vmatprep.subr.mxu0 %v4314
    %4559 = vmatpush1.msra.mxu0 %v4313
    %4560 = vmatprep.subr.mxu0 %v4312
    %4561 = vmatpush1.msra.mxu0 %v4311
    %4562 = vmatprep.subr.mxu0 %v4310
    %4563 = vmatpush1.msra.mxu0 %v4309
    %4564 = vmatprep.subr.mxu0 %v4308
    %4565 = vmatpush1.msra.mxu0 %v4307
    %4566 = vmatprep.subr.mxu0 0.0
    %4567 = vmatpush2.msra.mxu0 0.0
    %4568 = vmatprep.subr.mxu0 0.0
    %4569 = vmatpush2.msra.mxu0 0.0
    %4570 = vmatprep.subr.mxu0 0.0
    %4571 = vmatpush2.msra.mxu0 0.0
    %4572 = vmatprep.subr.mxu0 0.0
    %4573 = vmatpush2.msra.mxu0 0.0
    %4574 = vmatprep.subr.mxu0 0.0
    %4575 = vmatpush2.msra.mxu0 0.0
    %4576 = vmatprep.subr.mxu0 0.0
    %4577 = vmatpush2.msra.mxu0 0.0
    %4578 = vmatprep.subr.mxu0 0.0
    %4579 = vmatpush2.msra.mxu0 0.0
    %4580 = vmatprep.subr.mxu0 0.0
    %4581 = vmatpush2.msra.mxu0 0.0
    %4582 = vmatprep.subr.mxu0 0.0
    %4583 = vmatpush2.msra.mxu0 0.0
    %4584 = vmatprep.subr.mxu0 0.0
    %4585 = vmatpush2.msra.mxu0 0.0
    %4586 = vmatprep.subr.mxu0 0.0
    %4587 = vmatpush2.msra.mxu0 0.0
    %4588 = vmatprep.subr.mxu0 0.0
    %4589 = vmatpush2.msra.mxu0 0.0
    %4590 = vmatprep.subr.mxu0 0.0
    %4591 = vmatpush2.msra.mxu0 0.0
    %4592 = vmatprep.subr.mxu0 0.0
    %4593 = vmatpush2.msra.mxu0 0.0
    %4594 = vmatprep.subr.mxu0 0.0
    %4595 = vmatpush2.msra.mxu0 0.0
    %4596 = vmatprep.subr.mxu0 0.0
    %4597 = vmatpush2.msra.mxu0 0.0
    %4598 = vmatprep.mubr.f32.mxu0 0.0
    %4599 = vmatmul.mubr.f32.gmra.mxu0 %v4532
    %v4600 = vpop.f32.mrf.mxu0
    %v4601 = vadd.f32 0.0, %v4600
    %v4602 = vpop.f32.mrf.mxu0
    %v4603 = vadd.f32 0.0, %v4602
    %4604 = vdwg.mxu0
    %v4606 = vsel %vm4419, %v4331, 0
    %4608 = vmatprep.subr.mxu0 0.0
    %4609 = vmatpush1.msra.mxu0 0.0
    %4610 = vmatprep.subr.mxu0 0.0
    %4611 = vmatpush1.msra.mxu0 0.0
    %4612 = vmatprep.subr.mxu0 0.0
    %4613 = vmatpush1.msra.mxu0 0.0
    %4614 = vmatprep.subr.mxu0 0.0
    %4615 = vmatpush1.msra.mxu0 0.0
    %4616 = vmatprep.subr.mxu0 0.0
    %4617 = vmatpush1.msra.mxu0 0.0
    %4618 = vmatprep.subr.mxu0 0.0
    %4619 = vmatpush1.msra.mxu0 0.0
    %4620 = vmatprep.subr.mxu0 0.0
    %4621 = vmatpush1.msra.mxu0 0.0
    %4622 = vmatprep.subr.mxu0 0.0
    %4623 = vmatpush1.msra.mxu0 0.0
    %4624 = vmatprep.subr.mxu0 0.0
    %4625 = vmatpush1.msra.mxu0 0.0
    %4626 = vmatprep.subr.mxu0 0.0
    %4627 = vmatpush1.msra.mxu0 0.0
    %4628 = vmatprep.subr.mxu0 0.0
    %4629 = vmatpush1.msra.mxu0 0.0
    %4630 = vmatprep.subr.mxu0 0.0
    %4631 = vmatpush1.msra.mxu0 0.0
    %4632 = vmatprep.subr.mxu0 0.0
    %4633 = vmatpush1.msra.mxu0 0.0
    %4634 = vmatprep.subr.mxu0 0.0
    %4635 = vmatpush1.msra.mxu0 0.0
    %4636 = vmatprep.subr.mxu0 %v4428
    %4637 = vmatpush1.msra.mxu0 %v4425
    %4638 = vmatprep.subr.mxu0 %v4304
    %4639 = vmatpush1.msra.mxu0 %v4303
    %4640 = vmatprep.subr.mxu0 0.0
    %4641 = vmatpush2.msra.mxu0 0.0
    %4642 = vmatprep.subr.mxu0 0.0
    %4643 = vmatpush2.msra.mxu0 0.0
    %4644 = vmatprep.subr.mxu0 0.0
    %4645 = vmatpush2.msra.mxu0 0.0
    %4646 = vmatprep.subr.mxu0 0.0
    %4647 = vmatpush2.msra.mxu0 0.0
    %4648 = vmatprep.subr.mxu0 0.0
    %4649 = vmatpush2.msra.mxu0 0.0
    %4650 = vmatprep.subr.mxu0 0.0
    %4651 = vmatpush2.msra.mxu0 0.0
    %4652 = vmatprep.subr.mxu0 0.0
    %4653 = vmatpush2.msra.mxu0 0.0
    %4654 = vmatprep.subr.mxu0 0.0
    %4655 = vmatpush2.msra.mxu0 0.0
    %4656 = vmatprep.subr.mxu0 0.0
    %4657 = vmatpush2.msra.mxu0 0.0
    %4658 = vmatprep.subr.mxu0 0.0
    %4659 = vmatpush2.msra.mxu0 0.0
    %4660 = vmatprep.subr.mxu0 0.0
    %4661 = vmatpush2.msra.mxu0 0.0
    %4662 = vmatprep.subr.mxu0 0.0
    %4663 = vmatpush2.msra.mxu0 0.0
    %4664 = vmatprep.subr.mxu0 0.0
    %4665 = vmatpush2.msra.mxu0 0.0
    %4666 = vmatprep.subr.mxu0 0.0
    %4667 = vmatpush2.msra.mxu0 0.0
    %4668 = vmatprep.subr.mxu0 0.0
    %4669 = vmatpush2.msra.mxu0 0.0
    %4670 = vmatprep.subr.mxu0 0.0
    %4671 = vmatpush2.msra.mxu0 0.0
    %4672 = vmatprep.mubr.f32.mxu0 0.0
    %4673 = vmatmul.mubr.f32.gmra.mxu0 %v4606
    %v4674 = vpop.f32.mrf.mxu0
    %v4675 = vadd.f32 %v4601, %v4674
    %v4676 = vpop.f32.mrf.mxu0
    %v4677 = vadd.f32 %v4603, %v4676
    %4678 = vdwg.mxu0
    %v4679 = vxor.u32 %v4675, 2147483648
    %v4680 = vxor.u32 %v4677, 2147483648
    %v4681 = vmul.f32 %v4679, 1.442695
    %v4682 = vpow.pop %v4681
    %v4683 = vmul.f32 %v4680, 1.442695
    %v4684 = vpow.pop %v4683
    %v4685 = vadd.f32 %v4682, 1.0
    %v4686 = vadd.f32 %v4684, 1.0
    %v4687 = vrcp.pop %v4685
    %v4688 = vmul.f32 1.0, %v4687
    %v4689 = vrcp.pop %v4686
    %v4690 = vmul.f32 1.0, %v4689
    %v4691 = vmul.f32 %v4688, %v4524
    %v4692 = vtanh.pop %v4677
    %4694 = vrot.lane.b32.xlu0 %v4692, 64
    %v4695 = vpop.permute.xlu0 %4694
    %v4697 = vmul.f32 %v4688, %v4695
    %4699 = vrot.lane.b32.xlu0 %v4697, 64
    %v4700 = vpop.permute.xlu0 %4699
    %v4702 = vadd.f32 %v4691, %v4700
    %v4703 = vtanh.pop %v4702
    %4705 = vrot.lane.b32.xlu0 %v4703, 64
    %v4706 = vpop.permute.xlu0 %4705
    %v4708 = vmul.f32 %v4690, %v4706
    %v4710 = vsel %vm4344, %v4708, 0
    %4712 = vmatprep.subr.mxu0 0.0
    %4713 = vmatpush1.msra.mxu0 0.0
    %4714 = vmatprep.subr.mxu0 0.0
    %4715 = vmatpush1.msra.mxu0 0.0
    %4716 = vmatprep.subr.mxu0 0.0
    %4717 = vmatpush1.msra.mxu0 0.0
    %4718 = vmatprep.subr.mxu0 0.0
    %4719 = vmatpush1.msra.mxu0 0.0
    %4720 = vmatprep.subr.mxu0 0.0
    %4721 = vmatpush1.msra.mxu0 0.0
    %4722 = vmatprep.subr.mxu0 0.0
    %4723 = vmatpush1.msra.mxu0 0.0
    %4724 = vmatprep.subr.mxu0 0.0
    %4725 = vmatpush1.msra.mxu0 0.0
    %4726 = vmatprep.subr.mxu0 0.0
    %4727 = vmatpush1.msra.mxu0 0.0
    %4728 = vmatprep.subr.mxu0 %v4322
    %4729 = vmatpush1.msra.mxu0 %v4321
    %4730 = vmatprep.subr.mxu0 %v4320
    %4731 = vmatpush1.msra.mxu0 %v4319
    %4732 = vmatprep.subr.mxu0 %v4318
    %4733 = vmatpush1.msra.mxu0 %v4317
    %4734 = vmatprep.subr.mxu0 %v4316
    %4735 = vmatpush1.msra.mxu0 %v4315
    %4736 = vmatprep.subr.mxu0 %v4314
    %4737 = vmatpush1.msra.mxu0 %v4313
    %4738 = vmatprep.subr.mxu0 %v4312
    %4739 = vmatpush1.msra.mxu0 %v4311
    %4740 = vmatprep.subr.mxu0 %v4310
    %4741 = vmatpush1.msra.mxu0 %v4309
    %4742 = vmatprep.subr.mxu0 %v4308
    %4743 = vmatpush1.msra.mxu0 %v4307
    %4744 = vmatprep.subr.mxu0 0.0
    %4745 = vmatpush2.msra.mxu0 0.0
    %4746 = vmatprep.subr.mxu0 0.0
    %4747 = vmatpush2.msra.mxu0 0.0
    %4748 = vmatprep.subr.mxu0 0.0
    %4749 = vmatpush2.msra.mxu0 0.0
    %4750 = vmatprep.subr.mxu0 0.0
    %4751 = vmatpush2.msra.mxu0 0.0
    %4752 = vmatprep.subr.mxu0 0.0
    %4753 = vmatpush2.msra.mxu0 0.0
    %4754 = vmatprep.subr.mxu0 0.0
    %4755 = vmatpush2.msra.mxu0 0.0
    %4756 = vmatprep.subr.mxu0 0.0
    %4757 = vmatpush2.msra.mxu0 0.0
    %4758 = vmatprep.subr.mxu0 0.0
    %4759 = vmatpush2.msra.mxu0 0.0
    %4760 = vmatprep.subr.mxu0 0.0
    %4761 = vmatpush2.msra.mxu0 0.0
    %4762 = vmatprep.subr.mxu0 0.0
    %4763 = vmatpush2.msra.mxu0 0.0
    %4764 = vmatprep.subr.mxu0 0.0
    %4765 = vmatpush2.msra.mxu0 0.0
    %4766 = vmatprep.subr.mxu0 0.0
    %4767 = vmatpush2.msra.mxu0 0.0
    %4768 = vmatprep.subr.mxu0 0.0
    %4769 = vmatpush2.msra.mxu0 0.0
    %4770 = vmatprep.subr.mxu0 0.0
    %4771 = vmatpush2.msra.mxu0 0.0
    %4772 = vmatprep.subr.mxu0 0.0
    %4773 = vmatpush2.msra.mxu0 0.0
    %4774 = vmatprep.subr.mxu0 0.0
    %4775 = vmatpush2.msra.mxu0 0.0
    %4776 = vmatprep.mubr.f32.mxu0 0.0
    %4777 = vmatmul.mubr.f32.gmra.mxu0 %v4710
    %v4778 = vpop.f32.mrf.mxu0
    %v4779 = vadd.f32 0.0, %v4778
    %v4780 = vpop.f32.mrf.mxu0
    %v4781 = vadd.f32 0.0, %v4780
    %4782 = vdwg.mxu0
    %v4784 = vsel %vm4419, %v4335, 0
    %4786 = vmatprep.subr.mxu0 0.0
    %4787 = vmatpush1.msra.mxu0 0.0
    %4788 = vmatprep.subr.mxu0 0.0
    %4789 = vmatpush1.msra.mxu0 0.0
    %4790 = vmatprep.subr.mxu0 0.0
    %4791 = vmatpush1.msra.mxu0 0.0
    %4792 = vmatprep.subr.mxu0 0.0
    %4793 = vmatpush1.msra.mxu0 0.0
    %4794 = vmatprep.subr.mxu0 0.0
    %4795 = vmatpush1.msra.mxu0 0.0
    %4796 = vmatprep.subr.mxu0 0.0
    %4797 = vmatpush1.msra.mxu0 0.0
    %4798 = vmatprep.subr.mxu0 0.0
    %4799 = vmatpush1.msra.mxu0 0.0
    %4800 = vmatprep.subr.mxu0 0.0
    %4801 = vmatpush1.msra.mxu0 0.0
    %4802 = vmatprep.subr.mxu0 0.0
    %4803 = vmatpush1.msra.mxu0 0.0
    %4804 = vmatprep.subr.mxu0 0.0
    %4805 = vmatpush1.msra.mxu0 0.0
    %4806 = vmatprep.subr.mxu0 0.0
    %4807 = vmatpush1.msra.mxu0 0.0
    %4808 = vmatprep.subr.mxu0 0.0
    %4809 = vmatpush1.msra.mxu0 0.0
    %4810 = vmatprep.subr.mxu0 0.0
    %4811 = vmatpush1.msra.mxu0 0.0
    %4812 = vmatprep.subr.mxu0 0.0
    %4813 = vmatpush1.msra.mxu0 0.0
    %4814 = vmatprep.subr.mxu0 %v4428
    %4815 = vmatpush1.msra.mxu0 %v4425
    %4816 = vmatprep.subr.mxu0 %v4304
    %4817 = vmatpush1.msra.mxu0 %v4303
    %4818 = vmatprep.subr.mxu0 0.0
    %4819 = vmatpush2.msra.mxu0 0.0
    %4820 = vmatprep.subr.mxu0 0.0
    %4821 = vmatpush2.msra.mxu0 0.0
    %4822 = vmatprep.subr.mxu0 0.0
    %4823 = vmatpush2.msra.mxu0 0.0
    %4824 = vmatprep.subr.mxu0 0.0
    %4825 = vmatpush2.msra.mxu0 0.0
    %4826 = vmatprep.subr.mxu0 0.0
    %4827 = vmatpush2.msra.mxu0 0.0
    %4828 = vmatprep.subr.mxu0 0.0
    %4829 = vmatpush2.msra.mxu0 0.0
    %4830 = vmatprep.subr.mxu0 0.0
    %4831 = vmatpush2.msra.mxu0 0.0
    %4832 = vmatprep.subr.mxu0 0.0
    %4833 = vmatpush2.msra.mxu0 0.0
    %4834 = vmatprep.subr.mxu0 0.0
    %4835 = vmatpush2.msra.mxu0 0.0
    %4836 = vmatprep.subr.mxu0 0.0
    %4837 = vmatpush2.msra.mxu0 0.0
    %4838 = vmatprep.subr.mxu0 0.0
    %4839 = vmatpush2.msra.mxu0 0.0
    %4840 = vmatprep.subr.mxu0 0.0
    %4841 = vmatpush2.msra.mxu0 0.0
    %4842 = vmatprep.subr.mxu0 0.0
    %4843 = vmatpush2.msra.mxu0 0.0
    %4844 = vmatprep.subr.mxu0 0.0
    %4845 = vmatpush2.msra.mxu0 0.0
    %4846 = vmatprep.subr.mxu0 0.0
    %4847 = vmatpush2.msra.mxu0 0.0
    %4848 = vmatprep.subr.mxu0 0.0
    %4849 = vmatpush2.msra.mxu0 0.0
    %4850 = vmatprep.mubr.f32.mxu0 0.0
    %4851 = vmatmul.mubr.f32.gmra.mxu0 %v4784
    %v4852 = vpop.f32.mrf.mxu0
    %v4853 = vadd.f32 %v4779, %v4852
    %v4854 = vpop.f32.mrf.mxu0
    %v4855 = vadd.f32 %v4781, %v4854
    %4856 = vdwg.mxu0
    %v4857 = vxor.u32 %v4853, 2147483648
    %v4858 = vxor.u32 %v4855, 2147483648
    %v4859 = vmul.f32 %v4857, 1.442695
    %v4860 = vpow.pop %v4859
    %v4861 = vmul.f32 %v4858, 1.442695
    %v4862 = vpow.pop %v4861
    %v4863 = vadd.f32 %v4860, 1.0
    %v4864 = vadd.f32 %v4862, 1.0
    %v4865 = vrcp.pop %v4863
    %v4866 = vmul.f32 1.0, %v4865
    %v4867 = vrcp.pop %v4864
    %v4868 = vmul.f32 1.0, %v4867
    %v4869 = vmul.f32 %v4866, %v4702
    %v4870 = vtanh.pop %v4855
    %4872 = vrot.lane.b32.xlu0 %v4870, 64
    %v4873 = vpop.permute.xlu0 %4872
    %v4875 = vmul.f32 %v4866, %v4873
    %4877 = vrot.lane.b32.xlu0 %v4875, 64
    %v4878 = vpop.permute.xlu0 %4877
    %v4880 = vadd.f32 %v4869, %v4878
    %v4881 = vtanh.pop %v4880
    %4883 = vrot.lane.b32.xlu0 %v4881, 64
    %v4884 = vpop.permute.xlu0 %4883
    %v4886 = vmul.f32 %v4868, %v4884
    %v4888 = vsel %vm4344, %v4886, 0
    %4890 = vmatprep.subr.mxu0 0.0
    %4891 = vmatpush1.msra.mxu0 0.0
    %4892 = vmatprep.subr.mxu0 0.0
    %4893 = vmatpush1.msra.mxu0 0.0
    %4894 = vmatprep.subr.mxu0 0.0
    %4895 = vmatpush1.msra.mxu0 0.0
    %4896 = vmatprep.subr.mxu0 0.0
    %4897 = vmatpush1.msra.mxu0 0.0
    %4898 = vmatprep.subr.mxu0 0.0
    %4899 = vmatpush1.msra.mxu0 0.0
    %4900 = vmatprep.subr.mxu0 0.0
    %4901 = vmatpush1.msra.mxu0 0.0
    %4902 = vmatprep.subr.mxu0 0.0
    %4903 = vmatpush1.msra.mxu0 0.0
    %4904 = vmatprep.subr.mxu0 0.0
    %4905 = vmatpush1.msra.mxu0 0.0
    %4906 = vmatprep.subr.mxu0 %v4322
    %4907 = vmatpush1.msra.mxu0 %v4321
    %4908 = vmatprep.subr.mxu0 %v4320
    %4909 = vmatpush1.msra.mxu0 %v4319
    %4910 = vmatprep.subr.mxu0 %v4318
    %4911 = vmatpush1.msra.mxu0 %v4317
    %4912 = vmatprep.subr.mxu0 %v4316
    %4913 = vmatpush1.msra.mxu0 %v4315
    %4914 = vmatprep.subr.mxu0 %v4314
    %4915 = vmatpush1.msra.mxu0 %v4313
    %4916 = vmatprep.subr.mxu0 %v4312
    %4917 = vmatpush1.msra.mxu0 %v4311
    %4918 = vmatprep.subr.mxu0 %v4310
    %4919 = vmatpush1.msra.mxu0 %v4309
    %4920 = vmatprep.subr.mxu0 %v4308
    %4921 = vmatpush1.msra.mxu0 %v4307
    %4922 = vmatprep.subr.mxu0 0.0
    %4923 = vmatpush2.msra.mxu0 0.0
    %4924 = vmatprep.subr.mxu0 0.0
    %4925 = vmatpush2.msra.mxu0 0.0
    %4926 = vmatprep.subr.mxu0 0.0
    %4927 = vmatpush2.msra.mxu0 0.0
    %4928 = vmatprep.subr.mxu0 0.0
    %4929 = vmatpush2.msra.mxu0 0.0
    %4930 = vmatprep.subr.mxu0 0.0
    %4931 = vmatpush2.msra.mxu0 0.0
    %4932 = vmatprep.subr.mxu0 0.0
    %4933 = vmatpush2.msra.mxu0 0.0
    %4934 = vmatprep.subr.mxu0 0.0
    %4935 = vmatpush2.msra.mxu0 0.0
    %4936 = vmatprep.subr.mxu0 0.0
    %4937 = vmatpush2.msra.mxu0 0.0
    %4938 = vmatprep.subr.mxu0 0.0
    %4939 = vmatpush2.msra.mxu0 0.0
    %4940 = vmatprep.subr.mxu0 0.0
    %4941 = vmatpush2.msra.mxu0 0.0
    %4942 = vmatprep.subr.mxu0 0.0
    %4943 = vmatpush2.msra.mxu0 0.0
    %4944 = vmatprep.subr.mxu0 0.0
    %4945 = vmatpush2.msra.mxu0 0.0
    %4946 = vmatprep.subr.mxu0 0.0
    %4947 = vmatpush2.msra.mxu0 0.0
    %4948 = vmatprep.subr.mxu0 0.0
    %4949 = vmatpush2.msra.mxu0 0.0
    %4950 = vmatprep.subr.mxu0 0.0
    %4951 = vmatpush2.msra.mxu0 0.0
    %4952 = vmatprep.subr.mxu0 0.0
    %4953 = vmatpush2.msra.mxu0 0.0
    %4954 = vmatprep.mubr.f32.mxu0 0.0
    %4955 = vmatmul.mubr.f32.gmra.mxu0 %v4888
    %v4956 = vpop.f32.mrf.mxu0
    %v4957 = vadd.f32 0.0, %v4956
    %v4958 = vpop.f32.mrf.mxu0
    %v4959 = vadd.f32 0.0, %v4958
    %4960 = vdwg.mxu0
    %v4962 = vsel %vm4419, %v4339, 0
    %4964 = vmatprep.subr.mxu0 0.0
    %4965 = vmatpush1.msra.mxu0 0.0
    %4966 = vmatprep.subr.mxu0 0.0
    %4967 = vmatpush1.msra.mxu0 0.0
    %4968 = vmatprep.subr.mxu0 0.0
    %4969 = vmatpush1.msra.mxu0 0.0
    %4970 = vmatprep.subr.mxu0 0.0
    %4971 = vmatpush1.msra.mxu0 0.0
    %4972 = vmatprep.subr.mxu0 0.0
    %4973 = vmatpush1.msra.mxu0 0.0
    %4974 = vmatprep.subr.mxu0 0.0
    %4975 = vmatpush1.msra.mxu0 0.0
    %4976 = vmatprep.subr.mxu0 0.0
    %4977 = vmatpush1.msra.mxu0 0.0
    %4978 = vmatprep.subr.mxu0 0.0
    %4979 = vmatpush1.msra.mxu0 0.0
    %4980 = vmatprep.subr.mxu0 0.0
    %4981 = vmatpush1.msra.mxu0 0.0
    %4982 = vmatprep.subr.mxu0 0.0
    %4983 = vmatpush1.msra.mxu0 0.0
    %4984 = vmatprep.subr.mxu0 0.0
    %4985 = vmatpush1.msra.mxu0 0.0
    %4986 = vmatprep.subr.mxu0 0.0
    %4987 = vmatpush1.msra.mxu0 0.0
    %4988 = vmatprep.subr.mxu0 0.0
    %4989 = vmatpush1.msra.mxu0 0.0
    %4990 = vmatprep.subr.mxu0 0.0
    %4991 = vmatpush1.msra.mxu0 0.0
    %4992 = vmatprep.subr.mxu0 %v4428
    %4993 = vmatpush1.msra.mxu0 %v4425
    %4994 = vmatprep.subr.mxu0 %v4304
    %4995 = vmatpush1.msra.mxu0 %v4303
    %4996 = vmatprep.subr.mxu0 0.0
    %4997 = vmatpush2.msra.mxu0 0.0
    %4998 = vmatprep.subr.mxu0 0.0
    %4999 = vmatpush2.msra.mxu0 0.0
    %5000 = vmatprep.subr.mxu0 0.0
    %5001 = vmatpush2.msra.mxu0 0.0
    %5002 = vmatprep.subr.mxu0 0.0
    %5003 = vmatpush2.msra.mxu0 0.0
    %5004 = vmatprep.subr.mxu0 0.0
    %5005 = vmatpush2.msra.mxu0 0.0
    %5006 = vmatprep.subr.mxu0 0.0
    %5007 = vmatpush2.msra.mxu0 0.0
    %5008 = vmatprep.subr.mxu0 0.0
    %5009 = vmatpush2.msra.mxu0 0.0
    %5010 = vmatprep.subr.mxu0 0.0
    %5011 = vmatpush2.msra.mxu0 0.0
    %5012 = vmatprep.subr.mxu0 0.0
    %5013 = vmatpush2.msra.mxu0 0.0
    %5014 = vmatprep.subr.mxu0 0.0
    %5015 = vmatpush2.msra.mxu0 0.0
    %5016 = vmatprep.subr.mxu0 0.0
    %5017 = vmatpush2.msra.mxu0 0.0
    %5018 = vmatprep.subr.mxu0 0.0
    %5019 = vmatpush2.msra.mxu0 0.0
    %5020 = vmatprep.subr.mxu0 0.0
    %5021 = vmatpush2.msra.mxu0 0.0
    %5022 = vmatprep.subr.mxu0 0.0
    %5023 = vmatpush2.msra.mxu0 0.0
    %5024 = vmatprep.subr.mxu0 0.0
    %5025 = vmatpush2.msra.mxu0 0.0
    %5026 = vmatprep.subr.mxu0 0.0
    %5027 = vmatpush2.msra.mxu0 0.0
    %5028 = vmatprep.mubr.f32.mxu0 0.0
    %5029 = vmatmul.mubr.f32.gmra.mxu0 %v4962
    %v5030 = vpop.f32.mrf.mxu0
    %v5031 = vadd.f32 %v4957, %v5030
    %v5032 = vpop.f32.mrf.mxu0
    %v5033 = vadd.f32 %v4959, %v5032
    %5034 = vdwg.mxu0
    %v5035 = vxor.u32 %v5031, 2147483648
    %v5036 = vxor.u32 %v5033, 2147483648
    %v5037 = vmul.f32 %v5035, 1.442695
    %v5038 = vpow.pop %v5037
    %v5039 = vmul.f32 %v5036, 1.442695
    %v5040 = vpow.pop %v5039
    %v5041 = vadd.f32 %v5038, 1.0
    %v5042 = vadd.f32 %v5040, 1.0
    %v5043 = vrcp.pop %v5041
    %v5044 = vmul.f32 1.0, %v5043
    %v5045 = vrcp.pop %v5042
    %v5046 = vmul.f32 1.0, %v5045
    %v5047 = vmul.f32 %v5044, %v4880
    %v5048 = vtanh.pop %v5033
    %5050 = vrot.lane.b32.xlu0 %v5048, 64
    %v5051 = vpop.permute.xlu0 %5050
    %v5053 = vmul.f32 %v5044, %v5051
    %5055 = vrot.lane.b32.xlu0 %v5053, 64
    %v5056 = vpop.permute.xlu0 %5055
    %v5058 = vadd.f32 %v5047, %v5056
    %v5059 = vtanh.pop %v5058
    %5061 = vrot.lane.b32.xlu0 %v5059, 64
    %v5062 = vpop.permute.xlu0 %5061
    %v5064 = vmul.f32 %v5046, %v5062
    %v5066 = vsel %vm4344, %v5064, 0
    %5068 = vmatprep.subr.mxu0 0.0
    %5069 = vmatpush1.msra.mxu0 0.0
    %5070 = vmatprep.subr.mxu0 0.0
    %5071 = vmatpush1.msra.mxu0 0.0
    %5072 = vmatprep.subr.mxu0 0.0
    %5073 = vmatpush1.msra.mxu0 0.0
    %5074 = vmatprep.subr.mxu0 0.0
    %5075 = vmatpush1.msra.mxu0 0.0
    %5076 = vmatprep.subr.mxu0 0.0
    %5077 = vmatpush1.msra.mxu0 0.0
    %5078 = vmatprep.subr.mxu0 0.0
    %5079 = vmatpush1.msra.mxu0 0.0
    %5080 = vmatprep.subr.mxu0 0.0
    %5081 = vmatpush1.msra.mxu0 0.0
    %5082 = vmatprep.subr.mxu0 0.0
    %5083 = vmatpush1.msra.mxu0 0.0
    %5084 = vmatprep.subr.mxu0 %v4322
    %5085 = vmatpush1.msra.mxu0 %v4321
    %5086 = vmatprep.subr.mxu0 %v4320
    %5087 = vmatpush1.msra.mxu0 %v4319
    %5088 = vmatprep.subr.mxu0 %v4318
    %5089 = vmatpush1.msra.mxu0 %v4317
    %5090 = vmatprep.subr.mxu0 %v4316
    %5091 = vmatpush1.msra.mxu0 %v4315
    %5092 = vmatprep.subr.mxu0 %v4314
    %5093 = vmatpush1.msra.mxu0 %v4313
    %5094 = vmatprep.subr.mxu0 %v4312
    %5095 = vmatpush1.msra.mxu0 %v4311
    %5096 = vmatprep.subr.mxu0 %v4310
    %5097 = vmatpush1.msra.mxu0 %v4309
    %5098 = vmatprep.subr.mxu0 %v4308
    %5099 = vmatpush1.msra.mxu0 %v4307
    %5100 = vmatprep.subr.mxu0 0.0
    %5101 = vmatpush2.msra.mxu0 0.0
    %5102 = vmatprep.subr.mxu0 0.0
    %5103 = vmatpush2.msra.mxu0 0.0
    %5104 = vmatprep.subr.mxu0 0.0
    %5105 = vmatpush2.msra.mxu0 0.0
    %5106 = vmatprep.subr.mxu0 0.0
    %5107 = vmatpush2.msra.mxu0 0.0
    %5108 = vmatprep.subr.mxu0 0.0
    %5109 = vmatpush2.msra.mxu0 0.0
    %5110 = vmatprep.subr.mxu0 0.0
    %5111 = vmatpush2.msra.mxu0 0.0
    %5112 = vmatprep.subr.mxu0 0.0
    %5113 = vmatpush2.msra.mxu0 0.0
    %5114 = vmatprep.subr.mxu0 0.0
    %5115 = vmatpush2.msra.mxu0 0.0
    %5116 = vmatprep.subr.mxu0 0.0
    %5117 = vmatpush2.msra.mxu0 0.0
    %5118 = vmatprep.subr.mxu0 0.0
    %5119 = vmatpush2.msra.mxu0 0.0
    %5120 = vmatprep.subr.mxu0 0.0
    %5121 = vmatpush2.msra.mxu0 0.0
    %5122 = vmatprep.subr.mxu0 0.0
    %5123 = vmatpush2.msra.mxu0 0.0
    %5124 = vmatprep.subr.mxu0 0.0
    %5125 = vmatpush2.msra.mxu0 0.0
    %5126 = vmatprep.subr.mxu0 0.0
    %5127 = vmatpush2.msra.mxu0 0.0
    %5128 = vmatprep.subr.mxu0 0.0
    %5129 = vmatpush2.msra.mxu0 0.0
    %5130 = vmatprep.subr.mxu0 0.0
    %5131 = vmatpush2.msra.mxu0 0.0
    %5132 = vmatprep.mubr.f32.mxu0 0.0
    %5133 = vmatmul.mubr.f32.gmra.mxu0 %v5066
    %v5134 = vpop.f32.mrf.mxu0
    %v5135 = vadd.f32 0.0, %v5134
    %v5136 = vpop.f32.mrf.mxu0
    %v5137 = vadd.f32 0.0, %v5136
    %5138 = vdwg.mxu0
    %v5140 = vsel %vm4419, %v4343, 0
    %5142 = vmatprep.subr.mxu0 0.0
    %5143 = vmatpush1.msra.mxu0 0.0
    %5144 = vmatprep.subr.mxu0 0.0
    %5145 = vmatpush1.msra.mxu0 0.0
    %5146 = vmatprep.subr.mxu0 0.0
    %5147 = vmatpush1.msra.mxu0 0.0
    %5148 = vmatprep.subr.mxu0 0.0
    %5149 = vmatpush1.msra.mxu0 0.0
    %5150 = vmatprep.subr.mxu0 0.0
    %5151 = vmatpush1.msra.mxu0 0.0
    %5152 = vmatprep.subr.mxu0 0.0
    %5153 = vmatpush1.msra.mxu0 0.0
    %5154 = vmatprep.subr.mxu0 0.0
    %5155 = vmatpush1.msra.mxu0 0.0
    %5156 = vmatprep.subr.mxu0 0.0
    %5157 = vmatpush1.msra.mxu0 0.0
    %5158 = vmatprep.subr.mxu0 0.0
    %5159 = vmatpush1.msra.mxu0 0.0
    %5160 = vmatprep.subr.mxu0 0.0
    %5161 = vmatpush1.msra.mxu0 0.0
    %5162 = vmatprep.subr.mxu0 0.0
    %5163 = vmatpush1.msra.mxu0 0.0
    %5164 = vmatprep.subr.mxu0 0.0
    %5165 = vmatpush1.msra.mxu0 0.0
    %5166 = vmatprep.subr.mxu0 0.0
    %5167 = vmatpush1.msra.mxu0 0.0
    %5168 = vmatprep.subr.mxu0 0.0
    %5169 = vmatpush1.msra.mxu0 0.0
    %5170 = vmatprep.subr.mxu0 %v4428
    %5171 = vmatpush1.msra.mxu0 %v4425
    %5172 = vmatprep.subr.mxu0 %v4304
    %5173 = vmatpush1.msra.mxu0 %v4303
    %5174 = vmatprep.subr.mxu0 0.0
    %5175 = vmatpush2.msra.mxu0 0.0
    %5176 = vmatprep.subr.mxu0 0.0
    %5177 = vmatpush2.msra.mxu0 0.0
    %5178 = vmatprep.subr.mxu0 0.0
    %5179 = vmatpush2.msra.mxu0 0.0
    %5180 = vmatprep.subr.mxu0 0.0
    %5181 = vmatpush2.msra.mxu0 0.0
    %5182 = vmatprep.subr.mxu0 0.0
    %5183 = vmatpush2.msra.mxu0 0.0
    %5184 = vmatprep.subr.mxu0 0.0
    %5185 = vmatpush2.msra.mxu0 0.0
    %5186 = vmatprep.subr.mxu0 0.0
    %5187 = vmatpush2.msra.mxu0 0.0
    %5188 = vmatprep.subr.mxu0 0.0
    %5189 = vmatpush2.msra.mxu0 0.0
    %5190 = vmatprep.subr.mxu0 0.0
    %5191 = vmatpush2.msra.mxu0 0.0
    %5192 = vmatprep.subr.mxu0 0.0
    %5193 = vmatpush2.msra.mxu0 0.0
    %5194 = vmatprep.subr.mxu0 0.0
    %5195 = vmatpush2.msra.mxu0 0.0
    %5196 = vmatprep.subr.mxu0 0.0
    %5197 = vmatpush2.msra.mxu0 0.0
    %5198 = vmatprep.subr.mxu0 0.0
    %5199 = vmatpush2.msra.mxu0 0.0
    %5200 = vmatprep.subr.mxu0 0.0
    %5201 = vmatpush2.msra.mxu0 0.0
    %5202 = vmatprep.subr.mxu0 0.0
    %5203 = vmatpush2.msra.mxu0 0.0
    %5204 = vmatprep.subr.mxu0 0.0
    %5205 = vmatpush2.msra.mxu0 0.0
    %5206 = vmatprep.mubr.f32.mxu0 0.0
    %5207 = vmatmul.mubr.f32.gmra.mxu0 %v5140
    %v5208 = vpop.f32.mrf.mxu0
    %v5209 = vadd.f32 %v5135, %v5208
    %v5210 = vpop.f32.mrf.mxu0
    %v5211 = vadd.f32 %v5137, %v5210
    %5212 = vdwg.mxu0
    %v5213 = vxor.u32 %v5209, 2147483648
    %v5214 = vxor.u32 %v5211, 2147483648
    %v5215 = vmul.f32 %v5213, 1.442695
    %v5216 = vpow.pop %v5215
    %v5217 = vmul.f32 %v5214, 1.442695
    %v5218 = vpow.pop %v5217
    %v5219 = vadd.f32 %v5216, 1.0
    %v5220 = vadd.f32 %v5218, 1.0
    %v5221 = vrcp.pop %v5219
    %v5222 = vmul.f32 1.0, %v5221
    %v5223 = vrcp.pop %v5220
    %v5224 = vmul.f32 1.0, %v5223
    %v5225 = vmul.f32 %v5222, %v5058
    %v5226 = vtanh.pop %v5211
    %5228 = vrot.lane.b32.xlu0 %v5226, 64
    %v5229 = vpop.permute.xlu0 %5228
    %v5231 = vmul.f32 %v5222, %v5229
    %5233 = vrot.lane.b32.xlu0 %v5231, 64
    %v5234 = vpop.permute.xlu0 %5233
    %v5236 = vadd.f32 %v5225, %v5234
    %v5237 = vtanh.pop %v5236
    %5239 = vrot.lane.b32.xlu0 %v5237, 64
    %v5240 = vpop.permute.xlu0 %5239
    %v5242 = vmul.f32 %v5224, %v5240
    %v5243 = vld [vmem:[#allocation19] sm:$0xff]
    %v5244 = vld [vmem:[#allocation19 + $0x8] sm:$0xff]
    %v5245 = vld [vmem:[#allocation19 + $0x10] sm:$0x7]
    %v5246 = vld [vmem:[#allocation19 + $0x18] sm:$0x7]
    %v5247 = vld [vmem:[#allocation20] sm:$0xff]
    %v5248 = vld [vmem:[#allocation20 + $0x8] sm:$0xff]
    %v5249 = vld [vmem:[#allocation20 + $0x10] sm:$0xff]
    %v5250 = vld [vmem:[#allocation20 + $0x18] sm:$0xff]
    %v5251 = vld [vmem:[#allocation20 + $0x20] sm:$0xff]
    %v5252 = vld [vmem:[#allocation20 + $0x28] sm:$0xff]
    %v5253 = vld [vmem:[#allocation20 + $0x30] sm:$0xff]
    %v5254 = vld [vmem:[#allocation20 + $0x38] sm:$0xff]
    %v5255 = vld [vmem:[#allocation20 + $0x40] sm:$0xff]
    %v5256 = vld [vmem:[#allocation20 + $0x48] sm:$0xff]
    %v5257 = vld [vmem:[#allocation20 + $0x50] sm:$0xff]
    %v5258 = vld [vmem:[#allocation20 + $0x58] sm:$0xff]
    %v5259 = vld [vmem:[#allocation20 + $0x60] sm:$0xff]
    %v5260 = vld [vmem:[#allocation20 + $0x68] sm:$0xff]
    %v5261 = vld [vmem:[#allocation20 + $0x70] sm:$0xff]
    %v5262 = vld [vmem:[#allocation20 + $0x78] sm:$0xff]
    %v5263 = vld [vmem:[#allocation2 + $0x8] sm:$0xff]
    %v5264 = vld [vmem:[#allocation2 + $0x10] sm:$0xff]
    %5267 = vrot.lane.b32.xlu0 %v5263, 6
    %v5268 = vpop.permute.xlu0 %5267
    %5269 = vrot.lane.b32.xlu0 %v5264, 6
    %v5270 = vpop.permute.xlu0 %5269
    %vm5271 = vcmask 48128
    %v5272 = vsel %vm5271, %v5268, %v5270
    %v5274 = vsel %vm4326, %v5272, 1.0
    %5275 = vrot.lane.b32.xlu0 %v5264, 124
    %v5276 = vpop.permute.xlu0 %5275
    %v5278 = vsel %vm4326, %v5276, 1.0
    %5279 = vrot.lane.b32.xlu0 %v5264, 114
    %v5280 = vpop.permute.xlu0 %5279
    %v5282 = vsel %vm4326, %v5280, 1.0
    %5283 = vrot.lane.b32.xlu0 %v5264, 104
    %v5284 = vpop.permute.xlu0 %5283
    %v5286 = vsel %vm4326, %v5284, 1.0
    %5287 = vrot.lane.b32.xlu0 %v5264, 94
    %v5288 = vpop.permute.xlu0 %5287
    %v5290 = vsel %vm4326, %v5288, 1.0
    %5291 = vrot.lane.b32.xlu0 %v5264, 84
    %v5292 = vpop.permute.xlu0 %5291
    %v5294 = vsel %vm4326, %v5292, 1.0
    %5295 = vmatprep.subr.mxu0 0.0
    %5296 = vmatpush1.msra.mxu0 0.0
    %5297 = vmatprep.subr.mxu0 0.0
    %5298 = vmatpush1.msra.mxu0 0.0
    %5299 = vmatprep.subr.mxu0 0.0
    %5300 = vmatpush1.msra.mxu0 0.0
    %5301 = vmatprep.subr.mxu0 0.0
    %5302 = vmatpush1.msra.mxu0 0.0
    %5303 = vmatprep.subr.mxu0 0.0
    %5304 = vmatpush1.msra.mxu0 0.0
    %5305 = vmatprep.subr.mxu0 0.0
    %5306 = vmatpush1.msra.mxu0 0.0
    %5307 = vmatprep.subr.mxu0 0.0
    %5308 = vmatpush1.msra.mxu0 0.0
    %5309 = vmatprep.subr.mxu0 0.0
    %5310 = vmatpush1.msra.mxu0 0.0
    %5311 = vmatprep.subr.mxu0 %v5262
    %5312 = vmatpush1.msra.mxu0 %v5261
    %5313 = vmatprep.subr.mxu0 %v5260
    %5314 = vmatpush1.msra.mxu0 %v5259
    %5315 = vmatprep.subr.mxu0 %v5258
    %5316 = vmatpush1.msra.mxu0 %v5257
    %5317 = vmatprep.subr.mxu0 %v5256
    %5318 = vmatpush1.msra.mxu0 %v5255
    %5319 = vmatprep.subr.mxu0 %v5254
    %5320 = vmatpush1.msra.mxu0 %v5253
    %5321 = vmatprep.subr.mxu0 %v5252
    %5322 = vmatpush1.msra.mxu0 %v5251
    %5323 = vmatprep.subr.mxu0 %v5250
    %5324 = vmatpush1.msra.mxu0 %v5249
    %5325 = vmatprep.subr.mxu0 %v5248
    %5326 = vmatpush1.msra.mxu0 %v5247
    %5327 = vmatprep.subr.mxu0 0.0
    %5328 = vmatpush2.msra.mxu0 0.0
    %5329 = vmatprep.subr.mxu0 0.0
    %5330 = vmatpush2.msra.mxu0 0.0
    %5331 = vmatprep.subr.mxu0 0.0
    %5332 = vmatpush2.msra.mxu0 0.0
    %5333 = vmatprep.subr.mxu0 0.0
    %5334 = vmatpush2.msra.mxu0 0.0
    %5335 = vmatprep.subr.mxu0 0.0
    %5336 = vmatpush2.msra.mxu0 0.0
    %5337 = vmatprep.subr.mxu0 0.0
    %5338 = vmatpush2.msra.mxu0 0.0
    %5339 = vmatprep.subr.mxu0 0.0
    %5340 = vmatpush2.msra.mxu0 0.0
    %5341 = vmatprep.subr.mxu0 0.0
    %5342 = vmatpush2.msra.mxu0 0.0
    %5343 = vmatprep.subr.mxu0 0.0
    %5344 = vmatpush2.msra.mxu0 0.0
    %5345 = vmatprep.subr.mxu0 0.0
    %5346 = vmatpush2.msra.mxu0 0.0
    %5347 = vmatprep.subr.mxu0 0.0
    %5348 = vmatpush2.msra.mxu0 0.0
    %5349 = vmatprep.subr.mxu0 0.0
    %5350 = vmatpush2.msra.mxu0 0.0
    %5351 = vmatprep.subr.mxu0 0.0
    %5352 = vmatpush2.msra.mxu0 0.0
    %5353 = vmatprep.subr.mxu0 0.0
    %5354 = vmatpush2.msra.mxu0 0.0
    %5355 = vmatprep.subr.mxu0 0.0
    %5356 = vmatpush2.msra.mxu0 0.0
    %5357 = vmatprep.subr.mxu0 0.0
    %5358 = vmatpush2.msra.mxu0 0.0
    %5359 = vmatprep.mubr.f32.mxu0 0.0
    %5360 = vmatmul.mubr.f32.gmra.mxu0 %v4346
    %v5361 = vpop.f32.mrf.mxu0
    %v5362 = vadd.f32 0.0, %v5361
    %v5363 = vpop.f32.mrf.mxu0
    %v5364 = vadd.f32 0.0, %v5363
    %5365 = vdwg.mxu0
    %v5367 = vsel %vm4419, %v5274, 0
    %v5370 = vsel %vm4423, %v5245, 0
    %v5373 = vsel %vm4423, %v5246, 0
    %5375 = vmatprep.subr.mxu0 0.0
    %5376 = vmatpush1.msra.mxu0 0.0
    %5377 = vmatprep.subr.mxu0 0.0
    %5378 = vmatpush1.msra.mxu0 0.0
    %5379 = vmatprep.subr.mxu0 0.0
    %5380 = vmatpush1.msra.mxu0 0.0
    %5381 = vmatprep.subr.mxu0 0.0
    %5382 = vmatpush1.msra.mxu0 0.0
    %5383 = vmatprep.subr.mxu0 0.0
    %5384 = vmatpush1.msra.mxu0 0.0
    %5385 = vmatprep.subr.mxu0 0.0
    %5386 = vmatpush1.msra.mxu0 0.0
    %5387 = vmatprep.subr.mxu0 0.0
    %5388 = vmatpush1.msra.mxu0 0.0
    %5389 = vmatprep.subr.mxu0 0.0
    %5390 = vmatpush1.msra.mxu0 0.0
    %5391 = vmatprep.subr.mxu0 0.0
    %5392 = vmatpush1.msra.mxu0 0.0
    %5393 = vmatprep.subr.mxu0 0.0
    %5394 = vmatpush1.msra.mxu0 0.0
    %5395 = vmatprep.subr.mxu0 0.0
    %5396 = vmatpush1.msra.mxu0 0.0
    %5397 = vmatprep.subr.mxu0 0.0
    %5398 = vmatpush1.msra.mxu0 0.0
    %5399 = vmatprep.subr.mxu0 0.0
    %5400 = vmatpush1.msra.mxu0 0.0
    %5401 = vmatprep.subr.mxu0 0.0
    %5402 = vmatpush1.msra.mxu0 0.0
    %5403 = vmatprep.subr.mxu0 %v5373
    %5404 = vmatpush1.msra.mxu0 %v5370
    %5405 = vmatprep.subr.mxu0 %v5244
    %5406 = vmatpush1.msra.mxu0 %v5243
    %5407 = vmatprep.subr.mxu0 0.0
    %5408 = vmatpush2.msra.mxu0 0.0
    %5409 = vmatprep.subr.mxu0 0.0
    %5410 = vmatpush2.msra.mxu0 0.0
    %5411 = vmatprep.subr.mxu0 0.0
    %5412 = vmatpush2.msra.mxu0 0.0
    %5413 = vmatprep.subr.mxu0 0.0
    %5414 = vmatpush2.msra.mxu0 0.0
    %5415 = vmatprep.subr.mxu0 0.0
    %5416 = vmatpush2.msra.mxu0 0.0
    %5417 = vmatprep.subr.mxu0 0.0
    %5418 = vmatpush2.msra.mxu0 0.0
    %5419 = vmatprep.subr.mxu0 0.0
    %5420 = vmatpush2.msra.mxu0 0.0
    %5421 = vmatprep.subr.mxu0 0.0
    %5422 = vmatpush2.msra.mxu0 0.0
    %5423 = vmatprep.subr.mxu0 0.0
    %5424 = vmatpush2.msra.mxu0 0.0
    %5425 = vmatprep.subr.mxu0 0.0
    %5426 = vmatpush2.msra.mxu0 0.0
    %5427 = vmatprep.subr.mxu0 0.0
    %5428 = vmatpush2.msra.mxu0 0.0
    %5429 = vmatprep.subr.mxu0 0.0
    %5430 = vmatpush2.msra.mxu0 0.0
    %5431 = vmatprep.subr.mxu0 0.0
    %5432 = vmatpush2.msra.mxu0 0.0
    %5433 = vmatprep.subr.mxu0 0.0
    %5434 = vmatpush2.msra.mxu0 0.0
    %5435 = vmatprep.subr.mxu0 0.0
    %5436 = vmatpush2.msra.mxu0 0.0
    %5437 = vmatprep.subr.mxu0 0.0
    %5438 = vmatpush2.msra.mxu0 0.0
    %5439 = vmatprep.mubr.f32.mxu0 0.0
    %5440 = vmatmul.mubr.f32.gmra.mxu0 %v5367
    %v5441 = vpop.f32.mrf.mxu0
    %v5442 = vadd.f32 %v5362, %v5441
    %v5443 = vpop.f32.mrf.mxu0
    %v5444 = vadd.f32 %v5364, %v5443
    %5445 = vdwg.mxu0
    %v5446 = vxor.u32 %v5442, 2147483648
    %v5447 = vxor.u32 %v5444, 2147483648
    %v5448 = vmul.f32 %v5446, 1.442695
    %v5449 = vpow.pop %v5448
    %v5450 = vmul.f32 %v5447, 1.442695
    %v5451 = vpow.pop %v5450
    %v5452 = vadd.f32 %v5449, 1.0
    %v5453 = vadd.f32 %v5451, 1.0
    %v5454 = vrcp.pop %v5452
    %v5455 = vmul.f32 1.0, %v5454
    %v5456 = vrcp.pop %v5453
    %v5457 = vmul.f32 1.0, %v5456
    %v5458 = vmul.f32 %v5455, 0.0
    %v5459 = vtanh.pop %v5444
    %5461 = vrot.lane.b32.xlu0 %v5459, 64
    %v5462 = vpop.permute.xlu0 %5461
    %v5464 = vmul.f32 %v5455, %v5462
    %5466 = vrot.lane.b32.xlu0 %v5464, 64
    %v5467 = vpop.permute.xlu0 %5466
    %v5469 = vadd.f32 %v5458, %v5467
    %v5470 = vtanh.pop %v5469
    %5472 = vrot.lane.b32.xlu0 %v5470, 64
    %v5473 = vpop.permute.xlu0 %5472
    %v5475 = vmul.f32 %v5457, %v5473
    %v5477 = vsel %vm4344, %v5475, 0
    %5479 = vmatprep.subr.mxu0 0.0
    %5480 = vmatpush1.msra.mxu0 0.0
    %5481 = vmatprep.subr.mxu0 0.0
    %5482 = vmatpush1.msra.mxu0 0.0
    %5483 = vmatprep.subr.mxu0 0.0
    %5484 = vmatpush1.msra.mxu0 0.0
    %5485 = vmatprep.subr.mxu0 0.0
    %5486 = vmatpush1.msra.mxu0 0.0
    %5487 = vmatprep.subr.mxu0 0.0
    %5488 = vmatpush1.msra.mxu0 0.0
    %5489 = vmatprep.subr.mxu0 0.0
    %5490 = vmatpush1.msra.mxu0 0.0
    %5491 = vmatprep.subr.mxu0 0.0
    %5492 = vmatpush1.msra.mxu0 0.0
    %5493 = vmatprep.subr.mxu0 0.0
    %5494 = vmatpush1.msra.mxu0 0.0
    %5495 = vmatprep.subr.mxu0 %v5262
    %5496 = vmatpush1.msra.mxu0 %v5261
    %5497 = vmatprep.subr.mxu0 %v5260
    %5498 = vmatpush1.msra.mxu0 %v5259
    %5499 = vmatprep.subr.mxu0 %v5258
    %5500 = vmatpush1.msra.mxu0 %v5257
    %5501 = vmatprep.subr.mxu0 %v5256
    %5502 = vmatpush1.msra.mxu0 %v5255
    %5503 = vmatprep.subr.mxu0 %v5254
    %5504 = vmatpush1.msra.mxu0 %v5253
    %5505 = vmatprep.subr.mxu0 %v5252
    %5506 = vmatpush1.msra.mxu0 %v5251
    %5507 = vmatprep.subr.mxu0 %v5250
    %5508 = vmatpush1.msra.mxu0 %v5249
    %5509 = vmatprep.subr.mxu0 %v5248
    %5510 = vmatpush1.msra.mxu0 %v5247
    %5511 = vmatprep.subr.mxu0 0.0
    %5512 = vmatpush2.msra.mxu0 0.0
    %5513 = vmatprep.subr.mxu0 0.0
    %5514 = vmatpush2.msra.mxu0 0.0
    %5515 = vmatprep.subr.mxu0 0.0
    %5516 = vmatpush2.msra.mxu0 0.0
    %5517 = vmatprep.subr.mxu0 0.0
    %5518 = vmatpush2.msra.mxu0 0.0
    %5519 = vmatprep.subr.mxu0 0.0
    %5520 = vmatpush2.msra.mxu0 0.0
    %5521 = vmatprep.subr.mxu0 0.0
    %5522 = vmatpush2.msra.mxu0 0.0
    %5523 = vmatprep.subr.mxu0 0.0
    %5524 = vmatpush2.msra.mxu0 0.0
    %5525 = vmatprep.subr.mxu0 0.0
    %5526 = vmatpush2.msra.mxu0 0.0
    %5527 = vmatprep.subr.mxu0 0.0
    %5528 = vmatpush2.msra.mxu0 0.0
    %5529 = vmatprep.subr.mxu0 0.0
    %5530 = vmatpush2.msra.mxu0 0.0
    %5531 = vmatprep.subr.mxu0 0.0
    %5532 = vmatpush2.msra.mxu0 0.0
    %5533 = vmatprep.subr.mxu0 0.0
    %5534 = vmatpush2.msra.mxu0 0.0
    %5535 = vmatprep.subr.mxu0 0.0
    %5536 = vmatpush2.msra.mxu0 0.0
    %5537 = vmatprep.subr.mxu0 0.0
    %5538 = vmatpush2.msra.mxu0 0.0
    %5539 = vmatprep.subr.mxu0 0.0
    %5540 = vmatpush2.msra.mxu0 0.0
    %5541 = vmatprep.subr.mxu0 0.0
    %5542 = vmatpush2.msra.mxu0 0.0
    %5543 = vmatprep.mubr.f32.mxu0 0.0
    %5544 = vmatmul.mubr.f32.gmra.mxu0 %v5477
    %v5545 = vpop.f32.mrf.mxu0
    %v5546 = vadd.f32 0.0, %v5545
    %v5547 = vpop.f32.mrf.mxu0
    %v5548 = vadd.f32 0.0, %v5547
    %5549 = vdwg.mxu0
    %v5551 = vsel %vm4419, %v5278, 0
    %5553 = vmatprep.subr.mxu0 0.0
    %5554 = vmatpush1.msra.mxu0 0.0
    %5555 = vmatprep.subr.mxu0 0.0
    %5556 = vmatpush1.msra.mxu0 0.0
    %5557 = vmatprep.subr.mxu0 0.0
    %5558 = vmatpush1.msra.mxu0 0.0
    %5559 = vmatprep.subr.mxu0 0.0
    %5560 = vmatpush1.msra.mxu0 0.0
    %5561 = vmatprep.subr.mxu0 0.0
    %5562 = vmatpush1.msra.mxu0 0.0
    %5563 = vmatprep.subr.mxu0 0.0
    %5564 = vmatpush1.msra.mxu0 0.0
    %5565 = vmatprep.subr.mxu0 0.0
    %5566 = vmatpush1.msra.mxu0 0.0
    %5567 = vmatprep.subr.mxu0 0.0
    %5568 = vmatpush1.msra.mxu0 0.0
    %5569 = vmatprep.subr.mxu0 0.0
    %5570 = vmatpush1.msra.mxu0 0.0
    %5571 = vmatprep.subr.mxu0 0.0
    %5572 = vmatpush1.msra.mxu0 0.0
    %5573 = vmatprep.subr.mxu0 0.0
    %5574 = vmatpush1.msra.mxu0 0.0
    %5575 = vmatprep.subr.mxu0 0.0
    %5576 = vmatpush1.msra.mxu0 0.0
    %5577 = vmatprep.subr.mxu0 0.0
    %5578 = vmatpush1.msra.mxu0 0.0
    %5579 = vmatprep.subr.mxu0 0.0
    %5580 = vmatpush1.msra.mxu0 0.0
    %5581 = vmatprep.subr.mxu0 %v5373
    %5582 = vmatpush1.msra.mxu0 %v5370
    %5583 = vmatprep.subr.mxu0 %v5244
    %5584 = vmatpush1.msra.mxu0 %v5243
    %5585 = vmatprep.subr.mxu0 0.0
    %5586 = vmatpush2.msra.mxu0 0.0
    %5587 = vmatprep.subr.mxu0 0.0
    %5588 = vmatpush2.msra.mxu0 0.0
    %5589 = vmatprep.subr.mxu0 0.0
    %5590 = vmatpush2.msra.mxu0 0.0
    %5591 = vmatprep.subr.mxu0 0.0
    %5592 = vmatpush2.msra.mxu0 0.0
    %5593 = vmatprep.subr.mxu0 0.0
    %5594 = vmatpush2.msra.mxu0 0.0
    %5595 = vmatprep.subr.mxu0 0.0
    %5596 = vmatpush2.msra.mxu0 0.0
    %5597 = vmatprep.subr.mxu0 0.0
    %5598 = vmatpush2.msra.mxu0 0.0
    %5599 = vmatprep.subr.mxu0 0.0
    %5600 = vmatpush2.msra.mxu0 0.0
    %5601 = vmatprep.subr.mxu0 0.0
    %5602 = vmatpush2.msra.mxu0 0.0
    %5603 = vmatprep.subr.mxu0 0.0
    %5604 = vmatpush2.msra.mxu0 0.0
    %5605 = vmatprep.subr.mxu0 0.0
    %5606 = vmatpush2.msra.mxu0 0.0
    %5607 = vmatprep.subr.mxu0 0.0
    %5608 = vmatpush2.msra.mxu0 0.0
    %5609 = vmatprep.subr.mxu0 0.0
    %5610 = vmatpush2.msra.mxu0 0.0
    %5611 = vmatprep.subr.mxu0 0.0
    %5612 = vmatpush2.msra.mxu0 0.0
    %5613 = vmatprep.subr.mxu0 0.0
    %5614 = vmatpush2.msra.mxu0 0.0
    %5615 = vmatprep.subr.mxu0 0.0
    %5616 = vmatpush2.msra.mxu0 0.0
    %5617 = vmatprep.mubr.f32.mxu0 0.0
    %5618 = vmatmul.mubr.f32.gmra.mxu0 %v5551
    %v5619 = vpop.f32.mrf.mxu0
    %v5620 = vadd.f32 %v5546, %v5619
    %v5621 = vpop.f32.mrf.mxu0
    %v5622 = vadd.f32 %v5548, %v5621
    %5623 = vdwg.mxu0
    %v5624 = vxor.u32 %v5620, 2147483648
    %v5625 = vxor.u32 %v5622, 2147483648
    %v5626 = vmul.f32 %v5624, 1.442695
    %v5627 = vpow.pop %v5626
    %v5628 = vmul.f32 %v5625, 1.442695
    %v5629 = vpow.pop %v5628
    %v5630 = vadd.f32 %v5627, 1.0
    %v5631 = vadd.f32 %v5629, 1.0
    %v5632 = vrcp.pop %v5630
    %v5633 = vmul.f32 1.0, %v5632
    %v5634 = vrcp.pop %v5631
    %v5635 = vmul.f32 1.0, %v5634
    %v5636 = vmul.f32 %v5633, %v5469
    %v5637 = vtanh.pop %v5622
    %5639 = vrot.lane.b32.xlu0 %v5637, 64
    %v5640 = vpop.permute.xlu0 %5639
    %v5642 = vmul.f32 %v5633, %v5640
    %5644 = vrot.lane.b32.xlu0 %v5642, 64
    %v5645 = vpop.permute.xlu0 %5644
    %v5647 = vadd.f32 %v5636, %v5645
    %v5648 = vtanh.pop %v5647
    %5650 = vrot.lane.b32.xlu0 %v5648, 64
    %v5651 = vpop.permute.xlu0 %5650
    %v5653 = vmul.f32 %v5635, %v5651
    %v5655 = vsel %vm4344, %v5653, 0
    %5657 = vmatprep.subr.mxu0 0.0
    %5658 = vmatpush1.msra.mxu0 0.0
    %5659 = vmatprep.subr.mxu0 0.0
    %5660 = vmatpush1.msra.mxu0 0.0
    %5661 = vmatprep.subr.mxu0 0.0
    %5662 = vmatpush1.msra.mxu0 0.0
    %5663 = vmatprep.subr.mxu0 0.0
    %5664 = vmatpush1.msra.mxu0 0.0
    %5665 = vmatprep.subr.mxu0 0.0
    %5666 = vmatpush1.msra.mxu0 0.0
    %5667 = vmatprep.subr.mxu0 0.0
    %5668 = vmatpush1.msra.mxu0 0.0
    %5669 = vmatprep.subr.mxu0 0.0
    %5670 = vmatpush1.msra.mxu0 0.0
    %5671 = vmatprep.subr.mxu0 0.0
    %5672 = vmatpush1.msra.mxu0 0.0
    %5673 = vmatprep.subr.mxu0 %v5262
    %5674 = vmatpush1.msra.mxu0 %v5261
    %5675 = vmatprep.subr.mxu0 %v5260
    %5676 = vmatpush1.msra.mxu0 %v5259
    %5677 = vmatprep.subr.mxu0 %v5258
    %5678 = vmatpush1.msra.mxu0 %v5257
    %5679 = vmatprep.subr.mxu0 %v5256
    %5680 = vmatpush1.msra.mxu0 %v5255
    %5681 = vmatprep.subr.mxu0 %v5254
    %5682 = vmatpush1.msra.mxu0 %v5253
    %5683 = vmatprep.subr.mxu0 %v5252
    %5684 = vmatpush1.msra.mxu0 %v5251
    %5685 = vmatprep.subr.mxu0 %v5250
    %5686 = vmatpush1.msra.mxu0 %v5249
    %5687 = vmatprep.subr.mxu0 %v5248
    %5688 = vmatpush1.msra.mxu0 %v5247
    %5689 = vmatprep.subr.mxu0 0.0
    %5690 = vmatpush2.msra.mxu0 0.0
    %5691 = vmatprep.subr.mxu0 0.0
    %5692 = vmatpush2.msra.mxu0 0.0
    %5693 = vmatprep.subr.mxu0 0.0
    %5694 = vmatpush2.msra.mxu0 0.0
    %5695 = vmatprep.subr.mxu0 0.0
    %5696 = vmatpush2.msra.mxu0 0.0
    %5697 = vmatprep.subr.mxu0 0.0
    %5698 = vmatpush2.msra.mxu0 0.0
    %5699 = vmatprep.subr.mxu0 0.0
    %5700 = vmatpush2.msra.mxu0 0.0
    %5701 = vmatprep.subr.mxu0 0.0
    %5702 = vmatpush2.msra.mxu0 0.0
    %5703 = vmatprep.subr.mxu0 0.0
    %5704 = vmatpush2.msra.mxu0 0.0
    %5705 = vmatprep.subr.mxu0 0.0
    %5706 = vmatpush2.msra.mxu0 0.0
    %5707 = vmatprep.subr.mxu0 0.0
    %5708 = vmatpush2.msra.mxu0 0.0
    %5709 = vmatprep.subr.mxu0 0.0
    %5710 = vmatpush2.msra.mxu0 0.0
    %5711 = vmatprep.subr.mxu0 0.0
    %5712 = vmatpush2.msra.mxu0 0.0
    %5713 = vmatprep.subr.mxu0 0.0
    %5714 = vmatpush2.msra.mxu0 0.0
    %5715 = vmatprep.subr.mxu0 0.0
    %5716 = vmatpush2.msra.mxu0 0.0
    %5717 = vmatprep.subr.mxu0 0.0
    %5718 = vmatpush2.msra.mxu0 0.0
    %5719 = vmatprep.subr.mxu0 0.0
    %5720 = vmatpush2.msra.mxu0 0.0
    %5721 = vmatprep.mubr.f32.mxu0 0.0
    %5722 = vmatmul.mubr.f32.gmra.mxu0 %v5655
    %v5723 = vpop.f32.mrf.mxu0
    %v5724 = vadd.f32 0.0, %v5723
    %v5725 = vpop.f32.mrf.mxu0
    %v5726 = vadd.f32 0.0, %v5725
    %5727 = vdwg.mxu0
    %v5729 = vsel %vm4419, %v5282, 0
    %5731 = vmatprep.subr.mxu0 0.0
    %5732 = vmatpush1.msra.mxu0 0.0
    %5733 = vmatprep.subr.mxu0 0.0
    %5734 = vmatpush1.msra.mxu0 0.0
    %5735 = vmatprep.subr.mxu0 0.0
    %5736 = vmatpush1.msra.mxu0 0.0
    %5737 = vmatprep.subr.mxu0 0.0
    %5738 = vmatpush1.msra.mxu0 0.0
    %5739 = vmatprep.subr.mxu0 0.0
    %5740 = vmatpush1.msra.mxu0 0.0
    %5741 = vmatprep.subr.mxu0 0.0
    %5742 = vmatpush1.msra.mxu0 0.0
    %5743 = vmatprep.subr.mxu0 0.0
    %5744 = vmatpush1.msra.mxu0 0.0
    %5745 = vmatprep.subr.mxu0 0.0
    %5746 = vmatpush1.msra.mxu0 0.0
    %5747 = vmatprep.subr.mxu0 0.0
    %5748 = vmatpush1.msra.mxu0 0.0
    %5749 = vmatprep.subr.mxu0 0.0
    %5750 = vmatpush1.msra.mxu0 0.0
    %5751 = vmatprep.subr.mxu0 0.0
    %5752 = vmatpush1.msra.mxu0 0.0
    %5753 = vmatprep.subr.mxu0 0.0
    %5754 = vmatpush1.msra.mxu0 0.0
    %5755 = vmatprep.subr.mxu0 0.0
    %5756 = vmatpush1.msra.mxu0 0.0
    %5757 = vmatprep.subr.mxu0 0.0
    %5758 = vmatpush1.msra.mxu0 0.0
    %5759 = vmatprep.subr.mxu0 %v5373
    %5760 = vmatpush1.msra.mxu0 %v5370
    %5761 = vmatprep.subr.mxu0 %v5244
    %5762 = vmatpush1.msra.mxu0 %v5243
    %5763 = vmatprep.subr.mxu0 0.0
    %5764 = vmatpush2.msra.mxu0 0.0
    %5765 = vmatprep.subr.mxu0 0.0
    %5766 = vmatpush2.msra.mxu0 0.0
    %5767 = vmatprep.subr.mxu0 0.0
    %5768 = vmatpush2.msra.mxu0 0.0
    %5769 = vmatprep.subr.mxu0 0.0
    %5770 = vmatpush2.msra.mxu0 0.0
    %5771 = vmatprep.subr.mxu0 0.0
    %5772 = vmatpush2.msra.mxu0 0.0
    %5773 = vmatprep.subr.mxu0 0.0
    %5774 = vmatpush2.msra.mxu0 0.0
    %5775 = vmatprep.subr.mxu0 0.0
    %5776 = vmatpush2.msra.mxu0 0.0
    %5777 = vmatprep.subr.mxu0 0.0
    %5778 = vmatpush2.msra.mxu0 0.0
    %5779 = vmatprep.subr.mxu0 0.0
    %5780 = vmatpush2.msra.mxu0 0.0
    %5781 = vmatprep.subr.mxu0 0.0
    %5782 = vmatpush2.msra.mxu0 0.0
    %5783 = vmatprep.subr.mxu0 0.0
    %5784 = vmatpush2.msra.mxu0 0.0
    %5785 = vmatprep.subr.mxu0 0.0
    %5786 = vmatpush2.msra.mxu0 0.0
    %5787 = vmatprep.subr.mxu0 0.0
    %5788 = vmatpush2.msra.mxu0 0.0
    %5789 = vmatprep.subr.mxu0 0.0
    %5790 = vmatpush2.msra.mxu0 0.0
    %5791 = vmatprep.subr.mxu0 0.0
    %5792 = vmatpush2.msra.mxu0 0.0
    %5793 = vmatprep.subr.mxu0 0.0
    %5794 = vmatpush2.msra.mxu0 0.0
    %5795 = vmatprep.mubr.f32.mxu0 0.0
    %5796 = vmatmul.mubr.f32.gmra.mxu0 %v5729
    %v5797 = vpop.f32.mrf.mxu0
    %v5798 = vadd.f32 %v5724, %v5797
    %v5799 = vpop.f32.mrf.mxu0
    %v5800 = vadd.f32 %v5726, %v5799
    %5801 = vdwg.mxu0
    %v5802 = vxor.u32 %v5798, 2147483648
    %v5803 = vxor.u32 %v5800, 2147483648
    %v5804 = vmul.f32 %v5802, 1.442695
    %v5805 = vpow.pop %v5804
    %v5806 = vmul.f32 %v5803, 1.442695
    %v5807 = vpow.pop %v5806
    %v5808 = vadd.f32 %v5805, 1.0
    %v5809 = vadd.f32 %v5807, 1.0
    %v5810 = vrcp.pop %v5808
    %v5811 = vmul.f32 1.0, %v5810
    %v5812 = vrcp.pop %v5809
    %v5813 = vmul.f32 1.0, %v5812
    %v5814 = vmul.f32 %v5811, %v5647
    %v5815 = vtanh.pop %v5800
    %5817 = vrot.lane.b32.xlu0 %v5815, 64
    %v5818 = vpop.permute.xlu0 %5817
    %v5820 = vmul.f32 %v5811, %v5818
    %5822 = vrot.lane.b32.xlu0 %v5820, 64
    %v5823 = vpop.permute.xlu0 %5822
    %v5825 = vadd.f32 %v5814, %v5823
    %v5826 = vtanh.pop %v5825
    %5828 = vrot.lane.b32.xlu0 %v5826, 64
    %v5829 = vpop.permute.xlu0 %5828
    %v5831 = vmul.f32 %v5813, %v5829
    %v5833 = vsel %vm4344, %v5831, 0
    %5835 = vmatprep.subr.mxu0 0.0
    %5836 = vmatpush1.msra.mxu0 0.0
    %5837 = vmatprep.subr.mxu0 0.0
    %5838 = vmatpush1.msra.mxu0 0.0
    %5839 = vmatprep.subr.mxu0 0.0
    %5840 = vmatpush1.msra.mxu0 0.0
    %5841 = vmatprep.subr.mxu0 0.0
    %5842 = vmatpush1.msra.mxu0 0.0
    %5843 = vmatprep.subr.mxu0 0.0
    %5844 = vmatpush1.msra.mxu0 0.0
    %5845 = vmatprep.subr.mxu0 0.0
    %5846 = vmatpush1.msra.mxu0 0.0
    %5847 = vmatprep.subr.mxu0 0.0
    %5848 = vmatpush1.msra.mxu0 0.0
    %5849 = vmatprep.subr.mxu0 0.0
    %5850 = vmatpush1.msra.mxu0 0.0
    %5851 = vmatprep.subr.mxu0 %v5262
    %5852 = vmatpush1.msra.mxu0 %v5261
    %5853 = vmatprep.subr.mxu0 %v5260
    %5854 = vmatpush1.msra.mxu0 %v5259
    %5855 = vmatprep.subr.mxu0 %v5258
    %5856 = vmatpush1.msra.mxu0 %v5257
    %5857 = vmatprep.subr.mxu0 %v5256
    %5858 = vmatpush1.msra.mxu0 %v5255
    %5859 = vmatprep.subr.mxu0 %v5254
    %5860 = vmatpush1.msra.mxu0 %v5253
    %5861 = vmatprep.subr.mxu0 %v5252
    %5862 = vmatpush1.msra.mxu0 %v5251
    %5863 = vmatprep.subr.mxu0 %v5250
    %5864 = vmatpush1.msra.mxu0 %v5249
    %5865 = vmatprep.subr.mxu0 %v5248
    %5866 = vmatpush1.msra.mxu0 %v5247
    %5867 = vmatprep.subr.mxu0 0.0
    %5868 = vmatpush2.msra.mxu0 0.0
    %5869 = vmatprep.subr.mxu0 0.0
    %5870 = vmatpush2.msra.mxu0 0.0
    %5871 = vmatprep.subr.mxu0 0.0
    %5872 = vmatpush2.msra.mxu0 0.0
    %5873 = vmatprep.subr.mxu0 0.0
    %5874 = vmatpush2.msra.mxu0 0.0
    %5875 = vmatprep.subr.mxu0 0.0
    %5876 = vmatpush2.msra.mxu0 0.0
    %5877 = vmatprep.subr.mxu0 0.0
    %5878 = vmatpush2.msra.mxu0 0.0
    %5879 = vmatprep.subr.mxu0 0.0
    %5880 = vmatpush2.msra.mxu0 0.0
    %5881 = vmatprep.subr.mxu0 0.0
    %5882 = vmatpush2.msra.mxu0 0.0
    %5883 = vmatprep.subr.mxu0 0.0
    %5884 = vmatpush2.msra.mxu0 0.0
    %5885 = vmatprep.subr.mxu0 0.0
    %5886 = vmatpush2.msra.mxu0 0.0
    %5887 = vmatprep.subr.mxu0 0.0
    %5888 = vmatpush2.msra.mxu0 0.0
    %5889 = vmatprep.subr.mxu0 0.0
    %5890 = vmatpush2.msra.mxu0 0.0
    %5891 = vmatprep.subr.mxu0 0.0
    %5892 = vmatpush2.msra.mxu0 0.0
    %5893 = vmatprep.subr.mxu0 0.0
    %5894 = vmatpush2.msra.mxu0 0.0
    %5895 = vmatprep.subr.mxu0 0.0
    %5896 = vmatpush2.msra.mxu0 0.0
    %5897 = vmatprep.subr.mxu0 0.0
    %5898 = vmatpush2.msra.mxu0 0.0
    %5899 = vmatprep.mubr.f32.mxu0 0.0
    %5900 = vmatmul.mubr.f32.gmra.mxu0 %v5833
    %v5901 = vpop.f32.mrf.mxu0
    %v5902 = vadd.f32 0.0, %v5901
    %v5903 = vpop.f32.mrf.mxu0
    %v5904 = vadd.f32 0.0, %v5903
    %5905 = vdwg.mxu0
    %v5907 = vsel %vm4419, %v5286, 0
    %5909 = vmatprep.subr.mxu0 0.0
    %5910 = vmatpush1.msra.mxu0 0.0
    %5911 = vmatprep.subr.mxu0 0.0
    %5912 = vmatpush1.msra.mxu0 0.0
    %5913 = vmatprep.subr.mxu0 0.0
    %5914 = vmatpush1.msra.mxu0 0.0
    %5915 = vmatprep.subr.mxu0 0.0
    %5916 = vmatpush1.msra.mxu0 0.0
    %5917 = vmatprep.subr.mxu0 0.0
    %5918 = vmatpush1.msra.mxu0 0.0
    %5919 = vmatprep.subr.mxu0 0.0
    %5920 = vmatpush1.msra.mxu0 0.0
    %5921 = vmatprep.subr.mxu0 0.0
    %5922 = vmatpush1.msra.mxu0 0.0
    %5923 = vmatprep.subr.mxu0 0.0
    %5924 = vmatpush1.msra.mxu0 0.0
    %5925 = vmatprep.subr.mxu0 0.0
    %5926 = vmatpush1.msra.mxu0 0.0
    %5927 = vmatprep.subr.mxu0 0.0
    %5928 = vmatpush1.msra.mxu0 0.0
    %5929 = vmatprep.subr.mxu0 0.0
    %5930 = vmatpush1.msra.mxu0 0.0
    %5931 = vmatprep.subr.mxu0 0.0
    %5932 = vmatpush1.msra.mxu0 0.0
    %5933 = vmatprep.subr.mxu0 0.0
    %5934 = vmatpush1.msra.mxu0 0.0
    %5935 = vmatprep.subr.mxu0 0.0
    %5936 = vmatpush1.msra.mxu0 0.0
    %5937 = vmatprep.subr.mxu0 %v5373
    %5938 = vmatpush1.msra.mxu0 %v5370
    %5939 = vmatprep.subr.mxu0 %v5244
    %5940 = vmatpush1.msra.mxu0 %v5243
    %5941 = vmatprep.subr.mxu0 0.0
    %5942 = vmatpush2.msra.mxu0 0.0
    %5943 = vmatprep.subr.mxu0 0.0
    %5944 = vmatpush2.msra.mxu0 0.0
    %5945 = vmatprep.subr.mxu0 0.0
    %5946 = vmatpush2.msra.mxu0 0.0
    %5947 = vmatprep.subr.mxu0 0.0
    %5948 = vmatpush2.msra.mxu0 0.0
    %5949 = vmatprep.subr.mxu0 0.0
    %5950 = vmatpush2.msra.mxu0 0.0
    %5951 = vmatprep.subr.mxu0 0.0
    %5952 = vmatpush2.msra.mxu0 0.0
    %5953 = vmatprep.subr.mxu0 0.0
    %5954 = vmatpush2.msra.mxu0 0.0
    %5955 = vmatprep.subr.mxu0 0.0
    %5956 = vmatpush2.msra.mxu0 0.0
    %5957 = vmatprep.subr.mxu0 0.0
    %5958 = vmatpush2.msra.mxu0 0.0
    %5959 = vmatprep.subr.mxu0 0.0
    %5960 = vmatpush2.msra.mxu0 0.0
    %5961 = vmatprep.subr.mxu0 0.0
    %5962 = vmatpush2.msra.mxu0 0.0
    %5963 = vmatprep.subr.mxu0 0.0
    %5964 = vmatpush2.msra.mxu0 0.0
    %5965 = vmatprep.subr.mxu0 0.0
    %5966 = vmatpush2.msra.mxu0 0.0
    %5967 = vmatprep.subr.mxu0 0.0
    %5968 = vmatpush2.msra.mxu0 0.0
    %5969 = vmatprep.subr.mxu0 0.0
    %5970 = vmatpush2.msra.mxu0 0.0
    %5971 = vmatprep.subr.mxu0 0.0
    %5972 = vmatpush2.msra.mxu0 0.0
    %5973 = vmatprep.mubr.f32.mxu0 0.0
    %5974 = vmatmul.mubr.f32.gmra.mxu0 %v5907
    %v5975 = vpop.f32.mrf.mxu0
    %v5976 = vadd.f32 %v5902, %v5975
    %v5977 = vpop.f32.mrf.mxu0
    %v5978 = vadd.f32 %v5904, %v5977
    %5979 = vdwg.mxu0
    %v5980 = vxor.u32 %v5976, 2147483648
    %v5981 = vxor.u32 %v5978, 2147483648
    %v5982 = vmul.f32 %v5980, 1.442695
    %v5983 = vpow.pop %v5982
    %v5984 = vmul.f32 %v5981, 1.442695
    %v5985 = vpow.pop %v5984
    %v5986 = vadd.f32 %v5983, 1.0
    %v5987 = vadd.f32 %v5985, 1.0
    %v5988 = vrcp.pop %v5986
    %v5989 = vmul.f32 1.0, %v5988
    %v5990 = vrcp.pop %v5987
    %v5991 = vmul.f32 1.0, %v5990
    %v5992 = vmul.f32 %v5989, %v5825
    %v5993 = vtanh.pop %v5978
    %5995 = vrot.lane.b32.xlu0 %v5993, 64
    %v5996 = vpop.permute.xlu0 %5995
    %v5998 = vmul.f32 %v5989, %v5996
    %6000 = vrot.lane.b32.xlu0 %v5998, 64
    %v6001 = vpop.permute.xlu0 %6000
    %v6003 = vadd.f32 %v5992, %v6001
    %v6004 = vtanh.pop %v6003
    %6006 = vrot.lane.b32.xlu0 %v6004, 64
    %v6007 = vpop.permute.xlu0 %6006
    %v6009 = vmul.f32 %v5991, %v6007
    %v6011 = vsel %vm4344, %v6009, 0
    %6013 = vmatprep.subr.mxu0 0.0
    %6014 = vmatpush1.msra.mxu0 0.0
    %6015 = vmatprep.subr.mxu0 0.0
    %6016 = vmatpush1.msra.mxu0 0.0
    %6017 = vmatprep.subr.mxu0 0.0
    %6018 = vmatpush1.msra.mxu0 0.0
    %6019 = vmatprep.subr.mxu0 0.0
    %6020 = vmatpush1.msra.mxu0 0.0
    %6021 = vmatprep.subr.mxu0 0.0
    %6022 = vmatpush1.msra.mxu0 0.0
    %6023 = vmatprep.subr.mxu0 0.0
    %6024 = vmatpush1.msra.mxu0 0.0
    %6025 = vmatprep.subr.mxu0 0.0
    %6026 = vmatpush1.msra.mxu0 0.0
    %6027 = vmatprep.subr.mxu0 0.0
    %6028 = vmatpush1.msra.mxu0 0.0
    %6029 = vmatprep.subr.mxu0 %v5262
    %6030 = vmatpush1.msra.mxu0 %v5261
    %6031 = vmatprep.subr.mxu0 %v5260
    %6032 = vmatpush1.msra.mxu0 %v5259
    %6033 = vmatprep.subr.mxu0 %v5258
    %6034 = vmatpush1.msra.mxu0 %v5257
    %6035 = vmatprep.subr.mxu0 %v5256
    %6036 = vmatpush1.msra.mxu0 %v5255
    %6037 = vmatprep.subr.mxu0 %v5254
    %6038 = vmatpush1.msra.mxu0 %v5253
    %6039 = vmatprep.subr.mxu0 %v5252
    %6040 = vmatpush1.msra.mxu0 %v5251
    %6041 = vmatprep.subr.mxu0 %v5250
    %6042 = vmatpush1.msra.mxu0 %v5249
    %6043 = vmatprep.subr.mxu0 %v5248
    %6044 = vmatpush1.msra.mxu0 %v5247
    %6045 = vmatprep.subr.mxu0 0.0
    %6046 = vmatpush2.msra.mxu0 0.0
    %6047 = vmatprep.subr.mxu0 0.0
    %6048 = vmatpush2.msra.mxu0 0.0
    %6049 = vmatprep.subr.mxu0 0.0
    %6050 = vmatpush2.msra.mxu0 0.0
    %6051 = vmatprep.subr.mxu0 0.0
    %6052 = vmatpush2.msra.mxu0 0.0
    %6053 = vmatprep.subr.mxu0 0.0
    %6054 = vmatpush2.msra.mxu0 0.0
    %6055 = vmatprep.subr.mxu0 0.0
    %6056 = vmatpush2.msra.mxu0 0.0
    %6057 = vmatprep.subr.mxu0 0.0
    %6058 = vmatpush2.msra.mxu0 0.0
    %6059 = vmatprep.subr.mxu0 0.0
    %6060 = vmatpush2.msra.mxu0 0.0
    %6061 = vmatprep.subr.mxu0 0.0
    %6062 = vmatpush2.msra.mxu0 0.0
    %6063 = vmatprep.subr.mxu0 0.0
    %6064 = vmatpush2.msra.mxu0 0.0
    %6065 = vmatprep.subr.mxu0 0.0
    %6066 = vmatpush2.msra.mxu0 0.0
    %6067 = vmatprep.subr.mxu0 0.0
    %6068 = vmatpush2.msra.mxu0 0.0
    %6069 = vmatprep.subr.mxu0 0.0
    %6070 = vmatpush2.msra.mxu0 0.0
    %6071 = vmatprep.subr.mxu0 0.0
    %6072 = vmatpush2.msra.mxu0 0.0
    %6073 = vmatprep.subr.mxu0 0.0
    %6074 = vmatpush2.msra.mxu0 0.0
    %6075 = vmatprep.subr.mxu0 0.0
    %6076 = vmatpush2.msra.mxu0 0.0
    %6077 = vmatprep.mubr.f32.mxu0 0.0
    %6078 = vmatmul.mubr.f32.gmra.mxu0 %v6011
    %v6079 = vpop.f32.mrf.mxu0
    %v6080 = vadd.f32 0.0, %v6079
    %v6081 = vpop.f32.mrf.mxu0
    %v6082 = vadd.f32 0.0, %v6081
    %6083 = vdwg.mxu0
    %v6085 = vsel %vm4419, %v5290, 0
    %6087 = vmatprep.subr.mxu0 0.0
    %6088 = vmatpush1.msra.mxu0 0.0
    %6089 = vmatprep.subr.mxu0 0.0
    %6090 = vmatpush1.msra.mxu0 0.0
    %6091 = vmatprep.subr.mxu0 0.0
    %6092 = vmatpush1.msra.mxu0 0.0
    %6093 = vmatprep.subr.mxu0 0.0
    %6094 = vmatpush1.msra.mxu0 0.0
    %6095 = vmatprep.subr.mxu0 0.0
    %6096 = vmatpush1.msra.mxu0 0.0
    %6097 = vmatprep.subr.mxu0 0.0
    %6098 = vmatpush1.msra.mxu0 0.0
    %6099 = vmatprep.subr.mxu0 0.0
    %6100 = vmatpush1.msra.mxu0 0.0
    %6101 = vmatprep.subr.mxu0 0.0
    %6102 = vmatpush1.msra.mxu0 0.0
    %6103 = vmatprep.subr.mxu0 0.0
    %6104 = vmatpush1.msra.mxu0 0.0
    %6105 = vmatprep.subr.mxu0 0.0
    %6106 = vmatpush1.msra.mxu0 0.0
    %6107 = vmatprep.subr.mxu0 0.0
    %6108 = vmatpush1.msra.mxu0 0.0
    %6109 = vmatprep.subr.mxu0 0.0
    %6110 = vmatpush1.msra.mxu0 0.0
    %6111 = vmatprep.subr.mxu0 0.0
    %6112 = vmatpush1.msra.mxu0 0.0
    %6113 = vmatprep.subr.mxu0 0.0
    %6114 = vmatpush1.msra.mxu0 0.0
    %6115 = vmatprep.subr.mxu0 %v5373
    %6116 = vmatpush1.msra.mxu0 %v5370
    %6117 = vmatprep.subr.mxu0 %v5244
    %6118 = vmatpush1.msra.mxu0 %v5243
    %6119 = vmatprep.subr.mxu0 0.0
    %6120 = vmatpush2.msra.mxu0 0.0
    %6121 = vmatprep.subr.mxu0 0.0
    %6122 = vmatpush2.msra.mxu0 0.0
    %6123 = vmatprep.subr.mxu0 0.0
    %6124 = vmatpush2.msra.mxu0 0.0
    %6125 = vmatprep.subr.mxu0 0.0
    %6126 = vmatpush2.msra.mxu0 0.0
    %6127 = vmatprep.subr.mxu0 0.0
    %6128 = vmatpush2.msra.mxu0 0.0
    %6129 = vmatprep.subr.mxu0 0.0
    %6130 = vmatpush2.msra.mxu0 0.0
    %6131 = vmatprep.subr.mxu0 0.0
    %6132 = vmatpush2.msra.mxu0 0.0
    %6133 = vmatprep.subr.mxu0 0.0
    %6134 = vmatpush2.msra.mxu0 0.0
    %6135 = vmatprep.subr.mxu0 0.0
    %6136 = vmatpush2.msra.mxu0 0.0
    %6137 = vmatprep.subr.mxu0 0.0
    %6138 = vmatpush2.msra.mxu0 0.0
    %6139 = vmatprep.subr.mxu0 0.0
    %6140 = vmatpush2.msra.mxu0 0.0
    %6141 = vmatprep.subr.mxu0 0.0
    %6142 = vmatpush2.msra.mxu0 0.0
    %6143 = vmatprep.subr.mxu0 0.0
    %6144 = vmatpush2.msra.mxu0 0.0
    %6145 = vmatprep.subr.mxu0 0.0
    %6146 = vmatpush2.msra.mxu0 0.0
    %6147 = vmatprep.subr.mxu0 0.0
    %6148 = vmatpush2.msra.mxu0 0.0
    %6149 = vmatprep.subr.mxu0 0.0
    %6150 = vmatpush2.msra.mxu0 0.0
    %6151 = vmatprep.mubr.f32.mxu0 0.0
    %6152 = vmatmul.mubr.f32.gmra.mxu0 %v6085
    %v6153 = vpop.f32.mrf.mxu0
    %v6154 = vadd.f32 %v6080, %v6153
    %v6155 = vpop.f32.mrf.mxu0
    %v6156 = vadd.f32 %v6082, %v6155
    %6157 = vdwg.mxu0
    %v6158 = vxor.u32 %v6154, 2147483648
    %v6159 = vxor.u32 %v6156, 2147483648
    %v6160 = vmul.f32 %v6158, 1.442695
    %v6161 = vpow.pop %v6160
    %v6162 = vmul.f32 %v6159, 1.442695
    %v6163 = vpow.pop %v6162
    %v6164 = vadd.f32 %v6161, 1.0
    %v6165 = vadd.f32 %v6163, 1.0
    %v6166 = vrcp.pop %v6164
    %v6167 = vmul.f32 1.0, %v6166
    %v6168 = vrcp.pop %v6165
    %v6169 = vmul.f32 1.0, %v6168
    %v6170 = vmul.f32 %v6167, %v6003
    %v6171 = vtanh.pop %v6156
    %6173 = vrot.lane.b32.xlu0 %v6171, 64
    %v6174 = vpop.permute.xlu0 %6173
    %v6176 = vmul.f32 %v6167, %v6174
    %6178 = vrot.lane.b32.xlu0 %v6176, 64
    %v6179 = vpop.permute.xlu0 %6178
    %v6181 = vadd.f32 %v6170, %v6179
    %v6182 = vtanh.pop %v6181
    %6184 = vrot.lane.b32.xlu0 %v6182, 64
    %v6185 = vpop.permute.xlu0 %6184
    %v6187 = vmul.f32 %v6169, %v6185
    %v6189 = vsel %vm4344, %v6187, 0
    %6191 = vmatprep.subr.mxu0 0.0
    %6192 = vmatpush1.msra.mxu0 0.0
    %6193 = vmatprep.subr.mxu0 0.0
    %6194 = vmatpush1.msra.mxu0 0.0
    %6195 = vmatprep.subr.mxu0 0.0
    %6196 = vmatpush1.msra.mxu0 0.0
    %6197 = vmatprep.subr.mxu0 0.0
    %6198 = vmatpush1.msra.mxu0 0.0
    %6199 = vmatprep.subr.mxu0 0.0
    %6200 = vmatpush1.msra.mxu0 0.0
    %6201 = vmatprep.subr.mxu0 0.0
    %6202 = vmatpush1.msra.mxu0 0.0
    %6203 = vmatprep.subr.mxu0 0.0
    %6204 = vmatpush1.msra.mxu0 0.0
    %6205 = vmatprep.subr.mxu0 0.0
    %6206 = vmatpush1.msra.mxu0 0.0
    %6207 = vmatprep.subr.mxu0 %v5262
    %6208 = vmatpush1.msra.mxu0 %v5261
    %6209 = vmatprep.subr.mxu0 %v5260
    %6210 = vmatpush1.msra.mxu0 %v5259
    %6211 = vmatprep.subr.mxu0 %v5258
    %6212 = vmatpush1.msra.mxu0 %v5257
    %6213 = vmatprep.subr.mxu0 %v5256
    %6214 = vmatpush1.msra.mxu0 %v5255
    %6215 = vmatprep.subr.mxu0 %v5254
    %6216 = vmatpush1.msra.mxu0 %v5253
    %6217 = vmatprep.subr.mxu0 %v5252
    %6218 = vmatpush1.msra.mxu0 %v5251
    %6219 = vmatprep.subr.mxu0 %v5250
    %6220 = vmatpush1.msra.mxu0 %v5249
    %6221 = vmatprep.subr.mxu0 %v5248
    %6222 = vmatpush1.msra.mxu0 %v5247
    %6223 = vmatprep.subr.mxu0 0.0
    %6224 = vmatpush2.msra.mxu0 0.0
    %6225 = vmatprep.subr.mxu0 0.0
    %6226 = vmatpush2.msra.mxu0 0.0
    %6227 = vmatprep.subr.mxu0 0.0
    %6228 = vmatpush2.msra.mxu0 0.0
    %6229 = vmatprep.subr.mxu0 0.0
    %6230 = vmatpush2.msra.mxu0 0.0
    %6231 = vmatprep.subr.mxu0 0.0
    %6232 = vmatpush2.msra.mxu0 0.0
    %6233 = vmatprep.subr.mxu0 0.0
    %6234 = vmatpush2.msra.mxu0 0.0
    %6235 = vmatprep.subr.mxu0 0.0
    %6236 = vmatpush2.msra.mxu0 0.0
    %6237 = vmatprep.subr.mxu0 0.0
    %6238 = vmatpush2.msra.mxu0 0.0
    %6239 = vmatprep.subr.mxu0 0.0
    %6240 = vmatpush2.msra.mxu0 0.0
    %6241 = vmatprep.subr.mxu0 0.0
    %6242 = vmatpush2.msra.mxu0 0.0
    %6243 = vmatprep.subr.mxu0 0.0
    %6244 = vmatpush2.msra.mxu0 0.0
    %6245 = vmatprep.subr.mxu0 0.0
    %6246 = vmatpush2.msra.mxu0 0.0
    %6247 = vmatprep.subr.mxu0 0.0
    %6248 = vmatpush2.msra.mxu0 0.0
    %6249 = vmatprep.subr.mxu0 0.0
    %6250 = vmatpush2.msra.mxu0 0.0
    %6251 = vmatprep.subr.mxu0 0.0
    %6252 = vmatpush2.msra.mxu0 0.0
    %6253 = vmatprep.subr.mxu0 0.0
    %6254 = vmatpush2.msra.mxu0 0.0
    %6255 = vmatprep.mubr.f32.mxu0 0.0
    %6256 = vmatmul.mubr.f32.gmra.mxu0 %v6189
    %v6257 = vpop.f32.mrf.mxu0
    %v6258 = vadd.f32 0.0, %v6257
    %v6259 = vpop.f32.mrf.mxu0
    %v6260 = vadd.f32 0.0, %v6259
    %6261 = vdwg.mxu0
    %v6263 = vsel %vm4419, %v5294, 0
    %6265 = vmatprep.subr.mxu0 0.0
    %6266 = vmatpush1.msra.mxu0 0.0
    %6267 = vmatprep.subr.mxu0 0.0
    %6268 = vmatpush1.msra.mxu0 0.0
    %6269 = vmatprep.subr.mxu0 0.0
    %6270 = vmatpush1.msra.mxu0 0.0
    %6271 = vmatprep.subr.mxu0 0.0
    %6272 = vmatpush1.msra.mxu0 0.0
    %6273 = vmatprep.subr.mxu0 0.0
    %6274 = vmatpush1.msra.mxu0 0.0
    %6275 = vmatprep.subr.mxu0 0.0
    %6276 = vmatpush1.msra.mxu0 0.0
    %6277 = vmatprep.subr.mxu0 0.0
    %6278 = vmatpush1.msra.mxu0 0.0
    %6279 = vmatprep.subr.mxu0 0.0
    %6280 = vmatpush1.msra.mxu0 0.0
    %6281 = vmatprep.subr.mxu0 0.0
    %6282 = vmatpush1.msra.mxu0 0.0
    %6283 = vmatprep.subr.mxu0 0.0
    %6284 = vmatpush1.msra.mxu0 0.0
    %6285 = vmatprep.subr.mxu0 0.0
    %6286 = vmatpush1.msra.mxu0 0.0
    %6287 = vmatprep.subr.mxu0 0.0
    %6288 = vmatpush1.msra.mxu0 0.0
    %6289 = vmatprep.subr.mxu0 0.0
    %6290 = vmatpush1.msra.mxu0 0.0
    %6291 = vmatprep.subr.mxu0 0.0
    %6292 = vmatpush1.msra.mxu0 0.0
    %6293 = vmatprep.subr.mxu0 %v5373
    %6294 = vmatpush1.msra.mxu0 %v5370
    %6295 = vmatprep.subr.mxu0 %v5244
    %6296 = vmatpush1.msra.mxu0 %v5243
    %6297 = vmatprep.subr.mxu0 0.0
    %6298 = vmatpush2.msra.mxu0 0.0
    %6299 = vmatprep.subr.mxu0 0.0
    %6300 = vmatpush2.msra.mxu0 0.0
    %6301 = vmatprep.subr.mxu0 0.0
    %6302 = vmatpush2.msra.mxu0 0.0
    %6303 = vmatprep.subr.mxu0 0.0
    %6304 = vmatpush2.msra.mxu0 0.0
    %6305 = vmatprep.subr.mxu0 0.0
    %6306 = vmatpush2.msra.mxu0 0.0
    %6307 = vmatprep.subr.mxu0 0.0
    %6308 = vmatpush2.msra.mxu0 0.0
    %6309 = vmatprep.subr.mxu0 0.0
    %6310 = vmatpush2.msra.mxu0 0.0
    %6311 = vmatprep.subr.mxu0 0.0
    %6312 = vmatpush2.msra.mxu0 0.0
    %6313 = vmatprep.subr.mxu0 0.0
    %6314 = vmatpush2.msra.mxu0 0.0
    %6315 = vmatprep.subr.mxu0 0.0
    %6316 = vmatpush2.msra.mxu0 0.0
    %6317 = vmatprep.subr.mxu0 0.0
    %6318 = vmatpush2.msra.mxu0 0.0
    %6319 = vmatprep.subr.mxu0 0.0
    %6320 = vmatpush2.msra.mxu0 0.0
    %6321 = vmatprep.subr.mxu0 0.0
    %6322 = vmatpush2.msra.mxu0 0.0
    %6323 = vmatprep.subr.mxu0 0.0
    %6324 = vmatpush2.msra.mxu0 0.0
    %6325 = vmatprep.subr.mxu0 0.0
    %6326 = vmatpush2.msra.mxu0 0.0
    %6327 = vmatprep.subr.mxu0 0.0
    %6328 = vmatpush2.msra.mxu0 0.0
    %6329 = vmatprep.mubr.f32.mxu0 0.0
    %6330 = vmatmul.mubr.f32.gmra.mxu0 %v6263
    %v6331 = vpop.f32.mrf.mxu0
    %v6332 = vadd.f32 %v6258, %v6331
    %v6333 = vpop.f32.mrf.mxu0
    %v6334 = vadd.f32 %v6260, %v6333
    %6335 = vdwg.mxu0
    %v6336 = vxor.u32 %v6332, 2147483648
    %v6337 = vxor.u32 %v6334, 2147483648
    %v6338 = vmul.f32 %v6336, 1.442695
    %v6339 = vpow.pop %v6338
    %v6340 = vmul.f32 %v6337, 1.442695
    %v6341 = vpow.pop %v6340
    %v6342 = vadd.f32 %v6339, 1.0
    %v6343 = vadd.f32 %v6341, 1.0
    %v6344 = vrcp.pop %v6342
    %v6345 = vmul.f32 1.0, %v6344
    %v6346 = vrcp.pop %v6343
    %v6347 = vmul.f32 1.0, %v6346
    %v6348 = vmul.f32 %v6345, %v6181
    %v6349 = vtanh.pop %v6334
    %6351 = vrot.lane.b32.xlu0 %v6349, 64
    %v6352 = vpop.permute.xlu0 %6351
    %v6354 = vmul.f32 %v6345, %v6352
    %6356 = vrot.lane.b32.xlu0 %v6354, 64
    %v6357 = vpop.permute.xlu0 %6356
    %v6359 = vadd.f32 %v6348, %v6357
    %v6360 = vtanh.pop %v6359
    %6362 = vrot.lane.b32.xlu0 %v6360, 64
    %v6363 = vpop.permute.xlu0 %6362
    %v6365 = vmul.f32 %v6347, %v6363
    %6367 = vrot.lane.b32.xlu0 %v875, 32
    %v6368 = vpop.permute.xlu0 %6367
    %6371 = vrot.lane.b32.xlu0 %v4302, 32
    %v6372 = vpop.permute.xlu0 %6371
    %6374 = vrot.lane.b32.xlu0 %v875, 64
    %v6375 = vpop.permute.xlu0 %6374
    %6377 = vrot.lane.b32.xlu0 %v875, 96
    %v6378 = vpop.permute.xlu0 %6377
    %6381 = vrot.lane.b32.xlu0 %v1598, 32
    %v6382 = vpop.permute.xlu0 %6381
    %6385 = vrot.lane.b32.xlu0 %v876, 32
    %v6386 = vpop.permute.xlu0 %6385
    %6389 = vrot.lane.b32.xlu0 %v6365, 32
    %v6390 = vpop.permute.xlu0 %6389
    %6392 = vrot.lane.b32.xlu0 %v876, 64
    %v6393 = vpop.permute.xlu0 %6392
    %6395 = vrot.lane.b32.xlu0 %v4302, 64
    %v6396 = vpop.permute.xlu0 %6395
    %6398 = vrot.lane.b32.xlu0 %v876, 96
    %v6399 = vpop.permute.xlu0 %6398
    %6401 = vrot.lane.b32.xlu0 %v4302, 96
    %v6402 = vpop.permute.xlu0 %6401
    %vm6404 = vcmask 261120
    %v6405 = vsel %vm6404, %v4302, %v6368
    %v6406 = vsel %vm4344, %v6405, %v6372
    %vm6407 = vcmask 785408
    %v6408 = vsel %vm6407, %v6406, %v6375
    %v6409 = vsel %vm6404, %v1598, %v6378
    %v6410 = vsel %vm4344, %v6409, %v6382
    %v6411 = vsel %vm6407, %v6410, %v875
    %v6412 = vsel %vm6404, %v6365, %v6386
    %v6413 = vsel %vm4344, %v6412, %v6390
    %v6414 = vsel %vm6407, %v6413, %v6393
    %v6415 = vsel %vm6404, %v6396, %v6399
    %v6416 = vsel %vm4344, %v6415, %v6402
    %v6417 = vsel %vm6407, %v6416, %v876
    %6419 = vrot.lane.b32.xlu0 %v877, 32
    %v6420 = vpop.permute.xlu0 %6419
    %6422 = vrot.lane.b32.xlu0 %v877, 64
    %v6423 = vpop.permute.xlu0 %6422
    %6425 = vrot.lane.b32.xlu0 %v877, 96
    %v6426 = vpop.permute.xlu0 %6425
    %6429 = vrot.lane.b32.xlu0 %v5242, 32
    %v6430 = vpop.permute.xlu0 %6429
    %6433 = vrot.lane.b32.xlu0 %v878, 32
    %v6434 = vpop.permute.xlu0 %6433
    %6437 = vrot.lane.b32.xlu0 %v2631, 32
    %v6438 = vpop.permute.xlu0 %6437
    %6440 = vrot.lane.b32.xlu0 %v878, 64
    %v6441 = vpop.permute.xlu0 %6440
    %6443 = vrot.lane.b32.xlu0 %v2631, 64
    %v6444 = vpop.permute.xlu0 %6443
    %6446 = vrot.lane.b32.xlu0 %v878, 96
    %v6447 = vpop.permute.xlu0 %6446
    %6449 = vrot.lane.b32.xlu0 %v2631, 96
    %v6450 = vpop.permute.xlu0 %6449
    %v6452 = vsel %vm6404, %v5242, %v6420
    %v6453 = vsel %vm4344, %v6452, %v1598
    %v6454 = vsel %vm6407, %v6453, %v6423
    %v6455 = vsel %vm6404, %v6382, %v6426
    %v6456 = vsel %vm4344, %v6455, %v6430
    %v6457 = vsel %vm6407, %v6456, %v877
    %v6458 = vsel %vm6404, %v2631, %v6434
    %v6459 = vsel %vm4344, %v6458, %v6438
    %v6460 = vsel %vm6407, %v6459, %v6441
    %v6461 = vsel %vm6404, %v6444, %v6447
    %v6462 = vsel %vm4344, %v6461, %v6450
    %v6463 = vsel %vm6407, %v6462, %v878
    %6464 = vst [vmem:[#allocation22] sm:$0xff] %v6408
    %6465 = vst [vmem:[#allocation22 + $0x8] sm:$0xff] %v6411
    %6466 = vst [vmem:[#allocation22 + $0x10] sm:$0xff] %v6414
    %6467 = vst [vmem:[#allocation22 + $0x18] sm:$0xff] %v6417
    %6468 = vst [vmem:[#allocation22 + $0x20] sm:$0xff] %v6454
    %6469 = vst [vmem:[#allocation22 + $0x28] sm:$0xff] %v6457
    %6470 = vst [vmem:[#allocation22 + $0x30] sm:$0xff] %v6460
    %6471 = vst [vmem:[#allocation22 + $0x38] sm:$0xff] %v6463
    // Predicated region
    $region98: #{tpu_custom_call.1} parent=1 // pred_check
      _
    $region99: #{tpu_custom_call.1} parent=1 // pred_check_branch
      %6473 = sbr.rel (0) target = $region101
    $region100: #{tpu_custom_call.1} parent=1 // pred_region
      %s6475 = ssub.s32 1024, 1024
      %6476 = vsyncadd [#allocation4], %s6475
      %s6478 = sshll.u32 [#allocation22], 4
      %s6479 = int_to_ptr.vmem [resolvable:$true] %s6478
      %6481 = dma.vmem_to_hbm [thread:$0]  %s6479, 1024, %s12, [#allocation4]
    $region101: #{tpu_custom_call.1} parent=1 // pred_fallthru
      _
    // Predicated region
    $region102: #{tpu_custom_call.1} parent=1 // pred_check
      _
    $region103: #{tpu_custom_call.1} parent=1 // pred_check_branch
      %6483 = sbr.rel (0) target = $region105
    $region104: #{tpu_custom_call.1} parent=1 // pred_region
      %6484 = dma.done [#allocation4], 1024
    $region105: #{tpu_custom_call.1} parent=1 // pred_fallthru
      _
    %6485 = vsyncpa [#allocation3], 1
    %6486 = vsyncpa [#allocation6], 1
    %6487 = vsyncpa [#allocation9], 1
    %6488 = vsyncpa [#allocation12], 1
    %6489 = vsyncpa [#allocation15], 1
    %6490 = vsyncpa [#allocation18], 1
    %6491 = vsyncpa [#allocation21], 1
    %6492 = vsyncpa [#allocation4], 1

</llo_original>
